<compile_context>
chip_gen: v6e
topology: v6e:2x2x1
jax: 0.10.0
libtpu: 0.0.40
codegen_flags: <defaults>
</compile_context>

<pallas_src>
import math
import jax
import jax.numpy as jnp
from jax import lax
from jax.experimental import pallas as pl
from jax.experimental.pallas import tpu as pltpu

PAD = 128           # lane-padded feature width used throughout the kernel
TIME_DIM = 32       # sinusoidal embedding dim
NEG_SLOPE = 0.2
BN_EPS = 1e-5
LN_EPS = 1e-5
WDT = jnp.bfloat16  # matmul operand dtype (f32 accumulation)


def _round_up(a, b):
    return ((a + b - 1) // b) * b


def _leaky(x):
    return jnp.where(x >= 0, x, NEG_SLOPE * x)


# ----------------------------- fused kernel -------------------------------- #

def _block(x, w1, wqkv, bqkv, vecs, out_dim):
    """One Block(attn=True): (BN-folded) linear -> lrelu -> +attn -> LayerNorm.

    x:    (BM, PAD) f32, zero in lanes >= in_dim
    w1:   (PAD, PAD) bf16   (BN folded, zero-padded)
    wqkv: (PAD, 3*PAD) bf16 (Q scaled by 1/hidden, zero-padded)
    bqkv: (1, 3*PAD) f32    packed [bq*1/h | bk | bv], zero-padded
    vecs: (8, PAD) f32 rows = [b_folded, ln_g, ln_b, 0...]
    """
    b1 = vecs[0:1, :]
    ln_g = vecs[1:2, :]
    ln_b = vecs[2:3, :]

    # Linear (+ folded BatchNorm) and LeakyReLU.  Padded lanes stay exactly 0.
    h = jnp.dot(x.astype(WDT), w1, preferred_element_type=jnp.float32) + b1
    z = _leaky(h)

    # Fused Q|K|V projection (one MXU push) + packed bias, then static slices.
    qkv = jnp.dot(z.astype(WDT), wqkv, preferred_element_type=jnp.float32) + bqkv
    q = qkv[:, 0:PAD]                      # 1/hidden already folded into Q
    k = qkv[:, PAD:2 * PAD]
    v = qkv[:, 2 * PAD:3 * PAD]

    # Elementwise attention score + softmax over the feature dim (mask pads).
    score = k * q
    if out_dim < PAD:
        lane = lax.broadcasted_iota(jnp.int32, score.shape, 1)
        score = jnp.where(lane < out_dim, score, -1e30)
    score = score - jnp.max(score, axis=-1, keepdims=True)
    e = jnp.exp(score)
    p = e * pl.reciprocal(jnp.sum(e, axis=-1, keepdims=True), approx=True)
    z = z + v * p                          # padded lanes of v*p are 0

    # LayerNorm over the true out_dim lanes: two-pass variance with an exact
    # correction for the (PAD - out_dim) zero lanes (each contributes mean^2).
    inv_n = 1.0 / out_dim
    mean = jnp.sum(z, axis=-1, keepdims=True) * inv_n
    zc = z - mean
    ss = jnp.sum(zc * zc, axis=-1, keepdims=True)
    if out_dim < PAD:
        ss = ss - (PAD - out_dim) * mean * mean
    var = ss * inv_n
    y = zc * lax.rsqrt(var + LN_EPS) * ln_g + ln_b
    return y                               # ln_g/ln_b padded lanes are 0 -> y pads stay 0


def _make_kernel(n_squeeze, out_dims):
    n_blocks = len(out_dims)

    def kernel(x_ref, t_ref, temb_ref, wt_ref, bt_ref,
               w1_ref, wqkv_ref, bqkv_ref, vec_ref, o_ref):
        # --- sinusoidal time embedding: freq table precomputed host-side;
        #     cos(a) == sin(a + pi/2), so a single EUP sin covers both halves.
        freqs = temb_ref[0:1, :]                               # (1, 32)
        phase = temb_ref[1:2, :]                               # (1, 32)
        emb = jnp.sin(t_ref[...] * freqs + phase)              # (BM, 32)

        # --- timeMLP: lrelu(linear(emb)) ---
        time = jnp.dot(emb.astype(WDT), wt_ref[...],
                       preferred_element_type=jnp.float32) + bt_ref[...]
        time = _leaky(time)

        x = x_ref[...] + time                                  # (BM, PAD)

        # --- squeeze path (skip latents live in registers/VMEM) ---
        latents = [x]
        for bi in range(n_squeeze):
            x = _block(x, w1_ref[bi], wqkv_ref[bi], bqkv_ref[bi],
                       vec_ref[bi], out_dims[bi])
            latents.append(x)

        # --- unsqueeze path with fused skip adds ---
        for ui in range(n_blocks - n_squeeze):
            bi = n_squeeze + ui
            x = _block(x, w1_ref[bi], wqkv_ref[bi], bqkv_ref[bi],
                       vec_ref[bi], out_dims[bi])
            x = x + latents[len(latents) - 1 - ui]

        o_ref[...] = x                                         # lane-dense store

    return kernel


# ------------------------------ wrapper ------------------------------------ #

def unet_forward(prep, x, t, *, bm=128):
    """x: (B, nodes[0]) f32, t: (B,) -> (B, nodes[0]) f32."""
    B, in_dim = x.shape
    BM = min(bm, _round_up(B, 8))          # batch-tile rows (v5e-friendly 128 default)
    B_pad = _round_up(B, BM)
    num_tiles = B_pad // BM

    x_pad = jnp.zeros((B_pad, PAD), jnp.float32).at[:B, :in_dim].set(x)
    t_pad = jnp.zeros((B_pad, 1), jnp.float32).at[:B, 0].set(t.astype(jnp.float32))

    nb = len(prep["out_dims"])
    kernel = _make_kernel(prep["n_squeeze"], prep["out_dims"])

    weights = (prep["temb"], prep["wt"], prep["bt"],
               prep["w1"], prep["wqkv"], prep["bqkv"], prep["vec"])
    weight_bytes = sum(int(w.size) * w.dtype.itemsize for w in weights)
    cost = pl.CostEstimate(
        flops=int(2 * B_pad * (TIME_DIM * PAD + nb * PAD * 4 * PAD)),
        transcendentals=int(B_pad * (TIME_DIM + nb * PAD)),
        bytes_accessed=int(weight_bytes + (2 * B_pad * PAD + B_pad) * 4),
    )

    # Activations: blocked (BM, PAD) tiles -> pipelined, lane-dense I/O.
    # Weights: full-shape blocks with constant index_map -> DMA'd once,
    # resident in VMEM across all grid steps (~0.7 MiB total).
    in_specs = [
        pl.BlockSpec((BM, PAD), lambda i: (i, 0)),                      # x
        pl.BlockSpec((BM, 1), lambda i: (i, 0)),                        # t
        pl.BlockSpec((2, TIME_DIM), lambda i: (0, 0)),                  # temb
        pl.BlockSpec((TIME_DIM, PAD), lambda i: (0, 0)),                # wt
        pl.BlockSpec((1, PAD), lambda i: (0, 0)),                       # bt
        pl.BlockSpec((nb, PAD, PAD), lambda i: (0, 0, 0)),              # w1
        pl.BlockSpec((nb, PAD, 3 * PAD), lambda i: (0, 0, 0)),          # wqkv
        pl.BlockSpec((nb, 1, 3 * PAD), lambda i: (0, 0, 0)),            # bqkv
        pl.BlockSpec((nb, 8, PAD), lambda i: (0, 0, 0)),                # vec
    ]
    out_specs = pl.BlockSpec((BM, PAD), lambda i: (i, 0))

    out = pl.pallas_call(
        kernel,
        out_shape=jax.ShapeDtypeStruct((B_pad, PAD), jnp.float32),
        grid=(num_tiles,),
        in_specs=in_specs,
        out_specs=out_specs,
        compiler_params=pltpu.CompilerParams(
            dimension_semantics=("parallel",)),   # 2x on v7x (2 TCs/chip)
        cost_estimate=cost,
    )(x_pad, t_pad, *weights)
    return out[:B, :in_dim]


# ------------------------- parameter preparation --------------------------- #

def prepare_params(raw, nodes):
    """Fold BN + attention scale, fuse QKV, pad to 128 lanes, stack blocks."""
    d0 = nodes[0]
    wt = jnp.zeros((TIME_DIM, PAD), jnp.float32).at[:, :d0].set(raw["time"]["w"])
    bt = jnp.zeros((1, PAD), jnp.float32).at[0, :d0].set(raw["time"]["b"])

    # Host-side sinusoidal frequency table + sin/cos phase offsets (1 row each).
    half = TIME_DIM // 2
    f = jnp.exp(jnp.arange(half, dtype=jnp.float32)
                * (-(math.log(10000.0) / (half - 1))))
    freqs_full = jnp.concatenate([f, f])
    phase = jnp.concatenate([jnp.zeros((half,), jnp.float32),
                             jnp.full((half,), math.pi / 2, jnp.float32)])
    temb = jnp.stack([freqs_full, phase])                     # (2, TIME_DIM)

    blocks = raw["squeeze"] + raw["unsqueeze"]
    out_dims, w1s, wqkvs, bqkvs, vecs = [], [], [], [], []
    for p in blocks:
        in_dim, out_dim = p["w"].shape
        out_dims.append(out_dim)

        # Fold eval-mode BatchNorm into the linear: y = (xW+b - m)*s + beta
        s = p["bn_g"] / jnp.sqrt(p["bn_v"] + BN_EPS)
        w_f = p["w"] * s[None, :]
        b_f = (p["b"] - p["bn_m"]) * s + p["bn_b"]
        w1 = jnp.zeros((PAD, PAD), jnp.float32).at[:in_dim, :out_dim].set(w_f)

        # Fused Q|K|V, with the 1/hidden score scale folded into Q.
        inv_h = 1.0 / out_dim
        wq = p["wq"] * inv_h
        bq = p["bq"] * inv_h
        wqkv = jnp.zeros((PAD, 3 * PAD), jnp.float32)
        wqkv = wqkv.at[:out_dim, 0:out_dim].set(wq)
        wqkv = wqkv.at[:out_dim, PAD:PAD + out_dim].set(p["wk"])
        wqkv = wqkv.at[:out_dim, 2 * PAD:2 * PAD + out_dim].set(p["wv"])

        # Packed Q|K|V bias row (added before slicing in the kernel).
        bqkv = jnp.zeros((1, 3 * PAD), jnp.float32)
        bqkv = bqkv.at[0, 0:out_dim].set(bq)
        bqkv = bqkv.at[0, PAD:PAD + out_dim].set(p["bk"])
        bqkv = bqkv.at[0, 2 * PAD:2 * PAD + out_dim].set(p["bv"])

        # Remaining per-feature vectors of the block in one (8, 128) tile.
        vec = jnp.zeros((8, PAD), jnp.float32)
        vec = vec.at[0, :out_dim].set(b_f)
        vec = vec.at[1, :out_dim].set(p["ln_g"])
        vec = vec.at[2, :out_dim].set(p["ln_b"])

        w1s.append(w1)
        wqkvs.append(wqkv)
        bqkvs.append(bqkv)
        vecs.append(vec)

    return {
        "temb": temb,
        "wt": wt.astype(WDT),
        "bt": bt,
        "w1": jnp.stack(w1s).astype(WDT),       # (n_blocks, 128, 128)
        "wqkv": jnp.stack(wqkvs).astype(WDT),   # (n_blocks, 128, 384)
        "bqkv": jnp.stack(bqkvs),               # (n_blocks, 1, 384) f32
        "vec": jnp.stack(vecs),                 # (n_blocks, 8, 128) f32
        "out_dims": tuple(out_dims),
        "n_squeeze": len(raw["squeeze"]),
    }


# ------------------------- pure-JAX reference ------------------------------- #

def unet_reference(raw, x, t):
    """f32 reference mirroring the PyTorch eval-mode forward exactly."""
    half = TIME_DIM // 2
    freqs = jnp.exp(jnp.arange(half, dtype=jnp.float32)
                    * (-(math.log(10000.0) / (half - 1))))
    args = t.astype(jnp.float32)[:, None] * freqs[None, :]
    emb = jnp.concatenate([jnp.sin(args), jnp.cos(args)], axis=-1)
    time = emb @ raw["time"]["w"] + raw["time"]["b"]
    time = jnp.where(time >= 0, time, NEG_SLOPE * time)
    X = x + time

    def block(p, X):
        h = X @ p["w"] + p["b"]
        h = (h - p["bn_m"]) / jnp.sqrt(p["bn_v"] + BN_EPS) * p["bn_g"] + p["bn_b"]
        z = jnp.where(h >= 0, h, NEG_SLOPE * h)
        q = z @ p["wq"] + p["bq"]
        k = z @ p["wk"] + p["bk"]
        v = z @ p["wv"] + p["bv"]
        hidden = p["wq"].shape[1]
        pr = jax.nn.softmax(k * q / hidden, axis=-1)
        z = z + v * pr
        mean = jnp.mean(z, axis=-1, keepdims=True)
        var = jnp.mean((z - mean) ** 2, axis=-1, keepdims=True)
        return (z - mean) / jnp.sqrt(var + LN_EPS) * p["ln_g"] + p["ln_b"]

    latents = [X]
    for p in raw["squeeze"]:
        X = block(p, X)
        latents.append(X)
    for i, p in enumerate(raw["unsqueeze"]):
        X = block(p, X) + latents[len(latents) - 1 - i]
    return X


# ------------------------------ raw init ------------------------------------ #

def init_linear(key, in_dim, out_dim):
    k1, k2 = jax.random.split(key)
    bound = 1.0 / math.sqrt(in_dim)
    w = jax.random.uniform(k1, (in_dim, out_dim), jnp.float32, -bound, bound)
    b = jax.random.uniform(k2, (out_dim,), jnp.float32, -bound, bound)
    return w, b


def init_block(key, in_dim, out_dim):
    keys = jax.random.split(key, 4)
    w, b = init_linear(keys[0], in_dim, out_dim)
    wq, bq = init_linear(keys[1], out_dim, out_dim)
    wk, bk = init_linear(keys[2], out_dim, out_dim)
    wv, bv = init_linear(keys[3], out_dim, out_dim)
    return dict(
        w=w, b=b,
        bn_g=jnp.ones((out_dim,), jnp.float32),
        bn_b=jnp.zeros((out_dim,), jnp.float32),
        bn_m=jnp.zeros((out_dim,), jnp.float32),
        bn_v=jnp.ones((out_dim,), jnp.float32),
        wq=wq, bq=bq, wk=wk, bk=bk, wv=wv, bv=bv,
        ln_g=jnp.ones((out_dim,), jnp.float32),
        ln_b=jnp.zeros((out_dim,), jnp.float32),
    )


def init_unet(key, nodes):
    n_blocks = 2 * (len(nodes) - 1) + 1
    keys = jax.random.split(key, n_blocks + 1)
    tw, tb = init_linear(keys[0], TIME_DIM, nodes[0])
    params = {"time": {"w": tw, "b": tb}, "squeeze": [], "unsqueeze": []}
    ki = 1
    for i in range(len(nodes) - 1):
        params["squeeze"].append(init_block(keys[ki], nodes[i], nodes[i + 1]))
        ki += 1
    params["unsqueeze"].append(init_block(keys[ki], nodes[-1], nodes[-1]))
    ki += 1
    for i in range(len(nodes) - 1, 0, -1):
        params["unsqueeze"].append(init_block(keys[ki], nodes[i], nodes[i - 1]))
        ki += 1
    return params


# ------------------------------ main ---------------------------------------- #

if __name__ == "__main__":
    nodes = [32, 64, 128]
    batch = 256          # fills the MXU M dim; 2 x 128-row tiles -> parallel grid

    key = jax.random.PRNGKey(0)
    k_param, k_x, k_t = jax.random.split(key, 3)

    raw = init_unet(k_param, nodes)
    prep = prepare_params(raw, nodes)

    x = jax.random.normal(k_x, (batch, nodes[0]), jnp.float32)
    t = jax.random.randint(k_t, (batch,), 0, 1000).astype(jnp.float32)

    out = unet_forward(prep, x, t, bm=128)
    out = jax.block_until_ready(out)

    assert out.shape == (batch, nodes[0]), out.shape
    assert bool(jnp.all(jnp.isfinite(out)))

    # Tolerance check vs. the f32 PyTorch-exact reference (kernel uses bf16
    # matmul operands + approx softmax reciprocal, so a loose bound is used).
    ref = unet_reference(raw, x, t)
    err = float(jnp.max(jnp.abs(out - ref)))
    scale = float(jnp.max(jnp.abs(ref))) + 1e-6
    assert err <= 0.15 * scale, (err, scale)

    print("KERNEL_OK")
</pallas_src>

<mosaic_0001>
module attributes {stable_mosaic.version = 11 : i64} {
  func.func @kernel(%arg0: i32, %arg1: memref<128x128xf32, #tpu.memory_space<vmem>>, %arg2: memref<128x1xf32, #tpu.memory_space<vmem>>, %arg3: memref<2x32xf32, #tpu.memory_space<vmem>>, %arg4: memref<32x128xbf16, #tpu.memory_space<vmem>>, %arg5: memref<1x128xf32, #tpu.memory_space<vmem>>, %arg6: memref<5x128x128xbf16, #tpu.memory_space<vmem>>, %arg7: memref<5x128x384xbf16, #tpu.memory_space<vmem>>, %arg8: memref<5x1x384xf32, #tpu.memory_space<vmem>>, %arg9: memref<5x8x128xf32, #tpu.memory_space<vmem>>, %arg10: memref<128x128xf32, #tpu.memory_space<vmem>>) attributes {dimension_semantics = [#tpu.dimension_semantics<parallel>], iteration_bounds = array<i64: 2>, scalar_prefetch = 0 : i64, scratch_operands = 0 : i64, tpu.core_type = #tpu.core_type<tc>, window_params = [{transform_indices = @transform_0, window_bounds = array<i64: 128, 128>}, {transform_indices = @transform_1, window_bounds = array<i64: 128, 1>}, {pipeline_mode = #tpu.pipeline_mode<synchronous>, transform_indices = @transform_2, window_bounds = array<i64: 2, 32>}, {pipeline_mode = #tpu.pipeline_mode<synchronous>, transform_indices = @transform_3, window_bounds = array<i64: 32, 128>}, {pipeline_mode = #tpu.pipeline_mode<synchronous>, transform_indices = @transform_4, window_bounds = array<i64: 1, 128>}, {pipeline_mode = #tpu.pipeline_mode<synchronous>, transform_indices = @transform_5, window_bounds = array<i64: 5, 128, 128>}, {pipeline_mode = #tpu.pipeline_mode<synchronous>, transform_indices = @transform_6, window_bounds = array<i64: 5, 128, 384>}, {pipeline_mode = #tpu.pipeline_mode<synchronous>, transform_indices = @transform_7, window_bounds = array<i64: 5, 1, 384>}, {pipeline_mode = #tpu.pipeline_mode<synchronous>, transform_indices = @transform_8, window_bounds = array<i64: 5, 8, 128>}, {transform_indices = @transform_9, window_bounds = array<i64: 128, 128>}]} {
    %c0 = arith.constant 0 : index
    %c0_0 = arith.constant 0 : index
    %0 = vector.load %arg3[%c0, %c0_0] : memref<2x32xf32, #tpu.memory_space<vmem>>, vector<1x32xf32>
    %c1 = arith.constant 1 : index
    %c0_1 = arith.constant 0 : index
    %1 = vector.load %arg3[%c1, %c0_1] : memref<2x32xf32, #tpu.memory_space<vmem>>, vector<1x32xf32>
    %c0_2 = arith.constant 0 : index
    %c0_3 = arith.constant 0 : index
    %2 = vector.load %arg2[%c0_2, %c0_3] : memref<128x1xf32, #tpu.memory_space<vmem>>, vector<128x1xf32>
    %3 = vector.broadcast %2 : vector<128x1xf32> to vector<128x32xf32>
    %4 = vector.broadcast %0 : vector<1x32xf32> to vector<128x32xf32>
    %5 = arith.mulf %3, %4 : vector<128x32xf32>
    %6 = vector.broadcast %1 : vector<1x32xf32> to vector<128x32xf32>
    %7 = arith.addf %5, %6 : vector<128x32xf32>
    %8 = math.sin %7 : vector<128x32xf32>
    %9 = arith.truncf %8 : vector<128x32xf32> to vector<128x32xbf16>
    %c0_4 = arith.constant 0 : index
    %c0_5 = arith.constant 0 : index
    %10 = vector.load %arg4[%c0_4, %c0_5] : memref<32x128xbf16, #tpu.memory_space<vmem>>, vector<32x128xbf16>
    %cst = arith.constant dense<0.000000e+00> : vector<128x128xf32>
    %11 = tpu.matmul %9, %10, %cst {dimension_numbers = #tpu.dot_dimension_numbers<[1], [0], [0], [1], [0, 0, 1, 1], [], []>} : vector<128x32xbf16>, vector<32x128xbf16>, vector<128x128xf32> -> vector<128x128xf32>
    %c0_6 = arith.constant 0 : index
    %c0_7 = arith.constant 0 : index
    %12 = vector.load %arg5[%c0_6, %c0_7] : memref<1x128xf32, #tpu.memory_space<vmem>>, vector<1x128xf32>
    %13 = vector.broadcast %12 : vector<1x128xf32> to vector<128x128xf32>
    %14 = arith.addf %11, %13 : vector<128x128xf32>
    %cst_8 = arith.constant 0.000000e+00 : f32
    %15 = vector.broadcast %cst_8 : f32 to vector<128x128xf32>
    %16 = arith.cmpf oge, %14, %15 : vector<128x128xf32>
    %cst_9 = arith.constant 2.000000e-01 : f32
    %17 = vector.broadcast %cst_9 : f32 to vector<128x128xf32>
    %18 = arith.mulf %17, %14 : vector<128x128xf32>
    %19 = arith.select %16, %14, %18 : vector<128x128xi1>, vector<128x128xf32>
    %c0_10 = arith.constant 0 : index
    %c0_11 = arith.constant 0 : index
    %20 = vector.load %arg1[%c0_10, %c0_11] : memref<128x128xf32, #tpu.memory_space<vmem>>, vector<128x128xf32>
    %21 = arith.addf %20, %19 : vector<128x128xf32>
    %c0_12 = arith.constant 0 : index
    %c0_13 = arith.constant 0 : index
    %c0_14 = arith.constant 0 : index
    %22 = vector.load %arg6[%c0_12, %c0_13, %c0_14] : memref<5x128x128xbf16, #tpu.memory_space<vmem>>, vector<1x128x128xbf16>
    %23 = vector.shape_cast %22 : vector<1x128x128xbf16> to vector<128x128xbf16>
    %c0_15 = arith.constant 0 : index
    %c0_16 = arith.constant 0 : index
    %c0_17 = arith.constant 0 : index
    %24 = vector.load %arg7[%c0_15, %c0_16, %c0_17] : memref<5x128x384xbf16, #tpu.memory_space<vmem>>, vector<1x128x384xbf16>
    %25 = vector.shape_cast %24 : vector<1x128x384xbf16> to vector<128x384xbf16>
    %c0_18 = arith.constant 0 : index
    %c0_19 = arith.constant 0 : index
    %c0_20 = arith.constant 0 : index
    %26 = vector.load %arg8[%c0_18, %c0_19, %c0_20] : memref<5x1x384xf32, #tpu.memory_space<vmem>>, vector<1x1x384xf32>
    %27 = vector.shape_cast %26 : vector<1x1x384xf32> to vector<1x384xf32>
    %c0_21 = arith.constant 0 : index
    %c0_22 = arith.constant 0 : index
    %c0_23 = arith.constant 0 : index
    %28 = vector.load %arg9[%c0_21, %c0_22, %c0_23] : memref<5x8x128xf32, #tpu.memory_space<vmem>>, vector<1x8x128xf32>
    %29 = vector.shape_cast %28 : vector<1x8x128xf32> to vector<8x128xf32>
    %30 = vector.extract_strided_slice %29 {offsets = [0, 0], sizes = [1, 128], strides = [1, 1]} : vector<8x128xf32> to vector<1x128xf32>
    %31 = vector.extract_strided_slice %29 {offsets = [1, 0], sizes = [1, 128], strides = [1, 1]} : vector<8x128xf32> to vector<1x128xf32>
    %32 = vector.extract_strided_slice %29 {offsets = [2, 0], sizes = [1, 128], strides = [1, 1]} : vector<8x128xf32> to vector<1x128xf32>
    %33 = arith.truncf %21 : vector<128x128xf32> to vector<128x128xbf16>
    %cst_24 = arith.constant dense<0.000000e+00> : vector<128x128xf32>
    %34 = tpu.matmul %33, %23, %cst_24 {dimension_numbers = #tpu.dot_dimension_numbers<[1], [0], [0], [1], [0, 0, 1, 1], [], []>} : vector<128x128xbf16>, vector<128x128xbf16>, vector<128x128xf32> -> vector<128x128xf32>
    %35 = vector.broadcast %30 : vector<1x128xf32> to vector<128x128xf32>
    %36 = arith.addf %34, %35 : vector<128x128xf32>
    %cst_25 = arith.constant 0.000000e+00 : f32
    %37 = vector.broadcast %cst_25 : f32 to vector<128x128xf32>
    %38 = arith.cmpf oge, %36, %37 : vector<128x128xf32>
    %cst_26 = arith.constant 2.000000e-01 : f32
    %39 = vector.broadcast %cst_26 : f32 to vector<128x128xf32>
    %40 = arith.mulf %39, %36 : vector<128x128xf32>
    %41 = arith.select %38, %36, %40 : vector<128x128xi1>, vector<128x128xf32>
    %42 = arith.truncf %41 : vector<128x128xf32> to vector<128x128xbf16>
    %cst_27 = arith.constant dense<0.000000e+00> : vector<128x384xf32>
    %43 = tpu.matmul %42, %25, %cst_27 {dimension_numbers = #tpu.dot_dimension_numbers<[1], [0], [0], [1], [0, 0, 1, 1], [], []>} : vector<128x128xbf16>, vector<128x384xbf16>, vector<128x384xf32> -> vector<128x384xf32>
    %44 = vector.broadcast %27 : vector<1x384xf32> to vector<128x384xf32>
    %45 = arith.addf %43, %44 : vector<128x384xf32>
    %46 = vector.extract_strided_slice %45 {offsets = [0, 0], sizes = [128, 128], strides = [1, 1]} : vector<128x384xf32> to vector<128x128xf32>
    %47 = vector.extract_strided_slice %45 {offsets = [0, 128], sizes = [128, 128], strides = [1, 1]} : vector<128x384xf32> to vector<128x128xf32>
    %48 = vector.extract_strided_slice %45 {offsets = [0, 256], sizes = [128, 128], strides = [1, 1]} : vector<128x384xf32> to vector<128x128xf32>
    %49 = arith.mulf %47, %46 : vector<128x128xf32>
    %50 = tpu.iota {dimensions = array<i32: 1>} : vector<128x128xi32>
    %c64_i32 = arith.constant 64 : i32
    %51 = vector.broadcast %c64_i32 : i32 to vector<128x128xi32>
    %52 = arith.cmpi slt, %50, %51 : vector<128x128xi32>
    %cst_28 = arith.constant -1.000000e+30 : f32
    %53 = vector.broadcast %cst_28 : f32 to vector<128x128xf32>
    %54 = arith.select %52, %49, %53 : vector<128x128xi1>, vector<128x128xf32>
    %cst_29 = arith.constant dense<0xFF800000> : vector<128xf32>
    %55 = vector.multi_reduction <maximumf>, %54, %cst_29 [1] : vector<128x128xf32> to vector<128xf32>
    %56 = vector.shape_cast %55 : vector<128xf32> to vector<128x1xf32>
    %57 = vector.broadcast %56 : vector<128x1xf32> to vector<128x128xf32>
    %58 = arith.subf %54, %57 : vector<128x128xf32>
    %59 = math.exp %58 : vector<128x128xf32>
    %cst_30 = arith.constant dense<0.000000e+00> : vector<128xf32>
    %60 = vector.multi_reduction <add>, %59, %cst_30 [1] : vector<128x128xf32> to vector<128xf32>
    %61 = vector.shape_cast %60 : vector<128xf32> to vector<128x1xf32>
    %62 = tpu.reciprocal %61 {approx = true} : vector<128x1xf32> -> vector<128x1xf32>
    %63 = vector.broadcast %62 : vector<128x1xf32> to vector<128x128xf32>
    %64 = arith.mulf %59, %63 : vector<128x128xf32>
    %65 = arith.mulf %48, %64 : vector<128x128xf32>
    %66 = arith.addf %41, %65 : vector<128x128xf32>
    %cst_31 = arith.constant dense<0.000000e+00> : vector<128xf32>
    %67 = vector.multi_reduction <add>, %66, %cst_31 [1] : vector<128x128xf32> to vector<128xf32>
    %68 = vector.shape_cast %67 : vector<128xf32> to vector<128x1xf32>
    %cst_32 = arith.constant 1.562500e-02 : f32
    %69 = vector.broadcast %cst_32 : f32 to vector<128x1xf32>
    %70 = arith.mulf %68, %69 : vector<128x1xf32>
    %71 = vector.broadcast %70 : vector<128x1xf32> to vector<128x128xf32>
    %72 = arith.subf %66, %71 : vector<128x128xf32>
    %73 = arith.mulf %72, %72 : vector<128x128xf32>
    %cst_33 = arith.constant dense<0.000000e+00> : vector<128xf32>
    %74 = vector.multi_reduction <add>, %73, %cst_33 [1] : vector<128x128xf32> to vector<128xf32>
    %75 = vector.shape_cast %74 : vector<128xf32> to vector<128x1xf32>
    %cst_34 = arith.constant 6.400000e+01 : f32
    %76 = vector.broadcast %cst_34 : f32 to vector<128x1xf32>
    %77 = arith.mulf %76, %70 : vector<128x1xf32>
    %78 = arith.mulf %77, %70 : vector<128x1xf32>
    %79 = arith.subf %75, %78 : vector<128x1xf32>
    %cst_35 = arith.constant 1.562500e-02 : f32
    %80 = vector.broadcast %cst_35 : f32 to vector<128x1xf32>
    %81 = arith.mulf %79, %80 : vector<128x1xf32>
    %cst_36 = arith.constant 9.99999974E-6 : f32
    %82 = vector.broadcast %cst_36 : f32 to vector<128x1xf32>
    %83 = arith.addf %81, %82 : vector<128x1xf32>
    %84 = math.rsqrt %83 : vector<128x1xf32>
    %85 = vector.broadcast %84 : vector<128x1xf32> to vector<128x128xf32>
    %86 = arith.mulf %72, %85 : vector<128x128xf32>
    %87 = vector.broadcast %31 : vector<1x128xf32> to vector<128x128xf32>
    %88 = arith.mulf %86, %87 : vector<128x128xf32>
    %89 = vector.broadcast %32 : vector<1x128xf32> to vector<128x128xf32>
    %90 = arith.addf %88, %89 : vector<128x128xf32>
    %c1_37 = arith.constant 1 : index
    %c0_38 = arith.constant 0 : index
    %c0_39 = arith.constant 0 : index
    %91 = vector.load %arg6[%c1_37, %c0_38, %c0_39] : memref<5x128x128xbf16, #tpu.memory_space<vmem>>, vector<1x128x128xbf16>
    %92 = vector.shape_cast %91 : vector<1x128x128xbf16> to vector<128x128xbf16>
    %c1_40 = arith.constant 1 : index
    %c0_41 = arith.constant 0 : index
    %c0_42 = arith.constant 0 : index
    %93 = vector.load %arg7[%c1_40, %c0_41, %c0_42] : memref<5x128x384xbf16, #tpu.memory_space<vmem>>, vector<1x128x384xbf16>
    %94 = vector.shape_cast %93 : vector<1x128x384xbf16> to vector<128x384xbf16>
    %c1_43 = arith.constant 1 : index
    %c0_44 = arith.constant 0 : index
    %c0_45 = arith.constant 0 : index
    %95 = vector.load %arg8[%c1_43, %c0_44, %c0_45] : memref<5x1x384xf32, #tpu.memory_space<vmem>>, vector<1x1x384xf32>
    %96 = vector.shape_cast %95 : vector<1x1x384xf32> to vector<1x384xf32>
    %c1_46 = arith.constant 1 : index
    %c0_47 = arith.constant 0 : index
    %c0_48 = arith.constant 0 : index
    %97 = vector.load %arg9[%c1_46, %c0_47, %c0_48] : memref<5x8x128xf32, #tpu.memory_space<vmem>>, vector<1x8x128xf32>
    %98 = vector.shape_cast %97 : vector<1x8x128xf32> to vector<8x128xf32>
    %99 = vector.extract_strided_slice %98 {offsets = [0, 0], sizes = [1, 128], strides = [1, 1]} : vector<8x128xf32> to vector<1x128xf32>
    %100 = vector.extract_strided_slice %98 {offsets = [1, 0], sizes = [1, 128], strides = [1, 1]} : vector<8x128xf32> to vector<1x128xf32>
    %101 = vector.extract_strided_slice %98 {offsets = [2, 0], sizes = [1, 128], strides = [1, 1]} : vector<8x128xf32> to vector<1x128xf32>
    %102 = arith.truncf %90 : vector<128x128xf32> to vector<128x128xbf16>
    %cst_49 = arith.constant dense<0.000000e+00> : vector<128x128xf32>
    %103 = tpu.matmul %102, %92, %cst_49 {dimension_numbers = #tpu.dot_dimension_numbers<[1], [0], [0], [1], [0, 0, 1, 1], [], []>} : vector<128x128xbf16>, vector<128x128xbf16>, vector<128x128xf32> -> vector<128x128xf32>
    %104 = vector.broadcast %99 : vector<1x128xf32> to vector<128x128xf32>
    %105 = arith.addf %103, %104 : vector<128x128xf32>
    %cst_50 = arith.constant 0.000000e+00 : f32
    %106 = vector.broadcast %cst_50 : f32 to vector<128x128xf32>
    %107 = arith.cmpf oge, %105, %106 : vector<128x128xf32>
    %cst_51 = arith.constant 2.000000e-01 : f32
    %108 = vector.broadcast %cst_51 : f32 to vector<128x128xf32>
    %109 = arith.mulf %108, %105 : vector<128x128xf32>
    %110 = arith.select %107, %105, %109 : vector<128x128xi1>, vector<128x128xf32>
    %111 = arith.truncf %110 : vector<128x128xf32> to vector<128x128xbf16>
    %cst_52 = arith.constant dense<0.000000e+00> : vector<128x384xf32>
    %112 = tpu.matmul %111, %94, %cst_52 {dimension_numbers = #tpu.dot_dimension_numbers<[1], [0], [0], [1], [0, 0, 1, 1], [], []>} : vector<128x128xbf16>, vector<128x384xbf16>, vector<128x384xf32> -> vector<128x384xf32>
    %113 = vector.broadcast %96 : vector<1x384xf32> to vector<128x384xf32>
    %114 = arith.addf %112, %113 : vector<128x384xf32>
    %115 = vector.extract_strided_slice %114 {offsets = [0, 0], sizes = [128, 128], strides = [1, 1]} : vector<128x384xf32> to vector<128x128xf32>
    %116 = vector.extract_strided_slice %114 {offsets = [0, 128], sizes = [128, 128], strides = [1, 1]} : vector<128x384xf32> to vector<128x128xf32>
    %117 = vector.extract_strided_slice %114 {offsets = [0, 256], sizes = [128, 128], strides = [1, 1]} : vector<128x384xf32> to vector<128x128xf32>
    %118 = arith.mulf %116, %115 : vector<128x128xf32>
    %cst_53 = arith.constant dense<0xFF800000> : vector<128xf32>
    %119 = vector.multi_reduction <maximumf>, %118, %cst_53 [1] : vector<128x128xf32> to vector<128xf32>
    %120 = vector.shape_cast %119 : vector<128xf32> to vector<128x1xf32>
    %121 = vector.broadcast %120 : vector<128x1xf32> to vector<128x128xf32>
    %122 = arith.subf %118, %121 : vector<128x128xf32>
    %123 = math.exp %122 : vector<128x128xf32>
    %cst_54 = arith.constant dense<0.000000e+00> : vector<128xf32>
    %124 = vector.multi_reduction <add>, %123, %cst_54 [1] : vector<128x128xf32> to vector<128xf32>
    %125 = vector.shape_cast %124 : vector<128xf32> to vector<128x1xf32>
    %126 = tpu.reciprocal %125 {approx = true} : vector<128x1xf32> -> vector<128x1xf32>
    %127 = vector.broadcast %126 : vector<128x1xf32> to vector<128x128xf32>
    %128 = arith.mulf %123, %127 : vector<128x128xf32>
    %129 = arith.mulf %117, %128 : vector<128x128xf32>
    %130 = arith.addf %110, %129 : vector<128x128xf32>
    %cst_55 = arith.constant dense<0.000000e+00> : vector<128xf32>
    %131 = vector.multi_reduction <add>, %130, %cst_55 [1] : vector<128x128xf32> to vector<128xf32>
    %132 = vector.shape_cast %131 : vector<128xf32> to vector<128x1xf32>
    %cst_56 = arith.constant 7.812500e-03 : f32
    %133 = vector.broadcast %cst_56 : f32 to vector<128x1xf32>
    %134 = arith.mulf %132, %133 : vector<128x1xf32>
    %135 = vector.broadcast %134 : vector<128x1xf32> to vector<128x128xf32>
    %136 = arith.subf %130, %135 : vector<128x128xf32>
    %137 = arith.mulf %136, %136 : vector<128x128xf32>
    %cst_57 = arith.constant dense<0.000000e+00> : vector<128xf32>
    %138 = vector.multi_reduction <add>, %137, %cst_57 [1] : vector<128x128xf32> to vector<128xf32>
    %139 = vector.shape_cast %138 : vector<128xf32> to vector<128x1xf32>
    %cst_58 = arith.constant 7.812500e-03 : f32
    %140 = vector.broadcast %cst_58 : f32 to vector<128x1xf32>
    %141 = arith.mulf %139, %140 : vector<128x1xf32>
    %cst_59 = arith.constant 9.99999974E-6 : f32
    %142 = vector.broadcast %cst_59 : f32 to vector<128x1xf32>
    %143 = arith.addf %141, %142 : vector<128x1xf32>
    %144 = math.rsqrt %143 : vector<128x1xf32>
    %145 = vector.broadcast %144 : vector<128x1xf32> to vector<128x128xf32>
    %146 = arith.mulf %136, %145 : vector<128x128xf32>
    %147 = vector.broadcast %100 : vector<1x128xf32> to vector<128x128xf32>
    %148 = arith.mulf %146, %147 : vector<128x128xf32>
    %149 = vector.broadcast %101 : vector<1x128xf32> to vector<128x128xf32>
    %150 = arith.addf %148, %149 : vector<128x128xf32>
    %c2 = arith.constant 2 : index
    %c0_60 = arith.constant 0 : index
    %c0_61 = arith.constant 0 : index
    %151 = vector.load %arg6[%c2, %c0_60, %c0_61] : memref<5x128x128xbf16, #tpu.memory_space<vmem>>, vector<1x128x128xbf16>
    %152 = vector.shape_cast %151 : vector<1x128x128xbf16> to vector<128x128xbf16>
    %c2_62 = arith.constant 2 : index
    %c0_63 = arith.constant 0 : index
    %c0_64 = arith.constant 0 : index
    %153 = vector.load %arg7[%c2_62, %c0_63, %c0_64] : memref<5x128x384xbf16, #tpu.memory_space<vmem>>, vector<1x128x384xbf16>
    %154 = vector.shape_cast %153 : vector<1x128x384xbf16> to vector<128x384xbf16>
    %c2_65 = arith.constant 2 : index
    %c0_66 = arith.constant 0 : index
    %c0_67 = arith.constant 0 : index
    %155 = vector.load %arg8[%c2_65, %c0_66, %c0_67] : memref<5x1x384xf32, #tpu.memory_space<vmem>>, vector<1x1x384xf32>
    %156 = vector.shape_cast %155 : vector<1x1x384xf32> to vector<1x384xf32>
    %c2_68 = arith.constant 2 : index
    %c0_69 = arith.constant 0 : index
    %c0_70 = arith.constant 0 : index
    %157 = vector.load %arg9[%c2_68, %c0_69, %c0_70] : memref<5x8x128xf32, #tpu.memory_space<vmem>>, vector<1x8x128xf32>
    %158 = vector.shape_cast %157 : vector<1x8x128xf32> to vector<8x128xf32>
    %159 = vector.extract_strided_slice %158 {offsets = [0, 0], sizes = [1, 128], strides = [1, 1]} : vector<8x128xf32> to vector<1x128xf32>
    %160 = vector.extract_strided_slice %158 {offsets = [1, 0], sizes = [1, 128], strides = [1, 1]} : vector<8x128xf32> to vector<1x128xf32>
    %161 = vector.extract_strided_slice %158 {offsets = [2, 0], sizes = [1, 128], strides = [1, 1]} : vector<8x128xf32> to vector<1x128xf32>
    %162 = arith.truncf %150 : vector<128x128xf32> to vector<128x128xbf16>
    %cst_71 = arith.constant dense<0.000000e+00> : vector<128x128xf32>
    %163 = tpu.matmul %162, %152, %cst_71 {dimension_numbers = #tpu.dot_dimension_numbers<[1], [0], [0], [1], [0, 0, 1, 1], [], []>} : vector<128x128xbf16>, vector<128x128xbf16>, vector<128x128xf32> -> vector<128x128xf32>
    %164 = vector.broadcast %159 : vector<1x128xf32> to vector<128x128xf32>
    %165 = arith.addf %163, %164 : vector<128x128xf32>
    %cst_72 = arith.constant 0.000000e+00 : f32
    %166 = vector.broadcast %cst_72 : f32 to vector<128x128xf32>
    %167 = arith.cmpf oge, %165, %166 : vector<128x128xf32>
    %cst_73 = arith.constant 2.000000e-01 : f32
    %168 = vector.broadcast %cst_73 : f32 to vector<128x128xf32>
    %169 = arith.mulf %168, %165 : vector<128x128xf32>
    %170 = arith.select %167, %165, %169 : vector<128x128xi1>, vector<128x128xf32>
    %171 = arith.truncf %170 : vector<128x128xf32> to vector<128x128xbf16>
    %cst_74 = arith.constant dense<0.000000e+00> : vector<128x384xf32>
    %172 = tpu.matmul %171, %154, %cst_74 {dimension_numbers = #tpu.dot_dimension_numbers<[1], [0], [0], [1], [0, 0, 1, 1], [], []>} : vector<128x128xbf16>, vector<128x384xbf16>, vector<128x384xf32> -> vector<128x384xf32>
    %173 = vector.broadcast %156 : vector<1x384xf32> to vector<128x384xf32>
    %174 = arith.addf %172, %173 : vector<128x384xf32>
    %175 = vector.extract_strided_slice %174 {offsets = [0, 0], sizes = [128, 128], strides = [1, 1]} : vector<128x384xf32> to vector<128x128xf32>
    %176 = vector.extract_strided_slice %174 {offsets = [0, 128], sizes = [128, 128], strides = [1, 1]} : vector<128x384xf32> to vector<128x128xf32>
    %177 = vector.extract_strided_slice %174 {offsets = [0, 256], sizes = [128, 128], strides = [1, 1]} : vector<128x384xf32> to vector<128x128xf32>
    %178 = arith.mulf %176, %175 : vector<128x128xf32>
    %cst_75 = arith.constant dense<0xFF800000> : vector<128xf32>
    %179 = vector.multi_reduction <maximumf>, %178, %cst_75 [1] : vector<128x128xf32> to vector<128xf32>
    %180 = vector.shape_cast %179 : vector<128xf32> to vector<128x1xf32>
    %181 = vector.broadcast %180 : vector<128x1xf32> to vector<128x128xf32>
    %182 = arith.subf %178, %181 : vector<128x128xf32>
    %183 = math.exp %182 : vector<128x128xf32>
    %cst_76 = arith.constant dense<0.000000e+00> : vector<128xf32>
    %184 = vector.multi_reduction <add>, %183, %cst_76 [1] : vector<128x128xf32> to vector<128xf32>
    %185 = vector.shape_cast %184 : vector<128xf32> to vector<128x1xf32>
    %186 = tpu.reciprocal %185 {approx = true} : vector<128x1xf32> -> vector<128x1xf32>
    %187 = vector.broadcast %186 : vector<128x1xf32> to vector<128x128xf32>
    %188 = arith.mulf %183, %187 : vector<128x128xf32>
    %189 = arith.mulf %177, %188 : vector<128x128xf32>
    %190 = arith.addf %170, %189 : vector<128x128xf32>
    %cst_77 = arith.constant dense<0.000000e+00> : vector<128xf32>
    %191 = vector.multi_reduction <add>, %190, %cst_77 [1] : vector<128x128xf32> to vector<128xf32>
    %192 = vector.shape_cast %191 : vector<128xf32> to vector<128x1xf32>
    %cst_78 = arith.constant 7.812500e-03 : f32
    %193 = vector.broadcast %cst_78 : f32 to vector<128x1xf32>
    %194 = arith.mulf %192, %193 : vector<128x1xf32>
    %195 = vector.broadcast %194 : vector<128x1xf32> to vector<128x128xf32>
    %196 = arith.subf %190, %195 : vector<128x128xf32>
    %197 = arith.mulf %196, %196 : vector<128x128xf32>
    %cst_79 = arith.constant dense<0.000000e+00> : vector<128xf32>
    %198 = vector.multi_reduction <add>, %197, %cst_79 [1] : vector<128x128xf32> to vector<128xf32>
    %199 = vector.shape_cast %198 : vector<128xf32> to vector<128x1xf32>
    %cst_80 = arith.constant 7.812500e-03 : f32
    %200 = vector.broadcast %cst_80 : f32 to vector<128x1xf32>
    %201 = arith.mulf %199, %200 : vector<128x1xf32>
    %cst_81 = arith.constant 9.99999974E-6 : f32
    %202 = vector.broadcast %cst_81 : f32 to vector<128x1xf32>
    %203 = arith.addf %201, %202 : vector<128x1xf32>
    %204 = math.rsqrt %203 : vector<128x1xf32>
    %205 = vector.broadcast %204 : vector<128x1xf32> to vector<128x128xf32>
    %206 = arith.mulf %196, %205 : vector<128x128xf32>
    %207 = vector.broadcast %160 : vector<1x128xf32> to vector<128x128xf32>
    %208 = arith.mulf %206, %207 : vector<128x128xf32>
    %209 = vector.broadcast %161 : vector<1x128xf32> to vector<128x128xf32>
    %210 = arith.addf %208, %209 : vector<128x128xf32>
    %211 = arith.addf %210, %150 : vector<128x128xf32>
    %c3 = arith.constant 3 : index
    %c0_82 = arith.constant 0 : index
    %c0_83 = arith.constant 0 : index
    %212 = vector.load %arg6[%c3, %c0_82, %c0_83] : memref<5x128x128xbf16, #tpu.memory_space<vmem>>, vector<1x128x128xbf16>
    %213 = vector.shape_cast %212 : vector<1x128x128xbf16> to vector<128x128xbf16>
    %c3_84 = arith.constant 3 : index
    %c0_85 = arith.constant 0 : index
    %c0_86 = arith.constant 0 : index
    %214 = vector.load %arg7[%c3_84, %c0_85, %c0_86] : memref<5x128x384xbf16, #tpu.memory_space<vmem>>, vector<1x128x384xbf16>
    %215 = vector.shape_cast %214 : vector<1x128x384xbf16> to vector<128x384xbf16>
    %c3_87 = arith.constant 3 : index
    %c0_88 = arith.constant 0 : index
    %c0_89 = arith.constant 0 : index
    %216 = vector.load %arg8[%c3_87, %c0_88, %c0_89] : memref<5x1x384xf32, #tpu.memory_space<vmem>>, vector<1x1x384xf32>
    %217 = vector.shape_cast %216 : vector<1x1x384xf32> to vector<1x384xf32>
    %c3_90 = arith.constant 3 : index
    %c0_91 = arith.constant 0 : index
    %c0_92 = arith.constant 0 : index
    %218 = vector.load %arg9[%c3_90, %c0_91, %c0_92] : memref<5x8x128xf32, #tpu.memory_space<vmem>>, vector<1x8x128xf32>
    %219 = vector.shape_cast %218 : vector<1x8x128xf32> to vector<8x128xf32>
    %220 = vector.extract_strided_slice %219 {offsets = [0, 0], sizes = [1, 128], strides = [1, 1]} : vector<8x128xf32> to vector<1x128xf32>
    %221 = vector.extract_strided_slice %219 {offsets = [1, 0], sizes = [1, 128], strides = [1, 1]} : vector<8x128xf32> to vector<1x128xf32>
    %222 = vector.extract_strided_slice %219 {offsets = [2, 0], sizes = [1, 128], strides = [1, 1]} : vector<8x128xf32> to vector<1x128xf32>
    %223 = arith.truncf %211 : vector<128x128xf32> to vector<128x128xbf16>
    %cst_93 = arith.constant dense<0.000000e+00> : vector<128x128xf32>
    %224 = tpu.matmul %223, %213, %cst_93 {dimension_numbers = #tpu.dot_dimension_numbers<[1], [0], [0], [1], [0, 0, 1, 1], [], []>} : vector<128x128xbf16>, vector<128x128xbf16>, vector<128x128xf32> -> vector<128x128xf32>
    %225 = vector.broadcast %220 : vector<1x128xf32> to vector<128x128xf32>
    %226 = arith.addf %224, %225 : vector<128x128xf32>
    %cst_94 = arith.constant 0.000000e+00 : f32
    %227 = vector.broadcast %cst_94 : f32 to vector<128x128xf32>
    %228 = arith.cmpf oge, %226, %227 : vector<128x128xf32>
    %cst_95 = arith.constant 2.000000e-01 : f32
    %229 = vector.broadcast %cst_95 : f32 to vector<128x128xf32>
    %230 = arith.mulf %229, %226 : vector<128x128xf32>
    %231 = arith.select %228, %226, %230 : vector<128x128xi1>, vector<128x128xf32>
    %232 = arith.truncf %231 : vector<128x128xf32> to vector<128x128xbf16>
    %cst_96 = arith.constant dense<0.000000e+00> : vector<128x384xf32>
    %233 = tpu.matmul %232, %215, %cst_96 {dimension_numbers = #tpu.dot_dimension_numbers<[1], [0], [0], [1], [0, 0, 1, 1], [], []>} : vector<128x128xbf16>, vector<128x384xbf16>, vector<128x384xf32> -> vector<128x384xf32>
    %234 = vector.broadcast %217 : vector<1x384xf32> to vector<128x384xf32>
    %235 = arith.addf %233, %234 : vector<128x384xf32>
    %236 = vector.extract_strided_slice %235 {offsets = [0, 0], sizes = [128, 128], strides = [1, 1]} : vector<128x384xf32> to vector<128x128xf32>
    %237 = vector.extract_strided_slice %235 {offsets = [0, 128], sizes = [128, 128], strides = [1, 1]} : vector<128x384xf32> to vector<128x128xf32>
    %238 = vector.extract_strided_slice %235 {offsets = [0, 256], sizes = [128, 128], strides = [1, 1]} : vector<128x384xf32> to vector<128x128xf32>
    %239 = arith.mulf %237, %236 : vector<128x128xf32>
    %240 = tpu.iota {dimensions = array<i32: 1>} : vector<128x128xi32>
    %c64_i32_97 = arith.constant 64 : i32
    %241 = vector.broadcast %c64_i32_97 : i32 to vector<128x128xi32>
    %242 = arith.cmpi slt, %240, %241 : vector<128x128xi32>
    %cst_98 = arith.constant -1.000000e+30 : f32
    %243 = vector.broadcast %cst_98 : f32 to vector<128x128xf32>
    %244 = arith.select %242, %239, %243 : vector<128x128xi1>, vector<128x128xf32>
    %cst_99 = arith.constant dense<0xFF800000> : vector<128xf32>
    %245 = vector.multi_reduction <maximumf>, %244, %cst_99 [1] : vector<128x128xf32> to vector<128xf32>
    %246 = vector.shape_cast %245 : vector<128xf32> to vector<128x1xf32>
    %247 = vector.broadcast %246 : vector<128x1xf32> to vector<128x128xf32>
    %248 = arith.subf %244, %247 : vector<128x128xf32>
    %249 = math.exp %248 : vector<128x128xf32>
    %cst_100 = arith.constant dense<0.000000e+00> : vector<128xf32>
    %250 = vector.multi_reduction <add>, %249, %cst_100 [1] : vector<128x128xf32> to vector<128xf32>
    %251 = vector.shape_cast %250 : vector<128xf32> to vector<128x1xf32>
    %252 = tpu.reciprocal %251 {approx = true} : vector<128x1xf32> -> vector<128x1xf32>
    %253 = vector.broadcast %252 : vector<128x1xf32> to vector<128x128xf32>
    %254 = arith.mulf %249, %253 : vector<128x128xf32>
    %255 = arith.mulf %238, %254 : vector<128x128xf32>
    %256 = arith.addf %231, %255 : vector<128x128xf32>
    %cst_101 = arith.constant dense<0.000000e+00> : vector<128xf32>
    %257 = vector.multi_reduction <add>, %256, %cst_101 [1] : vector<128x128xf32> to vector<128xf32>
    %258 = vector.shape_cast %257 : vector<128xf32> to vector<128x1xf32>
    %cst_102 = arith.constant 1.562500e-02 : f32
    %259 = vector.broadcast %cst_102 : f32 to vector<128x1xf32>
    %260 = arith.mulf %258, %259 : vector<128x1xf32>
    %261 = vector.broadcast %260 : vector<128x1xf32> to vector<128x128xf32>
    %262 = arith.subf %256, %261 : vector<128x128xf32>
    %263 = arith.mulf %262, %262 : vector<128x128xf32>
    %cst_103 = arith.constant dense<0.000000e+00> : vector<128xf32>
    %264 = vector.multi_reduction <add>, %263, %cst_103 [1] : vector<128x128xf32> to vector<128xf32>
    %265 = vector.shape_cast %264 : vector<128xf32> to vector<128x1xf32>
    %cst_104 = arith.constant 6.400000e+01 : f32
    %266 = vector.broadcast %cst_104 : f32 to vector<128x1xf32>
    %267 = arith.mulf %266, %260 : vector<128x1xf32>
    %268 = arith.mulf %267, %260 : vector<128x1xf32>
    %269 = arith.subf %265, %268 : vector<128x1xf32>
    %cst_105 = arith.constant 1.562500e-02 : f32
    %270 = vector.broadcast %cst_105 : f32 to vector<128x1xf32>
    %271 = arith.mulf %269, %270 : vector<128x1xf32>
    %cst_106 = arith.constant 9.99999974E-6 : f32
    %272 = vector.broadcast %cst_106 : f32 to vector<128x1xf32>
    %273 = arith.addf %271, %272 : vector<128x1xf32>
    %274 = math.rsqrt %273 : vector<128x1xf32>
    %275 = vector.broadcast %274 : vector<128x1xf32> to vector<128x128xf32>
    %276 = arith.mulf %262, %275 : vector<128x128xf32>
    %277 = vector.broadcast %221 : vector<1x128xf32> to vector<128x128xf32>
    %278 = arith.mulf %276, %277 : vector<128x128xf32>
    %279 = vector.broadcast %222 : vector<1x128xf32> to vector<128x128xf32>
    %280 = arith.addf %278, %279 : vector<128x128xf32>
    %281 = arith.addf %280, %90 : vector<128x128xf32>
    %c4 = arith.constant 4 : index
    %c0_107 = arith.constant 0 : index
    %c0_108 = arith.constant 0 : index
    %282 = vector.load %arg6[%c4, %c0_107, %c0_108] : memref<5x128x128xbf16, #tpu.memory_space<vmem>>, vector<1x128x128xbf16>
    %283 = vector.shape_cast %282 : vector<1x128x128xbf16> to vector<128x128xbf16>
    %c4_109 = arith.constant 4 : index
    %c0_110 = arith.constant 0 : index
    %c0_111 = arith.constant 0 : index
    %284 = vector.load %arg7[%c4_109, %c0_110, %c0_111] : memref<5x128x384xbf16, #tpu.memory_space<vmem>>, vector<1x128x384xbf16>
    %285 = vector.shape_cast %284 : vector<1x128x384xbf16> to vector<128x384xbf16>
    %c4_112 = arith.constant 4 : index
    %c0_113 = arith.constant 0 : index
    %c0_114 = arith.constant 0 : index
    %286 = vector.load %arg8[%c4_112, %c0_113, %c0_114] : memref<5x1x384xf32, #tpu.memory_space<vmem>>, vector<1x1x384xf32>
    %287 = vector.shape_cast %286 : vector<1x1x384xf32> to vector<1x384xf32>
    %c4_115 = arith.constant 4 : index
    %c0_116 = arith.constant 0 : index
    %c0_117 = arith.constant 0 : index
    %288 = vector.load %arg9[%c4_115, %c0_116, %c0_117] : memref<5x8x128xf32, #tpu.memory_space<vmem>>, vector<1x8x128xf32>
    %289 = vector.shape_cast %288 : vector<1x8x128xf32> to vector<8x128xf32>
    %290 = vector.extract_strided_slice %289 {offsets = [0, 0], sizes = [1, 128], strides = [1, 1]} : vector<8x128xf32> to vector<1x128xf32>
    %291 = vector.extract_strided_slice %289 {offsets = [1, 0], sizes = [1, 128], strides = [1, 1]} : vector<8x128xf32> to vector<1x128xf32>
    %292 = vector.extract_strided_slice %289 {offsets = [2, 0], sizes = [1, 128], strides = [1, 1]} : vector<8x128xf32> to vector<1x128xf32>
    %293 = arith.truncf %281 : vector<128x128xf32> to vector<128x128xbf16>
    %cst_118 = arith.constant dense<0.000000e+00> : vector<128x128xf32>
    %294 = tpu.matmul %293, %283, %cst_118 {dimension_numbers = #tpu.dot_dimension_numbers<[1], [0], [0], [1], [0, 0, 1, 1], [], []>} : vector<128x128xbf16>, vector<128x128xbf16>, vector<128x128xf32> -> vector<128x128xf32>
    %295 = vector.broadcast %290 : vector<1x128xf32> to vector<128x128xf32>
    %296 = arith.addf %294, %295 : vector<128x128xf32>
    %cst_119 = arith.constant 0.000000e+00 : f32
    %297 = vector.broadcast %cst_119 : f32 to vector<128x128xf32>
    %298 = arith.cmpf oge, %296, %297 : vector<128x128xf32>
    %cst_120 = arith.constant 2.000000e-01 : f32
    %299 = vector.broadcast %cst_120 : f32 to vector<128x128xf32>
    %300 = arith.mulf %299, %296 : vector<128x128xf32>
    %301 = arith.select %298, %296, %300 : vector<128x128xi1>, vector<128x128xf32>
    %302 = arith.truncf %301 : vector<128x128xf32> to vector<128x128xbf16>
    %cst_121 = arith.constant dense<0.000000e+00> : vector<128x384xf32>
    %303 = tpu.matmul %302, %285, %cst_121 {dimension_numbers = #tpu.dot_dimension_numbers<[1], [0], [0], [1], [0, 0, 1, 1], [], []>} : vector<128x128xbf16>, vector<128x384xbf16>, vector<128x384xf32> -> vector<128x384xf32>
    %304 = vector.broadcast %287 : vector<1x384xf32> to vector<128x384xf32>
    %305 = arith.addf %303, %304 : vector<128x384xf32>
    %306 = vector.extract_strided_slice %305 {offsets = [0, 0], sizes = [128, 128], strides = [1, 1]} : vector<128x384xf32> to vector<128x128xf32>
    %307 = vector.extract_strided_slice %305 {offsets = [0, 128], sizes = [128, 128], strides = [1, 1]} : vector<128x384xf32> to vector<128x128xf32>
    %308 = vector.extract_strided_slice %305 {offsets = [0, 256], sizes = [128, 128], strides = [1, 1]} : vector<128x384xf32> to vector<128x128xf32>
    %309 = arith.mulf %307, %306 : vector<128x128xf32>
    %310 = tpu.iota {dimensions = array<i32: 1>} : vector<128x128xi32>
    %c32_i32 = arith.constant 32 : i32
    %311 = vector.broadcast %c32_i32 : i32 to vector<128x128xi32>
    %312 = arith.cmpi slt, %310, %311 : vector<128x128xi32>
    %cst_122 = arith.constant -1.000000e+30 : f32
    %313 = vector.broadcast %cst_122 : f32 to vector<128x128xf32>
    %314 = arith.select %312, %309, %313 : vector<128x128xi1>, vector<128x128xf32>
    %cst_123 = arith.constant dense<0xFF800000> : vector<128xf32>
    %315 = vector.multi_reduction <maximumf>, %314, %cst_123 [1] : vector<128x128xf32> to vector<128xf32>
    %316 = vector.shape_cast %315 : vector<128xf32> to vector<128x1xf32>
    %317 = vector.broadcast %316 : vector<128x1xf32> to vector<128x128xf32>
    %318 = arith.subf %314, %317 : vector<128x128xf32>
    %319 = math.exp %318 : vector<128x128xf32>
    %cst_124 = arith.constant dense<0.000000e+00> : vector<128xf32>
    %320 = vector.multi_reduction <add>, %319, %cst_124 [1] : vector<128x128xf32> to vector<128xf32>
    %321 = vector.shape_cast %320 : vector<128xf32> to vector<128x1xf32>
    %322 = tpu.reciprocal %321 {approx = true} : vector<128x1xf32> -> vector<128x1xf32>
    %323 = vector.broadcast %322 : vector<128x1xf32> to vector<128x128xf32>
    %324 = arith.mulf %319, %323 : vector<128x128xf32>
    %325 = arith.mulf %308, %324 : vector<128x128xf32>
    %326 = arith.addf %301, %325 : vector<128x128xf32>
    %cst_125 = arith.constant dense<0.000000e+00> : vector<128xf32>
    %327 = vector.multi_reduction <add>, %326, %cst_125 [1] : vector<128x128xf32> to vector<128xf32>
    %328 = vector.shape_cast %327 : vector<128xf32> to vector<128x1xf32>
    %cst_126 = arith.constant 3.125000e-02 : f32
    %329 = vector.broadcast %cst_126 : f32 to vector<128x1xf32>
    %330 = arith.mulf %328, %329 : vector<128x1xf32>
    %331 = vector.broadcast %330 : vector<128x1xf32> to vector<128x128xf32>
    %332 = arith.subf %326, %331 : vector<128x128xf32>
    %333 = arith.mulf %332, %332 : vector<128x128xf32>
    %cst_127 = arith.constant dense<0.000000e+00> : vector<128xf32>
    %334 = vector.multi_reduction <add>, %333, %cst_127 [1] : vector<128x128xf32> to vector<128xf32>
    %335 = vector.shape_cast %334 : vector<128xf32> to vector<128x1xf32>
    %cst_128 = arith.constant 9.600000e+01 : f32
    %336 = vector.broadcast %cst_128 : f32 to vector<128x1xf32>
    %337 = arith.mulf %336, %330 : vector<128x1xf32>
    %338 = arith.mulf %337, %330 : vector<128x1xf32>
    %339 = arith.subf %335, %338 : vector<128x1xf32>
    %cst_129 = arith.constant 3.125000e-02 : f32
    %340 = vector.broadcast %cst_129 : f32 to vector<128x1xf32>
    %341 = arith.mulf %339, %340 : vector<128x1xf32>
    %cst_130 = arith.constant 9.99999974E-6 : f32
    %342 = vector.broadcast %cst_130 : f32 to vector<128x1xf32>
    %343 = arith.addf %341, %342 : vector<128x1xf32>
    %344 = math.rsqrt %343 : vector<128x1xf32>
    %345 = vector.broadcast %344 : vector<128x1xf32> to vector<128x128xf32>
    %346 = arith.mulf %332, %345 : vector<128x128xf32>
    %347 = vector.broadcast %291 : vector<1x128xf32> to vector<128x128xf32>
    %348 = arith.mulf %346, %347 : vector<128x128xf32>
    %349 = vector.broadcast %292 : vector<1x128xf32> to vector<128x128xf32>
    %350 = arith.addf %348, %349 : vector<128x128xf32>
    %351 = arith.addf %350, %21 : vector<128x128xf32>
    %c0_131 = arith.constant 0 : index
    %c0_132 = arith.constant 0 : index
    %352 = vector.load %arg10[%c0_131, %c0_132] : memref<128x128xf32, #tpu.memory_space<vmem>>, vector<128x128xf32>
    tpu.vector_store %arg10[%c0_131, %c0_132], %351 {strides = array<i32>} : memref<128x128xf32, #tpu.memory_space<vmem>>, vector<128x128xf32>,
    return
  }
  func.func @transform_0(%arg0: i32) -> (i32, i32) {
    %c0_i32 = arith.constant 0 : i32
    %c0_i32_0 = arith.constant 0 : i32
    return %arg0, %c0_i32 : i32, i32
  }
  func.func @transform_1(%arg0: i32) -> (i32, i32) {
    %c0_i32 = arith.constant 0 : i32
    %c0_i32_0 = arith.constant 0 : i32
    return %arg0, %c0_i32 : i32, i32
  }
  func.func @transform_2(%arg0: i32) -> (i32, i32) {
    %c0_i32 = arith.constant 0 : i32
    %c0_i32_0 = arith.constant 0 : i32
    %c0_i32_1 = arith.constant 0 : i32
    return %c0_i32, %c0_i32_0 : i32, i32
  }
  func.func @transform_3(%arg0: i32) -> (i32, i32) {
    %c0_i32 = arith.constant 0 : i32
    %c0_i32_0 = arith.constant 0 : i32
    %c0_i32_1 = arith.constant 0 : i32
    return %c0_i32, %c0_i32_0 : i32, i32
  }
  func.func @transform_4(%arg0: i32) -> (i32, i32) {
    %c0_i32 = arith.constant 0 : i32
    %c0_i32_0 = arith.constant 0 : i32
    %c0_i32_1 = arith.constant 0 : i32
    return %c0_i32, %c0_i32_0 : i32, i32
  }
  func.func @transform_5(%arg0: i32) -> (i32, i32, i32) {
    %c0_i32 = arith.constant 0 : i32
    %c0_i32_0 = arith.constant 0 : i32
    %c0_i32_1 = arith.constant 0 : i32
    %c0_i32_2 = arith.constant 0 : i32
    return %c0_i32, %c0_i32_0, %c0_i32_1 : i32, i32, i32
  }
  func.func @transform_6(%arg0: i32) -> (i32, i32, i32) {
    %c0_i32 = arith.constant 0 : i32
    %c0_i32_0 = arith.constant 0 : i32
    %c0_i32_1 = arith.constant 0 : i32
    %c0_i32_2 = arith.constant 0 : i32
    return %c0_i32, %c0_i32_0, %c0_i32_1 : i32, i32, i32
  }
  func.func @transform_7(%arg0: i32) -> (i32, i32, i32) {
    %c0_i32 = arith.constant 0 : i32
    %c0_i32_0 = arith.constant 0 : i32
    %c0_i32_1 = arith.constant 0 : i32
    %c0_i32_2 = arith.constant 0 : i32
    return %c0_i32, %c0_i32_0, %c0_i32_1 : i32, i32, i32
  }
  func.func @transform_8(%arg0: i32) -> (i32, i32, i32) {
    %c0_i32 = arith.constant 0 : i32
    %c0_i32_0 = arith.constant 0 : i32
    %c0_i32_1 = arith.constant 0 : i32
    %c0_i32_2 = arith.constant 0 : i32
    return %c0_i32, %c0_i32_0, %c0_i32_1 : i32, i32, i32
  }
  func.func @transform_9(%arg0: i32) -> (i32, i32) {
    %c0_i32 = arith.constant 0 : i32
    %c0_i32_0 = arith.constant 0 : i32
    return %arg0, %c0_i32 : i32, i32
  }
}

</mosaic_0001>

<llo_original>
// kernel: tpu_custom_call.1
$region0: #{tpu_custom_call.1}
  #allocation0 [shape = 'u32[]', space=smem, size = 0x4, offset = 0x4, fixed_abs, tag = 'smem constant byte address 0x4 - core index']
  #allocation1 [shape = 'u32[144,128]{1,0:T(1,128)}', space=vmem, size = 0x12000, scoped, tag = 'internal scratch']
  %s0 = inlined_call_operand.vmem [shape: f32[256,128], index: 0, kind: input, shape index: {}]
  %s1 = inlined_call_operand.vmem [shape: f32[256,1], index: 1, kind: input, shape index: {}]
  %s2 = inlined_call_operand.vmem [shape: f32[2,32], index: 2, kind: input, shape index: {}]
  %s3 = inlined_call_operand.hbm [shape: bf16[32,128], index: 3, kind: input, shape index: {}]
  %s4 = inlined_call_operand.vmem [shape: f32[1,128], index: 4, kind: input, shape index: {}]
  %s5 = inlined_call_operand.hbm [shape: bf16[5,128,128], index: 5, kind: input, shape index: {}]
  %s6 = inlined_call_operand.hbm [shape: bf16[5,128,384], index: 6, kind: input, shape index: {}]
  %s7 = inlined_call_operand.hbm [shape: f32[5,1,384], index: 7, kind: input, shape index: {}]
  %s8 = inlined_call_operand.hbm [shape: f32[5,8,128], index: 8, kind: input, shape index: {}]
  %s9 = inlined_call_operand.hbm [shape: f32[256,128], index: 9, kind: output, shape index: {}]
  %s10 = sld [smem:[#allocation0]]
  $region89: #{tpu_custom_call.1} parent=0
    _
  %s12 = ssub.s32 1, %s10
  %s13 = scalar_select 0, %s12, %s10
  $region1: #{tpu_custom_call.1} parent=0
    #allocation2 [shape = 'u8[8192]{0}', space=vmem, size = 0x2000, scoped, tag = 'input window, operand 3, single buffered']
    #allocation3 [shape = 's32[2]{0}', space=sflag, size = 0x8, scoped, tag = 'scoped memory for tpu_custom_call.1']
    #allocation4 [shape = 's32[2]{0}', space=sflag, size = 0x8, scoped, tag = 'scoped memory for tpu_custom_call.1']
    #allocation5 [shape = 'u8[163840]{0}', space=vmem, size = 0x28000, scoped, tag = 'input window, operand 5, single buffered']
    #allocation6 [shape = 's32[1]{0}', space=sflag, size = 0x4, scoped, tag = 'scoped memory for tpu_custom_call.1']
    #allocation7 [shape = 'u8[491520]{0}', space=vmem, size = 0x78000, scoped, tag = 'input window, operand 6, single buffered']
    #allocation8 [shape = 'u8[7680]{0}', space=vmem, size = 0x2000, scoped, tag = 'input window, operand 7, single buffered']
    #allocation9 [shape = 's32[1]{0}', space=sflag, size = 0x4, scoped, tag = 'scoped memory for tpu_custom_call.1']
    #allocation10 [shape = 'u8[20480]{0}', space=vmem, size = 0x5000, scoped, tag = 'input window, operand 8, single buffered']
    #allocation11 [shape = 'u8[131072]{0}', space=vmem, size = 0x20000, scoped, tag = 'output window, operand 0']
    %14 = vsyncpa [#allocation3], 0
    %15 = vsyncpa [#allocation6], 0
    %16 = vsyncpa [#allocation9], 0
    %17 = vsyncpa [#allocation4], 0
    %s18 = scalar_lea.sflag [#allocation4], 1
    %19 = vsyncpa %s18, 0
    loop: start=0, step=1, limit=4
    $region2: #{tpu_custom_call.1} parent=1 // loop_pre_header
      _
    $region3: #{tpu_custom_call.1} parent=1 // loop_header
      %s21 = sphi 0, %s25
      %p22 = scmp.ge.s32.totalorder %s21, 4
      %s31 = sphi 0, %s33
      %s34 = sphi 0, %s31
      %s35 = sphi 0, %s34
      %s51 = sphi 0, %s35
      %s57 = sphi 0, %s59
      %s60 = sphi 0, %s57
      %s61 = sphi 0, %s60
      %s77 = sphi 0, %s61
      %s81 = sphi 0, %s81
      %s83 = sphi 0, %s81
      %s84 = sphi 0, %s83
      %s98 = sphi 0, %s84
      %s102 = sphi 0, %s102
      %s104 = sphi 0, %s102
      %s105 = sphi 0, %s104
      %s119 = sphi 0, %s105
      %s123 = sphi 0, %s123
      %s125 = sphi 0, %s123
      %s126 = sphi 0, %s125
      %s140 = sphi 0, %s126
      %s144 = sphi 0, %s144
      %s146 = sphi 0, %s144
      %s147 = sphi 0, %s146
      %s161 = sphi 0, %s147
      %s165 = sphi 0, %s165
      %s167 = sphi 0, %s165
      %s168 = sphi 0, %s167
      %s182 = sphi 0, %s168
      %s186 = sphi 0, %s186
      %s188 = sphi 0, %s186
      %s189 = sphi 0, %s188
      %s203 = sphi 0, %s189
      %s207 = sphi 0, %s207
      %s209 = sphi 0, %s207
      %s210 = sphi 0, %s209
      %s224 = sphi 0, %s210
      %s230 = sphi 0, %s232
      %s233 = sphi 0, %s230
      %s234 = sphi 0, %s233
      %s250 = sphi 0, %s234
    $region4: #{tpu_custom_call.1} parent=1 // loop_header_branch
      %24 = sbr.rel (%p22) target = $region8
    $region5: #{tpu_custom_call.1} parent=1 // loop_body
      %s26 = ssub.s32 %s21, 1
      %s27 = ssub.s32 %s21, 2
      %s28 = sadd.s32 %s21, 1
      %s29 = ssub.s32 %s21, %s28
      %p30 = scmp.eq.s32.totalorder %s29, 0
      %s32 = sadd.s32 %s31, 1
      %s33 = scalar_select %p30, %s31, %s32
      %p36 = pneg %p30
      %p37 = scmp.eq.s32.totalorder %s21, 1
      %p38 = por %p36, %p37
      %p39 = scmp.ne.s32.totalorder %s31, %s34
      %p40 = scmp.eq.s32.totalorder %s21, 0
      %p41 = por %p39, %p40
      %p42 = scmp.ne.s32.totalorder %s31, %s34
      %p43 = scmp.eq.s32.totalorder %s26, 1
      %p44 = por %p42, %p43
      %p45 = scmp.ne.s32.totalorder %s34, %s35
      %p46 = scmp.eq.s32.totalorder %s26, 0
      %p47 = por %p45, %p46
      %p48 = scmp.ne.s32.totalorder %s34, %s35
      %p49 = scmp.eq.s32.totalorder %s27, 1
      %p50 = por %p48, %p49
      %p52 = scmp.ne.s32.totalorder %s35, %s51
      %p53 = scmp.eq.s32.totalorder %s27, 0
      %p54 = por %p52, %p53
      %s55 = ssub.s32 %s21, %s28
      %p56 = scmp.eq.s32.totalorder %s55, 0
      %s58 = sadd.s32 %s57, 1
      %s59 = scalar_select %p56, %s57, %s58
      %p62 = pneg %p56
      %p63 = scmp.eq.s32.totalorder %s21, 1
      %p64 = por %p62, %p63
      %p65 = scmp.ne.s32.totalorder %s57, %s60
      %p66 = scmp.eq.s32.totalorder %s21, 0
      %p67 = por %p65, %p66
      %p68 = scmp.ne.s32.totalorder %s57, %s60
      %p69 = scmp.eq.s32.totalorder %s26, 1
      %p70 = por %p68, %p69
      %p71 = scmp.ne.s32.totalorder %s60, %s61
      %p72 = scmp.eq.s32.totalorder %s26, 0
      %p73 = por %p71, %p72
      %p74 = scmp.ne.s32.totalorder %s60, %s61
      %p75 = scmp.eq.s32.totalorder %s27, 1
      %p76 = por %p74, %p75
      %p78 = scmp.ne.s32.totalorder %s61, %s77
      %p79 = scmp.eq.s32.totalorder %s27, 0
      %p80 = por %p78, %p79
      %s82 = sadd.s32 %s81, 1
      %p85 = scmp.eq.s32.totalorder %s21, 1
      %p86 = scmp.ne.s32.totalorder %s81, %s83
      %p87 = scmp.eq.s32.totalorder %s21, 0
      %p88 = por %p86, %p87
      %p89 = scmp.ne.s32.totalorder %s81, %s83
      %p90 = scmp.eq.s32.totalorder %s26, 1
      %p91 = por %p89, %p90
      %p92 = scmp.ne.s32.totalorder %s83, %s84
      %p93 = scmp.eq.s32.totalorder %s26, 0
      %p94 = por %p92, %p93
      %p95 = scmp.ne.s32.totalorder %s83, %s84
      %p96 = scmp.eq.s32.totalorder %s27, 1
      %p97 = por %p95, %p96
      %p99 = scmp.ne.s32.totalorder %s84, %s98
      %p100 = scmp.eq.s32.totalorder %s27, 0
      %p101 = por %p99, %p100
      %s103 = sadd.s32 %s102, 1
      %p106 = scmp.eq.s32.totalorder %s21, 1
      %p107 = scmp.ne.s32.totalorder %s102, %s104
      %p108 = scmp.eq.s32.totalorder %s21, 0
      %p109 = por %p107, %p108
      %p110 = scmp.ne.s32.totalorder %s102, %s104
      %p111 = scmp.eq.s32.totalorder %s26, 1
      %p112 = por %p110, %p111
      %p113 = scmp.ne.s32.totalorder %s104, %s105
      %p114 = scmp.eq.s32.totalorder %s26, 0
      %p115 = por %p113, %p114
      %p116 = scmp.ne.s32.totalorder %s104, %s105
      %p117 = scmp.eq.s32.totalorder %s27, 1
      %p118 = por %p116, %p117
      %p120 = scmp.ne.s32.totalorder %s105, %s119
      %p121 = scmp.eq.s32.totalorder %s27, 0
      %p122 = por %p120, %p121
      %s124 = sadd.s32 %s123, 1
      %p127 = scmp.eq.s32.totalorder %s21, 1
      %p128 = scmp.ne.s32.totalorder %s123, %s125
      %p129 = scmp.eq.s32.totalorder %s21, 0
      %p130 = por %p128, %p129
      %p131 = scmp.ne.s32.totalorder %s123, %s125
      %p132 = scmp.eq.s32.totalorder %s26, 1
      %p133 = por %p131, %p132
      %p134 = scmp.ne.s32.totalorder %s125, %s126
      %p135 = scmp.eq.s32.totalorder %s26, 0
      %p136 = por %p134, %p135
      %p137 = scmp.ne.s32.totalorder %s125, %s126
      %p138 = scmp.eq.s32.totalorder %s27, 1
      %p139 = por %p137, %p138
      %p141 = scmp.ne.s32.totalorder %s126, %s140
      %p142 = scmp.eq.s32.totalorder %s27, 0
      %p143 = por %p141, %p142
      %s145 = sadd.s32 %s144, 1
      %p148 = scmp.eq.s32.totalorder %s21, 1
      %p149 = scmp.ne.s32.totalorder %s144, %s146
      %p150 = scmp.eq.s32.totalorder %s21, 0
      %p151 = por %p149, %p150
      %p152 = scmp.ne.s32.totalorder %s144, %s146
      %p153 = scmp.eq.s32.totalorder %s26, 1
      %p154 = por %p152, %p153
      %p155 = scmp.ne.s32.totalorder %s146, %s147
      %p156 = scmp.eq.s32.totalorder %s26, 0
      %p157 = por %p155, %p156
      %p158 = scmp.ne.s32.totalorder %s146, %s147
      %p159 = scmp.eq.s32.totalorder %s27, 1
      %p160 = por %p158, %p159
      %p162 = scmp.ne.s32.totalorder %s147, %s161
      %p163 = scmp.eq.s32.totalorder %s27, 0
      %p164 = por %p162, %p163
      %s166 = sadd.s32 %s165, 1
      %p169 = scmp.eq.s32.totalorder %s21, 1
      %p170 = scmp.ne.s32.totalorder %s165, %s167
      %p171 = scmp.eq.s32.totalorder %s21, 0
      %p172 = por %p170, %p171
      %p173 = scmp.ne.s32.totalorder %s165, %s167
      %p174 = scmp.eq.s32.totalorder %s26, 1
      %p175 = por %p173, %p174
      %p176 = scmp.ne.s32.totalorder %s167, %s168
      %p177 = scmp.eq.s32.totalorder %s26, 0
      %p178 = por %p176, %p177
      %p179 = scmp.ne.s32.totalorder %s167, %s168
      %p180 = scmp.eq.s32.totalorder %s27, 1
      %p181 = por %p179, %p180
      %p183 = scmp.ne.s32.totalorder %s168, %s182
      %p184 = scmp.eq.s32.totalorder %s27, 0
      %p185 = por %p183, %p184
      %s187 = sadd.s32 %s186, 1
      %p190 = scmp.eq.s32.totalorder %s21, 1
      %p191 = scmp.ne.s32.totalorder %s186, %s188
      %p192 = scmp.eq.s32.totalorder %s21, 0
      %p193 = por %p191, %p192
      %p194 = scmp.ne.s32.totalorder %s186, %s188
      %p195 = scmp.eq.s32.totalorder %s26, 1
      %p196 = por %p194, %p195
      %p197 = scmp.ne.s32.totalorder %s188, %s189
      %p198 = scmp.eq.s32.totalorder %s26, 0
      %p199 = por %p197, %p198
      %p200 = scmp.ne.s32.totalorder %s188, %s189
      %p201 = scmp.eq.s32.totalorder %s27, 1
      %p202 = por %p200, %p201
      %p204 = scmp.ne.s32.totalorder %s189, %s203
      %p205 = scmp.eq.s32.totalorder %s27, 0
      %p206 = por %p204, %p205
      %s208 = sadd.s32 %s207, 1
      %p211 = scmp.eq.s32.totalorder %s21, 1
      %p212 = scmp.ne.s32.totalorder %s207, %s209
      %p213 = scmp.eq.s32.totalorder %s21, 0
      %p214 = por %p212, %p213
      %p215 = scmp.ne.s32.totalorder %s207, %s209
      %p216 = scmp.eq.s32.totalorder %s26, 1
      %p217 = por %p215, %p216
      %p218 = scmp.ne.s32.totalorder %s209, %s210
      %p219 = scmp.eq.s32.totalorder %s26, 0
      %p220 = por %p218, %p219
      %p221 = scmp.ne.s32.totalorder %s209, %s210
      %p222 = scmp.eq.s32.totalorder %s27, 1
      %p223 = por %p221, %p222
      %p225 = scmp.ne.s32.totalorder %s210, %s224
      %p226 = scmp.eq.s32.totalorder %s27, 0
      %p227 = por %p225, %p226
      %s228 = ssub.s32 %s21, %s28
      %p229 = scmp.eq.s32.totalorder %s228, 0
      %s231 = sadd.s32 %s230, 1
      %s232 = scalar_select %p229, %s230, %s231
      %p235 = pneg %p229
      %p236 = scmp.eq.s32.totalorder %s21, 1
      %p237 = por %p235, %p236
      %p238 = scmp.ne.s32.totalorder %s230, %s233
      %p239 = scmp.eq.s32.totalorder %s21, 0
      %p240 = por %p238, %p239
      %p241 = scmp.ne.s32.totalorder %s230, %s233
      %p242 = scmp.eq.s32.totalorder %s26, 1
      %p243 = por %p241, %p242
      %p244 = scmp.ne.s32.totalorder %s233, %s234
      %p245 = scmp.eq.s32.totalorder %s26, 0
      %p246 = por %p244, %p245
      %p247 = scmp.ne.s32.totalorder %s233, %s234
      %p248 = scmp.eq.s32.totalorder %s27, 1
      %p249 = por %p247, %p248
      %p251 = scmp.ne.s32.totalorder %s234, %s250
      %p252 = scmp.eq.s32.totalorder %s27, 0
      %p253 = por %p251, %p252
      %p254 = scmp.le.s32.totalorder 1, %s21
      %p255 = scmp.lt.s32.totalorder %s21, 3
      %p256 = pnand %p254, %p255
      %p257 = pneg %p256
      // Predicated region
      $region9: #{tpu_custom_call.1} parent=5 // pred_check
        _
      $region10: #{tpu_custom_call.1} parent=5 // pred_check_branch
        %259 = sbr.rel (%p256) target = $region12
      $region11: #{tpu_custom_call.1} parent=5 // pred_region
        %s260 = ssub.s32 %s21, 1
        // Predicated region
        $region13: #{tpu_custom_call.1} parent=11 // pred_check
          %p261 = pneg %p94
        $region14: #{tpu_custom_call.1} parent=11 // pred_check_branch
          %263 = sbr.rel (%p261) target = $region16
        $region15: #{tpu_custom_call.1} parent=11 // pred_region
          _
        $region16: #{tpu_custom_call.1} parent=11 // pred_fallthru
          _
        // Predicated region
        $region17: #{tpu_custom_call.1} parent=11 // pred_check
          %p264 = pneg %p115
        $region18: #{tpu_custom_call.1} parent=11 // pred_check_branch
          %266 = sbr.rel (%p264) target = $region20
        $region19: #{tpu_custom_call.1} parent=11 // pred_region
          %s268 = ssub.s32 256, 256
          %269 = vsyncadd [#allocation3], %s268
          %s270 = sshll.u32 [#allocation2], 4
          %s271 = int_to_ptr.vmem [resolvable:$true] %s270
          %276 = dma.hbm_to_vmem [thread:$0]  %s3, 256, %s271, [#allocation3], 64, 64, 4
        $region20: #{tpu_custom_call.1} parent=11 // pred_fallthru
          _
        // Predicated region
        $region21: #{tpu_custom_call.1} parent=11 // pred_check
          %p277 = pneg %p136
        $region22: #{tpu_custom_call.1} parent=11 // pred_check_branch
          %279 = sbr.rel (%p277) target = $region24
        $region23: #{tpu_custom_call.1} parent=11 // pred_region
          _
        $region24: #{tpu_custom_call.1} parent=11 // pred_fallthru
          _
        // Predicated region
        $region25: #{tpu_custom_call.1} parent=11 // pred_check
          %p280 = pneg %p157
        $region26: #{tpu_custom_call.1} parent=11 // pred_check_branch
          %282 = sbr.rel (%p280) target = $region28
        $region27: #{tpu_custom_call.1} parent=11 // pred_region
          %s284 = ssub.s32 5120, 5120
          %285 = vsyncadd [#allocation6], %s284
          %s286 = sshll.u32 [#allocation5], 4
          %s287 = int_to_ptr.vmem [resolvable:$true] %s286
          %292 = dma.hbm_to_vmem [thread:$0]  %s5, 5120, %s287, [#allocation6], 64, 64, 4
        $region28: #{tpu_custom_call.1} parent=11 // pred_fallthru
          _
        // Predicated region
        $region29: #{tpu_custom_call.1} parent=11 // pred_check
          %p293 = pneg %p178
        $region30: #{tpu_custom_call.1} parent=11 // pred_check_branch
          %295 = sbr.rel (%p293) target = $region32
        $region31: #{tpu_custom_call.1} parent=11 // pred_region
          %s297 = ssub.s32 15360, 15360
          %298 = vsyncadd [#allocation6], %s297
          %s299 = sshll.u32 [#allocation7], 4
          %s300 = int_to_ptr.vmem [resolvable:$true] %s299
          %305 = dma.hbm_to_vmem [thread:$0]  %s6, 15360, %s300, [#allocation6], 192, 192, 12
        $region32: #{tpu_custom_call.1} parent=11 // pred_fallthru
          _
        // Predicated region
        $region33: #{tpu_custom_call.1} parent=11 // pred_check
          %p306 = pneg %p199
        $region34: #{tpu_custom_call.1} parent=11 // pred_check_branch
          %308 = sbr.rel (%p306) target = $region36
        $region35: #{tpu_custom_call.1} parent=11 // pred_region
          %s310 = ssub.s32 240, 240
          %311 = vsyncadd [#allocation9], %s310
          %s312 = sshll.u32 [#allocation8], 4
          %s313 = int_to_ptr.vmem [resolvable:$true] %s312
          %318 = dma.hbm_to_vmem [thread:$0]  %s7, 240, %s313, [#allocation9], 48, 48, 3
        $region36: #{tpu_custom_call.1} parent=11 // pred_fallthru
          _
        // Predicated region
        $region37: #{tpu_custom_call.1} parent=11 // pred_check
          %p319 = pneg %p220
        $region38: #{tpu_custom_call.1} parent=11 // pred_check_branch
          %321 = sbr.rel (%p319) target = $region40
        $region39: #{tpu_custom_call.1} parent=11 // pred_region
          %s323 = ssub.s32 640, 640
          %324 = vsyncadd [#allocation9], %s323
          %s325 = sshll.u32 [#allocation10], 4
          %s326 = int_to_ptr.vmem [resolvable:$true] %s325
          %331 = dma.hbm_to_vmem [thread:$0]  %s8, 640, %s326, [#allocation9], 128, 128, 8
        $region40: #{tpu_custom_call.1} parent=11 // pred_fallthru
          _
      $region12: #{tpu_custom_call.1} parent=5 // pred_fallthru
        _
      %p332 = scmp.lt.s32.totalorder %s21, 2
      // Predicated region
      $region41: #{tpu_custom_call.1} parent=5 // pred_check
        %p333 = pneg %p332
      $region42: #{tpu_custom_call.1} parent=5 // pred_check_branch
        %335 = sbr.rel (%p333) target = $region44
      $region43: #{tpu_custom_call.1} parent=5 // pred_region
        // Predicated region
        $region45: #{tpu_custom_call.1} parent=43 // pred_check
          %p336 = pneg %p41
        $region46: #{tpu_custom_call.1} parent=43 // pred_check_branch
          %338 = sbr.rel (%p336) target = $region48
        $region47: #{tpu_custom_call.1} parent=43 // pred_region
          %s339 = smul.u32 16, %s21
          %p340 = scmp.lt.s32.totalorder %s339, 31
          %s341 = scalar_select %p340, %s339, 31
          %s342 = smul.addr %s341, 8
          %s343 = scalar_lea.vmem %s0, %s342
          %s344 = smul.u32 16, %s21
        $region48: #{tpu_custom_call.1} parent=43 // pred_fallthru
          _
        // Predicated region
        $region49: #{tpu_custom_call.1} parent=43 // pred_check
          %p345 = pneg %p67
        $region50: #{tpu_custom_call.1} parent=43 // pred_check_branch
          %347 = sbr.rel (%p345) target = $region52
        $region51: #{tpu_custom_call.1} parent=43 // pred_region
          %s348 = smul.u32 16, %s21
          %p349 = scmp.lt.s32.totalorder %s348, 31
          %s350 = scalar_select %p349, %s348, 31
          %s351 = smul.addr %s350, 8
          %s352 = scalar_lea.vmem %s1, %s351
          %s353 = smul.u32 16, %s21
        $region52: #{tpu_custom_call.1} parent=43 // pred_fallthru
          _
      $region44: #{tpu_custom_call.1} parent=5 // pred_fallthru
        _
      %p354 = scmp.le.s32.totalorder 1, %s21
      %p355 = scmp.lt.s32.totalorder %s21, 3
      %p356 = pnand %p354, %p355
      %p357 = pneg %p356
      // Predicated region
      $region53: #{tpu_custom_call.1} parent=5 // pred_check
        _
      $region54: #{tpu_custom_call.1} parent=5 // pred_check_branch
        %359 = sbr.rel (%p356) target = $region56
      $region55: #{tpu_custom_call.1} parent=5 // pred_region
        %s360 = ssub.s32 %s21, 1
        // Predicated region
        $region57: #{tpu_custom_call.1} parent=55 // pred_check
          %p361 = pneg %p115
        $region58: #{tpu_custom_call.1} parent=55 // pred_check_branch
          %363 = sbr.rel (%p361) target = $region60
        $region59: #{tpu_custom_call.1} parent=55 // pred_region
          %364 = dma.done [#allocation3], 256
        $region60: #{tpu_custom_call.1} parent=55 // pred_fallthru
          _
        // Predicated region
        $region61: #{tpu_custom_call.1} parent=55 // pred_check
          %p365 = pneg %p157
        $region62: #{tpu_custom_call.1} parent=55 // pred_check_branch
          %367 = sbr.rel (%p365) target = $region64
        $region63: #{tpu_custom_call.1} parent=55 // pred_region
          %368 = dma.done [#allocation6], 5120
        $region64: #{tpu_custom_call.1} parent=55 // pred_fallthru
          _
        // Predicated region
        $region65: #{tpu_custom_call.1} parent=55 // pred_check
          %p369 = pneg %p178
        $region66: #{tpu_custom_call.1} parent=55 // pred_check_branch
          %371 = sbr.rel (%p369) target = $region68
        $region67: #{tpu_custom_call.1} parent=55 // pred_region
          %372 = dma.done [#allocation6], 15360
        $region68: #{tpu_custom_call.1} parent=55 // pred_fallthru
          _
        // Predicated region
        $region69: #{tpu_custom_call.1} parent=55 // pred_check
          %p373 = pneg %p199
        $region70: #{tpu_custom_call.1} parent=55 // pred_check_branch
          %375 = sbr.rel (%p373) target = $region72
        $region71: #{tpu_custom_call.1} parent=55 // pred_region
          %376 = dma.done [#allocation9], 240
        $region72: #{tpu_custom_call.1} parent=55 // pred_fallthru
          _
        // Predicated region
        $region73: #{tpu_custom_call.1} parent=55 // pred_check
          %p377 = pneg %p220
        $region74: #{tpu_custom_call.1} parent=55 // pred_check_branch
          %379 = sbr.rel (%p377) target = $region76
        $region75: #{tpu_custom_call.1} parent=55 // pred_region
          %380 = dma.done [#allocation9], 640
        $region76: #{tpu_custom_call.1} parent=55 // pred_fallthru
          _
        %s381 = smul.u32 16, %s26
        %p382 = scmp.lt.s32.totalorder %s381, 31
        %s383 = scalar_select %p382, %s381, 31
        %s384 = smul.addr %s383, 8
        %s385 = scalar_lea.vmem %s0, %s384
        %p386 = pneg %p47
        %p387 = pneg %p44
        %s388 = smul.u32 16, %s26
        %p389 = scmp.lt.s32.totalorder %s388, 31
        %s390 = scalar_select %p389, %s388, 31
        %s391 = smul.addr %s390, 8
        %s392 = scalar_lea.vmem %s1, %s391
        %p393 = pneg %p73
        %p394 = pneg %p70
        %p395 = pneg %p94
        %p396 = pneg %p91
        %p397 = pneg %p115
        %p398 = pneg %p112
        %p399 = pneg %p136
        %p400 = pneg %p133
        %p401 = pneg %p157
        %p402 = pneg %p154
        %p403 = pneg %p178
        %p404 = pneg %p175
        %p405 = pneg %p199
        %p406 = pneg %p196
        %p407 = pneg %p220
        %p408 = pneg %p217
        %p409 = pneg %p246
        %p410 = pneg %p243
        %s411 = sand.u32 %s233, 1
        %s412 = scalar_lea.sflag [#allocation4], %s411
        %s413 = sand.u32 %s233, 1
        %s414 = smul.addr %s413, 128
        %s415 = scalar_lea.vmem [#allocation11], %s414
        %s416 = smul.u32 16, %s26
        %p417 = scmp.lt.s32.totalorder %s416, 31
        %s418 = scalar_select %p417, %s416, 31
        %s419 = smul.addr %s418, 8
        %s420 = scalar_lea.vmem %s0, %s419
        %s421 = smul.u32 16, %s26
        %s422 = smul.u32 16, %s26
        %p423 = scmp.lt.s32.totalorder %s422, 31
        %s424 = scalar_select %p423, %s422, 31
        %s425 = smul.addr %s424, 8
        %s426 = scalar_lea.vmem %s1, %s425
        %s427 = smul.u32 16, %s26
        %s428 = smul.u32 16, %s26
        %v430 = vld [vmem:[%s2] sm:$0x1]
        %v431 = vld [vmem:[%s2 + $0x1] sm:$0x1]
        %v432 = vld [vmem:[%s426] sm:$0xff]
        %v433 = vld [vmem:[%s426 + $0x8] sm:$0xff]
        %v434 = vld [vmem:[%s426 + $0x10] sm:$0xff]
        %v435 = vld [vmem:[%s426 + $0x18] sm:$0xff]
        %v436 = vld [vmem:[%s426 + $0x20] sm:$0xff]
        %v437 = vld [vmem:[%s426 + $0x28] sm:$0xff]
        %v438 = vld [vmem:[%s426 + $0x30] sm:$0xff]
        %v439 = vld [vmem:[%s426 + $0x38] sm:$0xff]
        %v440 = vld [vmem:[%s426 + $0x40] sm:$0xff]
        %v441 = vld [vmem:[%s426 + $0x48] sm:$0xff]
        %v442 = vld [vmem:[%s426 + $0x50] sm:$0xff]
        %v443 = vld [vmem:[%s426 + $0x58] sm:$0xff]
        %v444 = vld [vmem:[%s426 + $0x60] sm:$0xff]
        %v445 = vld [vmem:[%s426 + $0x68] sm:$0xff]
        %v446 = vld [vmem:[%s426 + $0x70] sm:$0xff]
        %v447 = vld [vmem:[%s426 + $0x78] sm:$0xff]
        %449 = vset.pattern.permute.xlu0 0
        %450 = vperm.xlu0 %449, %v432
        %v451 = vpop.permute.xlu0 %450
        %454 = vset.pattern.permute.xlu0 0
        %455 = vperm.xlu0 %454, %v433
        %v456 = vpop.permute.xlu0 %455
        %459 = vset.pattern.permute.xlu0 0
        %460 = vperm.xlu0 %459, %v434
        %v461 = vpop.permute.xlu0 %460
        %464 = vset.pattern.permute.xlu0 0
        %465 = vperm.xlu0 %464, %v435
        %v466 = vpop.permute.xlu0 %465
        %469 = vset.pattern.permute.xlu0 0
        %470 = vperm.xlu0 %469, %v436
        %v471 = vpop.permute.xlu0 %470
        %474 = vset.pattern.permute.xlu0 0
        %475 = vperm.xlu0 %474, %v437
        %v476 = vpop.permute.xlu0 %475
        %479 = vset.pattern.permute.xlu0 0
        %480 = vperm.xlu0 %479, %v438
        %v481 = vpop.permute.xlu0 %480
        %484 = vset.pattern.permute.xlu0 0
        %485 = vperm.xlu0 %484, %v439
        %v486 = vpop.permute.xlu0 %485
        %489 = vset.pattern.permute.xlu0 0
        %490 = vperm.xlu0 %489, %v440
        %v491 = vpop.permute.xlu0 %490
        %494 = vset.pattern.permute.xlu0 0
        %495 = vperm.xlu0 %494, %v441
        %v496 = vpop.permute.xlu0 %495
        %499 = vset.pattern.permute.xlu0 0
        %500 = vperm.xlu0 %499, %v442
        %v501 = vpop.permute.xlu0 %500
        %504 = vset.pattern.permute.xlu0 0
        %505 = vperm.xlu0 %504, %v443
        %v506 = vpop.permute.xlu0 %505
        %509 = vset.pattern.permute.xlu0 0
        %510 = vperm.xlu0 %509, %v444
        %v511 = vpop.permute.xlu0 %510
        %514 = vset.pattern.permute.xlu0 0
        %515 = vperm.xlu0 %514, %v445
        %v516 = vpop.permute.xlu0 %515
        %519 = vset.pattern.permute.xlu0 0
        %520 = vperm.xlu0 %519, %v446
        %v521 = vpop.permute.xlu0 %520
        %524 = vset.pattern.permute.xlu0 0
        %525 = vperm.xlu0 %524, %v447
        %v526 = vpop.permute.xlu0 %525
        %v528 = vlaneseq
        %v529 = vshrl.u32 %v528, 7
        %v530 = vsub.s32 0, %v529
        %v531 = vrot.slane %v430, %v530
        %v532 = vmul.f32 %v451, %v531
        %v533 = vmul.f32 %v456, %v531
        %v534 = vmul.f32 %v461, %v531
        %v535 = vmul.f32 %v466, %v531
        %v536 = vmul.f32 %v471, %v531
        %v537 = vmul.f32 %v476, %v531
        %v538 = vmul.f32 %v481, %v531
        %v539 = vmul.f32 %v486, %v531
        %v540 = vmul.f32 %v491, %v531
        %v541 = vmul.f32 %v496, %v531
        %v542 = vmul.f32 %v501, %v531
        %v543 = vmul.f32 %v506, %v531
        %v544 = vmul.f32 %v511, %v531
        %v545 = vmul.f32 %v516, %v531
        %v546 = vmul.f32 %v521, %v531
        %v547 = vmul.f32 %v526, %v531
        %v548 = vlaneseq
        %v549 = vshrl.u32 %v548, 7
        %v550 = vsub.s32 0, %v549
        %v551 = vrot.slane %v431, %v550
        %v552 = vadd.f32 %v532, %v551
        %v553 = vadd.f32 %v533, %v551
        %v554 = vadd.f32 %v534, %v551
        %v555 = vadd.f32 %v535, %v551
        %v556 = vadd.f32 %v536, %v551
        %v557 = vadd.f32 %v537, %v551
        %v558 = vadd.f32 %v538, %v551
        %v559 = vadd.f32 %v539, %v551
        %v560 = vadd.f32 %v540, %v551
        %v561 = vadd.f32 %v541, %v551
        %v562 = vadd.f32 %v542, %v551
        %v563 = vadd.f32 %v543, %v551
        %v564 = vadd.f32 %v544, %v551
        %v565 = vadd.f32 %v545, %v551
        %v566 = vadd.f32 %v546, %v551
        %v567 = vadd.f32 %v547, %v551
        %v568 = vand.u32 2147483647, %v552
        %vm569 = vcmp.le.f32.partialorder %v568, 0.7853982
        %vm570 = vcmp.lt.s32.totalorder %v552, 0
        %v571 = vand.u32 %v552, 2139095040
        %v572 = vshrl.u32 %v571, 23
        %v573 = vsub.s32 %v572, 127
        %v574 = vand.u32 2147483647, %v552
        %v575 = vand.u32 %v574, 8388607
        %v576 = vor.u32 %v575, 8388608
        %v577 = vsub.s32 0, %v576
        %v578 = vadd.s32 %v573, 1
        %vm579 = vcmp.gt.s32.totalorder %v578, 0
        %v580 = vsel %vm579, %v578, 0
        %v581 = vshrl.u32 %v580, 5
        %v582 = vand.u32 %v580, 31
        %v583 = vsub.s32 32, %v582
        %v584 = vshrl.u32 683565275, %v583
        %v585 = vshll.u32 683565275, %v582
        %v586 = vshrl.u32 2475754826, %v583
        %v587 = vor.u32 %v585, %v586
        %v588 = vshll.u32 2475754826, %v582
        %v589 = vshrl.u32 2131351028, %v583
        %v590 = vor.u32 %v588, %v589
        %v591 = vshll.u32 2131351028, %v582
        %v592 = vshrl.u32 2102212464, %v583
        %v593 = vor.u32 %v591, %v592
        %v594 = vshll.u32 2102212464, %v582
        %v595 = vshrl.u32 920167782, %v583
        %v596 = vor.u32 %v594, %v595
        %v597 = vshll.u32 920167782, %v582
        %v598 = vshrl.u32 1326507024, %v583
        %v599 = vor.u32 %v597, %v598
        %vm600 = vcmp.lt.s32.totalorder %v581, 1
        %vm601 = vcmp.lt.s32.totalorder %v581, 2
        %vm602 = vcmp.lt.s32.totalorder %v581, 3
        %vm603 = vcmp.lt.s32.totalorder %v581, 4
        %v604 = vsel %vm600, %v584, %v587
        %v605 = vsel %vm603, %v593, 2102212464
        %v606 = vsel %vm602, %v590, %v605
        %v607 = vsel %vm601, %v604, %v606
        %v608 = vsel %vm600, %v587, %v590
        %v609 = vsel %vm603, %v596, 920167782
        %v610 = vsel %vm602, %v593, %v609
        %v611 = vsel %vm601, %v608, %v610
        %v612 = vsel %vm600, %v590, %v593
        %v613 = vsel %vm603, %v599, 1326507024
        %v614 = vsel %vm602, %v596, %v613
        %v615 = vsel %vm601, %v612, %v614
        %v616 = vshll.u32 %v576, 8
        %v617 = vmul.u32.u64.compose %v616, %v615
        %v618 = vextract.low.u32 %v617
        %v619 = vextract.high.u32 %v617
        %v620 = vmul.u32.u64.compose %v616, %v611
        %v621 = vextract.low.u32 %v620
        %v622 = vextract.high.u32 %v620
        %v623 = vmul.u32 %v616, %v607
        %v624 = vadd.s32 %v619, %v621
        %vm625 = vc.u32 %v619, %v621
        %v626 = vadd.s32 %v622, 1
        %v627 = vsel %vm625, %v626, %v622
        %v628 = vadd.s32 %v623, %v627
        %v629 = vadd.s32 %v628, 536870912
        %v630 = vshrl.u32 %v629, 30
        %v631 = vshll.u32 %v630, 30
        %v632 = vsub.s32 %v628, %v631
        %vm633 = vcmp.lt.s32.totalorder %v632, 0
        %v634 = vsub.s32 0, %v632
        %v635 = vsel %vm633, %v634, %v632
        %v636 = vclz %v635
        %v637 = vsub.s32 %v636, 2
        %vm638 = vcmp.gt.s32.totalorder 0, %v637
        %v639 = vsel %vm638, 0, %v637
        %v640 = vsub.s32 32, %v639
        %v641 = vshll.u32 %v632, %v639
        %v642 = vshrl.u32 %v624, %v640
        %v643 = vor.u32 %v641, %v642
        %v644 = vsub.s32 4294967266, %v639
        %v645 = vadd.s32 %v644, 127
        %v646 = vshll.u32 %v645, 23
        %v647 = vor.u32 4788187, %v646
        %v648 = vand.u32 2147483647, %v647
        %v650 = vcvt.s32.f32 %v643
        %v651 = vmul.f32 %v650, %v648
        %v652 = vxor.u32 %v651, 2147483648
        %v653 = vsel %vm570, %v652, %v651
        %v654 = vsub.s32 4, %v630
        %v655 = vsel %vm570, %v654, %v630
        %v656 = vsel %vm569, %v552, %v653
        %v657 = vsel %vm569, 0, %v655
        %v658 = vcosq.f32.pop %v656
        %v659 = vsinq.f32.pop %v656
        %vm660 = vweird.f32 %v552
        %v661 = vadd.s32 %v657, 3
        %v662 = vand.u32 %v661, 3
        %vm663 = vcmp.lt.s32.totalorder %v662, 2
        %vm664 = vcmp.eq.s32.totalorder %v662, 0
        %v665 = vxor.u32 %v659, 2147483648
        %v666 = vsel %vm664, %v658, %v665
        %vm667 = vcmp.eq.s32.totalorder %v662, 2
        %v668 = vxor.u32 %v658, 2147483648
        %v669 = vsel %vm667, %v668, %v659
        %v670 = vsel %vm663, %v666, %v669
        %v671 = vsel %vm660, nan, %v670
        %v672 = vand.u32 2147483647, %v553
        %vm673 = vcmp.le.f32.partialorder %v672, 0.7853982
        %vm674 = vcmp.lt.s32.totalorder %v553, 0
        %v675 = vand.u32 %v553, 2139095040
        %v676 = vshrl.u32 %v675, 23
        %v677 = vsub.s32 %v676, 127
        %v678 = vand.u32 2147483647, %v553
        %v679 = vand.u32 %v678, 8388607
        %v680 = vor.u32 %v679, 8388608
        %v681 = vsub.s32 0, %v680
        %v682 = vadd.s32 %v677, 1
        %vm683 = vcmp.gt.s32.totalorder %v682, 0
        %v684 = vsel %vm683, %v682, 0
        %v685 = vshrl.u32 %v684, 5
        %v686 = vand.u32 %v684, 31
        %v687 = vsub.s32 32, %v686
        %v688 = vshrl.u32 683565275, %v687
        %v689 = vshll.u32 683565275, %v686
        %v690 = vshrl.u32 2475754826, %v687
        %v691 = vor.u32 %v689, %v690
        %v692 = vshll.u32 2475754826, %v686
        %v693 = vshrl.u32 2131351028, %v687
        %v694 = vor.u32 %v692, %v693
        %v695 = vshll.u32 2131351028, %v686
        %v696 = vshrl.u32 2102212464, %v687
        %v697 = vor.u32 %v695, %v696
        %v698 = vshll.u32 2102212464, %v686
        %v699 = vshrl.u32 920167782, %v687
        %v700 = vor.u32 %v698, %v699
        %v701 = vshll.u32 920167782, %v686
        %v702 = vshrl.u32 1326507024, %v687
        %v703 = vor.u32 %v701, %v702
        %vm704 = vcmp.lt.s32.totalorder %v685, 1
        %vm705 = vcmp.lt.s32.totalorder %v685, 2
        %vm706 = vcmp.lt.s32.totalorder %v685, 3
        %vm707 = vcmp.lt.s32.totalorder %v685, 4
        %v708 = vsel %vm704, %v688, %v691
        %v709 = vsel %vm707, %v697, 2102212464
        %v710 = vsel %vm706, %v694, %v709
        %v711 = vsel %vm705, %v708, %v710
        %v712 = vsel %vm704, %v691, %v694
        %v713 = vsel %vm707, %v700, 920167782
        %v714 = vsel %vm706, %v697, %v713
        %v715 = vsel %vm705, %v712, %v714
        %v716 = vsel %vm704, %v694, %v697
        %v717 = vsel %vm707, %v703, 1326507024
        %v718 = vsel %vm706, %v700, %v717
        %v719 = vsel %vm705, %v716, %v718
        %v720 = vshll.u32 %v680, 8
        %v721 = vmul.u32.u64.compose %v720, %v719
        %v722 = vextract.low.u32 %v721
        %v723 = vextract.high.u32 %v721
        %v724 = vmul.u32.u64.compose %v720, %v715
        %v725 = vextract.low.u32 %v724
        %v726 = vextract.high.u32 %v724
        %v727 = vmul.u32 %v720, %v711
        %v728 = vadd.s32 %v723, %v725
        %vm729 = vc.u32 %v723, %v725
        %v730 = vadd.s32 %v726, 1
        %v731 = vsel %vm729, %v730, %v726
        %v732 = vadd.s32 %v727, %v731
        %v733 = vadd.s32 %v732, 536870912
        %v734 = vshrl.u32 %v733, 30
        %v735 = vshll.u32 %v734, 30
        %v736 = vsub.s32 %v732, %v735
        %vm737 = vcmp.lt.s32.totalorder %v736, 0
        %v738 = vsub.s32 0, %v736
        %v739 = vsel %vm737, %v738, %v736
        %v740 = vclz %v739
        %v741 = vsub.s32 %v740, 2
        %vm742 = vcmp.gt.s32.totalorder 0, %v741
        %v743 = vsel %vm742, 0, %v741
        %v744 = vsub.s32 32, %v743
        %v745 = vshll.u32 %v736, %v743
        %v746 = vshrl.u32 %v728, %v744
        %v747 = vor.u32 %v745, %v746
        %v748 = vsub.s32 4294967266, %v743
        %v749 = vadd.s32 %v748, 127
        %v750 = vshll.u32 %v749, 23
        %v751 = vor.u32 4788187, %v750
        %v752 = vand.u32 2147483647, %v751
        %v754 = vcvt.s32.f32 %v747
        %v755 = vmul.f32 %v754, %v752
        %v756 = vxor.u32 %v755, 2147483648
        %v757 = vsel %vm674, %v756, %v755
        %v758 = vsub.s32 4, %v734
        %v759 = vsel %vm674, %v758, %v734
        %v760 = vsel %vm673, %v553, %v757
        %v761 = vsel %vm673, 0, %v759
        %v762 = vcosq.f32.pop %v760
        %v763 = vsinq.f32.pop %v760
        %vm764 = vweird.f32 %v553
        %v765 = vadd.s32 %v761, 3
        %v766 = vand.u32 %v765, 3
        %vm767 = vcmp.lt.s32.totalorder %v766, 2
        %vm768 = vcmp.eq.s32.totalorder %v766, 0
        %v769 = vxor.u32 %v763, 2147483648
        %v770 = vsel %vm768, %v762, %v769
        %vm771 = vcmp.eq.s32.totalorder %v766, 2
        %v772 = vxor.u32 %v762, 2147483648
        %v773 = vsel %vm771, %v772, %v763
        %v774 = vsel %vm767, %v770, %v773
        %v775 = vsel %vm764, nan, %v774
        %v776 = vand.u32 2147483647, %v554
        %vm777 = vcmp.le.f32.partialorder %v776, 0.7853982
        %vm778 = vcmp.lt.s32.totalorder %v554, 0
        %v779 = vand.u32 %v554, 2139095040
        %v780 = vshrl.u32 %v779, 23
        %v781 = vsub.s32 %v780, 127
        %v782 = vand.u32 2147483647, %v554
        %v783 = vand.u32 %v782, 8388607
        %v784 = vor.u32 %v783, 8388608
        %v785 = vsub.s32 0, %v784
        %v786 = vadd.s32 %v781, 1
        %vm787 = vcmp.gt.s32.totalorder %v786, 0
        %v788 = vsel %vm787, %v786, 0
        %v789 = vshrl.u32 %v788, 5
        %v790 = vand.u32 %v788, 31
        %v791 = vsub.s32 32, %v790
        %v792 = vshrl.u32 683565275, %v791
        %v793 = vshll.u32 683565275, %v790
        %v794 = vshrl.u32 2475754826, %v791
        %v795 = vor.u32 %v793, %v794
        %v796 = vshll.u32 2475754826, %v790
        %v797 = vshrl.u32 2131351028, %v791
        %v798 = vor.u32 %v796, %v797
        %v799 = vshll.u32 2131351028, %v790
        %v800 = vshrl.u32 2102212464, %v791
        %v801 = vor.u32 %v799, %v800
        %v802 = vshll.u32 2102212464, %v790
        %v803 = vshrl.u32 920167782, %v791
        %v804 = vor.u32 %v802, %v803
        %v805 = vshll.u32 920167782, %v790
        %v806 = vshrl.u32 1326507024, %v791
        %v807 = vor.u32 %v805, %v806
        %vm808 = vcmp.lt.s32.totalorder %v789, 1
        %vm809 = vcmp.lt.s32.totalorder %v789, 2
        %vm810 = vcmp.lt.s32.totalorder %v789, 3
        %vm811 = vcmp.lt.s32.totalorder %v789, 4
        %v812 = vsel %vm808, %v792, %v795
        %v813 = vsel %vm811, %v801, 2102212464
        %v814 = vsel %vm810, %v798, %v813
        %v815 = vsel %vm809, %v812, %v814
        %v816 = vsel %vm808, %v795, %v798
        %v817 = vsel %vm811, %v804, 920167782
        %v818 = vsel %vm810, %v801, %v817
        %v819 = vsel %vm809, %v816, %v818
        %v820 = vsel %vm808, %v798, %v801
        %v821 = vsel %vm811, %v807, 1326507024
        %v822 = vsel %vm810, %v804, %v821
        %v823 = vsel %vm809, %v820, %v822
        %v824 = vshll.u32 %v784, 8
        %v825 = vmul.u32.u64.compose %v824, %v823
        %v826 = vextract.low.u32 %v825
        %v827 = vextract.high.u32 %v825
        %v828 = vmul.u32.u64.compose %v824, %v819
        %v829 = vextract.low.u32 %v828
        %v830 = vextract.high.u32 %v828
        %v831 = vmul.u32 %v824, %v815
        %v832 = vadd.s32 %v827, %v829
        %vm833 = vc.u32 %v827, %v829
        %v834 = vadd.s32 %v830, 1
        %v835 = vsel %vm833, %v834, %v830
        %v836 = vadd.s32 %v831, %v835
        %v837 = vadd.s32 %v836, 536870912
        %v838 = vshrl.u32 %v837, 30
        %v839 = vshll.u32 %v838, 30
        %v840 = vsub.s32 %v836, %v839
        %vm841 = vcmp.lt.s32.totalorder %v840, 0
        %v842 = vsub.s32 0, %v840
        %v843 = vsel %vm841, %v842, %v840
        %v844 = vclz %v843
        %v845 = vsub.s32 %v844, 2
        %vm846 = vcmp.gt.s32.totalorder 0, %v845
        %v847 = vsel %vm846, 0, %v845
        %v848 = vsub.s32 32, %v847
        %v849 = vshll.u32 %v840, %v847
        %v850 = vshrl.u32 %v832, %v848
        %v851 = vor.u32 %v849, %v850
        %v852 = vsub.s32 4294967266, %v847
        %v853 = vadd.s32 %v852, 127
        %v854 = vshll.u32 %v853, 23
        %v855 = vor.u32 4788187, %v854
        %v856 = vand.u32 2147483647, %v855
        %v858 = vcvt.s32.f32 %v851
        %v859 = vmul.f32 %v858, %v856
        %v860 = vxor.u32 %v859, 2147483648
        %v861 = vsel %vm778, %v860, %v859
        %v862 = vsub.s32 4, %v838
        %v863 = vsel %vm778, %v862, %v838
        %v864 = vsel %vm777, %v554, %v861
        %v865 = vsel %vm777, 0, %v863
        %v866 = vcosq.f32.pop %v864
        %v867 = vsinq.f32.pop %v864
        %vm868 = vweird.f32 %v554
        %v869 = vadd.s32 %v865, 3
        %v870 = vand.u32 %v869, 3
        %vm871 = vcmp.lt.s32.totalorder %v870, 2
        %vm872 = vcmp.eq.s32.totalorder %v870, 0
        %v873 = vxor.u32 %v867, 2147483648
        %v874 = vsel %vm872, %v866, %v873
        %vm875 = vcmp.eq.s32.totalorder %v870, 2
        %v876 = vxor.u32 %v866, 2147483648
        %v877 = vsel %vm875, %v876, %v867
        %v878 = vsel %vm871, %v874, %v877
        %v879 = vsel %vm868, nan, %v878
        %v880 = vand.u32 2147483647, %v555
        %vm881 = vcmp.le.f32.partialorder %v880, 0.7853982
        %vm882 = vcmp.lt.s32.totalorder %v555, 0
        %v883 = vand.u32 %v555, 2139095040
        %v884 = vshrl.u32 %v883, 23
        %v885 = vsub.s32 %v884, 127
        %v886 = vand.u32 2147483647, %v555
        %v887 = vand.u32 %v886, 8388607
        %v888 = vor.u32 %v887, 8388608
        %v889 = vsub.s32 0, %v888
        %v890 = vadd.s32 %v885, 1
        %vm891 = vcmp.gt.s32.totalorder %v890, 0
        %v892 = vsel %vm891, %v890, 0
        %v893 = vshrl.u32 %v892, 5
        %v894 = vand.u32 %v892, 31
        %v895 = vsub.s32 32, %v894
        %v896 = vshrl.u32 683565275, %v895
        %v897 = vshll.u32 683565275, %v894
        %v898 = vshrl.u32 2475754826, %v895
        %v899 = vor.u32 %v897, %v898
        %v900 = vshll.u32 2475754826, %v894
        %v901 = vshrl.u32 2131351028, %v895
        %v902 = vor.u32 %v900, %v901
        %v903 = vshll.u32 2131351028, %v894
        %v904 = vshrl.u32 2102212464, %v895
        %v905 = vor.u32 %v903, %v904
        %v906 = vshll.u32 2102212464, %v894
        %v907 = vshrl.u32 920167782, %v895
        %v908 = vor.u32 %v906, %v907
        %v909 = vshll.u32 920167782, %v894
        %v910 = vshrl.u32 1326507024, %v895
        %v911 = vor.u32 %v909, %v910
        %vm912 = vcmp.lt.s32.totalorder %v893, 1
        %vm913 = vcmp.lt.s32.totalorder %v893, 2
        %vm914 = vcmp.lt.s32.totalorder %v893, 3
        %vm915 = vcmp.lt.s32.totalorder %v893, 4
        %v916 = vsel %vm912, %v896, %v899
        %v917 = vsel %vm915, %v905, 2102212464
        %v918 = vsel %vm914, %v902, %v917
        %v919 = vsel %vm913, %v916, %v918
        %v920 = vsel %vm912, %v899, %v902
        %v921 = vsel %vm915, %v908, 920167782
        %v922 = vsel %vm914, %v905, %v921
        %v923 = vsel %vm913, %v920, %v922
        %v924 = vsel %vm912, %v902, %v905
        %v925 = vsel %vm915, %v911, 1326507024
        %v926 = vsel %vm914, %v908, %v925
        %v927 = vsel %vm913, %v924, %v926
        %v928 = vshll.u32 %v888, 8
        %v929 = vmul.u32.u64.compose %v928, %v927
        %v930 = vextract.low.u32 %v929
        %v931 = vextract.high.u32 %v929
        %v932 = vmul.u32.u64.compose %v928, %v923
        %v933 = vextract.low.u32 %v932
        %v934 = vextract.high.u32 %v932
        %v935 = vmul.u32 %v928, %v919
        %v936 = vadd.s32 %v931, %v933
        %vm937 = vc.u32 %v931, %v933
        %v938 = vadd.s32 %v934, 1
        %v939 = vsel %vm937, %v938, %v934
        %v940 = vadd.s32 %v935, %v939
        %v941 = vadd.s32 %v940, 536870912
        %v942 = vshrl.u32 %v941, 30
        %v943 = vshll.u32 %v942, 30
        %v944 = vsub.s32 %v940, %v943
        %vm945 = vcmp.lt.s32.totalorder %v944, 0
        %v946 = vsub.s32 0, %v944
        %v947 = vsel %vm945, %v946, %v944
        %v948 = vclz %v947
        %v949 = vsub.s32 %v948, 2
        %vm950 = vcmp.gt.s32.totalorder 0, %v949
        %v951 = vsel %vm950, 0, %v949
        %v952 = vsub.s32 32, %v951
        %v953 = vshll.u32 %v944, %v951
        %v954 = vshrl.u32 %v936, %v952
        %v955 = vor.u32 %v953, %v954
        %v956 = vsub.s32 4294967266, %v951
        %v957 = vadd.s32 %v956, 127
        %v958 = vshll.u32 %v957, 23
        %v959 = vor.u32 4788187, %v958
        %v960 = vand.u32 2147483647, %v959
        %v962 = vcvt.s32.f32 %v955
        %v963 = vmul.f32 %v962, %v960
        %v964 = vxor.u32 %v963, 2147483648
        %v965 = vsel %vm882, %v964, %v963
        %v966 = vsub.s32 4, %v942
        %v967 = vsel %vm882, %v966, %v942
        %v968 = vsel %vm881, %v555, %v965
        %v969 = vsel %vm881, 0, %v967
        %v970 = vcosq.f32.pop %v968
        %v971 = vsinq.f32.pop %v968
        %vm972 = vweird.f32 %v555
        %v973 = vadd.s32 %v969, 3
        %v974 = vand.u32 %v973, 3
        %vm975 = vcmp.lt.s32.totalorder %v974, 2
        %vm976 = vcmp.eq.s32.totalorder %v974, 0
        %v977 = vxor.u32 %v971, 2147483648
        %v978 = vsel %vm976, %v970, %v977
        %vm979 = vcmp.eq.s32.totalorder %v974, 2
        %v980 = vxor.u32 %v970, 2147483648
        %v981 = vsel %vm979, %v980, %v971
        %v982 = vsel %vm975, %v978, %v981
        %v983 = vsel %vm972, nan, %v982
        %v984 = vand.u32 2147483647, %v556
        %vm985 = vcmp.le.f32.partialorder %v984, 0.7853982
        %vm986 = vcmp.lt.s32.totalorder %v556, 0
        %v987 = vand.u32 %v556, 2139095040
        %v988 = vshrl.u32 %v987, 23
        %v989 = vsub.s32 %v988, 127
        %v990 = vand.u32 2147483647, %v556
        %v991 = vand.u32 %v990, 8388607
        %v992 = vor.u32 %v991, 8388608
        %v993 = vsub.s32 0, %v992
        %v994 = vadd.s32 %v989, 1
        %vm995 = vcmp.gt.s32.totalorder %v994, 0
        %v996 = vsel %vm995, %v994, 0
        %v997 = vshrl.u32 %v996, 5
        %v998 = vand.u32 %v996, 31
        %v999 = vsub.s32 32, %v998
        %v1000 = vshrl.u32 683565275, %v999
        %v1001 = vshll.u32 683565275, %v998
        %v1002 = vshrl.u32 2475754826, %v999
        %v1003 = vor.u32 %v1001, %v1002
        %v1004 = vshll.u32 2475754826, %v998
        %v1005 = vshrl.u32 2131351028, %v999
        %v1006 = vor.u32 %v1004, %v1005
        %v1007 = vshll.u32 2131351028, %v998
        %v1008 = vshrl.u32 2102212464, %v999
        %v1009 = vor.u32 %v1007, %v1008
        %v1010 = vshll.u32 2102212464, %v998
        %v1011 = vshrl.u32 920167782, %v999
        %v1012 = vor.u32 %v1010, %v1011
        %v1013 = vshll.u32 920167782, %v998
        %v1014 = vshrl.u32 1326507024, %v999
        %v1015 = vor.u32 %v1013, %v1014
        %vm1016 = vcmp.lt.s32.totalorder %v997, 1
        %vm1017 = vcmp.lt.s32.totalorder %v997, 2
        %vm1018 = vcmp.lt.s32.totalorder %v997, 3
        %vm1019 = vcmp.lt.s32.totalorder %v997, 4
        %v1020 = vsel %vm1016, %v1000, %v1003
        %v1021 = vsel %vm1019, %v1009, 2102212464
        %v1022 = vsel %vm1018, %v1006, %v1021
        %v1023 = vsel %vm1017, %v1020, %v1022
        %v1024 = vsel %vm1016, %v1003, %v1006
        %v1025 = vsel %vm1019, %v1012, 920167782
        %v1026 = vsel %vm1018, %v1009, %v1025
        %v1027 = vsel %vm1017, %v1024, %v1026
        %v1028 = vsel %vm1016, %v1006, %v1009
        %v1029 = vsel %vm1019, %v1015, 1326507024
        %v1030 = vsel %vm1018, %v1012, %v1029
        %v1031 = vsel %vm1017, %v1028, %v1030
        %v1032 = vshll.u32 %v992, 8
        %v1033 = vmul.u32.u64.compose %v1032, %v1031
        %v1034 = vextract.low.u32 %v1033
        %v1035 = vextract.high.u32 %v1033
        %v1036 = vmul.u32.u64.compose %v1032, %v1027
        %v1037 = vextract.low.u32 %v1036
        %v1038 = vextract.high.u32 %v1036
        %v1039 = vmul.u32 %v1032, %v1023
        %v1040 = vadd.s32 %v1035, %v1037
        %vm1041 = vc.u32 %v1035, %v1037
        %v1042 = vadd.s32 %v1038, 1
        %v1043 = vsel %vm1041, %v1042, %v1038
        %v1044 = vadd.s32 %v1039, %v1043
        %v1045 = vadd.s32 %v1044, 536870912
        %v1046 = vshrl.u32 %v1045, 30
        %v1047 = vshll.u32 %v1046, 30
        %v1048 = vsub.s32 %v1044, %v1047
        %vm1049 = vcmp.lt.s32.totalorder %v1048, 0
        %v1050 = vsub.s32 0, %v1048
        %v1051 = vsel %vm1049, %v1050, %v1048
        %v1052 = vclz %v1051
        %v1053 = vsub.s32 %v1052, 2
        %vm1054 = vcmp.gt.s32.totalorder 0, %v1053
        %v1055 = vsel %vm1054, 0, %v1053
        %v1056 = vsub.s32 32, %v1055
        %v1057 = vshll.u32 %v1048, %v1055
        %v1058 = vshrl.u32 %v1040, %v1056
        %v1059 = vor.u32 %v1057, %v1058
        %v1060 = vsub.s32 4294967266, %v1055
        %v1061 = vadd.s32 %v1060, 127
        %v1062 = vshll.u32 %v1061, 23
        %v1063 = vor.u32 4788187, %v1062
        %v1064 = vand.u32 2147483647, %v1063
        %v1066 = vcvt.s32.f32 %v1059
        %v1067 = vmul.f32 %v1066, %v1064
        %v1068 = vxor.u32 %v1067, 2147483648
        %v1069 = vsel %vm986, %v1068, %v1067
        %v1070 = vsub.s32 4, %v1046
        %v1071 = vsel %vm986, %v1070, %v1046
        %v1072 = vsel %vm985, %v556, %v1069
        %v1073 = vsel %vm985, 0, %v1071
        %v1074 = vcosq.f32.pop %v1072
        %v1075 = vsinq.f32.pop %v1072
        %vm1076 = vweird.f32 %v556
        %v1077 = vadd.s32 %v1073, 3
        %v1078 = vand.u32 %v1077, 3
        %vm1079 = vcmp.lt.s32.totalorder %v1078, 2
        %vm1080 = vcmp.eq.s32.totalorder %v1078, 0
        %v1081 = vxor.u32 %v1075, 2147483648
        %v1082 = vsel %vm1080, %v1074, %v1081
        %vm1083 = vcmp.eq.s32.totalorder %v1078, 2
        %v1084 = vxor.u32 %v1074, 2147483648
        %v1085 = vsel %vm1083, %v1084, %v1075
        %v1086 = vsel %vm1079, %v1082, %v1085
        %v1087 = vsel %vm1076, nan, %v1086
        %v1088 = vand.u32 2147483647, %v557
        %vm1089 = vcmp.le.f32.partialorder %v1088, 0.7853982
        %vm1090 = vcmp.lt.s32.totalorder %v557, 0
        %v1091 = vand.u32 %v557, 2139095040
        %v1092 = vshrl.u32 %v1091, 23
        %v1093 = vsub.s32 %v1092, 127
        %v1094 = vand.u32 2147483647, %v557
        %v1095 = vand.u32 %v1094, 8388607
        %v1096 = vor.u32 %v1095, 8388608
        %v1097 = vsub.s32 0, %v1096
        %v1098 = vadd.s32 %v1093, 1
        %vm1099 = vcmp.gt.s32.totalorder %v1098, 0
        %v1100 = vsel %vm1099, %v1098, 0
        %v1101 = vshrl.u32 %v1100, 5
        %v1102 = vand.u32 %v1100, 31
        %v1103 = vsub.s32 32, %v1102
        %v1104 = vshrl.u32 683565275, %v1103
        %v1105 = vshll.u32 683565275, %v1102
        %v1106 = vshrl.u32 2475754826, %v1103
        %v1107 = vor.u32 %v1105, %v1106
        %v1108 = vshll.u32 2475754826, %v1102
        %v1109 = vshrl.u32 2131351028, %v1103
        %v1110 = vor.u32 %v1108, %v1109
        %v1111 = vshll.u32 2131351028, %v1102
        %v1112 = vshrl.u32 2102212464, %v1103
        %v1113 = vor.u32 %v1111, %v1112
        %v1114 = vshll.u32 2102212464, %v1102
        %v1115 = vshrl.u32 920167782, %v1103
        %v1116 = vor.u32 %v1114, %v1115
        %v1117 = vshll.u32 920167782, %v1102
        %v1118 = vshrl.u32 1326507024, %v1103
        %v1119 = vor.u32 %v1117, %v1118
        %vm1120 = vcmp.lt.s32.totalorder %v1101, 1
        %vm1121 = vcmp.lt.s32.totalorder %v1101, 2
        %vm1122 = vcmp.lt.s32.totalorder %v1101, 3
        %vm1123 = vcmp.lt.s32.totalorder %v1101, 4
        %v1124 = vsel %vm1120, %v1104, %v1107
        %v1125 = vsel %vm1123, %v1113, 2102212464
        %v1126 = vsel %vm1122, %v1110, %v1125
        %v1127 = vsel %vm1121, %v1124, %v1126
        %v1128 = vsel %vm1120, %v1107, %v1110
        %v1129 = vsel %vm1123, %v1116, 920167782
        %v1130 = vsel %vm1122, %v1113, %v1129
        %v1131 = vsel %vm1121, %v1128, %v1130
        %v1132 = vsel %vm1120, %v1110, %v1113
        %v1133 = vsel %vm1123, %v1119, 1326507024
        %v1134 = vsel %vm1122, %v1116, %v1133
        %v1135 = vsel %vm1121, %v1132, %v1134
        %v1136 = vshll.u32 %v1096, 8
        %v1137 = vmul.u32.u64.compose %v1136, %v1135
        %v1138 = vextract.low.u32 %v1137
        %v1139 = vextract.high.u32 %v1137
        %v1140 = vmul.u32.u64.compose %v1136, %v1131
        %v1141 = vextract.low.u32 %v1140
        %v1142 = vextract.high.u32 %v1140
        %v1143 = vmul.u32 %v1136, %v1127
        %v1144 = vadd.s32 %v1139, %v1141
        %vm1145 = vc.u32 %v1139, %v1141
        %v1146 = vadd.s32 %v1142, 1
        %v1147 = vsel %vm1145, %v1146, %v1142
        %v1148 = vadd.s32 %v1143, %v1147
        %v1149 = vadd.s32 %v1148, 536870912
        %v1150 = vshrl.u32 %v1149, 30
        %v1151 = vshll.u32 %v1150, 30
        %v1152 = vsub.s32 %v1148, %v1151
        %vm1153 = vcmp.lt.s32.totalorder %v1152, 0
        %v1154 = vsub.s32 0, %v1152
        %v1155 = vsel %vm1153, %v1154, %v1152
        %v1156 = vclz %v1155
        %v1157 = vsub.s32 %v1156, 2
        %vm1158 = vcmp.gt.s32.totalorder 0, %v1157
        %v1159 = vsel %vm1158, 0, %v1157
        %v1160 = vsub.s32 32, %v1159
        %v1161 = vshll.u32 %v1152, %v1159
        %v1162 = vshrl.u32 %v1144, %v1160
        %v1163 = vor.u32 %v1161, %v1162
        %v1164 = vsub.s32 4294967266, %v1159
        %v1165 = vadd.s32 %v1164, 127
        %v1166 = vshll.u32 %v1165, 23
        %v1167 = vor.u32 4788187, %v1166
        %v1168 = vand.u32 2147483647, %v1167
        %v1170 = vcvt.s32.f32 %v1163
        %v1171 = vmul.f32 %v1170, %v1168
        %v1172 = vxor.u32 %v1171, 2147483648
        %v1173 = vsel %vm1090, %v1172, %v1171
        %v1174 = vsub.s32 4, %v1150
        %v1175 = vsel %vm1090, %v1174, %v1150
        %v1176 = vsel %vm1089, %v557, %v1173
        %v1177 = vsel %vm1089, 0, %v1175
        %v1178 = vcosq.f32.pop %v1176
        %v1179 = vsinq.f32.pop %v1176
        %vm1180 = vweird.f32 %v557
        %v1181 = vadd.s32 %v1177, 3
        %v1182 = vand.u32 %v1181, 3
        %vm1183 = vcmp.lt.s32.totalorder %v1182, 2
        %vm1184 = vcmp.eq.s32.totalorder %v1182, 0
        %v1185 = vxor.u32 %v1179, 2147483648
        %v1186 = vsel %vm1184, %v1178, %v1185
        %vm1187 = vcmp.eq.s32.totalorder %v1182, 2
        %v1188 = vxor.u32 %v1178, 2147483648
        %v1189 = vsel %vm1187, %v1188, %v1179
        %v1190 = vsel %vm1183, %v1186, %v1189
        %v1191 = vsel %vm1180, nan, %v1190
        %v1192 = vand.u32 2147483647, %v558
        %vm1193 = vcmp.le.f32.partialorder %v1192, 0.7853982
        %vm1194 = vcmp.lt.s32.totalorder %v558, 0
        %v1195 = vand.u32 %v558, 2139095040
        %v1196 = vshrl.u32 %v1195, 23
        %v1197 = vsub.s32 %v1196, 127
        %v1198 = vand.u32 2147483647, %v558
        %v1199 = vand.u32 %v1198, 8388607
        %v1200 = vor.u32 %v1199, 8388608
        %v1201 = vsub.s32 0, %v1200
        %v1202 = vadd.s32 %v1197, 1
        %vm1203 = vcmp.gt.s32.totalorder %v1202, 0
        %v1204 = vsel %vm1203, %v1202, 0
        %v1205 = vshrl.u32 %v1204, 5
        %v1206 = vand.u32 %v1204, 31
        %v1207 = vsub.s32 32, %v1206
        %v1208 = vshrl.u32 683565275, %v1207
        %v1209 = vshll.u32 683565275, %v1206
        %v1210 = vshrl.u32 2475754826, %v1207
        %v1211 = vor.u32 %v1209, %v1210
        %v1212 = vshll.u32 2475754826, %v1206
        %v1213 = vshrl.u32 2131351028, %v1207
        %v1214 = vor.u32 %v1212, %v1213
        %v1215 = vshll.u32 2131351028, %v1206
        %v1216 = vshrl.u32 2102212464, %v1207
        %v1217 = vor.u32 %v1215, %v1216
        %v1218 = vshll.u32 2102212464, %v1206
        %v1219 = vshrl.u32 920167782, %v1207
        %v1220 = vor.u32 %v1218, %v1219
        %v1221 = vshll.u32 920167782, %v1206
        %v1222 = vshrl.u32 1326507024, %v1207
        %v1223 = vor.u32 %v1221, %v1222
        %vm1224 = vcmp.lt.s32.totalorder %v1205, 1
        %vm1225 = vcmp.lt.s32.totalorder %v1205, 2
        %vm1226 = vcmp.lt.s32.totalorder %v1205, 3
        %vm1227 = vcmp.lt.s32.totalorder %v1205, 4
        %v1228 = vsel %vm1224, %v1208, %v1211
        %v1229 = vsel %vm1227, %v1217, 2102212464
        %v1230 = vsel %vm1226, %v1214, %v1229
        %v1231 = vsel %vm1225, %v1228, %v1230
        %v1232 = vsel %vm1224, %v1211, %v1214
        %v1233 = vsel %vm1227, %v1220, 920167782
        %v1234 = vsel %vm1226, %v1217, %v1233
        %v1235 = vsel %vm1225, %v1232, %v1234
        %v1236 = vsel %vm1224, %v1214, %v1217
        %v1237 = vsel %vm1227, %v1223, 1326507024
        %v1238 = vsel %vm1226, %v1220, %v1237
        %v1239 = vsel %vm1225, %v1236, %v1238
        %v1240 = vshll.u32 %v1200, 8
        %v1241 = vmul.u32.u64.compose %v1240, %v1239
        %v1242 = vextract.low.u32 %v1241
        %v1243 = vextract.high.u32 %v1241
        %v1244 = vmul.u32.u64.compose %v1240, %v1235
        %v1245 = vextract.low.u32 %v1244
        %v1246 = vextract.high.u32 %v1244
        %v1247 = vmul.u32 %v1240, %v1231
        %v1248 = vadd.s32 %v1243, %v1245
        %vm1249 = vc.u32 %v1243, %v1245
        %v1250 = vadd.s32 %v1246, 1
        %v1251 = vsel %vm1249, %v1250, %v1246
        %v1252 = vadd.s32 %v1247, %v1251
        %v1253 = vadd.s32 %v1252, 536870912
        %v1254 = vshrl.u32 %v1253, 30
        %v1255 = vshll.u32 %v1254, 30
        %v1256 = vsub.s32 %v1252, %v1255
        %vm1257 = vcmp.lt.s32.totalorder %v1256, 0
        %v1258 = vsub.s32 0, %v1256
        %v1259 = vsel %vm1257, %v1258, %v1256
        %v1260 = vclz %v1259
        %v1261 = vsub.s32 %v1260, 2
        %vm1262 = vcmp.gt.s32.totalorder 0, %v1261
        %v1263 = vsel %vm1262, 0, %v1261
        %v1264 = vsub.s32 32, %v1263
        %v1265 = vshll.u32 %v1256, %v1263
        %v1266 = vshrl.u32 %v1248, %v1264
        %v1267 = vor.u32 %v1265, %v1266
        %v1268 = vsub.s32 4294967266, %v1263
        %v1269 = vadd.s32 %v1268, 127
        %v1270 = vshll.u32 %v1269, 23
        %v1271 = vor.u32 4788187, %v1270
        %v1272 = vand.u32 2147483647, %v1271
        %v1274 = vcvt.s32.f32 %v1267
        %v1275 = vmul.f32 %v1274, %v1272
        %v1276 = vxor.u32 %v1275, 2147483648
        %v1277 = vsel %vm1194, %v1276, %v1275
        %v1278 = vsub.s32 4, %v1254
        %v1279 = vsel %vm1194, %v1278, %v1254
        %v1280 = vsel %vm1193, %v558, %v1277
        %v1281 = vsel %vm1193, 0, %v1279
        %v1282 = vcosq.f32.pop %v1280
        %v1283 = vsinq.f32.pop %v1280
        %vm1284 = vweird.f32 %v558
        %v1285 = vadd.s32 %v1281, 3
        %v1286 = vand.u32 %v1285, 3
        %vm1287 = vcmp.lt.s32.totalorder %v1286, 2
        %vm1288 = vcmp.eq.s32.totalorder %v1286, 0
        %v1289 = vxor.u32 %v1283, 2147483648
        %v1290 = vsel %vm1288, %v1282, %v1289
        %vm1291 = vcmp.eq.s32.totalorder %v1286, 2
        %v1292 = vxor.u32 %v1282, 2147483648
        %v1293 = vsel %vm1291, %v1292, %v1283
        %v1294 = vsel %vm1287, %v1290, %v1293
        %v1295 = vsel %vm1284, nan, %v1294
        %v1296 = vand.u32 2147483647, %v559
        %vm1297 = vcmp.le.f32.partialorder %v1296, 0.7853982
        %vm1298 = vcmp.lt.s32.totalorder %v559, 0
        %v1299 = vand.u32 %v559, 2139095040
        %v1300 = vshrl.u32 %v1299, 23
        %v1301 = vsub.s32 %v1300, 127
        %v1302 = vand.u32 2147483647, %v559
        %v1303 = vand.u32 %v1302, 8388607
        %v1304 = vor.u32 %v1303, 8388608
        %v1305 = vsub.s32 0, %v1304
        %v1306 = vadd.s32 %v1301, 1
        %vm1307 = vcmp.gt.s32.totalorder %v1306, 0
        %v1308 = vsel %vm1307, %v1306, 0
        %v1309 = vshrl.u32 %v1308, 5
        %v1310 = vand.u32 %v1308, 31
        %v1311 = vsub.s32 32, %v1310
        %v1312 = vshrl.u32 683565275, %v1311
        %v1313 = vshll.u32 683565275, %v1310
        %v1314 = vshrl.u32 2475754826, %v1311
        %v1315 = vor.u32 %v1313, %v1314
        %v1316 = vshll.u32 2475754826, %v1310
        %v1317 = vshrl.u32 2131351028, %v1311
        %v1318 = vor.u32 %v1316, %v1317
        %v1319 = vshll.u32 2131351028, %v1310
        %v1320 = vshrl.u32 2102212464, %v1311
        %v1321 = vor.u32 %v1319, %v1320
        %v1322 = vshll.u32 2102212464, %v1310
        %v1323 = vshrl.u32 920167782, %v1311
        %v1324 = vor.u32 %v1322, %v1323
        %v1325 = vshll.u32 920167782, %v1310
        %v1326 = vshrl.u32 1326507024, %v1311
        %v1327 = vor.u32 %v1325, %v1326
        %vm1328 = vcmp.lt.s32.totalorder %v1309, 1
        %vm1329 = vcmp.lt.s32.totalorder %v1309, 2
        %vm1330 = vcmp.lt.s32.totalorder %v1309, 3
        %vm1331 = vcmp.lt.s32.totalorder %v1309, 4
        %v1332 = vsel %vm1328, %v1312, %v1315
        %v1333 = vsel %vm1331, %v1321, 2102212464
        %v1334 = vsel %vm1330, %v1318, %v1333
        %v1335 = vsel %vm1329, %v1332, %v1334
        %v1336 = vsel %vm1328, %v1315, %v1318
        %v1337 = vsel %vm1331, %v1324, 920167782
        %v1338 = vsel %vm1330, %v1321, %v1337
        %v1339 = vsel %vm1329, %v1336, %v1338
        %v1340 = vsel %vm1328, %v1318, %v1321
        %v1341 = vsel %vm1331, %v1327, 1326507024
        %v1342 = vsel %vm1330, %v1324, %v1341
        %v1343 = vsel %vm1329, %v1340, %v1342
        %v1344 = vshll.u32 %v1304, 8
        %v1345 = vmul.u32.u64.compose %v1344, %v1343
        %v1346 = vextract.low.u32 %v1345
        %v1347 = vextract.high.u32 %v1345
        %v1348 = vmul.u32.u64.compose %v1344, %v1339
        %v1349 = vextract.low.u32 %v1348
        %v1350 = vextract.high.u32 %v1348
        %v1351 = vmul.u32 %v1344, %v1335
        %v1352 = vadd.s32 %v1347, %v1349
        %vm1353 = vc.u32 %v1347, %v1349
        %v1354 = vadd.s32 %v1350, 1
        %v1355 = vsel %vm1353, %v1354, %v1350
        %v1356 = vadd.s32 %v1351, %v1355
        %v1357 = vadd.s32 %v1356, 536870912
        %v1358 = vshrl.u32 %v1357, 30
        %v1359 = vshll.u32 %v1358, 30
        %v1360 = vsub.s32 %v1356, %v1359
        %vm1361 = vcmp.lt.s32.totalorder %v1360, 0
        %v1362 = vsub.s32 0, %v1360
        %v1363 = vsel %vm1361, %v1362, %v1360
        %v1364 = vclz %v1363
        %v1365 = vsub.s32 %v1364, 2
        %vm1366 = vcmp.gt.s32.totalorder 0, %v1365
        %v1367 = vsel %vm1366, 0, %v1365
        %v1368 = vsub.s32 32, %v1367
        %v1369 = vshll.u32 %v1360, %v1367
        %v1370 = vshrl.u32 %v1352, %v1368
        %v1371 = vor.u32 %v1369, %v1370
        %v1372 = vsub.s32 4294967266, %v1367
        %v1373 = vadd.s32 %v1372, 127
        %v1374 = vshll.u32 %v1373, 23
        %v1375 = vor.u32 4788187, %v1374
        %v1376 = vand.u32 2147483647, %v1375
        %v1378 = vcvt.s32.f32 %v1371
        %v1379 = vmul.f32 %v1378, %v1376
        %v1380 = vxor.u32 %v1379, 2147483648
        %v1381 = vsel %vm1298, %v1380, %v1379
        %v1382 = vsub.s32 4, %v1358
        %v1383 = vsel %vm1298, %v1382, %v1358
        %v1384 = vsel %vm1297, %v559, %v1381
        %v1385 = vsel %vm1297, 0, %v1383
        %v1386 = vcosq.f32.pop %v1384
        %v1387 = vsinq.f32.pop %v1384
        %vm1388 = vweird.f32 %v559
        %v1389 = vadd.s32 %v1385, 3
        %v1390 = vand.u32 %v1389, 3
        %vm1391 = vcmp.lt.s32.totalorder %v1390, 2
        %vm1392 = vcmp.eq.s32.totalorder %v1390, 0
        %v1393 = vxor.u32 %v1387, 2147483648
        %v1394 = vsel %vm1392, %v1386, %v1393
        %vm1395 = vcmp.eq.s32.totalorder %v1390, 2
        %v1396 = vxor.u32 %v1386, 2147483648
        %v1397 = vsel %vm1395, %v1396, %v1387
        %v1398 = vsel %vm1391, %v1394, %v1397
        %v1399 = vsel %vm1388, nan, %v1398
        %v1400 = vand.u32 2147483647, %v560
        %vm1401 = vcmp.le.f32.partialorder %v1400, 0.7853982
        %vm1402 = vcmp.lt.s32.totalorder %v560, 0
        %v1403 = vand.u32 %v560, 2139095040
        %v1404 = vshrl.u32 %v1403, 23
        %v1405 = vsub.s32 %v1404, 127
        %v1406 = vand.u32 2147483647, %v560
        %v1407 = vand.u32 %v1406, 8388607
        %v1408 = vor.u32 %v1407, 8388608
        %v1409 = vsub.s32 0, %v1408
        %v1410 = vadd.s32 %v1405, 1
        %vm1411 = vcmp.gt.s32.totalorder %v1410, 0
        %v1412 = vsel %vm1411, %v1410, 0
        %v1413 = vshrl.u32 %v1412, 5
        %v1414 = vand.u32 %v1412, 31
        %v1415 = vsub.s32 32, %v1414
        %v1416 = vshrl.u32 683565275, %v1415
        %v1417 = vshll.u32 683565275, %v1414
        %v1418 = vshrl.u32 2475754826, %v1415
        %v1419 = vor.u32 %v1417, %v1418
        %v1420 = vshll.u32 2475754826, %v1414
        %v1421 = vshrl.u32 2131351028, %v1415
        %v1422 = vor.u32 %v1420, %v1421
        %v1423 = vshll.u32 2131351028, %v1414
        %v1424 = vshrl.u32 2102212464, %v1415
        %v1425 = vor.u32 %v1423, %v1424
        %v1426 = vshll.u32 2102212464, %v1414
        %v1427 = vshrl.u32 920167782, %v1415
        %v1428 = vor.u32 %v1426, %v1427
        %v1429 = vshll.u32 920167782, %v1414
        %v1430 = vshrl.u32 1326507024, %v1415
        %v1431 = vor.u32 %v1429, %v1430
        %vm1432 = vcmp.lt.s32.totalorder %v1413, 1
        %vm1433 = vcmp.lt.s32.totalorder %v1413, 2
        %vm1434 = vcmp.lt.s32.totalorder %v1413, 3
        %vm1435 = vcmp.lt.s32.totalorder %v1413, 4
        %v1436 = vsel %vm1432, %v1416, %v1419
        %v1437 = vsel %vm1435, %v1425, 2102212464
        %v1438 = vsel %vm1434, %v1422, %v1437
        %v1439 = vsel %vm1433, %v1436, %v1438
        %v1440 = vsel %vm1432, %v1419, %v1422
        %v1441 = vsel %vm1435, %v1428, 920167782
        %v1442 = vsel %vm1434, %v1425, %v1441
        %v1443 = vsel %vm1433, %v1440, %v1442
        %v1444 = vsel %vm1432, %v1422, %v1425
        %v1445 = vsel %vm1435, %v1431, 1326507024
        %v1446 = vsel %vm1434, %v1428, %v1445
        %v1447 = vsel %vm1433, %v1444, %v1446
        %v1448 = vshll.u32 %v1408, 8
        %v1449 = vmul.u32.u64.compose %v1448, %v1447
        %v1450 = vextract.low.u32 %v1449
        %v1451 = vextract.high.u32 %v1449
        %v1452 = vmul.u32.u64.compose %v1448, %v1443
        %v1453 = vextract.low.u32 %v1452
        %v1454 = vextract.high.u32 %v1452
        %v1455 = vmul.u32 %v1448, %v1439
        %v1456 = vadd.s32 %v1451, %v1453
        %vm1457 = vc.u32 %v1451, %v1453
        %v1458 = vadd.s32 %v1454, 1
        %v1459 = vsel %vm1457, %v1458, %v1454
        %v1460 = vadd.s32 %v1455, %v1459
        %v1461 = vadd.s32 %v1460, 536870912
        %v1462 = vshrl.u32 %v1461, 30
        %v1463 = vshll.u32 %v1462, 30
        %v1464 = vsub.s32 %v1460, %v1463
        %vm1465 = vcmp.lt.s32.totalorder %v1464, 0
        %v1466 = vsub.s32 0, %v1464
        %v1467 = vsel %vm1465, %v1466, %v1464
        %v1468 = vclz %v1467
        %v1469 = vsub.s32 %v1468, 2
        %vm1470 = vcmp.gt.s32.totalorder 0, %v1469
        %v1471 = vsel %vm1470, 0, %v1469
        %v1472 = vsub.s32 32, %v1471
        %v1473 = vshll.u32 %v1464, %v1471
        %v1474 = vshrl.u32 %v1456, %v1472
        %v1475 = vor.u32 %v1473, %v1474
        %v1476 = vsub.s32 4294967266, %v1471
        %v1477 = vadd.s32 %v1476, 127
        %v1478 = vshll.u32 %v1477, 23
        %v1479 = vor.u32 4788187, %v1478
        %v1480 = vand.u32 2147483647, %v1479
        %v1482 = vcvt.s32.f32 %v1475
        %v1483 = vmul.f32 %v1482, %v1480
        %v1484 = vxor.u32 %v1483, 2147483648
        %v1485 = vsel %vm1402, %v1484, %v1483
        %v1486 = vsub.s32 4, %v1462
        %v1487 = vsel %vm1402, %v1486, %v1462
        %v1488 = vsel %vm1401, %v560, %v1485
        %v1489 = vsel %vm1401, 0, %v1487
        %v1490 = vcosq.f32.pop %v1488
        %v1491 = vsinq.f32.pop %v1488
        %vm1492 = vweird.f32 %v560
        %v1493 = vadd.s32 %v1489, 3
        %v1494 = vand.u32 %v1493, 3
        %vm1495 = vcmp.lt.s32.totalorder %v1494, 2
        %vm1496 = vcmp.eq.s32.totalorder %v1494, 0
        %v1497 = vxor.u32 %v1491, 2147483648
        %v1498 = vsel %vm1496, %v1490, %v1497
        %vm1499 = vcmp.eq.s32.totalorder %v1494, 2
        %v1500 = vxor.u32 %v1490, 2147483648
        %v1501 = vsel %vm1499, %v1500, %v1491
        %v1502 = vsel %vm1495, %v1498, %v1501
        %v1503 = vsel %vm1492, nan, %v1502
        %v1504 = vand.u32 2147483647, %v561
        %vm1505 = vcmp.le.f32.partialorder %v1504, 0.7853982
        %vm1506 = vcmp.lt.s32.totalorder %v561, 0
        %v1507 = vand.u32 %v561, 2139095040
        %v1508 = vshrl.u32 %v1507, 23
        %v1509 = vsub.s32 %v1508, 127
        %v1510 = vand.u32 2147483647, %v561
        %v1511 = vand.u32 %v1510, 8388607
        %v1512 = vor.u32 %v1511, 8388608
        %v1513 = vsub.s32 0, %v1512
        %v1514 = vadd.s32 %v1509, 1
        %vm1515 = vcmp.gt.s32.totalorder %v1514, 0
        %v1516 = vsel %vm1515, %v1514, 0
        %v1517 = vshrl.u32 %v1516, 5
        %v1518 = vand.u32 %v1516, 31
        %v1519 = vsub.s32 32, %v1518
        %v1520 = vshrl.u32 683565275, %v1519
        %v1521 = vshll.u32 683565275, %v1518
        %v1522 = vshrl.u32 2475754826, %v1519
        %v1523 = vor.u32 %v1521, %v1522
        %v1524 = vshll.u32 2475754826, %v1518
        %v1525 = vshrl.u32 2131351028, %v1519
        %v1526 = vor.u32 %v1524, %v1525
        %v1527 = vshll.u32 2131351028, %v1518
        %v1528 = vshrl.u32 2102212464, %v1519
        %v1529 = vor.u32 %v1527, %v1528
        %v1530 = vshll.u32 2102212464, %v1518
        %v1531 = vshrl.u32 920167782, %v1519
        %v1532 = vor.u32 %v1530, %v1531
        %v1533 = vshll.u32 920167782, %v1518
        %v1534 = vshrl.u32 1326507024, %v1519
        %v1535 = vor.u32 %v1533, %v1534
        %vm1536 = vcmp.lt.s32.totalorder %v1517, 1
        %vm1537 = vcmp.lt.s32.totalorder %v1517, 2
        %vm1538 = vcmp.lt.s32.totalorder %v1517, 3
        %vm1539 = vcmp.lt.s32.totalorder %v1517, 4
        %v1540 = vsel %vm1536, %v1520, %v1523
        %v1541 = vsel %vm1539, %v1529, 2102212464
        %v1542 = vsel %vm1538, %v1526, %v1541
        %v1543 = vsel %vm1537, %v1540, %v1542
        %v1544 = vsel %vm1536, %v1523, %v1526
        %v1545 = vsel %vm1539, %v1532, 920167782
        %v1546 = vsel %vm1538, %v1529, %v1545
        %v1547 = vsel %vm1537, %v1544, %v1546
        %v1548 = vsel %vm1536, %v1526, %v1529
        %v1549 = vsel %vm1539, %v1535, 1326507024
        %v1550 = vsel %vm1538, %v1532, %v1549
        %v1551 = vsel %vm1537, %v1548, %v1550
        %v1552 = vshll.u32 %v1512, 8
        %v1553 = vmul.u32.u64.compose %v1552, %v1551
        %v1554 = vextract.low.u32 %v1553
        %v1555 = vextract.high.u32 %v1553
        %v1556 = vmul.u32.u64.compose %v1552, %v1547
        %v1557 = vextract.low.u32 %v1556
        %v1558 = vextract.high.u32 %v1556
        %v1559 = vmul.u32 %v1552, %v1543
        %v1560 = vadd.s32 %v1555, %v1557
        %vm1561 = vc.u32 %v1555, %v1557
        %v1562 = vadd.s32 %v1558, 1
        %v1563 = vsel %vm1561, %v1562, %v1558
        %v1564 = vadd.s32 %v1559, %v1563
        %v1565 = vadd.s32 %v1564, 536870912
        %v1566 = vshrl.u32 %v1565, 30
        %v1567 = vshll.u32 %v1566, 30
        %v1568 = vsub.s32 %v1564, %v1567
        %vm1569 = vcmp.lt.s32.totalorder %v1568, 0
        %v1570 = vsub.s32 0, %v1568
        %v1571 = vsel %vm1569, %v1570, %v1568
        %v1572 = vclz %v1571
        %v1573 = vsub.s32 %v1572, 2
        %vm1574 = vcmp.gt.s32.totalorder 0, %v1573
        %v1575 = vsel %vm1574, 0, %v1573
        %v1576 = vsub.s32 32, %v1575
        %v1577 = vshll.u32 %v1568, %v1575
        %v1578 = vshrl.u32 %v1560, %v1576
        %v1579 = vor.u32 %v1577, %v1578
        %v1580 = vsub.s32 4294967266, %v1575
        %v1581 = vadd.s32 %v1580, 127
        %v1582 = vshll.u32 %v1581, 23
        %v1583 = vor.u32 4788187, %v1582
        %v1584 = vand.u32 2147483647, %v1583
        %v1586 = vcvt.s32.f32 %v1579
        %v1587 = vmul.f32 %v1586, %v1584
        %v1588 = vxor.u32 %v1587, 2147483648
        %v1589 = vsel %vm1506, %v1588, %v1587
        %v1590 = vsub.s32 4, %v1566
        %v1591 = vsel %vm1506, %v1590, %v1566
        %v1592 = vsel %vm1505, %v561, %v1589
        %v1593 = vsel %vm1505, 0, %v1591
        %v1594 = vcosq.f32.pop %v1592
        %v1595 = vsinq.f32.pop %v1592
        %vm1596 = vweird.f32 %v561
        %v1597 = vadd.s32 %v1593, 3
        %v1598 = vand.u32 %v1597, 3
        %vm1599 = vcmp.lt.s32.totalorder %v1598, 2
        %vm1600 = vcmp.eq.s32.totalorder %v1598, 0
        %v1601 = vxor.u32 %v1595, 2147483648
        %v1602 = vsel %vm1600, %v1594, %v1601
        %vm1603 = vcmp.eq.s32.totalorder %v1598, 2
        %v1604 = vxor.u32 %v1594, 2147483648
        %v1605 = vsel %vm1603, %v1604, %v1595
        %v1606 = vsel %vm1599, %v1602, %v1605
        %v1607 = vsel %vm1596, nan, %v1606
        %v1608 = vand.u32 2147483647, %v562
        %vm1609 = vcmp.le.f32.partialorder %v1608, 0.7853982
        %vm1610 = vcmp.lt.s32.totalorder %v562, 0
        %v1611 = vand.u32 %v562, 2139095040
        %v1612 = vshrl.u32 %v1611, 23
        %v1613 = vsub.s32 %v1612, 127
        %v1614 = vand.u32 2147483647, %v562
        %v1615 = vand.u32 %v1614, 8388607
        %v1616 = vor.u32 %v1615, 8388608
        %v1617 = vsub.s32 0, %v1616
        %v1618 = vadd.s32 %v1613, 1
        %vm1619 = vcmp.gt.s32.totalorder %v1618, 0
        %v1620 = vsel %vm1619, %v1618, 0
        %v1621 = vshrl.u32 %v1620, 5
        %v1622 = vand.u32 %v1620, 31
        %v1623 = vsub.s32 32, %v1622
        %v1624 = vshrl.u32 683565275, %v1623
        %v1625 = vshll.u32 683565275, %v1622
        %v1626 = vshrl.u32 2475754826, %v1623
        %v1627 = vor.u32 %v1625, %v1626
        %v1628 = vshll.u32 2475754826, %v1622
        %v1629 = vshrl.u32 2131351028, %v1623
        %v1630 = vor.u32 %v1628, %v1629
        %v1631 = vshll.u32 2131351028, %v1622
        %v1632 = vshrl.u32 2102212464, %v1623
        %v1633 = vor.u32 %v1631, %v1632
        %v1634 = vshll.u32 2102212464, %v1622
        %v1635 = vshrl.u32 920167782, %v1623
        %v1636 = vor.u32 %v1634, %v1635
        %v1637 = vshll.u32 920167782, %v1622
        %v1638 = vshrl.u32 1326507024, %v1623
        %v1639 = vor.u32 %v1637, %v1638
        %vm1640 = vcmp.lt.s32.totalorder %v1621, 1
        %vm1641 = vcmp.lt.s32.totalorder %v1621, 2
        %vm1642 = vcmp.lt.s32.totalorder %v1621, 3
        %vm1643 = vcmp.lt.s32.totalorder %v1621, 4
        %v1644 = vsel %vm1640, %v1624, %v1627
        %v1645 = vsel %vm1643, %v1633, 2102212464
        %v1646 = vsel %vm1642, %v1630, %v1645
        %v1647 = vsel %vm1641, %v1644, %v1646
        %v1648 = vsel %vm1640, %v1627, %v1630
        %v1649 = vsel %vm1643, %v1636, 920167782
        %v1650 = vsel %vm1642, %v1633, %v1649
        %v1651 = vsel %vm1641, %v1648, %v1650
        %v1652 = vsel %vm1640, %v1630, %v1633
        %v1653 = vsel %vm1643, %v1639, 1326507024
        %v1654 = vsel %vm1642, %v1636, %v1653
        %v1655 = vsel %vm1641, %v1652, %v1654
        %v1656 = vshll.u32 %v1616, 8
        %v1657 = vmul.u32.u64.compose %v1656, %v1655
        %v1658 = vextract.low.u32 %v1657
        %v1659 = vextract.high.u32 %v1657
        %v1660 = vmul.u32.u64.compose %v1656, %v1651
        %v1661 = vextract.low.u32 %v1660
        %v1662 = vextract.high.u32 %v1660
        %v1663 = vmul.u32 %v1656, %v1647
        %v1664 = vadd.s32 %v1659, %v1661
        %vm1665 = vc.u32 %v1659, %v1661
        %v1666 = vadd.s32 %v1662, 1
        %v1667 = vsel %vm1665, %v1666, %v1662
        %v1668 = vadd.s32 %v1663, %v1667
        %v1669 = vadd.s32 %v1668, 536870912
        %v1670 = vshrl.u32 %v1669, 30
        %v1671 = vshll.u32 %v1670, 30
        %v1672 = vsub.s32 %v1668, %v1671
        %vm1673 = vcmp.lt.s32.totalorder %v1672, 0
        %v1674 = vsub.s32 0, %v1672
        %v1675 = vsel %vm1673, %v1674, %v1672
        %v1676 = vclz %v1675
        %v1677 = vsub.s32 %v1676, 2
        %vm1678 = vcmp.gt.s32.totalorder 0, %v1677
        %v1679 = vsel %vm1678, 0, %v1677
        %v1680 = vsub.s32 32, %v1679
        %v1681 = vshll.u32 %v1672, %v1679
        %v1682 = vshrl.u32 %v1664, %v1680
        %v1683 = vor.u32 %v1681, %v1682
        %v1684 = vsub.s32 4294967266, %v1679
        %v1685 = vadd.s32 %v1684, 127
        %v1686 = vshll.u32 %v1685, 23
        %v1687 = vor.u32 4788187, %v1686
        %v1688 = vand.u32 2147483647, %v1687
        %v1690 = vcvt.s32.f32 %v1683
        %v1691 = vmul.f32 %v1690, %v1688
        %v1692 = vxor.u32 %v1691, 2147483648
        %v1693 = vsel %vm1610, %v1692, %v1691
        %v1694 = vsub.s32 4, %v1670
        %v1695 = vsel %vm1610, %v1694, %v1670
        %v1696 = vsel %vm1609, %v562, %v1693
        %v1697 = vsel %vm1609, 0, %v1695
        %v1698 = vcosq.f32.pop %v1696
        %v1699 = vsinq.f32.pop %v1696
        %vm1700 = vweird.f32 %v562
        %v1701 = vadd.s32 %v1697, 3
        %v1702 = vand.u32 %v1701, 3
        %vm1703 = vcmp.lt.s32.totalorder %v1702, 2
        %vm1704 = vcmp.eq.s32.totalorder %v1702, 0
        %v1705 = vxor.u32 %v1699, 2147483648
        %v1706 = vsel %vm1704, %v1698, %v1705
        %vm1707 = vcmp.eq.s32.totalorder %v1702, 2
        %v1708 = vxor.u32 %v1698, 2147483648
        %v1709 = vsel %vm1707, %v1708, %v1699
        %v1710 = vsel %vm1703, %v1706, %v1709
        %v1711 = vsel %vm1700, nan, %v1710
        %v1712 = vand.u32 2147483647, %v563
        %vm1713 = vcmp.le.f32.partialorder %v1712, 0.7853982
        %vm1714 = vcmp.lt.s32.totalorder %v563, 0
        %v1715 = vand.u32 %v563, 2139095040
        %v1716 = vshrl.u32 %v1715, 23
        %v1717 = vsub.s32 %v1716, 127
        %v1718 = vand.u32 2147483647, %v563
        %v1719 = vand.u32 %v1718, 8388607
        %v1720 = vor.u32 %v1719, 8388608
        %v1721 = vsub.s32 0, %v1720
        %v1722 = vadd.s32 %v1717, 1
        %vm1723 = vcmp.gt.s32.totalorder %v1722, 0
        %v1724 = vsel %vm1723, %v1722, 0
        %v1725 = vshrl.u32 %v1724, 5
        %v1726 = vand.u32 %v1724, 31
        %v1727 = vsub.s32 32, %v1726
        %v1728 = vshrl.u32 683565275, %v1727
        %v1729 = vshll.u32 683565275, %v1726
        %v1730 = vshrl.u32 2475754826, %v1727
        %v1731 = vor.u32 %v1729, %v1730
        %v1732 = vshll.u32 2475754826, %v1726
        %v1733 = vshrl.u32 2131351028, %v1727
        %v1734 = vor.u32 %v1732, %v1733
        %v1735 = vshll.u32 2131351028, %v1726
        %v1736 = vshrl.u32 2102212464, %v1727
        %v1737 = vor.u32 %v1735, %v1736
        %v1738 = vshll.u32 2102212464, %v1726
        %v1739 = vshrl.u32 920167782, %v1727
        %v1740 = vor.u32 %v1738, %v1739
        %v1741 = vshll.u32 920167782, %v1726
        %v1742 = vshrl.u32 1326507024, %v1727
        %v1743 = vor.u32 %v1741, %v1742
        %vm1744 = vcmp.lt.s32.totalorder %v1725, 1
        %vm1745 = vcmp.lt.s32.totalorder %v1725, 2
        %vm1746 = vcmp.lt.s32.totalorder %v1725, 3
        %vm1747 = vcmp.lt.s32.totalorder %v1725, 4
        %v1748 = vsel %vm1744, %v1728, %v1731
        %v1749 = vsel %vm1747, %v1737, 2102212464
        %v1750 = vsel %vm1746, %v1734, %v1749
        %v1751 = vsel %vm1745, %v1748, %v1750
        %v1752 = vsel %vm1744, %v1731, %v1734
        %v1753 = vsel %vm1747, %v1740, 920167782
        %v1754 = vsel %vm1746, %v1737, %v1753
        %v1755 = vsel %vm1745, %v1752, %v1754
        %v1756 = vsel %vm1744, %v1734, %v1737
        %v1757 = vsel %vm1747, %v1743, 1326507024
        %v1758 = vsel %vm1746, %v1740, %v1757
        %v1759 = vsel %vm1745, %v1756, %v1758
        %v1760 = vshll.u32 %v1720, 8
        %v1761 = vmul.u32.u64.compose %v1760, %v1759
        %v1762 = vextract.low.u32 %v1761
        %v1763 = vextract.high.u32 %v1761
        %v1764 = vmul.u32.u64.compose %v1760, %v1755
        %v1765 = vextract.low.u32 %v1764
        %v1766 = vextract.high.u32 %v1764
        %v1767 = vmul.u32 %v1760, %v1751
        %v1768 = vadd.s32 %v1763, %v1765
        %vm1769 = vc.u32 %v1763, %v1765
        %v1770 = vadd.s32 %v1766, 1
        %v1771 = vsel %vm1769, %v1770, %v1766
        %v1772 = vadd.s32 %v1767, %v1771
        %v1773 = vadd.s32 %v1772, 536870912
        %v1774 = vshrl.u32 %v1773, 30
        %v1775 = vshll.u32 %v1774, 30
        %v1776 = vsub.s32 %v1772, %v1775
        %vm1777 = vcmp.lt.s32.totalorder %v1776, 0
        %v1778 = vsub.s32 0, %v1776
        %v1779 = vsel %vm1777, %v1778, %v1776
        %v1780 = vclz %v1779
        %v1781 = vsub.s32 %v1780, 2
        %vm1782 = vcmp.gt.s32.totalorder 0, %v1781
        %v1783 = vsel %vm1782, 0, %v1781
        %v1784 = vsub.s32 32, %v1783
        %v1785 = vshll.u32 %v1776, %v1783
        %v1786 = vshrl.u32 %v1768, %v1784
        %v1787 = vor.u32 %v1785, %v1786
        %v1788 = vsub.s32 4294967266, %v1783
        %v1789 = vadd.s32 %v1788, 127
        %v1790 = vshll.u32 %v1789, 23
        %v1791 = vor.u32 4788187, %v1790
        %v1792 = vand.u32 2147483647, %v1791
        %v1794 = vcvt.s32.f32 %v1787
        %v1795 = vmul.f32 %v1794, %v1792
        %v1796 = vxor.u32 %v1795, 2147483648
        %v1797 = vsel %vm1714, %v1796, %v1795
        %v1798 = vsub.s32 4, %v1774
        %v1799 = vsel %vm1714, %v1798, %v1774
        %v1800 = vsel %vm1713, %v563, %v1797
        %v1801 = vsel %vm1713, 0, %v1799
        %v1802 = vcosq.f32.pop %v1800
        %v1803 = vsinq.f32.pop %v1800
        %vm1804 = vweird.f32 %v563
        %v1805 = vadd.s32 %v1801, 3
        %v1806 = vand.u32 %v1805, 3
        %vm1807 = vcmp.lt.s32.totalorder %v1806, 2
        %vm1808 = vcmp.eq.s32.totalorder %v1806, 0
        %v1809 = vxor.u32 %v1803, 2147483648
        %v1810 = vsel %vm1808, %v1802, %v1809
        %vm1811 = vcmp.eq.s32.totalorder %v1806, 2
        %v1812 = vxor.u32 %v1802, 2147483648
        %v1813 = vsel %vm1811, %v1812, %v1803
        %v1814 = vsel %vm1807, %v1810, %v1813
        %v1815 = vsel %vm1804, nan, %v1814
        %v1816 = vand.u32 2147483647, %v564
        %vm1817 = vcmp.le.f32.partialorder %v1816, 0.7853982
        %vm1818 = vcmp.lt.s32.totalorder %v564, 0
        %v1819 = vand.u32 %v564, 2139095040
        %v1820 = vshrl.u32 %v1819, 23
        %v1821 = vsub.s32 %v1820, 127
        %v1822 = vand.u32 2147483647, %v564
        %v1823 = vand.u32 %v1822, 8388607
        %v1824 = vor.u32 %v1823, 8388608
        %v1825 = vsub.s32 0, %v1824
        %v1826 = vadd.s32 %v1821, 1
        %vm1827 = vcmp.gt.s32.totalorder %v1826, 0
        %v1828 = vsel %vm1827, %v1826, 0
        %v1829 = vshrl.u32 %v1828, 5
        %v1830 = vand.u32 %v1828, 31
        %v1831 = vsub.s32 32, %v1830
        %v1832 = vshrl.u32 683565275, %v1831
        %v1833 = vshll.u32 683565275, %v1830
        %v1834 = vshrl.u32 2475754826, %v1831
        %v1835 = vor.u32 %v1833, %v1834
        %v1836 = vshll.u32 2475754826, %v1830
        %v1837 = vshrl.u32 2131351028, %v1831
        %v1838 = vor.u32 %v1836, %v1837
        %v1839 = vshll.u32 2131351028, %v1830
        %v1840 = vshrl.u32 2102212464, %v1831
        %v1841 = vor.u32 %v1839, %v1840
        %v1842 = vshll.u32 2102212464, %v1830
        %v1843 = vshrl.u32 920167782, %v1831
        %v1844 = vor.u32 %v1842, %v1843
        %v1845 = vshll.u32 920167782, %v1830
        %v1846 = vshrl.u32 1326507024, %v1831
        %v1847 = vor.u32 %v1845, %v1846
        %vm1848 = vcmp.lt.s32.totalorder %v1829, 1
        %vm1849 = vcmp.lt.s32.totalorder %v1829, 2
        %vm1850 = vcmp.lt.s32.totalorder %v1829, 3
        %vm1851 = vcmp.lt.s32.totalorder %v1829, 4
        %v1852 = vsel %vm1848, %v1832, %v1835
        %v1853 = vsel %vm1851, %v1841, 2102212464
        %v1854 = vsel %vm1850, %v1838, %v1853
        %v1855 = vsel %vm1849, %v1852, %v1854
        %v1856 = vsel %vm1848, %v1835, %v1838
        %v1857 = vsel %vm1851, %v1844, 920167782
        %v1858 = vsel %vm1850, %v1841, %v1857
        %v1859 = vsel %vm1849, %v1856, %v1858
        %v1860 = vsel %vm1848, %v1838, %v1841
        %v1861 = vsel %vm1851, %v1847, 1326507024
        %v1862 = vsel %vm1850, %v1844, %v1861
        %v1863 = vsel %vm1849, %v1860, %v1862
        %v1864 = vshll.u32 %v1824, 8
        %v1865 = vmul.u32.u64.compose %v1864, %v1863
        %v1866 = vextract.low.u32 %v1865
        %v1867 = vextract.high.u32 %v1865
        %v1868 = vmul.u32.u64.compose %v1864, %v1859
        %v1869 = vextract.low.u32 %v1868
        %v1870 = vextract.high.u32 %v1868
        %v1871 = vmul.u32 %v1864, %v1855
        %v1872 = vadd.s32 %v1867, %v1869
        %vm1873 = vc.u32 %v1867, %v1869
        %v1874 = vadd.s32 %v1870, 1
        %v1875 = vsel %vm1873, %v1874, %v1870
        %v1876 = vadd.s32 %v1871, %v1875
        %v1877 = vadd.s32 %v1876, 536870912
        %v1878 = vshrl.u32 %v1877, 30
        %v1879 = vshll.u32 %v1878, 30
        %v1880 = vsub.s32 %v1876, %v1879
        %vm1881 = vcmp.lt.s32.totalorder %v1880, 0
        %v1882 = vsub.s32 0, %v1880
        %v1883 = vsel %vm1881, %v1882, %v1880
        %v1884 = vclz %v1883
        %v1885 = vsub.s32 %v1884, 2
        %vm1886 = vcmp.gt.s32.totalorder 0, %v1885
        %v1887 = vsel %vm1886, 0, %v1885
        %v1888 = vsub.s32 32, %v1887
        %v1889 = vshll.u32 %v1880, %v1887
        %v1890 = vshrl.u32 %v1872, %v1888
        %v1891 = vor.u32 %v1889, %v1890
        %v1892 = vsub.s32 4294967266, %v1887
        %v1893 = vadd.s32 %v1892, 127
        %v1894 = vshll.u32 %v1893, 23
        %v1895 = vor.u32 4788187, %v1894
        %v1896 = vand.u32 2147483647, %v1895
        %v1898 = vcvt.s32.f32 %v1891
        %v1899 = vmul.f32 %v1898, %v1896
        %v1900 = vxor.u32 %v1899, 2147483648
        %v1901 = vsel %vm1818, %v1900, %v1899
        %v1902 = vsub.s32 4, %v1878
        %v1903 = vsel %vm1818, %v1902, %v1878
        %v1904 = vsel %vm1817, %v564, %v1901
        %v1905 = vsel %vm1817, 0, %v1903
        %v1906 = vcosq.f32.pop %v1904
        %v1907 = vsinq.f32.pop %v1904
        %vm1908 = vweird.f32 %v564
        %v1909 = vadd.s32 %v1905, 3
        %v1910 = vand.u32 %v1909, 3
        %vm1911 = vcmp.lt.s32.totalorder %v1910, 2
        %vm1912 = vcmp.eq.s32.totalorder %v1910, 0
        %v1913 = vxor.u32 %v1907, 2147483648
        %v1914 = vsel %vm1912, %v1906, %v1913
        %vm1915 = vcmp.eq.s32.totalorder %v1910, 2
        %v1916 = vxor.u32 %v1906, 2147483648
        %v1917 = vsel %vm1915, %v1916, %v1907
        %v1918 = vsel %vm1911, %v1914, %v1917
        %v1919 = vsel %vm1908, nan, %v1918
        %v1920 = vand.u32 2147483647, %v565
        %vm1921 = vcmp.le.f32.partialorder %v1920, 0.7853982
        %vm1922 = vcmp.lt.s32.totalorder %v565, 0
        %v1923 = vand.u32 %v565, 2139095040
        %v1924 = vshrl.u32 %v1923, 23
        %v1925 = vsub.s32 %v1924, 127
        %v1926 = vand.u32 2147483647, %v565
        %v1927 = vand.u32 %v1926, 8388607
        %v1928 = vor.u32 %v1927, 8388608
        %v1929 = vsub.s32 0, %v1928
        %v1930 = vadd.s32 %v1925, 1
        %vm1931 = vcmp.gt.s32.totalorder %v1930, 0
        %v1932 = vsel %vm1931, %v1930, 0
        %v1933 = vshrl.u32 %v1932, 5
        %v1934 = vand.u32 %v1932, 31
        %v1935 = vsub.s32 32, %v1934
        %v1936 = vshrl.u32 683565275, %v1935
        %v1937 = vshll.u32 683565275, %v1934
        %v1938 = vshrl.u32 2475754826, %v1935
        %v1939 = vor.u32 %v1937, %v1938
        %v1940 = vshll.u32 2475754826, %v1934
        %v1941 = vshrl.u32 2131351028, %v1935
        %v1942 = vor.u32 %v1940, %v1941
        %v1943 = vshll.u32 2131351028, %v1934
        %v1944 = vshrl.u32 2102212464, %v1935
        %v1945 = vor.u32 %v1943, %v1944
        %v1946 = vshll.u32 2102212464, %v1934
        %v1947 = vshrl.u32 920167782, %v1935
        %v1948 = vor.u32 %v1946, %v1947
        %v1949 = vshll.u32 920167782, %v1934
        %v1950 = vshrl.u32 1326507024, %v1935
        %v1951 = vor.u32 %v1949, %v1950
        %vm1952 = vcmp.lt.s32.totalorder %v1933, 1
        %vm1953 = vcmp.lt.s32.totalorder %v1933, 2
        %vm1954 = vcmp.lt.s32.totalorder %v1933, 3
        %vm1955 = vcmp.lt.s32.totalorder %v1933, 4
        %v1956 = vsel %vm1952, %v1936, %v1939
        %v1957 = vsel %vm1955, %v1945, 2102212464
        %v1958 = vsel %vm1954, %v1942, %v1957
        %v1959 = vsel %vm1953, %v1956, %v1958
        %v1960 = vsel %vm1952, %v1939, %v1942
        %v1961 = vsel %vm1955, %v1948, 920167782
        %v1962 = vsel %vm1954, %v1945, %v1961
        %v1963 = vsel %vm1953, %v1960, %v1962
        %v1964 = vsel %vm1952, %v1942, %v1945
        %v1965 = vsel %vm1955, %v1951, 1326507024
        %v1966 = vsel %vm1954, %v1948, %v1965
        %v1967 = vsel %vm1953, %v1964, %v1966
        %v1968 = vshll.u32 %v1928, 8
        %v1969 = vmul.u32.u64.compose %v1968, %v1967
        %v1970 = vextract.low.u32 %v1969
        %v1971 = vextract.high.u32 %v1969
        %v1972 = vmul.u32.u64.compose %v1968, %v1963
        %v1973 = vextract.low.u32 %v1972
        %v1974 = vextract.high.u32 %v1972
        %v1975 = vmul.u32 %v1968, %v1959
        %v1976 = vadd.s32 %v1971, %v1973
        %vm1977 = vc.u32 %v1971, %v1973
        %v1978 = vadd.s32 %v1974, 1
        %v1979 = vsel %vm1977, %v1978, %v1974
        %v1980 = vadd.s32 %v1975, %v1979
        %v1981 = vadd.s32 %v1980, 536870912
        %v1982 = vshrl.u32 %v1981, 30
        %v1983 = vshll.u32 %v1982, 30
        %v1984 = vsub.s32 %v1980, %v1983
        %vm1985 = vcmp.lt.s32.totalorder %v1984, 0
        %v1986 = vsub.s32 0, %v1984
        %v1987 = vsel %vm1985, %v1986, %v1984
        %v1988 = vclz %v1987
        %v1989 = vsub.s32 %v1988, 2
        %vm1990 = vcmp.gt.s32.totalorder 0, %v1989
        %v1991 = vsel %vm1990, 0, %v1989
        %v1992 = vsub.s32 32, %v1991
        %v1993 = vshll.u32 %v1984, %v1991
        %v1994 = vshrl.u32 %v1976, %v1992
        %v1995 = vor.u32 %v1993, %v1994
        %v1996 = vsub.s32 4294967266, %v1991
        %v1997 = vadd.s32 %v1996, 127
        %v1998 = vshll.u32 %v1997, 23
        %v1999 = vor.u32 4788187, %v1998
        %v2000 = vand.u32 2147483647, %v1999
        %v2002 = vcvt.s32.f32 %v1995
        %v2003 = vmul.f32 %v2002, %v2000
        %v2004 = vxor.u32 %v2003, 2147483648
        %v2005 = vsel %vm1922, %v2004, %v2003
        %v2006 = vsub.s32 4, %v1982
        %v2007 = vsel %vm1922, %v2006, %v1982
        %v2008 = vsel %vm1921, %v565, %v2005
        %v2009 = vsel %vm1921, 0, %v2007
        %v2010 = vcosq.f32.pop %v2008
        %v2011 = vsinq.f32.pop %v2008
        %vm2012 = vweird.f32 %v565
        %v2013 = vadd.s32 %v2009, 3
        %v2014 = vand.u32 %v2013, 3
        %vm2015 = vcmp.lt.s32.totalorder %v2014, 2
        %vm2016 = vcmp.eq.s32.totalorder %v2014, 0
        %v2017 = vxor.u32 %v2011, 2147483648
        %v2018 = vsel %vm2016, %v2010, %v2017
        %vm2019 = vcmp.eq.s32.totalorder %v2014, 2
        %v2020 = vxor.u32 %v2010, 2147483648
        %v2021 = vsel %vm2019, %v2020, %v2011
        %v2022 = vsel %vm2015, %v2018, %v2021
        %v2023 = vsel %vm2012, nan, %v2022
        %v2024 = vand.u32 2147483647, %v566
        %vm2025 = vcmp.le.f32.partialorder %v2024, 0.7853982
        %vm2026 = vcmp.lt.s32.totalorder %v566, 0
        %v2027 = vand.u32 %v566, 2139095040
        %v2028 = vshrl.u32 %v2027, 23
        %v2029 = vsub.s32 %v2028, 127
        %v2030 = vand.u32 2147483647, %v566
        %v2031 = vand.u32 %v2030, 8388607
        %v2032 = vor.u32 %v2031, 8388608
        %v2033 = vsub.s32 0, %v2032
        %v2034 = vadd.s32 %v2029, 1
        %vm2035 = vcmp.gt.s32.totalorder %v2034, 0
        %v2036 = vsel %vm2035, %v2034, 0
        %v2037 = vshrl.u32 %v2036, 5
        %v2038 = vand.u32 %v2036, 31
        %v2039 = vsub.s32 32, %v2038
        %v2040 = vshrl.u32 683565275, %v2039
        %v2041 = vshll.u32 683565275, %v2038
        %v2042 = vshrl.u32 2475754826, %v2039
        %v2043 = vor.u32 %v2041, %v2042
        %v2044 = vshll.u32 2475754826, %v2038
        %v2045 = vshrl.u32 2131351028, %v2039
        %v2046 = vor.u32 %v2044, %v2045
        %v2047 = vshll.u32 2131351028, %v2038
        %v2048 = vshrl.u32 2102212464, %v2039
        %v2049 = vor.u32 %v2047, %v2048
        %v2050 = vshll.u32 2102212464, %v2038
        %v2051 = vshrl.u32 920167782, %v2039
        %v2052 = vor.u32 %v2050, %v2051
        %v2053 = vshll.u32 920167782, %v2038
        %v2054 = vshrl.u32 1326507024, %v2039
        %v2055 = vor.u32 %v2053, %v2054
        %vm2056 = vcmp.lt.s32.totalorder %v2037, 1
        %vm2057 = vcmp.lt.s32.totalorder %v2037, 2
        %vm2058 = vcmp.lt.s32.totalorder %v2037, 3
        %vm2059 = vcmp.lt.s32.totalorder %v2037, 4
        %v2060 = vsel %vm2056, %v2040, %v2043
        %v2061 = vsel %vm2059, %v2049, 2102212464
        %v2062 = vsel %vm2058, %v2046, %v2061
        %v2063 = vsel %vm2057, %v2060, %v2062
        %v2064 = vsel %vm2056, %v2043, %v2046
        %v2065 = vsel %vm2059, %v2052, 920167782
        %v2066 = vsel %vm2058, %v2049, %v2065
        %v2067 = vsel %vm2057, %v2064, %v2066
        %v2068 = vsel %vm2056, %v2046, %v2049
        %v2069 = vsel %vm2059, %v2055, 1326507024
        %v2070 = vsel %vm2058, %v2052, %v2069
        %v2071 = vsel %vm2057, %v2068, %v2070
        %v2072 = vshll.u32 %v2032, 8
        %v2073 = vmul.u32.u64.compose %v2072, %v2071
        %v2074 = vextract.low.u32 %v2073
        %v2075 = vextract.high.u32 %v2073
        %v2076 = vmul.u32.u64.compose %v2072, %v2067
        %v2077 = vextract.low.u32 %v2076
        %v2078 = vextract.high.u32 %v2076
        %v2079 = vmul.u32 %v2072, %v2063
        %v2080 = vadd.s32 %v2075, %v2077
        %vm2081 = vc.u32 %v2075, %v2077
        %v2082 = vadd.s32 %v2078, 1
        %v2083 = vsel %vm2081, %v2082, %v2078
        %v2084 = vadd.s32 %v2079, %v2083
        %v2085 = vadd.s32 %v2084, 536870912
        %v2086 = vshrl.u32 %v2085, 30
        %v2087 = vshll.u32 %v2086, 30
        %v2088 = vsub.s32 %v2084, %v2087
        %vm2089 = vcmp.lt.s32.totalorder %v2088, 0
        %v2090 = vsub.s32 0, %v2088
        %v2091 = vsel %vm2089, %v2090, %v2088
        %v2092 = vclz %v2091
        %v2093 = vsub.s32 %v2092, 2
        %vm2094 = vcmp.gt.s32.totalorder 0, %v2093
        %v2095 = vsel %vm2094, 0, %v2093
        %v2096 = vsub.s32 32, %v2095
        %v2097 = vshll.u32 %v2088, %v2095
        %v2098 = vshrl.u32 %v2080, %v2096
        %v2099 = vor.u32 %v2097, %v2098
        %v2100 = vsub.s32 4294967266, %v2095
        %v2101 = vadd.s32 %v2100, 127
        %v2102 = vshll.u32 %v2101, 23
        %v2103 = vor.u32 4788187, %v2102
        %v2104 = vand.u32 2147483647, %v2103
        %v2106 = vcvt.s32.f32 %v2099
        %v2107 = vmul.f32 %v2106, %v2104
        %v2108 = vxor.u32 %v2107, 2147483648
        %v2109 = vsel %vm2026, %v2108, %v2107
        %v2110 = vsub.s32 4, %v2086
        %v2111 = vsel %vm2026, %v2110, %v2086
        %v2112 = vsel %vm2025, %v566, %v2109
        %v2113 = vsel %vm2025, 0, %v2111
        %v2114 = vcosq.f32.pop %v2112
        %v2115 = vsinq.f32.pop %v2112
        %vm2116 = vweird.f32 %v566
        %v2117 = vadd.s32 %v2113, 3
        %v2118 = vand.u32 %v2117, 3
        %vm2119 = vcmp.lt.s32.totalorder %v2118, 2
        %vm2120 = vcmp.eq.s32.totalorder %v2118, 0
        %v2121 = vxor.u32 %v2115, 2147483648
        %v2122 = vsel %vm2120, %v2114, %v2121
        %vm2123 = vcmp.eq.s32.totalorder %v2118, 2
        %v2124 = vxor.u32 %v2114, 2147483648
        %v2125 = vsel %vm2123, %v2124, %v2115
        %v2126 = vsel %vm2119, %v2122, %v2125
        %v2127 = vsel %vm2116, nan, %v2126
        %v2128 = vand.u32 2147483647, %v567
        %vm2129 = vcmp.le.f32.partialorder %v2128, 0.7853982
        %vm2130 = vcmp.lt.s32.totalorder %v567, 0
        %v2131 = vand.u32 %v567, 2139095040
        %v2132 = vshrl.u32 %v2131, 23
        %v2133 = vsub.s32 %v2132, 127
        %v2134 = vand.u32 2147483647, %v567
        %v2135 = vand.u32 %v2134, 8388607
        %v2136 = vor.u32 %v2135, 8388608
        %v2137 = vsub.s32 0, %v2136
        %v2138 = vadd.s32 %v2133, 1
        %vm2139 = vcmp.gt.s32.totalorder %v2138, 0
        %v2140 = vsel %vm2139, %v2138, 0
        %v2141 = vshrl.u32 %v2140, 5
        %v2142 = vand.u32 %v2140, 31
        %v2143 = vsub.s32 32, %v2142
        %v2144 = vshrl.u32 683565275, %v2143
        %v2145 = vshll.u32 683565275, %v2142
        %v2146 = vshrl.u32 2475754826, %v2143
        %v2147 = vor.u32 %v2145, %v2146
        %v2148 = vshll.u32 2475754826, %v2142
        %v2149 = vshrl.u32 2131351028, %v2143
        %v2150 = vor.u32 %v2148, %v2149
        %v2151 = vshll.u32 2131351028, %v2142
        %v2152 = vshrl.u32 2102212464, %v2143
        %v2153 = vor.u32 %v2151, %v2152
        %v2154 = vshll.u32 2102212464, %v2142
        %v2155 = vshrl.u32 920167782, %v2143
        %v2156 = vor.u32 %v2154, %v2155
        %v2157 = vshll.u32 920167782, %v2142
        %v2158 = vshrl.u32 1326507024, %v2143
        %v2159 = vor.u32 %v2157, %v2158
        %vm2160 = vcmp.lt.s32.totalorder %v2141, 1
        %vm2161 = vcmp.lt.s32.totalorder %v2141, 2
        %vm2162 = vcmp.lt.s32.totalorder %v2141, 3
        %vm2163 = vcmp.lt.s32.totalorder %v2141, 4
        %v2164 = vsel %vm2160, %v2144, %v2147
        %v2165 = vsel %vm2163, %v2153, 2102212464
        %v2166 = vsel %vm2162, %v2150, %v2165
        %v2167 = vsel %vm2161, %v2164, %v2166
        %v2168 = vsel %vm2160, %v2147, %v2150
        %v2169 = vsel %vm2163, %v2156, 920167782
        %v2170 = vsel %vm2162, %v2153, %v2169
        %v2171 = vsel %vm2161, %v2168, %v2170
        %v2172 = vsel %vm2160, %v2150, %v2153
        %v2173 = vsel %vm2163, %v2159, 1326507024
        %v2174 = vsel %vm2162, %v2156, %v2173
        %v2175 = vsel %vm2161, %v2172, %v2174
        %v2176 = vshll.u32 %v2136, 8
        %v2177 = vmul.u32.u64.compose %v2176, %v2175
        %v2178 = vextract.low.u32 %v2177
        %v2179 = vextract.high.u32 %v2177
        %v2180 = vmul.u32.u64.compose %v2176, %v2171
        %v2181 = vextract.low.u32 %v2180
        %v2182 = vextract.high.u32 %v2180
        %v2183 = vmul.u32 %v2176, %v2167
        %v2184 = vadd.s32 %v2179, %v2181
        %vm2185 = vc.u32 %v2179, %v2181
        %v2186 = vadd.s32 %v2182, 1
        %v2187 = vsel %vm2185, %v2186, %v2182
        %v2188 = vadd.s32 %v2183, %v2187
        %v2189 = vadd.s32 %v2188, 536870912
        %v2190 = vshrl.u32 %v2189, 30
        %v2191 = vshll.u32 %v2190, 30
        %v2192 = vsub.s32 %v2188, %v2191
        %vm2193 = vcmp.lt.s32.totalorder %v2192, 0
        %v2194 = vsub.s32 0, %v2192
        %v2195 = vsel %vm2193, %v2194, %v2192
        %v2196 = vclz %v2195
        %v2197 = vsub.s32 %v2196, 2
        %vm2198 = vcmp.gt.s32.totalorder 0, %v2197
        %v2199 = vsel %vm2198, 0, %v2197
        %v2200 = vsub.s32 32, %v2199
        %v2201 = vshll.u32 %v2192, %v2199
        %v2202 = vshrl.u32 %v2184, %v2200
        %v2203 = vor.u32 %v2201, %v2202
        %v2204 = vsub.s32 4294967266, %v2199
        %v2205 = vadd.s32 %v2204, 127
        %v2206 = vshll.u32 %v2205, 23
        %v2207 = vor.u32 4788187, %v2206
        %v2208 = vand.u32 2147483647, %v2207
        %v2210 = vcvt.s32.f32 %v2203
        %v2211 = vmul.f32 %v2210, %v2208
        %v2212 = vxor.u32 %v2211, 2147483648
        %v2213 = vsel %vm2130, %v2212, %v2211
        %v2214 = vsub.s32 4, %v2190
        %v2215 = vsel %vm2130, %v2214, %v2190
        %v2216 = vsel %vm2129, %v567, %v2213
        %v2217 = vsel %vm2129, 0, %v2215
        %v2218 = vcosq.f32.pop %v2216
        %v2219 = vsinq.f32.pop %v2216
        %vm2220 = vweird.f32 %v567
        %v2221 = vadd.s32 %v2217, 3
        %v2222 = vand.u32 %v2221, 3
        %vm2223 = vcmp.lt.s32.totalorder %v2222, 2
        %vm2224 = vcmp.eq.s32.totalorder %v2222, 0
        %v2225 = vxor.u32 %v2219, 2147483648
        %v2226 = vsel %vm2224, %v2218, %v2225
        %vm2227 = vcmp.eq.s32.totalorder %v2222, 2
        %v2228 = vxor.u32 %v2218, 2147483648
        %v2229 = vsel %vm2227, %v2228, %v2219
        %v2230 = vsel %vm2223, %v2226, %v2229
        %v2231 = vsel %vm2220, nan, %v2230
        %v2232 = vpack.c.bf16 %v775, %v671
        %v2233 = vpack.c.bf16 %v983, %v879
        %v2234 = vpack.c.bf16 %v1191, %v1087
        %v2235 = vpack.c.bf16 %v1399, %v1295
        %v2236 = vpack.c.bf16 %v1607, %v1503
        %v2237 = vpack.c.bf16 %v1815, %v1711
        %v2238 = vpack.c.bf16 %v2023, %v1919
        %v2239 = vpack.c.bf16 %v2231, %v2127
        %v2240 = vld [vmem:[#allocation2] sm:$0xf]
        %v2241 = vld [vmem:[#allocation2 + $0x4] sm:$0xf]
        %v2242 = vld [vmem:[#allocation2 + $0x8] sm:$0xf]
        %v2243 = vld [vmem:[#allocation2 + $0xc] sm:$0xf]
        %v2244 = vld [vmem:[%s4] sm:$0x1]
        %v2246 = vlaneseq
        %v2247 = vshrl.u32 %v2246, 7
        %v2248 = vsub.s32 0, %v2247
        %v2249 = vrot.slane %v2244, %v2248
        %v2255 = vunpack.c.l.b16 %v2240
        %v2256 = vunpack.c.l.b16 %v2241
        %v2257 = vunpack.c.l.b16 %v2242
        %v2258 = vunpack.c.l.b16 %v2243
        %v2259 = vpack.c.b16 %v2256, %v2255
        %v2260 = vpack.c.b16 %v2258, %v2257
        %vm2263 = vcmask 261120
        %v2265 = vsel %vm2263, %v2232, 0
        %v2268 = vsel %vm2263, %v2233, 0
        %v2271 = vsel %vm2263, %v2234, 0
        %v2274 = vsel %vm2263, %v2235, 0
        %v2277 = vsel %vm2263, %v2236, 0
        %v2280 = vsel %vm2263, %v2237, 0
        %v2283 = vsel %vm2263, %v2238, 0
        %v2286 = vsel %vm2263, %v2239, 0
        %2288 = vmatprep.subr.bf16.mxu0 0
        %2289 = vmatpush1.bf16.msra.mxu0 0
        %2290 = vmatprep.subr.bf16.mxu0 0
        %2291 = vmatpush1.bf16.msra.mxu0 0
        %2292 = vmatprep.subr.bf16.mxu0 0
        %2293 = vmatpush1.bf16.msra.mxu0 0
        %2294 = vmatprep.subr.bf16.mxu0 0
        %2295 = vmatpush1.bf16.msra.mxu0 0
        %2296 = vmatprep.subr.bf16.mxu0 0
        %2297 = vmatpush1.bf16.msra.mxu0 0
        %2298 = vmatprep.subr.bf16.mxu0 0
        %2299 = vmatpush1.bf16.msra.mxu0 0
        %2300 = vmatprep.subr.bf16.mxu0 0
        %2301 = vmatpush1.bf16.msra.mxu0 %v2260
        %2302 = vmatprep.subr.bf16.mxu0 0
        %2303 = vmatpush1.bf16.msra.mxu0 %v2259
        %2304 = vmatprep.subr.bf16.mxu0 0
        %2305 = vmatpush2.bf16.msra.mxu0 0
        %2306 = vmatprep.subr.bf16.mxu0 0
        %2307 = vmatpush2.bf16.msra.mxu0 0
        %2308 = vmatprep.subr.bf16.mxu0 0
        %2309 = vmatpush2.bf16.msra.mxu0 0
        %2310 = vmatprep.subr.bf16.mxu0 0
        %2311 = vmatpush2.bf16.msra.mxu0 0
        %2312 = vmatprep.subr.bf16.mxu0 0
        %2313 = vmatpush2.bf16.msra.mxu0 0
        %2314 = vmatprep.subr.bf16.mxu0 0
        %2315 = vmatpush2.bf16.msra.mxu0 0
        %2316 = vmatprep.subr.bf16.mxu0 0
        %2317 = vmatpush2.bf16.msra.mxu0 0
        %2318 = vmatprep.subr.bf16.mxu0 0
        %2319 = vmatpush2.bf16.msra.mxu0 0
        %2320 = vmatprep.mubr.bf16.mxu0 0
        %2321 = vmatmul.mubr.bf16.gmra.mxu0 %v2265
        %v2322 = vpop.f32.mrf.mxu0
        %v2323 = vadd.f32 %v2249, %v2322
        %v2324 = vpop.f32.mrf.mxu0
        %v2325 = vpop.f32.mrf.mxu0
        %v2326 = vadd.f32 %v2249, %v2325
        %v2327 = vpop.f32.mrf.mxu0
        %2328 = vmatprep.mubr.bf16.mxu0 0
        %2329 = vmatmul.mubr.bf16.gmra.mxu0 %v2268
        %v2330 = vpop.f32.mrf.mxu0
        %v2331 = vadd.f32 %v2249, %v2330
        %v2332 = vpop.f32.mrf.mxu0
        %v2333 = vpop.f32.mrf.mxu0
        %v2334 = vadd.f32 %v2249, %v2333
        %v2335 = vpop.f32.mrf.mxu0
        %2336 = vmatprep.mubr.bf16.mxu0 0
        %2337 = vmatmul.mubr.bf16.gmra.mxu0 %v2271
        %v2338 = vpop.f32.mrf.mxu0
        %v2339 = vadd.f32 %v2249, %v2338
        %v2340 = vpop.f32.mrf.mxu0
        %v2341 = vpop.f32.mrf.mxu0
        %v2342 = vadd.f32 %v2249, %v2341
        %v2343 = vpop.f32.mrf.mxu0
        %2344 = vmatprep.mubr.bf16.mxu0 0
        %2345 = vmatmul.mubr.bf16.gmra.mxu0 %v2274
        %v2346 = vpop.f32.mrf.mxu0
        %v2347 = vadd.f32 %v2249, %v2346
        %v2348 = vpop.f32.mrf.mxu0
        %v2349 = vpop.f32.mrf.mxu0
        %v2350 = vadd.f32 %v2249, %v2349
        %v2351 = vpop.f32.mrf.mxu0
        %2352 = vmatprep.mubr.bf16.mxu0 0
        %2353 = vmatmul.mubr.bf16.gmra.mxu0 %v2277
        %v2354 = vpop.f32.mrf.mxu0
        %v2355 = vadd.f32 %v2249, %v2354
        %v2356 = vpop.f32.mrf.mxu0
        %v2357 = vpop.f32.mrf.mxu0
        %v2358 = vadd.f32 %v2249, %v2357
        %v2359 = vpop.f32.mrf.mxu0
        %2360 = vmatprep.mubr.bf16.mxu0 0
        %2361 = vmatmul.mubr.bf16.gmra.mxu0 %v2280
        %v2362 = vpop.f32.mrf.mxu0
        %v2363 = vadd.f32 %v2249, %v2362
        %v2364 = vpop.f32.mrf.mxu0
        %v2365 = vpop.f32.mrf.mxu0
        %v2366 = vadd.f32 %v2249, %v2365
        %v2367 = vpop.f32.mrf.mxu0
        %2368 = vmatprep.mubr.bf16.mxu0 0
        %2369 = vmatmul.mubr.bf16.gmra.mxu0 %v2283
        %v2370 = vpop.f32.mrf.mxu0
        %v2371 = vadd.f32 %v2249, %v2370
        %v2372 = vpop.f32.mrf.mxu0
        %v2373 = vpop.f32.mrf.mxu0
        %v2374 = vadd.f32 %v2249, %v2373
        %v2375 = vpop.f32.mrf.mxu0
        %2376 = vmatprep.mubr.bf16.mxu0 0
        %2377 = vmatmul.mubr.bf16.gmra.mxu0 %v2286
        %v2378 = vpop.f32.mrf.mxu0
        %v2379 = vadd.f32 %v2249, %v2378
        %v2380 = vpop.f32.mrf.mxu0
        %v2381 = vpop.f32.mrf.mxu0
        %v2382 = vadd.f32 %v2249, %v2381
        %v2383 = vpop.f32.mrf.mxu0
        %2384 = vdwg.mxu0
        %vm2385 = vcmp.ge.f32.partialorder %v2323, 0.0
        %vm2386 = vcmp.ge.f32.partialorder %v2326, 0.0
        %vm2387 = vcmp.ge.f32.partialorder %v2331, 0.0
        %vm2388 = vcmp.ge.f32.partialorder %v2334, 0.0
        %vm2389 = vcmp.ge.f32.partialorder %v2339, 0.0
        %vm2390 = vcmp.ge.f32.partialorder %v2342, 0.0
        %vm2391 = vcmp.ge.f32.partialorder %v2347, 0.0
        %vm2392 = vcmp.ge.f32.partialorder %v2350, 0.0
        %vm2393 = vcmp.ge.f32.partialorder %v2355, 0.0
        %vm2394 = vcmp.ge.f32.partialorder %v2358, 0.0
        %vm2395 = vcmp.ge.f32.partialorder %v2363, 0.0
        %vm2396 = vcmp.ge.f32.partialorder %v2366, 0.0
        %vm2397 = vcmp.ge.f32.partialorder %v2371, 0.0
        %vm2398 = vcmp.ge.f32.partialorder %v2374, 0.0
        %vm2399 = vcmp.ge.f32.partialorder %v2379, 0.0
        %vm2400 = vcmp.ge.f32.partialorder %v2382, 0.0
        %v2401 = vmul.f32 %v2323, 0.2
        %v2402 = vmul.f32 %v2326, 0.2
        %v2403 = vmul.f32 %v2331, 0.2
        %v2404 = vmul.f32 %v2334, 0.2
        %v2405 = vmul.f32 %v2339, 0.2
        %v2406 = vmul.f32 %v2342, 0.2
        %v2407 = vmul.f32 %v2347, 0.2
        %v2408 = vmul.f32 %v2350, 0.2
        %v2409 = vmul.f32 %v2355, 0.2
        %v2410 = vmul.f32 %v2358, 0.2
        %v2411 = vmul.f32 %v2363, 0.2
        %v2412 = vmul.f32 %v2366, 0.2
        %v2413 = vmul.f32 %v2371, 0.2
        %v2414 = vmul.f32 %v2374, 0.2
        %v2415 = vmul.f32 %v2379, 0.2
        %v2416 = vmul.f32 %v2382, 0.2
        %v2417 = vsel %vm2385, %v2323, %v2401
        %v2418 = vsel %vm2386, %v2326, %v2402
        %v2419 = vsel %vm2387, %v2331, %v2403
        %v2420 = vsel %vm2388, %v2334, %v2404
        %v2421 = vsel %vm2389, %v2339, %v2405
        %v2422 = vsel %vm2390, %v2342, %v2406
        %v2423 = vsel %vm2391, %v2347, %v2407
        %v2424 = vsel %vm2392, %v2350, %v2408
        %v2425 = vsel %vm2393, %v2355, %v2409
        %v2426 = vsel %vm2394, %v2358, %v2410
        %v2427 = vsel %vm2395, %v2363, %v2411
        %v2428 = vsel %vm2396, %v2366, %v2412
        %v2429 = vsel %vm2397, %v2371, %v2413
        %v2430 = vsel %vm2398, %v2374, %v2414
        %v2431 = vsel %vm2399, %v2379, %v2415
        %v2432 = vsel %vm2400, %v2382, %v2416
        %v2433 = vld [vmem:[%s420] sm:$0xff]
        %v2434 = vld [vmem:[%s420 + $0x8] sm:$0xff]
        %v2435 = vld [vmem:[%s420 + $0x10] sm:$0xff]
        %v2436 = vld [vmem:[%s420 + $0x18] sm:$0xff]
        %v2437 = vld [vmem:[%s420 + $0x20] sm:$0xff]
        %v2438 = vld [vmem:[%s420 + $0x28] sm:$0xff]
        %v2439 = vld [vmem:[%s420 + $0x30] sm:$0xff]
        %v2440 = vld [vmem:[%s420 + $0x38] sm:$0xff]
        %v2441 = vld [vmem:[%s420 + $0x40] sm:$0xff]
        %v2442 = vld [vmem:[%s420 + $0x48] sm:$0xff]
        %v2443 = vld [vmem:[%s420 + $0x50] sm:$0xff]
        %v2444 = vld [vmem:[%s420 + $0x58] sm:$0xff]
        %v2445 = vld [vmem:[%s420 + $0x60] sm:$0xff]
        %v2446 = vld [vmem:[%s420 + $0x68] sm:$0xff]
        %v2447 = vld [vmem:[%s420 + $0x70] sm:$0xff]
        %v2448 = vld [vmem:[%s420 + $0x78] sm:$0xff]
        %v2449 = vadd.f32 %v2433, %v2417
        %v2450 = vadd.f32 %v2434, %v2418
        %v2451 = vadd.f32 %v2435, %v2419
        %v2452 = vadd.f32 %v2436, %v2420
        %v2453 = vadd.f32 %v2437, %v2421
        %v2454 = vadd.f32 %v2438, %v2422
        %v2455 = vadd.f32 %v2439, %v2423
        %v2456 = vadd.f32 %v2440, %v2424
        %v2457 = vadd.f32 %v2441, %v2425
        %v2458 = vadd.f32 %v2442, %v2426
        %v2459 = vadd.f32 %v2443, %v2427
        %v2460 = vadd.f32 %v2444, %v2428
        %v2461 = vadd.f32 %v2445, %v2429
        %v2462 = vadd.f32 %v2446, %v2430
        %v2463 = vadd.f32 %v2447, %v2431
        %v2464 = vadd.f32 %v2448, %v2432
        %v2465 = vld [vmem:[#allocation5] sm:$0xf]
        %v2466 = vld [vmem:[#allocation5 + $0x4] sm:$0xf]
        %v2467 = vld [vmem:[#allocation5 + $0x8] sm:$0xf]
        %v2468 = vld [vmem:[#allocation5 + $0xc] sm:$0xf]
        %v2469 = vld [vmem:[#allocation5 + $0x10] sm:$0xf]
        %v2470 = vld [vmem:[#allocation5 + $0x14] sm:$0xf]
        %v2471 = vld [vmem:[#allocation5 + $0x18] sm:$0xf]
        %v2472 = vld [vmem:[#allocation5 + $0x1c] sm:$0xf]
        %v2473 = vld [vmem:[#allocation5 + $0x20] sm:$0xf]
        %v2474 = vld [vmem:[#allocation5 + $0x24] sm:$0xf]
        %v2475 = vld [vmem:[#allocation5 + $0x28] sm:$0xf]
        %v2476 = vld [vmem:[#allocation5 + $0x2c] sm:$0xf]
        %v2477 = vld [vmem:[#allocation5 + $0x30] sm:$0xf]
        %v2478 = vld [vmem:[#allocation5 + $0x34] sm:$0xf]
        %v2479 = vld [vmem:[#allocation5 + $0x38] sm:$0xf]
        %v2480 = vld [vmem:[#allocation5 + $0x3c] sm:$0xf]
        %v2481 = vld [vmem:[#allocation7] sm:$0xff]
        %v2482 = vld [vmem:[#allocation7 + $0x8] sm:$0xf]
        %v2483 = vld [vmem:[#allocation7 + $0xc] sm:$0xff]
        %v2484 = vld [vmem:[#allocation7 + $0x14] sm:$0xf]
        %v2485 = vld [vmem:[#allocation7 + $0x18] sm:$0xff]
        %v2486 = vld [vmem:[#allocation7 + $0x20] sm:$0xf]
        %v2487 = vld [vmem:[#allocation7 + $0x24] sm:$0xff]
        %v2488 = vld [vmem:[#allocation7 + $0x2c] sm:$0xf]
        %v2489 = vld [vmem:[#allocation7 + $0x30] sm:$0xff]
        %v2490 = vld [vmem:[#allocation7 + $0x38] sm:$0xf]
        %v2491 = vld [vmem:[#allocation7 + $0x3c] sm:$0xff]
        %v2492 = vld [vmem:[#allocation7 + $0x44] sm:$0xf]
        %v2493 = vld [vmem:[#allocation7 + $0x48] sm:$0xff]
        %v2494 = vld [vmem:[#allocation7 + $0x50] sm:$0xf]
        %v2495 = vld [vmem:[#allocation7 + $0x54] sm:$0xff]
        %v2496 = vld [vmem:[#allocation7 + $0x5c] sm:$0xf]
        %v2497 = vld [vmem:[#allocation7 + $0x60] sm:$0xff]
        %v2498 = vld [vmem:[#allocation7 + $0x68] sm:$0xf]
        %v2499 = vld [vmem:[#allocation7 + $0x6c] sm:$0xff]
        %v2500 = vld [vmem:[#allocation7 + $0x74] sm:$0xf]
        %v2501 = vld [vmem:[#allocation7 + $0x78] sm:$0xff]
        %v2502 = vld [vmem:[#allocation7 + $0x80] sm:$0xf]
        %v2503 = vld [vmem:[#allocation7 + $0x84] sm:$0xff]
        %v2504 = vld [vmem:[#allocation7 + $0x8c] sm:$0xf]
        %v2505 = vld [vmem:[#allocation7 + $0x90] sm:$0xff]
        %v2506 = vld [vmem:[#allocation7 + $0x98] sm:$0xf]
        %v2507 = vld [vmem:[#allocation7 + $0x9c] sm:$0xff]
        %v2508 = vld [vmem:[#allocation7 + $0xa4] sm:$0xf]
        %v2509 = vld [vmem:[#allocation7 + $0xa8] sm:$0xff]
        %v2510 = vld [vmem:[#allocation7 + $0xb0] sm:$0xf]
        %v2511 = vld [vmem:[#allocation7 + $0xb4] sm:$0xff]
        %v2512 = vld [vmem:[#allocation7 + $0xbc] sm:$0xf]
        %v2513 = vld [vmem:[#allocation8] sm:$0x7]
        %v2514 = vld [vmem:[#allocation10] sm:$0xff]
        %v2515 = vpack.c.bf16 %v2450, %v2449
        %v2516 = vpack.c.bf16 %v2452, %v2451
        %v2517 = vpack.c.bf16 %v2454, %v2453
        %v2518 = vpack.c.bf16 %v2456, %v2455
        %v2519 = vpack.c.bf16 %v2458, %v2457
        %v2520 = vpack.c.bf16 %v2460, %v2459
        %v2521 = vpack.c.bf16 %v2462, %v2461
        %v2522 = vpack.c.bf16 %v2464, %v2463
        %v2523 = vlaneseq
        %v2524 = vshrl.u32 %v2523, 7
        %v2525 = vsub.s32 0, %v2524
        %v2526 = vrot.slane %v2514, %v2525
        %v2543 = vunpack.c.l.b16 %v2465
        %v2544 = vunpack.c.l.b16 %v2466
        %v2545 = vunpack.c.l.b16 %v2467
        %v2546 = vunpack.c.l.b16 %v2468
        %v2547 = vunpack.c.l.b16 %v2469
        %v2548 = vunpack.c.l.b16 %v2470
        %v2549 = vunpack.c.l.b16 %v2471
        %v2550 = vunpack.c.l.b16 %v2472
        %v2551 = vunpack.c.l.b16 %v2473
        %v2552 = vunpack.c.l.b16 %v2474
        %v2553 = vunpack.c.l.b16 %v2475
        %v2554 = vunpack.c.l.b16 %v2476
        %v2555 = vunpack.c.l.b16 %v2477
        %v2556 = vunpack.c.l.b16 %v2478
        %v2557 = vunpack.c.l.b16 %v2479
        %v2558 = vunpack.c.l.b16 %v2480
        %v2559 = vpack.c.b16 %v2544, %v2543
        %v2560 = vpack.c.b16 %v2546, %v2545
        %v2561 = vpack.c.b16 %v2548, %v2547
        %v2562 = vpack.c.b16 %v2550, %v2549
        %v2563 = vpack.c.b16 %v2552, %v2551
        %v2564 = vpack.c.b16 %v2554, %v2553
        %v2565 = vpack.c.b16 %v2556, %v2555
        %v2566 = vpack.c.b16 %v2558, %v2557
        %2575 = vmatprep.subr.bf16.mxu0 0
        %2576 = vmatpush1.bf16.msra.mxu0 %v2566
        %2577 = vmatprep.subr.bf16.mxu0 0
        %2578 = vmatpush1.bf16.msra.mxu0 %v2565
        %2579 = vmatprep.subr.bf16.mxu0 0
        %2580 = vmatpush1.bf16.msra.mxu0 %v2564
        %2581 = vmatprep.subr.bf16.mxu0 0
        %2582 = vmatpush1.bf16.msra.mxu0 %v2563
        %2583 = vmatprep.subr.bf16.mxu0 0
        %2584 = vmatpush1.bf16.msra.mxu0 %v2562
        %2585 = vmatprep.subr.bf16.mxu0 0
        %2586 = vmatpush1.bf16.msra.mxu0 %v2561
        %2587 = vmatprep.subr.bf16.mxu0 0
        %2588 = vmatpush1.bf16.msra.mxu0 %v2560
        %2589 = vmatprep.subr.bf16.mxu0 0
        %2590 = vmatpush1.bf16.msra.mxu0 %v2559
        %2591 = vmatprep.subr.bf16.mxu0 0
        %2592 = vmatpush2.bf16.msra.mxu0 0
        %2593 = vmatprep.subr.bf16.mxu0 0
        %2594 = vmatpush2.bf16.msra.mxu0 0
        %2595 = vmatprep.subr.bf16.mxu0 0
        %2596 = vmatpush2.bf16.msra.mxu0 0
        %2597 = vmatprep.subr.bf16.mxu0 0
        %2598 = vmatpush2.bf16.msra.mxu0 0
        %2599 = vmatprep.subr.bf16.mxu0 0
        %2600 = vmatpush2.bf16.msra.mxu0 0
        %2601 = vmatprep.subr.bf16.mxu0 0
        %2602 = vmatpush2.bf16.msra.mxu0 0
        %2603 = vmatprep.subr.bf16.mxu0 0
        %2604 = vmatpush2.bf16.msra.mxu0 0
        %2605 = vmatprep.subr.bf16.mxu0 0
        %2606 = vmatpush2.bf16.msra.mxu0 0
        %2607 = vmatprep.mubr.bf16.mxu0 0
        %2608 = vmatmul.mubr.bf16.gmra.mxu0 %v2515
        %v2609 = vpop.f32.mrf.mxu0
        %v2610 = vadd.f32 %v2526, %v2609
        %v2611 = vpop.f32.mrf.mxu0
        %v2612 = vpop.f32.mrf.mxu0
        %v2613 = vadd.f32 %v2526, %v2612
        %v2614 = vpop.f32.mrf.mxu0
        %2615 = vmatprep.mubr.bf16.mxu0 0
        %2616 = vmatmul.mubr.bf16.gmra.mxu0 %v2516
        %v2617 = vpop.f32.mrf.mxu0
        %v2618 = vadd.f32 %v2526, %v2617
        %v2619 = vpop.f32.mrf.mxu0
        %v2620 = vpop.f32.mrf.mxu0
        %v2621 = vadd.f32 %v2526, %v2620
        %v2622 = vpop.f32.mrf.mxu0
        %2623 = vmatprep.mubr.bf16.mxu0 0
        %2624 = vmatmul.mubr.bf16.gmra.mxu0 %v2517
        %v2625 = vpop.f32.mrf.mxu0
        %v2626 = vadd.f32 %v2526, %v2625
        %v2627 = vpop.f32.mrf.mxu0
        %v2628 = vpop.f32.mrf.mxu0
        %v2629 = vadd.f32 %v2526, %v2628
        %v2630 = vpop.f32.mrf.mxu0
        %2631 = vmatprep.mubr.bf16.mxu0 0
        %2632 = vmatmul.mubr.bf16.gmra.mxu0 %v2518
        %v2633 = vpop.f32.mrf.mxu0
        %v2634 = vadd.f32 %v2526, %v2633
        %v2635 = vpop.f32.mrf.mxu0
        %v2636 = vpop.f32.mrf.mxu0
        %v2637 = vadd.f32 %v2526, %v2636
        %v2638 = vpop.f32.mrf.mxu0
        %2639 = vmatprep.mubr.bf16.mxu0 0
        %2640 = vmatmul.mubr.bf16.gmra.mxu0 %v2519
        %v2641 = vpop.f32.mrf.mxu0
        %v2642 = vadd.f32 %v2526, %v2641
        %v2643 = vpop.f32.mrf.mxu0
        %v2644 = vpop.f32.mrf.mxu0
        %v2645 = vadd.f32 %v2526, %v2644
        %v2646 = vpop.f32.mrf.mxu0
        %2647 = vmatprep.mubr.bf16.mxu0 0
        %2648 = vmatmul.mubr.bf16.gmra.mxu0 %v2520
        %v2649 = vpop.f32.mrf.mxu0
        %v2650 = vadd.f32 %v2526, %v2649
        %v2651 = vpop.f32.mrf.mxu0
        %v2652 = vpop.f32.mrf.mxu0
        %v2653 = vadd.f32 %v2526, %v2652
        %v2654 = vpop.f32.mrf.mxu0
        %2655 = vmatprep.mubr.bf16.mxu0 0
        %2656 = vmatmul.mubr.bf16.gmra.mxu0 %v2521
        %v2657 = vpop.f32.mrf.mxu0
        %v2658 = vadd.f32 %v2526, %v2657
        %v2659 = vpop.f32.mrf.mxu0
        %v2660 = vpop.f32.mrf.mxu0
        %v2661 = vadd.f32 %v2526, %v2660
        %v2662 = vpop.f32.mrf.mxu0
        %2663 = vmatprep.mubr.bf16.mxu0 0
        %2664 = vmatmul.mubr.bf16.gmra.mxu0 %v2522
        %v2665 = vpop.f32.mrf.mxu0
        %v2666 = vadd.f32 %v2526, %v2665
        %v2667 = vpop.f32.mrf.mxu0
        %v2668 = vpop.f32.mrf.mxu0
        %v2669 = vadd.f32 %v2526, %v2668
        %v2670 = vpop.f32.mrf.mxu0
        %2671 = vdwg.mxu0
        %vm2672 = vcmp.ge.f32.partialorder %v2610, 0.0
        %vm2673 = vcmp.ge.f32.partialorder %v2613, 0.0
        %vm2674 = vcmp.ge.f32.partialorder %v2618, 0.0
        %vm2675 = vcmp.ge.f32.partialorder %v2621, 0.0
        %vm2676 = vcmp.ge.f32.partialorder %v2626, 0.0
        %vm2677 = vcmp.ge.f32.partialorder %v2629, 0.0
        %vm2678 = vcmp.ge.f32.partialorder %v2634, 0.0
        %vm2679 = vcmp.ge.f32.partialorder %v2637, 0.0
        %vm2680 = vcmp.ge.f32.partialorder %v2642, 0.0
        %vm2681 = vcmp.ge.f32.partialorder %v2645, 0.0
        %vm2682 = vcmp.ge.f32.partialorder %v2650, 0.0
        %vm2683 = vcmp.ge.f32.partialorder %v2653, 0.0
        %vm2684 = vcmp.ge.f32.partialorder %v2658, 0.0
        %vm2685 = vcmp.ge.f32.partialorder %v2661, 0.0
        %vm2686 = vcmp.ge.f32.partialorder %v2666, 0.0
        %vm2687 = vcmp.ge.f32.partialorder %v2669, 0.0
        %v2688 = vmul.f32 %v2610, 0.2
        %v2689 = vmul.f32 %v2613, 0.2
        %v2690 = vmul.f32 %v2618, 0.2
        %v2691 = vmul.f32 %v2621, 0.2
        %v2692 = vmul.f32 %v2626, 0.2
        %v2693 = vmul.f32 %v2629, 0.2
        %v2694 = vmul.f32 %v2634, 0.2
        %v2695 = vmul.f32 %v2637, 0.2
        %v2696 = vmul.f32 %v2642, 0.2
        %v2697 = vmul.f32 %v2645, 0.2
        %v2698 = vmul.f32 %v2650, 0.2
        %v2699 = vmul.f32 %v2653, 0.2
        %v2700 = vmul.f32 %v2658, 0.2
        %v2701 = vmul.f32 %v2661, 0.2
        %v2702 = vmul.f32 %v2666, 0.2
        %v2703 = vmul.f32 %v2669, 0.2
        %v2704 = vsel %vm2672, %v2610, %v2688
        %v2705 = vsel %vm2673, %v2613, %v2689
        %v2706 = vsel %vm2674, %v2618, %v2690
        %v2707 = vsel %vm2675, %v2621, %v2691
        %v2708 = vsel %vm2676, %v2626, %v2692
        %v2709 = vsel %vm2677, %v2629, %v2693
        %v2710 = vsel %vm2678, %v2634, %v2694
        %v2711 = vsel %vm2679, %v2637, %v2695
        %v2712 = vsel %vm2680, %v2642, %v2696
        %v2713 = vsel %vm2681, %v2645, %v2697
        %v2714 = vsel %vm2682, %v2650, %v2698
        %v2715 = vsel %vm2683, %v2653, %v2699
        %v2716 = vsel %vm2684, %v2658, %v2700
        %v2717 = vsel %vm2685, %v2661, %v2701
        %v2718 = vsel %vm2686, %v2666, %v2702
        %v2719 = vsel %vm2687, %v2669, %v2703
        %v2720 = vpack.c.bf16 %v2705, %v2704
        %v2721 = vpack.c.bf16 %v2707, %v2706
        %v2722 = vpack.c.bf16 %v2709, %v2708
        %v2723 = vpack.c.bf16 %v2711, %v2710
        %v2724 = vpack.c.bf16 %v2713, %v2712
        %v2725 = vpack.c.bf16 %v2715, %v2714
        %v2726 = vpack.c.bf16 %v2717, %v2716
        %v2727 = vpack.c.bf16 %v2719, %v2718
        %v2729 = vlaneseq
        %v2730 = vshrl.u32 %v2729, 7
        %v2731 = vsub.s32 0, %v2730
        %v2732 = vrot.slane %v2513, %v2731
        %v2733 = vlaneseq
        %v2734 = vshrl.u32 %v2733, 7
        %v2735 = vsub.s32 1, %v2734
        %v2736 = vrot.slane %v2513, %v2735
        %v2737 = vlaneseq
        %v2738 = vshrl.u32 %v2737, 7
        %v2739 = vsub.s32 2, %v2738
        %v2740 = vrot.slane %v2513, %v2739
        %v2776 = vunpack.c.l.b16 %v2481
        %v2777 = vunpack.c.h.b16 %v2481
        %v2778 = vunpack.c.l.b16 %v2482
        %v2779 = vunpack.c.l.b16 %v2483
        %v2780 = vunpack.c.h.b16 %v2483
        %v2781 = vunpack.c.l.b16 %v2484
        %v2782 = vunpack.c.l.b16 %v2485
        %v2783 = vunpack.c.h.b16 %v2485
        %v2784 = vunpack.c.l.b16 %v2486
        %v2785 = vunpack.c.l.b16 %v2487
        %v2786 = vunpack.c.h.b16 %v2487
        %v2787 = vunpack.c.l.b16 %v2488
        %v2788 = vunpack.c.l.b16 %v2489
        %v2789 = vunpack.c.h.b16 %v2489
        %v2790 = vunpack.c.l.b16 %v2490
        %v2791 = vunpack.c.l.b16 %v2491
        %v2792 = vunpack.c.h.b16 %v2491
        %v2793 = vunpack.c.l.b16 %v2492
        %v2794 = vunpack.c.l.b16 %v2493
        %v2795 = vunpack.c.h.b16 %v2493
        %v2796 = vunpack.c.l.b16 %v2494
        %v2797 = vunpack.c.l.b16 %v2495
        %v2798 = vunpack.c.h.b16 %v2495
        %v2799 = vunpack.c.l.b16 %v2496
        %v2800 = vunpack.c.l.b16 %v2497
        %v2801 = vunpack.c.h.b16 %v2497
        %v2802 = vunpack.c.l.b16 %v2498
        %v2803 = vunpack.c.l.b16 %v2499
        %v2804 = vunpack.c.h.b16 %v2499
        %v2805 = vunpack.c.l.b16 %v2500
        %v2806 = vunpack.c.l.b16 %v2501
        %v2807 = vunpack.c.h.b16 %v2501
        %v2808 = vunpack.c.l.b16 %v2502
        %v2809 = vunpack.c.l.b16 %v2503
        %v2810 = vunpack.c.h.b16 %v2503
        %v2811 = vunpack.c.l.b16 %v2504
        %v2812 = vunpack.c.l.b16 %v2505
        %v2813 = vunpack.c.h.b16 %v2505
        %v2814 = vunpack.c.l.b16 %v2506
        %v2815 = vunpack.c.l.b16 %v2507
        %v2816 = vunpack.c.h.b16 %v2507
        %v2817 = vunpack.c.l.b16 %v2508
        %v2818 = vunpack.c.l.b16 %v2509
        %v2819 = vunpack.c.h.b16 %v2509
        %v2820 = vunpack.c.l.b16 %v2510
        %v2821 = vunpack.c.l.b16 %v2511
        %v2822 = vunpack.c.h.b16 %v2511
        %v2823 = vunpack.c.l.b16 %v2512
        %v2824 = vpack.c.b16 %v2779, %v2776
        %v2825 = vpack.c.b16 %v2780, %v2777
        %v2826 = vpack.c.b16 %v2781, %v2778
        %v2827 = vpack.c.b16 %v2785, %v2782
        %v2828 = vpack.c.b16 %v2786, %v2783
        %v2829 = vpack.c.b16 %v2787, %v2784
        %v2830 = vpack.c.b16 %v2791, %v2788
        %v2831 = vpack.c.b16 %v2792, %v2789
        %v2832 = vpack.c.b16 %v2793, %v2790
        %v2833 = vpack.c.b16 %v2797, %v2794
        %v2834 = vpack.c.b16 %v2798, %v2795
        %v2835 = vpack.c.b16 %v2799, %v2796
        %v2836 = vpack.c.b16 %v2803, %v2800
        %v2837 = vpack.c.b16 %v2804, %v2801
        %v2838 = vpack.c.b16 %v2805, %v2802
        %v2839 = vpack.c.b16 %v2809, %v2806
        %v2840 = vpack.c.b16 %v2810, %v2807
        %v2841 = vpack.c.b16 %v2811, %v2808
        %v2842 = vpack.c.b16 %v2815, %v2812
        %v2843 = vpack.c.b16 %v2816, %v2813
        %v2844 = vpack.c.b16 %v2817, %v2814
        %v2845 = vpack.c.b16 %v2821, %v2818
        %v2846 = vpack.c.b16 %v2822, %v2819
        %v2847 = vpack.c.b16 %v2823, %v2820
        %2872 = vmatprep.subr.bf16.mxu0 %v2846
        %2873 = vmatpush1.bf16.msra.mxu0 %v2845
        %2874 = vmatprep.subr.bf16.mxu0 %v2843
        %2875 = vmatpush1.bf16.msra.mxu0 %v2842
        %2876 = vmatprep.subr.bf16.mxu0 %v2840
        %2877 = vmatpush1.bf16.msra.mxu0 %v2839
        %2878 = vmatprep.subr.bf16.mxu0 %v2837
        %2879 = vmatpush1.bf16.msra.mxu0 %v2836
        %2880 = vmatprep.subr.bf16.mxu0 %v2834
        %2881 = vmatpush1.bf16.msra.mxu0 %v2833
        %2882 = vmatprep.subr.bf16.mxu0 %v2831
        %2883 = vmatpush1.bf16.msra.mxu0 %v2830
        %2884 = vmatprep.subr.bf16.mxu0 %v2828
        %2885 = vmatpush1.bf16.msra.mxu0 %v2827
        %2886 = vmatprep.subr.bf16.mxu0 %v2825
        %2887 = vmatpush1.bf16.msra.mxu0 %v2824
        %2888 = vmatprep.subr.bf16.mxu0 0
        %2889 = vmatpush2.bf16.msra.mxu0 0
        %2890 = vmatprep.subr.bf16.mxu0 0
        %2891 = vmatpush2.bf16.msra.mxu0 0
        %2892 = vmatprep.subr.bf16.mxu0 0
        %2893 = vmatpush2.bf16.msra.mxu0 0
        %2894 = vmatprep.subr.bf16.mxu0 0
        %2895 = vmatpush2.bf16.msra.mxu0 0
        %2896 = vmatprep.subr.bf16.mxu0 0
        %2897 = vmatpush2.bf16.msra.mxu0 0
        %2898 = vmatprep.subr.bf16.mxu0 0
        %2899 = vmatpush2.bf16.msra.mxu0 0
        %2900 = vmatprep.subr.bf16.mxu0 0
        %2901 = vmatpush2.bf16.msra.mxu0 0
        %2902 = vmatprep.subr.bf16.mxu0 0
        %2903 = vmatpush2.bf16.msra.mxu0 0
        %2904 = vmatprep.mubr.bf16.mxu0 0
        %2905 = vmatmul.mubr.bf16.gmra.mxu0 %v2720
        %v2906 = vpop.f32.mrf.mxu0
        %v2907 = vadd.f32 %v2732, %v2906
        %v2908 = vpop.f32.mrf.mxu0
        %v2909 = vadd.f32 %v2736, %v2908
        %v2910 = vpop.f32.mrf.mxu0
        %v2911 = vadd.f32 %v2732, %v2910
        %v2912 = vpop.f32.mrf.mxu0
        %v2913 = vadd.f32 %v2736, %v2912
        %2914 = vmatprep.mubr.bf16.mxu0 0
        %2915 = vmatmul.mubr.bf16.gmra.mxu0 %v2721
        %v2916 = vpop.f32.mrf.mxu0
        %v2917 = vadd.f32 %v2732, %v2916
        %v2918 = vpop.f32.mrf.mxu0
        %v2919 = vadd.f32 %v2736, %v2918
        %v2920 = vpop.f32.mrf.mxu0
        %v2921 = vadd.f32 %v2732, %v2920
        %v2922 = vpop.f32.mrf.mxu0
        %v2923 = vadd.f32 %v2736, %v2922
        %2924 = vmatprep.mubr.bf16.mxu0 0
        %2925 = vmatmul.mubr.bf16.gmra.mxu0 %v2722
        %v2926 = vpop.f32.mrf.mxu0
        %v2927 = vadd.f32 %v2732, %v2926
        %v2928 = vpop.f32.mrf.mxu0
        %v2929 = vadd.f32 %v2736, %v2928
        %v2930 = vpop.f32.mrf.mxu0
        %v2931 = vadd.f32 %v2732, %v2930
        %v2932 = vpop.f32.mrf.mxu0
        %v2933 = vadd.f32 %v2736, %v2932
        %2934 = vmatprep.mubr.bf16.mxu0 0
        %2935 = vmatmul.mubr.bf16.gmra.mxu0 %v2723
        %v2936 = vpop.f32.mrf.mxu0
        %v2937 = vadd.f32 %v2732, %v2936
        %v2938 = vpop.f32.mrf.mxu0
        %v2939 = vadd.f32 %v2736, %v2938
        %v2940 = vpop.f32.mrf.mxu0
        %v2941 = vadd.f32 %v2732, %v2940
        %v2942 = vpop.f32.mrf.mxu0
        %v2943 = vadd.f32 %v2736, %v2942
        %2944 = vmatprep.mubr.bf16.mxu0 0
        %2945 = vmatmul.mubr.bf16.gmra.mxu0 %v2724
        %v2946 = vpop.f32.mrf.mxu0
        %v2947 = vadd.f32 %v2732, %v2946
        %v2948 = vpop.f32.mrf.mxu0
        %v2949 = vadd.f32 %v2736, %v2948
        %v2950 = vpop.f32.mrf.mxu0
        %v2951 = vadd.f32 %v2732, %v2950
        %v2952 = vpop.f32.mrf.mxu0
        %v2953 = vadd.f32 %v2736, %v2952
        %2954 = vmatprep.mubr.bf16.mxu0 0
        %2955 = vmatmul.mubr.bf16.gmra.mxu0 %v2725
        %v2956 = vpop.f32.mrf.mxu0
        %v2957 = vadd.f32 %v2732, %v2956
        %v2958 = vpop.f32.mrf.mxu0
        %v2959 = vadd.f32 %v2736, %v2958
        %v2960 = vpop.f32.mrf.mxu0
        %v2961 = vadd.f32 %v2732, %v2960
        %v2962 = vpop.f32.mrf.mxu0
        %v2963 = vadd.f32 %v2736, %v2962
        %2964 = vmatprep.mubr.bf16.mxu0 0
        %2965 = vmatmul.mubr.bf16.gmra.mxu0 %v2726
        %v2966 = vpop.f32.mrf.mxu0
        %v2967 = vadd.f32 %v2732, %v2966
        %v2968 = vpop.f32.mrf.mxu0
        %v2969 = vadd.f32 %v2736, %v2968
        %v2970 = vpop.f32.mrf.mxu0
        %v2971 = vadd.f32 %v2732, %v2970
        %v2972 = vpop.f32.mrf.mxu0
        %v2973 = vadd.f32 %v2736, %v2972
        %2974 = vmatprep.mubr.bf16.mxu0 0
        %2975 = vmatmul.mubr.bf16.gmra.mxu0 %v2727
        %v2976 = vpop.f32.mrf.mxu0
        %v2977 = vadd.f32 %v2732, %v2976
        %v2978 = vpop.f32.mrf.mxu0
        %v2979 = vadd.f32 %v2736, %v2978
        %v2980 = vpop.f32.mrf.mxu0
        %v2981 = vadd.f32 %v2732, %v2980
        %v2982 = vpop.f32.mrf.mxu0
        %v2983 = vadd.f32 %v2736, %v2982
        %2984 = vdwg.mxu0
        %2985 = vmatprep.subr.bf16.mxu0 0
        %2986 = vmatpush1.bf16.msra.mxu0 %v2847
        %2987 = vmatprep.subr.bf16.mxu0 0
        %2988 = vmatpush1.bf16.msra.mxu0 %v2844
        %2989 = vmatprep.subr.bf16.mxu0 0
        %2990 = vmatpush1.bf16.msra.mxu0 %v2841
        %2991 = vmatprep.subr.bf16.mxu0 0
        %2992 = vmatpush1.bf16.msra.mxu0 %v2838
        %2993 = vmatprep.subr.bf16.mxu0 0
        %2994 = vmatpush1.bf16.msra.mxu0 %v2835
        %2995 = vmatprep.subr.bf16.mxu0 0
        %2996 = vmatpush1.bf16.msra.mxu0 %v2832
        %2997 = vmatprep.subr.bf16.mxu0 0
        %2998 = vmatpush1.bf16.msra.mxu0 %v2829
        %2999 = vmatprep.subr.bf16.mxu0 0
        %3000 = vmatpush1.bf16.msra.mxu0 %v2826
        %3001 = vmatprep.subr.bf16.mxu0 0
        %3002 = vmatpush2.bf16.msra.mxu0 0
        %3003 = vmatprep.subr.bf16.mxu0 0
        %3004 = vmatpush2.bf16.msra.mxu0 0
        %3005 = vmatprep.subr.bf16.mxu0 0
        %3006 = vmatpush2.bf16.msra.mxu0 0
        %3007 = vmatprep.subr.bf16.mxu0 0
        %3008 = vmatpush2.bf16.msra.mxu0 0
        %3009 = vmatprep.subr.bf16.mxu0 0
        %3010 = vmatpush2.bf16.msra.mxu0 0
        %3011 = vmatprep.subr.bf16.mxu0 0
        %3012 = vmatpush2.bf16.msra.mxu0 0
        %3013 = vmatprep.subr.bf16.mxu0 0
        %3014 = vmatpush2.bf16.msra.mxu0 0
        %3015 = vmatprep.subr.bf16.mxu0 0
        %3016 = vmatpush2.bf16.msra.mxu0 0
        %3017 = vmatprep.mubr.bf16.mxu0 0
        %3018 = vmatmul.mubr.bf16.gmra.mxu0 %v2720
        %v3019 = vpop.f32.mrf.mxu0
        %v3020 = vadd.f32 %v2740, %v3019
        %v3021 = vpop.f32.mrf.mxu0
        %v3022 = vpop.f32.mrf.mxu0
        %v3023 = vadd.f32 %v2740, %v3022
        %v3024 = vpop.f32.mrf.mxu0
        %3025 = vmatprep.mubr.bf16.mxu0 0
        %3026 = vmatmul.mubr.bf16.gmra.mxu0 %v2721
        %v3027 = vpop.f32.mrf.mxu0
        %v3028 = vadd.f32 %v2740, %v3027
        %v3029 = vpop.f32.mrf.mxu0
        %v3030 = vpop.f32.mrf.mxu0
        %v3031 = vadd.f32 %v2740, %v3030
        %v3032 = vpop.f32.mrf.mxu0
        %3033 = vmatprep.mubr.bf16.mxu0 0
        %3034 = vmatmul.mubr.bf16.gmra.mxu0 %v2722
        %v3035 = vpop.f32.mrf.mxu0
        %v3036 = vadd.f32 %v2740, %v3035
        %v3037 = vpop.f32.mrf.mxu0
        %v3038 = vpop.f32.mrf.mxu0
        %v3039 = vadd.f32 %v2740, %v3038
        %v3040 = vpop.f32.mrf.mxu0
        %3041 = vmatprep.mubr.bf16.mxu0 0
        %3042 = vmatmul.mubr.bf16.gmra.mxu0 %v2723
        %v3043 = vpop.f32.mrf.mxu0
        %v3044 = vadd.f32 %v2740, %v3043
        %v3045 = vpop.f32.mrf.mxu0
        %v3046 = vpop.f32.mrf.mxu0
        %v3047 = vadd.f32 %v2740, %v3046
        %v3048 = vpop.f32.mrf.mxu0
        %3049 = vmatprep.mubr.bf16.mxu0 0
        %3050 = vmatmul.mubr.bf16.gmra.mxu0 %v2724
        %v3051 = vpop.f32.mrf.mxu0
        %v3052 = vadd.f32 %v2740, %v3051
        %v3053 = vpop.f32.mrf.mxu0
        %v3054 = vpop.f32.mrf.mxu0
        %v3055 = vadd.f32 %v2740, %v3054
        %v3056 = vpop.f32.mrf.mxu0
        %3057 = vmatprep.mubr.bf16.mxu0 0
        %3058 = vmatmul.mubr.bf16.gmra.mxu0 %v2725
        %v3059 = vpop.f32.mrf.mxu0
        %v3060 = vadd.f32 %v2740, %v3059
        %v3061 = vpop.f32.mrf.mxu0
        %v3062 = vpop.f32.mrf.mxu0
        %v3063 = vadd.f32 %v2740, %v3062
        %v3064 = vpop.f32.mrf.mxu0
        %3065 = vmatprep.mubr.bf16.mxu0 0
        %3066 = vmatmul.mubr.bf16.gmra.mxu0 %v2726
        %v3067 = vpop.f32.mrf.mxu0
        %v3068 = vadd.f32 %v2740, %v3067
        %v3069 = vpop.f32.mrf.mxu0
        %v3070 = vpop.f32.mrf.mxu0
        %v3071 = vadd.f32 %v2740, %v3070
        %v3072 = vpop.f32.mrf.mxu0
        %3073 = vmatprep.mubr.bf16.mxu0 0
        %3074 = vmatmul.mubr.bf16.gmra.mxu0 %v2727
        %v3075 = vpop.f32.mrf.mxu0
        %v3076 = vadd.f32 %v2740, %v3075
        %v3077 = vpop.f32.mrf.mxu0
        %v3078 = vpop.f32.mrf.mxu0
        %v3079 = vadd.f32 %v2740, %v3078
        %v3080 = vpop.f32.mrf.mxu0
        %3081 = vdwg.mxu0
        %v3082 = vmul.f32 %v2909, %v2907
        %v3083 = vmul.f32 %v2913, %v2911
        %v3084 = vmul.f32 %v2919, %v2917
        %v3085 = vmul.f32 %v2923, %v2921
        %v3086 = vmul.f32 %v2929, %v2927
        %v3087 = vmul.f32 %v2933, %v2931
        %v3088 = vmul.f32 %v2939, %v2937
        %v3089 = vmul.f32 %v2943, %v2941
        %v3090 = vmul.f32 %v2949, %v2947
        %v3091 = vmul.f32 %v2953, %v2951
        %v3092 = vmul.f32 %v2959, %v2957
        %v3093 = vmul.f32 %v2963, %v2961
        %v3094 = vmul.f32 %v2969, %v2967
        %v3095 = vmul.f32 %v2973, %v2971
        %v3096 = vmul.f32 %v2979, %v2977
        %v3097 = vmul.f32 %v2983, %v2981
        %v3098 = vlaneseq
        %v3099 = vand.u32 %v3098, 127
        %vm3100 = vcmp.lt.s32.totalorder %v3099, 64
        %v3101 = vsel %vm3100, %v3082, -1e+30
        %v3102 = vsel %vm3100, %v3083, -1e+30
        %v3103 = vsel %vm3100, %v3084, -1e+30
        %v3104 = vsel %vm3100, %v3085, -1e+30
        %v3105 = vsel %vm3100, %v3086, -1e+30
        %v3106 = vsel %vm3100, %v3087, -1e+30
        %v3107 = vsel %vm3100, %v3088, -1e+30
        %v3108 = vsel %vm3100, %v3089, -1e+30
        %v3109 = vsel %vm3100, %v3090, -1e+30
        %v3110 = vsel %vm3100, %v3091, -1e+30
        %v3111 = vsel %vm3100, %v3092, -1e+30
        %v3112 = vsel %vm3100, %v3093, -1e+30
        %v3113 = vsel %vm3100, %v3094, -1e+30
        %v3114 = vsel %vm3100, %v3095, -1e+30
        %v3115 = vsel %vm3100, %v3096, -1e+30
        %v3116 = vsel %vm3100, %v3097, -1e+30
        %3117 = vmax.xlane.f32.xlu0 %v3101
        %v3118 = vpop.xlane.xlu0 %3117
        %3119 = vmax.xlane.f32.xlu0 %v3102
        %v3120 = vpop.xlane.xlu0 %3119
        %3121 = vmax.xlane.f32.xlu0 %v3103
        %v3122 = vpop.xlane.xlu0 %3121
        %3123 = vmax.xlane.f32.xlu0 %v3104
        %v3124 = vpop.xlane.xlu0 %3123
        %3125 = vmax.xlane.f32.xlu0 %v3105
        %v3126 = vpop.xlane.xlu0 %3125
        %3127 = vmax.xlane.f32.xlu0 %v3106
        %v3128 = vpop.xlane.xlu0 %3127
        %3129 = vmax.xlane.f32.xlu0 %v3107
        %v3130 = vpop.xlane.xlu0 %3129
        %3131 = vmax.xlane.f32.xlu0 %v3108
        %v3132 = vpop.xlane.xlu0 %3131
        %3133 = vmax.xlane.f32.xlu0 %v3109
        %v3134 = vpop.xlane.xlu0 %3133
        %3135 = vmax.xlane.f32.xlu0 %v3110
        %v3136 = vpop.xlane.xlu0 %3135
        %3137 = vmax.xlane.f32.xlu0 %v3111
        %v3138 = vpop.xlane.xlu0 %3137
        %3139 = vmax.xlane.f32.xlu0 %v3112
        %v3140 = vpop.xlane.xlu0 %3139
        %3141 = vmax.xlane.f32.xlu0 %v3113
        %v3142 = vpop.xlane.xlu0 %3141
        %3143 = vmax.xlane.f32.xlu0 %v3114
        %v3144 = vpop.xlane.xlu0 %3143
        %3145 = vmax.xlane.f32.xlu0 %v3115
        %v3146 = vpop.xlane.xlu0 %3145
        %3147 = vmax.xlane.f32.xlu0 %v3116
        %v3148 = vpop.xlane.xlu0 %3147
        %v3149 = vsub.f32 %v3101, %v3118
        %v3150 = vsub.f32 %v3102, %v3120
        %v3151 = vsub.f32 %v3103, %v3122
        %v3152 = vsub.f32 %v3104, %v3124
        %v3153 = vsub.f32 %v3105, %v3126
        %v3154 = vsub.f32 %v3106, %v3128
        %v3155 = vsub.f32 %v3107, %v3130
        %v3156 = vsub.f32 %v3108, %v3132
        %v3157 = vsub.f32 %v3109, %v3134
        %v3158 = vsub.f32 %v3110, %v3136
        %v3159 = vsub.f32 %v3111, %v3138
        %v3160 = vsub.f32 %v3112, %v3140
        %v3161 = vsub.f32 %v3113, %v3142
        %v3162 = vsub.f32 %v3114, %v3144
        %v3163 = vsub.f32 %v3115, %v3146
        %v3164 = vsub.f32 %v3116, %v3148
        %v3165 = vmul.f32 %v3149, 1.442695
        %v3166 = vpow.pop %v3165
        %v3167 = vmul.f32 %v3150, 1.442695
        %v3168 = vpow.pop %v3167
        %v3169 = vmul.f32 %v3151, 1.442695
        %v3170 = vpow.pop %v3169
        %v3171 = vmul.f32 %v3152, 1.442695
        %v3172 = vpow.pop %v3171
        %v3173 = vmul.f32 %v3153, 1.442695
        %v3174 = vpow.pop %v3173
        %v3175 = vmul.f32 %v3154, 1.442695
        %v3176 = vpow.pop %v3175
        %v3177 = vmul.f32 %v3155, 1.442695
        %v3178 = vpow.pop %v3177
        %v3179 = vmul.f32 %v3156, 1.442695
        %v3180 = vpow.pop %v3179
        %v3181 = vmul.f32 %v3157, 1.442695
        %v3182 = vpow.pop %v3181
        %v3183 = vmul.f32 %v3158, 1.442695
        %v3184 = vpow.pop %v3183
        %v3185 = vmul.f32 %v3159, 1.442695
        %v3186 = vpow.pop %v3185
        %v3187 = vmul.f32 %v3160, 1.442695
        %v3188 = vpow.pop %v3187
        %v3189 = vmul.f32 %v3161, 1.442695
        %v3190 = vpow.pop %v3189
        %v3191 = vmul.f32 %v3162, 1.442695
        %v3192 = vpow.pop %v3191
        %v3193 = vmul.f32 %v3163, 1.442695
        %v3194 = vpow.pop %v3193
        %v3195 = vmul.f32 %v3164, 1.442695
        %v3196 = vpow.pop %v3195
        %3197 = vadd.xlane.f32.xlu0 %v3166
        %v3198 = vpop.xlane.xlu0 %3197
        %3199 = vadd.xlane.f32.xlu0 %v3168
        %v3200 = vpop.xlane.xlu0 %3199
        %3201 = vadd.xlane.f32.xlu0 %v3170
        %v3202 = vpop.xlane.xlu0 %3201
        %3203 = vadd.xlane.f32.xlu0 %v3172
        %v3204 = vpop.xlane.xlu0 %3203
        %3205 = vadd.xlane.f32.xlu0 %v3174
        %v3206 = vpop.xlane.xlu0 %3205
        %3207 = vadd.xlane.f32.xlu0 %v3176
        %v3208 = vpop.xlane.xlu0 %3207
        %3209 = vadd.xlane.f32.xlu0 %v3178
        %v3210 = vpop.xlane.xlu0 %3209
        %3211 = vadd.xlane.f32.xlu0 %v3180
        %v3212 = vpop.xlane.xlu0 %3211
        %3213 = vadd.xlane.f32.xlu0 %v3182
        %v3214 = vpop.xlane.xlu0 %3213
        %3215 = vadd.xlane.f32.xlu0 %v3184
        %v3216 = vpop.xlane.xlu0 %3215
        %3217 = vadd.xlane.f32.xlu0 %v3186
        %v3218 = vpop.xlane.xlu0 %3217
        %3219 = vadd.xlane.f32.xlu0 %v3188
        %v3220 = vpop.xlane.xlu0 %3219
        %3221 = vadd.xlane.f32.xlu0 %v3190
        %v3222 = vpop.xlane.xlu0 %3221
        %3223 = vadd.xlane.f32.xlu0 %v3192
        %v3224 = vpop.xlane.xlu0 %3223
        %3225 = vadd.xlane.f32.xlu0 %v3194
        %v3226 = vpop.xlane.xlu0 %3225
        %3227 = vadd.xlane.f32.xlu0 %v3196
        %v3228 = vpop.xlane.xlu0 %3227
        %v3229 = vrcp.pop %v3198
        %v3230 = vrcp.pop %v3200
        %v3231 = vrcp.pop %v3202
        %v3232 = vrcp.pop %v3204
        %v3233 = vrcp.pop %v3206
        %v3234 = vrcp.pop %v3208
        %v3235 = vrcp.pop %v3210
        %v3236 = vrcp.pop %v3212
        %v3237 = vrcp.pop %v3214
        %v3238 = vrcp.pop %v3216
        %v3239 = vrcp.pop %v3218
        %v3240 = vrcp.pop %v3220
        %v3241 = vrcp.pop %v3222
        %v3242 = vrcp.pop %v3224
        %v3243 = vrcp.pop %v3226
        %v3244 = vrcp.pop %v3228
        %v3245 = vmul.f32 %v3166, %v3229
        %v3246 = vmul.f32 %v3168, %v3230
        %v3247 = vmul.f32 %v3170, %v3231
        %v3248 = vmul.f32 %v3172, %v3232
        %v3249 = vmul.f32 %v3174, %v3233
        %v3250 = vmul.f32 %v3176, %v3234
        %v3251 = vmul.f32 %v3178, %v3235
        %v3252 = vmul.f32 %v3180, %v3236
        %v3253 = vmul.f32 %v3182, %v3237
        %v3254 = vmul.f32 %v3184, %v3238
        %v3255 = vmul.f32 %v3186, %v3239
        %v3256 = vmul.f32 %v3188, %v3240
        %v3257 = vmul.f32 %v3190, %v3241
        %v3258 = vmul.f32 %v3192, %v3242
        %v3259 = vmul.f32 %v3194, %v3243
        %v3260 = vmul.f32 %v3196, %v3244
        %v3261 = vmul.f32 %v3020, %v3245
        %v3262 = vmul.f32 %v3023, %v3246
        %v3263 = vmul.f32 %v3028, %v3247
        %v3264 = vmul.f32 %v3031, %v3248
        %v3265 = vmul.f32 %v3036, %v3249
        %v3266 = vmul.f32 %v3039, %v3250
        %v3267 = vmul.f32 %v3044, %v3251
        %v3268 = vmul.f32 %v3047, %v3252
        %v3269 = vmul.f32 %v3052, %v3253
        %v3270 = vmul.f32 %v3055, %v3254
        %v3271 = vmul.f32 %v3060, %v3255
        %v3272 = vmul.f32 %v3063, %v3256
        %v3273 = vmul.f32 %v3068, %v3257
        %v3274 = vmul.f32 %v3071, %v3258
        %v3275 = vmul.f32 %v3076, %v3259
        %v3276 = vmul.f32 %v3079, %v3260
        %v3277 = vadd.f32 %v2704, %v3261
        %v3278 = vadd.f32 %v2705, %v3262
        %v3279 = vadd.f32 %v2706, %v3263
        %v3280 = vadd.f32 %v2707, %v3264
        %v3281 = vadd.f32 %v2708, %v3265
        %v3282 = vadd.f32 %v2709, %v3266
        %v3283 = vadd.f32 %v2710, %v3267
        %v3284 = vadd.f32 %v2711, %v3268
        %v3285 = vadd.f32 %v2712, %v3269
        %v3286 = vadd.f32 %v2713, %v3270
        %v3287 = vadd.f32 %v2714, %v3271
        %v3288 = vadd.f32 %v2715, %v3272
        %v3289 = vadd.f32 %v2716, %v3273
        %v3290 = vadd.f32 %v2717, %v3274
        %v3291 = vadd.f32 %v2718, %v3275
        %v3292 = vadd.f32 %v2719, %v3276
        %3293 = vadd.xlane.f32.xlu0 %v3277
        %v3294 = vpop.xlane.xlu0 %3293
        %3295 = vadd.xlane.f32.xlu0 %v3278
        %v3296 = vpop.xlane.xlu0 %3295
        %3297 = vadd.xlane.f32.xlu0 %v3279
        %v3298 = vpop.xlane.xlu0 %3297
        %3299 = vadd.xlane.f32.xlu0 %v3280
        %v3300 = vpop.xlane.xlu0 %3299
        %3301 = vadd.xlane.f32.xlu0 %v3281
        %v3302 = vpop.xlane.xlu0 %3301
        %3303 = vadd.xlane.f32.xlu0 %v3282
        %v3304 = vpop.xlane.xlu0 %3303
        %3305 = vadd.xlane.f32.xlu0 %v3283
        %v3306 = vpop.xlane.xlu0 %3305
        %3307 = vadd.xlane.f32.xlu0 %v3284
        %v3308 = vpop.xlane.xlu0 %3307
        %3309 = vadd.xlane.f32.xlu0 %v3285
        %v3310 = vpop.xlane.xlu0 %3309
        %3311 = vadd.xlane.f32.xlu0 %v3286
        %v3312 = vpop.xlane.xlu0 %3311
        %3313 = vadd.xlane.f32.xlu0 %v3287
        %v3314 = vpop.xlane.xlu0 %3313
        %3315 = vadd.xlane.f32.xlu0 %v3288
        %v3316 = vpop.xlane.xlu0 %3315
        %3317 = vadd.xlane.f32.xlu0 %v3289
        %v3318 = vpop.xlane.xlu0 %3317
        %3319 = vadd.xlane.f32.xlu0 %v3290
        %v3320 = vpop.xlane.xlu0 %3319
        %3321 = vadd.xlane.f32.xlu0 %v3291
        %v3322 = vpop.xlane.xlu0 %3321
        %3323 = vadd.xlane.f32.xlu0 %v3292
        %v3324 = vpop.xlane.xlu0 %3323
        %v3325 = vmul.f32 %v3294, 0.015625
        %v3326 = vmul.f32 %v3296, 0.015625
        %v3327 = vmul.f32 %v3298, 0.015625
        %v3328 = vmul.f32 %v3300, 0.015625
        %v3329 = vmul.f32 %v3302, 0.015625
        %v3330 = vmul.f32 %v3304, 0.015625
        %v3331 = vmul.f32 %v3306, 0.015625
        %v3332 = vmul.f32 %v3308, 0.015625
        %v3333 = vmul.f32 %v3310, 0.015625
        %v3334 = vmul.f32 %v3312, 0.015625
        %v3335 = vmul.f32 %v3314, 0.015625
        %v3336 = vmul.f32 %v3316, 0.015625
        %v3337 = vmul.f32 %v3318, 0.015625
        %v3338 = vmul.f32 %v3320, 0.015625
        %v3339 = vmul.f32 %v3322, 0.015625
        %v3340 = vmul.f32 %v3324, 0.015625
        %v3341 = vsub.f32 %v3277, %v3325
        %v3342 = vsub.f32 %v3278, %v3326
        %v3343 = vsub.f32 %v3279, %v3327
        %v3344 = vsub.f32 %v3280, %v3328
        %v3345 = vsub.f32 %v3281, %v3329
        %v3346 = vsub.f32 %v3282, %v3330
        %v3347 = vsub.f32 %v3283, %v3331
        %v3348 = vsub.f32 %v3284, %v3332
        %v3349 = vsub.f32 %v3285, %v3333
        %v3350 = vsub.f32 %v3286, %v3334
        %v3351 = vsub.f32 %v3287, %v3335
        %v3352 = vsub.f32 %v3288, %v3336
        %v3353 = vsub.f32 %v3289, %v3337
        %v3354 = vsub.f32 %v3290, %v3338
        %v3355 = vsub.f32 %v3291, %v3339
        %v3356 = vsub.f32 %v3292, %v3340
        %v3357 = vmul.f32 %v3341, %v3341
        %v3358 = vmul.f32 %v3342, %v3342
        %v3359 = vmul.f32 %v3343, %v3343
        %v3360 = vmul.f32 %v3344, %v3344
        %v3361 = vmul.f32 %v3345, %v3345
        %v3362 = vmul.f32 %v3346, %v3346
        %v3363 = vmul.f32 %v3347, %v3347
        %v3364 = vmul.f32 %v3348, %v3348
        %v3365 = vmul.f32 %v3349, %v3349
        %v3366 = vmul.f32 %v3350, %v3350
        %v3367 = vmul.f32 %v3351, %v3351
        %v3368 = vmul.f32 %v3352, %v3352
        %v3369 = vmul.f32 %v3353, %v3353
        %v3370 = vmul.f32 %v3354, %v3354
        %v3371 = vmul.f32 %v3355, %v3355
        %v3372 = vmul.f32 %v3356, %v3356
        %3373 = vadd.xlane.f32.xlu0 %v3357
        %v3374 = vpop.xlane.xlu0 %3373
        %3375 = vadd.xlane.f32.xlu0 %v3358
        %v3376 = vpop.xlane.xlu0 %3375
        %3377 = vadd.xlane.f32.xlu0 %v3359
        %v3378 = vpop.xlane.xlu0 %3377
        %3379 = vadd.xlane.f32.xlu0 %v3360
        %v3380 = vpop.xlane.xlu0 %3379
        %3381 = vadd.xlane.f32.xlu0 %v3361
        %v3382 = vpop.xlane.xlu0 %3381
        %3383 = vadd.xlane.f32.xlu0 %v3362
        %v3384 = vpop.xlane.xlu0 %3383
        %3385 = vadd.xlane.f32.xlu0 %v3363
        %v3386 = vpop.xlane.xlu0 %3385
        %3387 = vadd.xlane.f32.xlu0 %v3364
        %v3388 = vpop.xlane.xlu0 %3387
        %3389 = vadd.xlane.f32.xlu0 %v3365
        %v3390 = vpop.xlane.xlu0 %3389
        %3391 = vadd.xlane.f32.xlu0 %v3366
        %v3392 = vpop.xlane.xlu0 %3391
        %3393 = vadd.xlane.f32.xlu0 %v3367
        %v3394 = vpop.xlane.xlu0 %3393
        %3395 = vadd.xlane.f32.xlu0 %v3368
        %v3396 = vpop.xlane.xlu0 %3395
        %3397 = vadd.xlane.f32.xlu0 %v3369
        %v3398 = vpop.xlane.xlu0 %3397
        %3399 = vadd.xlane.f32.xlu0 %v3370
        %v3400 = vpop.xlane.xlu0 %3399
        %3401 = vadd.xlane.f32.xlu0 %v3371
        %v3402 = vpop.xlane.xlu0 %3401
        %3403 = vadd.xlane.f32.xlu0 %v3372
        %v3404 = vpop.xlane.xlu0 %3403
        %v3405 = vmul.f32 %v3325, 64.0
        %v3406 = vmul.f32 %v3326, 64.0
        %v3407 = vmul.f32 %v3327, 64.0
        %v3408 = vmul.f32 %v3328, 64.0
        %v3409 = vmul.f32 %v3329, 64.0
        %v3410 = vmul.f32 %v3330, 64.0
        %v3411 = vmul.f32 %v3331, 64.0
        %v3412 = vmul.f32 %v3332, 64.0
        %v3413 = vmul.f32 %v3333, 64.0
        %v3414 = vmul.f32 %v3334, 64.0
        %v3415 = vmul.f32 %v3335, 64.0
        %v3416 = vmul.f32 %v3336, 64.0
        %v3417 = vmul.f32 %v3337, 64.0
        %v3418 = vmul.f32 %v3338, 64.0
        %v3419 = vmul.f32 %v3339, 64.0
        %v3420 = vmul.f32 %v3340, 64.0
        %v3421 = vmul.f32 %v3405, %v3325
        %v3422 = vmul.f32 %v3406, %v3326
        %v3423 = vmul.f32 %v3407, %v3327
        %v3424 = vmul.f32 %v3408, %v3328
        %v3425 = vmul.f32 %v3409, %v3329
        %v3426 = vmul.f32 %v3410, %v3330
        %v3427 = vmul.f32 %v3411, %v3331
        %v3428 = vmul.f32 %v3412, %v3332
        %v3429 = vmul.f32 %v3413, %v3333
        %v3430 = vmul.f32 %v3414, %v3334
        %v3431 = vmul.f32 %v3415, %v3335
        %v3432 = vmul.f32 %v3416, %v3336
        %v3433 = vmul.f32 %v3417, %v3337
        %v3434 = vmul.f32 %v3418, %v3338
        %v3435 = vmul.f32 %v3419, %v3339
        %v3436 = vmul.f32 %v3420, %v3340
        %v3437 = vsub.f32 %v3374, %v3421
        %v3438 = vsub.f32 %v3376, %v3422
        %v3439 = vsub.f32 %v3378, %v3423
        %v3440 = vsub.f32 %v3380, %v3424
        %v3441 = vsub.f32 %v3382, %v3425
        %v3442 = vsub.f32 %v3384, %v3426
        %v3443 = vsub.f32 %v3386, %v3427
        %v3444 = vsub.f32 %v3388, %v3428
        %v3445 = vsub.f32 %v3390, %v3429
        %v3446 = vsub.f32 %v3392, %v3430
        %v3447 = vsub.f32 %v3394, %v3431
        %v3448 = vsub.f32 %v3396, %v3432
        %v3449 = vsub.f32 %v3398, %v3433
        %v3450 = vsub.f32 %v3400, %v3434
        %v3451 = vsub.f32 %v3402, %v3435
        %v3452 = vsub.f32 %v3404, %v3436
        %v3453 = vmul.f32 %v3437, 0.015625
        %v3454 = vmul.f32 %v3438, 0.015625
        %v3455 = vmul.f32 %v3439, 0.015625
        %v3456 = vmul.f32 %v3440, 0.015625
        %v3457 = vmul.f32 %v3441, 0.015625
        %v3458 = vmul.f32 %v3442, 0.015625
        %v3459 = vmul.f32 %v3443, 0.015625
        %v3460 = vmul.f32 %v3444, 0.015625
        %v3461 = vmul.f32 %v3445, 0.015625
        %v3462 = vmul.f32 %v3446, 0.015625
        %v3463 = vmul.f32 %v3447, 0.015625
        %v3464 = vmul.f32 %v3448, 0.015625
        %v3465 = vmul.f32 %v3449, 0.015625
        %v3466 = vmul.f32 %v3450, 0.015625
        %v3467 = vmul.f32 %v3451, 0.015625
        %v3468 = vmul.f32 %v3452, 0.015625
        %v3469 = vadd.f32 %v3453, 1e-05
        %v3470 = vadd.f32 %v3454, 1e-05
        %v3471 = vadd.f32 %v3455, 1e-05
        %v3472 = vadd.f32 %v3456, 1e-05
        %v3473 = vadd.f32 %v3457, 1e-05
        %v3474 = vadd.f32 %v3458, 1e-05
        %v3475 = vadd.f32 %v3459, 1e-05
        %v3476 = vadd.f32 %v3460, 1e-05
        %v3477 = vadd.f32 %v3461, 1e-05
        %v3478 = vadd.f32 %v3462, 1e-05
        %v3479 = vadd.f32 %v3463, 1e-05
        %v3480 = vadd.f32 %v3464, 1e-05
        %v3481 = vadd.f32 %v3465, 1e-05
        %v3482 = vadd.f32 %v3466, 1e-05
        %v3483 = vadd.f32 %v3467, 1e-05
        %v3484 = vadd.f32 %v3468, 1e-05
        %v3485 = vrsqrt.pop %v3469
        %v3486 = vrsqrt.pop %v3470
        %v3487 = vrsqrt.pop %v3471
        %v3488 = vrsqrt.pop %v3472
        %v3489 = vrsqrt.pop %v3473
        %v3490 = vrsqrt.pop %v3474
        %v3491 = vrsqrt.pop %v3475
        %v3492 = vrsqrt.pop %v3476
        %v3493 = vrsqrt.pop %v3477
        %v3494 = vrsqrt.pop %v3478
        %v3495 = vrsqrt.pop %v3479
        %v3496 = vrsqrt.pop %v3480
        %v3497 = vrsqrt.pop %v3481
        %v3498 = vrsqrt.pop %v3482
        %v3499 = vrsqrt.pop %v3483
        %v3500 = vrsqrt.pop %v3484
        %v3501 = vmul.f32 %v3341, %v3485
        %v3502 = vmul.f32 %v3342, %v3486
        %v3503 = vmul.f32 %v3343, %v3487
        %v3504 = vmul.f32 %v3344, %v3488
        %v3505 = vmul.f32 %v3345, %v3489
        %v3506 = vmul.f32 %v3346, %v3490
        %v3507 = vmul.f32 %v3347, %v3491
        %v3508 = vmul.f32 %v3348, %v3492
        %v3509 = vmul.f32 %v3349, %v3493
        %v3510 = vmul.f32 %v3350, %v3494
        %v3511 = vmul.f32 %v3351, %v3495
        %v3512 = vmul.f32 %v3352, %v3496
        %v3513 = vmul.f32 %v3353, %v3497
        %v3514 = vmul.f32 %v3354, %v3498
        %v3515 = vmul.f32 %v3355, %v3499
        %v3516 = vmul.f32 %v3356, %v3500
        %v3517 = vlaneseq
        %v3518 = vshrl.u32 %v3517, 7
        %v3519 = vsub.s32 1, %v3518
        %v3520 = vrot.slane %v2514, %v3519
        %v3521 = vmul.f32 %v3501, %v3520
        %v3522 = vmul.f32 %v3502, %v3520
        %v3523 = vmul.f32 %v3503, %v3520
        %v3524 = vmul.f32 %v3504, %v3520
        %v3525 = vmul.f32 %v3505, %v3520
        %v3526 = vmul.f32 %v3506, %v3520
        %v3527 = vmul.f32 %v3507, %v3520
        %v3528 = vmul.f32 %v3508, %v3520
        %v3529 = vmul.f32 %v3509, %v3520
        %v3530 = vmul.f32 %v3510, %v3520
        %v3531 = vmul.f32 %v3511, %v3520
        %v3532 = vmul.f32 %v3512, %v3520
        %v3533 = vmul.f32 %v3513, %v3520
        %v3534 = vmul.f32 %v3514, %v3520
        %v3535 = vmul.f32 %v3515, %v3520
        %v3536 = vmul.f32 %v3516, %v3520
        %v3537 = vlaneseq
        %v3538 = vshrl.u32 %v3537, 7
        %v3539 = vsub.s32 2, %v3538
        %v3540 = vrot.slane %v2514, %v3539
        %v3541 = vadd.f32 %v3521, %v3540
        %v3542 = vadd.f32 %v3522, %v3540
        %v3543 = vadd.f32 %v3523, %v3540
        %v3544 = vadd.f32 %v3524, %v3540
        %v3545 = vadd.f32 %v3525, %v3540
        %v3546 = vadd.f32 %v3526, %v3540
        %v3547 = vadd.f32 %v3527, %v3540
        %v3548 = vadd.f32 %v3528, %v3540
        %v3549 = vadd.f32 %v3529, %v3540
        %v3550 = vadd.f32 %v3530, %v3540
        %v3551 = vadd.f32 %v3531, %v3540
        %v3552 = vadd.f32 %v3532, %v3540
        %v3553 = vadd.f32 %v3533, %v3540
        %v3554 = vadd.f32 %v3534, %v3540
        %v3555 = vadd.f32 %v3535, %v3540
        %v3556 = vadd.f32 %v3536, %v3540
        %s3557 = scalar_lea.vmem [#allocation5], 64
        %v3558 = vld [vmem:[%s3557] sm:$0xf]
        %v3559 = vld [vmem:[%s3557 + $0x4] sm:$0xf]
        %v3560 = vld [vmem:[%s3557 + $0x8] sm:$0xf]
        %v3561 = vld [vmem:[%s3557 + $0xc] sm:$0xf]
        %v3562 = vld [vmem:[%s3557 + $0x10] sm:$0xf]
        %v3563 = vld [vmem:[%s3557 + $0x14] sm:$0xf]
        %v3564 = vld [vmem:[%s3557 + $0x18] sm:$0xf]
        %v3565 = vld [vmem:[%s3557 + $0x1c] sm:$0xf]
        %v3566 = vld [vmem:[%s3557 + $0x20] sm:$0xf]
        %v3567 = vld [vmem:[%s3557 + $0x24] sm:$0xf]
        %v3568 = vld [vmem:[%s3557 + $0x28] sm:$0xf]
        %v3569 = vld [vmem:[%s3557 + $0x2c] sm:$0xf]
        %v3570 = vld [vmem:[%s3557 + $0x30] sm:$0xf]
        %v3571 = vld [vmem:[%s3557 + $0x34] sm:$0xf]
        %v3572 = vld [vmem:[%s3557 + $0x38] sm:$0xf]
        %v3573 = vld [vmem:[%s3557 + $0x3c] sm:$0xf]
        %s3574 = scalar_lea.vmem [#allocation7], 192
        %v3575 = vld [vmem:[%s3574] sm:$0xff]
        %v3576 = vld [vmem:[%s3574 + $0x8] sm:$0xf]
        %v3577 = vld [vmem:[%s3574 + $0xc] sm:$0xff]
        %v3578 = vld [vmem:[%s3574 + $0x14] sm:$0xf]
        %v3579 = vld [vmem:[%s3574 + $0x18] sm:$0xff]
        %v3580 = vld [vmem:[%s3574 + $0x20] sm:$0xf]
        %v3581 = vld [vmem:[%s3574 + $0x24] sm:$0xff]
        %v3582 = vld [vmem:[%s3574 + $0x2c] sm:$0xf]
        %v3583 = vld [vmem:[%s3574 + $0x30] sm:$0xff]
        %v3584 = vld [vmem:[%s3574 + $0x38] sm:$0xf]
        %v3585 = vld [vmem:[%s3574 + $0x3c] sm:$0xff]
        %v3586 = vld [vmem:[%s3574 + $0x44] sm:$0xf]
        %v3587 = vld [vmem:[%s3574 + $0x48] sm:$0xff]
        %v3588 = vld [vmem:[%s3574 + $0x50] sm:$0xf]
        %v3589 = vld [vmem:[%s3574 + $0x54] sm:$0xff]
        %v3590 = vld [vmem:[%s3574 + $0x5c] sm:$0xf]
        %v3591 = vld [vmem:[%s3574 + $0x60] sm:$0xff]
        %v3592 = vld [vmem:[%s3574 + $0x68] sm:$0xf]
        %v3593 = vld [vmem:[%s3574 + $0x6c] sm:$0xff]
        %v3594 = vld [vmem:[%s3574 + $0x74] sm:$0xf]
        %v3595 = vld [vmem:[%s3574 + $0x78] sm:$0xff]
        %v3596 = vld [vmem:[%s3574 + $0x80] sm:$0xf]
        %v3597 = vld [vmem:[%s3574 + $0x84] sm:$0xff]
        %v3598 = vld [vmem:[%s3574 + $0x8c] sm:$0xf]
        %v3599 = vld [vmem:[%s3574 + $0x90] sm:$0xff]
        %v3600 = vld [vmem:[%s3574 + $0x98] sm:$0xf]
        %v3601 = vld [vmem:[%s3574 + $0x9c] sm:$0xff]
        %v3602 = vld [vmem:[%s3574 + $0xa4] sm:$0xf]
        %v3603 = vld [vmem:[%s3574 + $0xa8] sm:$0xff]
        %v3604 = vld [vmem:[%s3574 + $0xb0] sm:$0xf]
        %v3605 = vld [vmem:[%s3574 + $0xb4] sm:$0xff]
        %v3606 = vld [vmem:[%s3574 + $0xbc] sm:$0xf]
        %s3607 = scalar_lea.vmem [#allocation8], 3
        %v3608 = vld [vmem:[%s3607] sm:$0x7]
        %s3609 = scalar_lea.vmem [#allocation10], 8
        %v3610 = vld [vmem:[%s3609] sm:$0xff]
        %v3611 = vpack.c.bf16 %v3542, %v3541
        %v3612 = vpack.c.bf16 %v3544, %v3543
        %v3613 = vpack.c.bf16 %v3546, %v3545
        %v3614 = vpack.c.bf16 %v3548, %v3547
        %v3615 = vpack.c.bf16 %v3550, %v3549
        %v3616 = vpack.c.bf16 %v3552, %v3551
        %v3617 = vpack.c.bf16 %v3554, %v3553
        %v3618 = vpack.c.bf16 %v3556, %v3555
        %v3619 = vlaneseq
        %v3620 = vshrl.u32 %v3619, 7
        %v3621 = vsub.s32 0, %v3620
        %v3622 = vrot.slane %v3610, %v3621
        %v3639 = vunpack.c.l.b16 %v3558
        %v3640 = vunpack.c.l.b16 %v3559
        %v3641 = vunpack.c.l.b16 %v3560
        %v3642 = vunpack.c.l.b16 %v3561
        %v3643 = vunpack.c.l.b16 %v3562
        %v3644 = vunpack.c.l.b16 %v3563
        %v3645 = vunpack.c.l.b16 %v3564
        %v3646 = vunpack.c.l.b16 %v3565
        %v3647 = vunpack.c.l.b16 %v3566
        %v3648 = vunpack.c.l.b16 %v3567
        %v3649 = vunpack.c.l.b16 %v3568
        %v3650 = vunpack.c.l.b16 %v3569
        %v3651 = vunpack.c.l.b16 %v3570
        %v3652 = vunpack.c.l.b16 %v3571
        %v3653 = vunpack.c.l.b16 %v3572
        %v3654 = vunpack.c.l.b16 %v3573
        %v3655 = vpack.c.b16 %v3640, %v3639
        %v3656 = vpack.c.b16 %v3642, %v3641
        %v3657 = vpack.c.b16 %v3644, %v3643
        %v3658 = vpack.c.b16 %v3646, %v3645
        %v3659 = vpack.c.b16 %v3648, %v3647
        %v3660 = vpack.c.b16 %v3650, %v3649
        %v3661 = vpack.c.b16 %v3652, %v3651
        %v3662 = vpack.c.b16 %v3654, %v3653
        %3671 = vmatprep.subr.bf16.mxu0 0
        %3672 = vmatpush1.bf16.msra.mxu0 %v3662
        %3673 = vmatprep.subr.bf16.mxu0 0
        %3674 = vmatpush1.bf16.msra.mxu0 %v3661
        %3675 = vmatprep.subr.bf16.mxu0 0
        %3676 = vmatpush1.bf16.msra.mxu0 %v3660
        %3677 = vmatprep.subr.bf16.mxu0 0
        %3678 = vmatpush1.bf16.msra.mxu0 %v3659
        %3679 = vmatprep.subr.bf16.mxu0 0
        %3680 = vmatpush1.bf16.msra.mxu0 %v3658
        %3681 = vmatprep.subr.bf16.mxu0 0
        %3682 = vmatpush1.bf16.msra.mxu0 %v3657
        %3683 = vmatprep.subr.bf16.mxu0 0
        %3684 = vmatpush1.bf16.msra.mxu0 %v3656
        %3685 = vmatprep.subr.bf16.mxu0 0
        %3686 = vmatpush1.bf16.msra.mxu0 %v3655
        %3687 = vmatprep.subr.bf16.mxu0 0
        %3688 = vmatpush2.bf16.msra.mxu0 0
        %3689 = vmatprep.subr.bf16.mxu0 0
        %3690 = vmatpush2.bf16.msra.mxu0 0
        %3691 = vmatprep.subr.bf16.mxu0 0
        %3692 = vmatpush2.bf16.msra.mxu0 0
        %3693 = vmatprep.subr.bf16.mxu0 0
        %3694 = vmatpush2.bf16.msra.mxu0 0
        %3695 = vmatprep.subr.bf16.mxu0 0
        %3696 = vmatpush2.bf16.msra.mxu0 0
        %3697 = vmatprep.subr.bf16.mxu0 0
        %3698 = vmatpush2.bf16.msra.mxu0 0
        %3699 = vmatprep.subr.bf16.mxu0 0
        %3700 = vmatpush2.bf16.msra.mxu0 0
        %3701 = vmatprep.subr.bf16.mxu0 0
        %3702 = vmatpush2.bf16.msra.mxu0 0
        %3703 = vmatprep.mubr.bf16.mxu0 0
        %3704 = vmatmul.mubr.bf16.gmra.mxu0 %v3611
        %v3705 = vpop.f32.mrf.mxu0
        %v3706 = vadd.f32 %v3622, %v3705
        %v3707 = vpop.f32.mrf.mxu0
        %v3708 = vpop.f32.mrf.mxu0
        %v3709 = vadd.f32 %v3622, %v3708
        %v3710 = vpop.f32.mrf.mxu0
        %3711 = vmatprep.mubr.bf16.mxu0 0
        %3712 = vmatmul.mubr.bf16.gmra.mxu0 %v3612
        %v3713 = vpop.f32.mrf.mxu0
        %v3714 = vadd.f32 %v3622, %v3713
        %v3715 = vpop.f32.mrf.mxu0
        %v3716 = vpop.f32.mrf.mxu0
        %v3717 = vadd.f32 %v3622, %v3716
        %v3718 = vpop.f32.mrf.mxu0
        %3719 = vmatprep.mubr.bf16.mxu0 0
        %3720 = vmatmul.mubr.bf16.gmra.mxu0 %v3613
        %v3721 = vpop.f32.mrf.mxu0
        %v3722 = vadd.f32 %v3622, %v3721
        %v3723 = vpop.f32.mrf.mxu0
        %v3724 = vpop.f32.mrf.mxu0
        %v3725 = vadd.f32 %v3622, %v3724
        %v3726 = vpop.f32.mrf.mxu0
        %3727 = vmatprep.mubr.bf16.mxu0 0
        %3728 = vmatmul.mubr.bf16.gmra.mxu0 %v3614
        %v3729 = vpop.f32.mrf.mxu0
        %v3730 = vadd.f32 %v3622, %v3729
        %v3731 = vpop.f32.mrf.mxu0
        %v3732 = vpop.f32.mrf.mxu0
        %v3733 = vadd.f32 %v3622, %v3732
        %v3734 = vpop.f32.mrf.mxu0
        %3735 = vmatprep.mubr.bf16.mxu0 0
        %3736 = vmatmul.mubr.bf16.gmra.mxu0 %v3615
        %v3737 = vpop.f32.mrf.mxu0
        %v3738 = vadd.f32 %v3622, %v3737
        %v3739 = vpop.f32.mrf.mxu0
        %v3740 = vpop.f32.mrf.mxu0
        %v3741 = vadd.f32 %v3622, %v3740
        %v3742 = vpop.f32.mrf.mxu0
        %3743 = vmatprep.mubr.bf16.mxu0 0
        %3744 = vmatmul.mubr.bf16.gmra.mxu0 %v3616
        %v3745 = vpop.f32.mrf.mxu0
        %v3746 = vadd.f32 %v3622, %v3745
        %v3747 = vpop.f32.mrf.mxu0
        %v3748 = vpop.f32.mrf.mxu0
        %v3749 = vadd.f32 %v3622, %v3748
        %v3750 = vpop.f32.mrf.mxu0
        %3751 = vmatprep.mubr.bf16.mxu0 0
        %3752 = vmatmul.mubr.bf16.gmra.mxu0 %v3617
        %v3753 = vpop.f32.mrf.mxu0
        %v3754 = vadd.f32 %v3622, %v3753
        %v3755 = vpop.f32.mrf.mxu0
        %v3756 = vpop.f32.mrf.mxu0
        %v3757 = vadd.f32 %v3622, %v3756
        %v3758 = vpop.f32.mrf.mxu0
        %3759 = vmatprep.mubr.bf16.mxu0 0
        %3760 = vmatmul.mubr.bf16.gmra.mxu0 %v3618
        %v3761 = vpop.f32.mrf.mxu0
        %v3762 = vadd.f32 %v3622, %v3761
        %v3763 = vpop.f32.mrf.mxu0
        %v3764 = vpop.f32.mrf.mxu0
        %v3765 = vadd.f32 %v3622, %v3764
        %v3766 = vpop.f32.mrf.mxu0
        %3767 = vdwg.mxu0
        %vm3768 = vcmp.ge.f32.partialorder %v3706, 0.0
        %vm3769 = vcmp.ge.f32.partialorder %v3709, 0.0
        %vm3770 = vcmp.ge.f32.partialorder %v3714, 0.0
        %vm3771 = vcmp.ge.f32.partialorder %v3717, 0.0
        %vm3772 = vcmp.ge.f32.partialorder %v3722, 0.0
        %vm3773 = vcmp.ge.f32.partialorder %v3725, 0.0
        %vm3774 = vcmp.ge.f32.partialorder %v3730, 0.0
        %vm3775 = vcmp.ge.f32.partialorder %v3733, 0.0
        %vm3776 = vcmp.ge.f32.partialorder %v3738, 0.0
        %vm3777 = vcmp.ge.f32.partialorder %v3741, 0.0
        %vm3778 = vcmp.ge.f32.partialorder %v3746, 0.0
        %vm3779 = vcmp.ge.f32.partialorder %v3749, 0.0
        %vm3780 = vcmp.ge.f32.partialorder %v3754, 0.0
        %vm3781 = vcmp.ge.f32.partialorder %v3757, 0.0
        %vm3782 = vcmp.ge.f32.partialorder %v3762, 0.0
        %vm3783 = vcmp.ge.f32.partialorder %v3765, 0.0
        %v3784 = vmul.f32 %v3706, 0.2
        %v3785 = vmul.f32 %v3709, 0.2
        %v3786 = vmul.f32 %v3714, 0.2
        %v3787 = vmul.f32 %v3717, 0.2
        %v3788 = vmul.f32 %v3722, 0.2
        %v3789 = vmul.f32 %v3725, 0.2
        %v3790 = vmul.f32 %v3730, 0.2
        %v3791 = vmul.f32 %v3733, 0.2
        %v3792 = vmul.f32 %v3738, 0.2
        %v3793 = vmul.f32 %v3741, 0.2
        %v3794 = vmul.f32 %v3746, 0.2
        %v3795 = vmul.f32 %v3749, 0.2
        %v3796 = vmul.f32 %v3754, 0.2
        %v3797 = vmul.f32 %v3757, 0.2
        %v3798 = vmul.f32 %v3762, 0.2
        %v3799 = vmul.f32 %v3765, 0.2
        %v3800 = vsel %vm3768, %v3706, %v3784
        %v3801 = vsel %vm3769, %v3709, %v3785
        %v3802 = vsel %vm3770, %v3714, %v3786
        %v3803 = vsel %vm3771, %v3717, %v3787
        %v3804 = vsel %vm3772, %v3722, %v3788
        %v3805 = vsel %vm3773, %v3725, %v3789
        %v3806 = vsel %vm3774, %v3730, %v3790
        %v3807 = vsel %vm3775, %v3733, %v3791
        %v3808 = vsel %vm3776, %v3738, %v3792
        %v3809 = vsel %vm3777, %v3741, %v3793
        %v3810 = vsel %vm3778, %v3746, %v3794
        %v3811 = vsel %vm3779, %v3749, %v3795
        %v3812 = vsel %vm3780, %v3754, %v3796
        %v3813 = vsel %vm3781, %v3757, %v3797
        %v3814 = vsel %vm3782, %v3762, %v3798
        %v3815 = vsel %vm3783, %v3765, %v3799
        %v3816 = vpack.c.bf16 %v3801, %v3800
        %v3817 = vpack.c.bf16 %v3803, %v3802
        %v3818 = vpack.c.bf16 %v3805, %v3804
        %v3819 = vpack.c.bf16 %v3807, %v3806
        %v3820 = vpack.c.bf16 %v3809, %v3808
        %v3821 = vpack.c.bf16 %v3811, %v3810
        %v3822 = vpack.c.bf16 %v3813, %v3812
        %v3823 = vpack.c.bf16 %v3815, %v3814
        %v3825 = vlaneseq
        %v3826 = vshrl.u32 %v3825, 7
        %v3827 = vsub.s32 0, %v3826
        %v3828 = vrot.slane %v3608, %v3827
        %v3829 = vlaneseq
        %v3830 = vshrl.u32 %v3829, 7
        %v3831 = vsub.s32 1, %v3830
        %v3832 = vrot.slane %v3608, %v3831
        %v3833 = vlaneseq
        %v3834 = vshrl.u32 %v3833, 7
        %v3835 = vsub.s32 2, %v3834
        %v3836 = vrot.slane %v3608, %v3835
        %v3872 = vunpack.c.l.b16 %v3575
        %v3873 = vunpack.c.h.b16 %v3575
        %v3874 = vunpack.c.l.b16 %v3576
        %v3875 = vunpack.c.l.b16 %v3577
        %v3876 = vunpack.c.h.b16 %v3577
        %v3877 = vunpack.c.l.b16 %v3578
        %v3878 = vunpack.c.l.b16 %v3579
        %v3879 = vunpack.c.h.b16 %v3579
        %v3880 = vunpack.c.l.b16 %v3580
        %v3881 = vunpack.c.l.b16 %v3581
        %v3882 = vunpack.c.h.b16 %v3581
        %v3883 = vunpack.c.l.b16 %v3582
        %v3884 = vunpack.c.l.b16 %v3583
        %v3885 = vunpack.c.h.b16 %v3583
        %v3886 = vunpack.c.l.b16 %v3584
        %v3887 = vunpack.c.l.b16 %v3585
        %v3888 = vunpack.c.h.b16 %v3585
        %v3889 = vunpack.c.l.b16 %v3586
        %v3890 = vunpack.c.l.b16 %v3587
        %v3891 = vunpack.c.h.b16 %v3587
        %v3892 = vunpack.c.l.b16 %v3588
        %v3893 = vunpack.c.l.b16 %v3589
        %v3894 = vunpack.c.h.b16 %v3589
        %v3895 = vunpack.c.l.b16 %v3590
        %v3896 = vunpack.c.l.b16 %v3591
        %v3897 = vunpack.c.h.b16 %v3591
        %v3898 = vunpack.c.l.b16 %v3592
        %v3899 = vunpack.c.l.b16 %v3593
        %v3900 = vunpack.c.h.b16 %v3593
        %v3901 = vunpack.c.l.b16 %v3594
        %v3902 = vunpack.c.l.b16 %v3595
        %v3903 = vunpack.c.h.b16 %v3595
        %v3904 = vunpack.c.l.b16 %v3596
        %v3905 = vunpack.c.l.b16 %v3597
        %v3906 = vunpack.c.h.b16 %v3597
        %v3907 = vunpack.c.l.b16 %v3598
        %v3908 = vunpack.c.l.b16 %v3599
        %v3909 = vunpack.c.h.b16 %v3599
        %v3910 = vunpack.c.l.b16 %v3600
        %v3911 = vunpack.c.l.b16 %v3601
        %v3912 = vunpack.c.h.b16 %v3601
        %v3913 = vunpack.c.l.b16 %v3602
        %v3914 = vunpack.c.l.b16 %v3603
        %v3915 = vunpack.c.h.b16 %v3603
        %v3916 = vunpack.c.l.b16 %v3604
        %v3917 = vunpack.c.l.b16 %v3605
        %v3918 = vunpack.c.h.b16 %v3605
        %v3919 = vunpack.c.l.b16 %v3606
        %v3920 = vpack.c.b16 %v3875, %v3872
        %v3921 = vpack.c.b16 %v3876, %v3873
        %v3922 = vpack.c.b16 %v3877, %v3874
        %v3923 = vpack.c.b16 %v3881, %v3878
        %v3924 = vpack.c.b16 %v3882, %v3879
        %v3925 = vpack.c.b16 %v3883, %v3880
        %v3926 = vpack.c.b16 %v3887, %v3884
        %v3927 = vpack.c.b16 %v3888, %v3885
        %v3928 = vpack.c.b16 %v3889, %v3886
        %v3929 = vpack.c.b16 %v3893, %v3890
        %v3930 = vpack.c.b16 %v3894, %v3891
        %v3931 = vpack.c.b16 %v3895, %v3892
        %v3932 = vpack.c.b16 %v3899, %v3896
        %v3933 = vpack.c.b16 %v3900, %v3897
        %v3934 = vpack.c.b16 %v3901, %v3898
        %v3935 = vpack.c.b16 %v3905, %v3902
        %v3936 = vpack.c.b16 %v3906, %v3903
        %v3937 = vpack.c.b16 %v3907, %v3904
        %v3938 = vpack.c.b16 %v3911, %v3908
        %v3939 = vpack.c.b16 %v3912, %v3909
        %v3940 = vpack.c.b16 %v3913, %v3910
        %v3941 = vpack.c.b16 %v3917, %v3914
        %v3942 = vpack.c.b16 %v3918, %v3915
        %v3943 = vpack.c.b16 %v3919, %v3916
        %3968 = vmatprep.subr.bf16.mxu0 %v3942
        %3969 = vmatpush1.bf16.msra.mxu0 %v3941
        %3970 = vmatprep.subr.bf16.mxu0 %v3939
        %3971 = vmatpush1.bf16.msra.mxu0 %v3938
        %3972 = vmatprep.subr.bf16.mxu0 %v3936
        %3973 = vmatpush1.bf16.msra.mxu0 %v3935
        %3974 = vmatprep.subr.bf16.mxu0 %v3933
        %3975 = vmatpush1.bf16.msra.mxu0 %v3932
        %3976 = vmatprep.subr.bf16.mxu0 %v3930
        %3977 = vmatpush1.bf16.msra.mxu0 %v3929
        %3978 = vmatprep.subr.bf16.mxu0 %v3927
        %3979 = vmatpush1.bf16.msra.mxu0 %v3926
        %3980 = vmatprep.subr.bf16.mxu0 %v3924
        %3981 = vmatpush1.bf16.msra.mxu0 %v3923
        %3982 = vmatprep.subr.bf16.mxu0 %v3921
        %3983 = vmatpush1.bf16.msra.mxu0 %v3920
        %3984 = vmatprep.subr.bf16.mxu0 0
        %3985 = vmatpush2.bf16.msra.mxu0 0
        %3986 = vmatprep.subr.bf16.mxu0 0
        %3987 = vmatpush2.bf16.msra.mxu0 0
        %3988 = vmatprep.subr.bf16.mxu0 0
        %3989 = vmatpush2.bf16.msra.mxu0 0
        %3990 = vmatprep.subr.bf16.mxu0 0
        %3991 = vmatpush2.bf16.msra.mxu0 0
        %3992 = vmatprep.subr.bf16.mxu0 0
        %3993 = vmatpush2.bf16.msra.mxu0 0
        %3994 = vmatprep.subr.bf16.mxu0 0
        %3995 = vmatpush2.bf16.msra.mxu0 0
        %3996 = vmatprep.subr.bf16.mxu0 0
        %3997 = vmatpush2.bf16.msra.mxu0 0
        %3998 = vmatprep.subr.bf16.mxu0 0
        %3999 = vmatpush2.bf16.msra.mxu0 0
        %4000 = vmatprep.mubr.bf16.mxu0 0
        %4001 = vmatmul.mubr.bf16.gmra.mxu0 %v3816
        %v4002 = vpop.f32.mrf.mxu0
        %v4003 = vadd.f32 %v3828, %v4002
        %v4004 = vpop.f32.mrf.mxu0
        %v4005 = vadd.f32 %v3832, %v4004
        %v4006 = vpop.f32.mrf.mxu0
        %v4007 = vadd.f32 %v3828, %v4006
        %v4008 = vpop.f32.mrf.mxu0
        %v4009 = vadd.f32 %v3832, %v4008
        %4010 = vmatprep.mubr.bf16.mxu0 0
        %4011 = vmatmul.mubr.bf16.gmra.mxu0 %v3817
        %v4012 = vpop.f32.mrf.mxu0
        %v4013 = vadd.f32 %v3828, %v4012
        %v4014 = vpop.f32.mrf.mxu0
        %v4015 = vadd.f32 %v3832, %v4014
        %v4016 = vpop.f32.mrf.mxu0
        %v4017 = vadd.f32 %v3828, %v4016
        %v4018 = vpop.f32.mrf.mxu0
        %v4019 = vadd.f32 %v3832, %v4018
        %4020 = vmatprep.mubr.bf16.mxu0 0
        %4021 = vmatmul.mubr.bf16.gmra.mxu0 %v3818
        %v4022 = vpop.f32.mrf.mxu0
        %v4023 = vadd.f32 %v3828, %v4022
        %v4024 = vpop.f32.mrf.mxu0
        %v4025 = vadd.f32 %v3832, %v4024
        %v4026 = vpop.f32.mrf.mxu0
        %v4027 = vadd.f32 %v3828, %v4026
        %v4028 = vpop.f32.mrf.mxu0
        %v4029 = vadd.f32 %v3832, %v4028
        %4030 = vmatprep.mubr.bf16.mxu0 0
        %4031 = vmatmul.mubr.bf16.gmra.mxu0 %v3819
        %v4032 = vpop.f32.mrf.mxu0
        %v4033 = vadd.f32 %v3828, %v4032
        %v4034 = vpop.f32.mrf.mxu0
        %v4035 = vadd.f32 %v3832, %v4034
        %v4036 = vpop.f32.mrf.mxu0
        %v4037 = vadd.f32 %v3828, %v4036
        %v4038 = vpop.f32.mrf.mxu0
        %v4039 = vadd.f32 %v3832, %v4038
        %4040 = vmatprep.mubr.bf16.mxu0 0
        %4041 = vmatmul.mubr.bf16.gmra.mxu0 %v3820
        %v4042 = vpop.f32.mrf.mxu0
        %v4043 = vadd.f32 %v3828, %v4042
        %v4044 = vpop.f32.mrf.mxu0
        %v4045 = vadd.f32 %v3832, %v4044
        %v4046 = vpop.f32.mrf.mxu0
        %v4047 = vadd.f32 %v3828, %v4046
        %v4048 = vpop.f32.mrf.mxu0
        %v4049 = vadd.f32 %v3832, %v4048
        %4050 = vmatprep.mubr.bf16.mxu0 0
        %4051 = vmatmul.mubr.bf16.gmra.mxu0 %v3821
        %v4052 = vpop.f32.mrf.mxu0
        %v4053 = vadd.f32 %v3828, %v4052
        %v4054 = vpop.f32.mrf.mxu0
        %v4055 = vadd.f32 %v3832, %v4054
        %v4056 = vpop.f32.mrf.mxu0
        %v4057 = vadd.f32 %v3828, %v4056
        %v4058 = vpop.f32.mrf.mxu0
        %v4059 = vadd.f32 %v3832, %v4058
        %4060 = vmatprep.mubr.bf16.mxu0 0
        %4061 = vmatmul.mubr.bf16.gmra.mxu0 %v3822
        %v4062 = vpop.f32.mrf.mxu0
        %v4063 = vadd.f32 %v3828, %v4062
        %v4064 = vpop.f32.mrf.mxu0
        %v4065 = vadd.f32 %v3832, %v4064
        %v4066 = vpop.f32.mrf.mxu0
        %v4067 = vadd.f32 %v3828, %v4066
        %v4068 = vpop.f32.mrf.mxu0
        %v4069 = vadd.f32 %v3832, %v4068
        %4070 = vmatprep.mubr.bf16.mxu0 0
        %4071 = vmatmul.mubr.bf16.gmra.mxu0 %v3823
        %v4072 = vpop.f32.mrf.mxu0
        %v4073 = vadd.f32 %v3828, %v4072
        %v4074 = vpop.f32.mrf.mxu0
        %v4075 = vadd.f32 %v3832, %v4074
        %v4076 = vpop.f32.mrf.mxu0
        %v4077 = vadd.f32 %v3828, %v4076
        %v4078 = vpop.f32.mrf.mxu0
        %v4079 = vadd.f32 %v3832, %v4078
        %4080 = vdwg.mxu0
        %4081 = vmatprep.subr.bf16.mxu0 0
        %4082 = vmatpush1.bf16.msra.mxu0 %v3943
        %4083 = vmatprep.subr.bf16.mxu0 0
        %4084 = vmatpush1.bf16.msra.mxu0 %v3940
        %4085 = vmatprep.subr.bf16.mxu0 0
        %4086 = vmatpush1.bf16.msra.mxu0 %v3937
        %4087 = vmatprep.subr.bf16.mxu0 0
        %4088 = vmatpush1.bf16.msra.mxu0 %v3934
        %4089 = vmatprep.subr.bf16.mxu0 0
        %4090 = vmatpush1.bf16.msra.mxu0 %v3931
        %4091 = vmatprep.subr.bf16.mxu0 0
        %4092 = vmatpush1.bf16.msra.mxu0 %v3928
        %4093 = vmatprep.subr.bf16.mxu0 0
        %4094 = vmatpush1.bf16.msra.mxu0 %v3925
        %4095 = vmatprep.subr.bf16.mxu0 0
        %4096 = vmatpush1.bf16.msra.mxu0 %v3922
        %4097 = vmatprep.subr.bf16.mxu0 0
        %4098 = vmatpush2.bf16.msra.mxu0 0
        %4099 = vmatprep.subr.bf16.mxu0 0
        %4100 = vmatpush2.bf16.msra.mxu0 0
        %4101 = vmatprep.subr.bf16.mxu0 0
        %4102 = vmatpush2.bf16.msra.mxu0 0
        %4103 = vmatprep.subr.bf16.mxu0 0
        %4104 = vmatpush2.bf16.msra.mxu0 0
        %4105 = vmatprep.subr.bf16.mxu0 0
        %4106 = vmatpush2.bf16.msra.mxu0 0
        %4107 = vmatprep.subr.bf16.mxu0 0
        %4108 = vmatpush2.bf16.msra.mxu0 0
        %4109 = vmatprep.subr.bf16.mxu0 0
        %4110 = vmatpush2.bf16.msra.mxu0 0
        %4111 = vmatprep.subr.bf16.mxu0 0
        %4112 = vmatpush2.bf16.msra.mxu0 0
        %4113 = vmatprep.mubr.bf16.mxu0 0
        %4114 = vmatmul.mubr.bf16.gmra.mxu0 %v3816
        %v4115 = vpop.f32.mrf.mxu0
        %v4116 = vadd.f32 %v3836, %v4115
        %v4117 = vpop.f32.mrf.mxu0
        %v4118 = vpop.f32.mrf.mxu0
        %v4119 = vadd.f32 %v3836, %v4118
        %v4120 = vpop.f32.mrf.mxu0
        %4121 = vmatprep.mubr.bf16.mxu0 0
        %4122 = vmatmul.mubr.bf16.gmra.mxu0 %v3817
        %v4123 = vpop.f32.mrf.mxu0
        %v4124 = vadd.f32 %v3836, %v4123
        %v4125 = vpop.f32.mrf.mxu0
        %v4126 = vpop.f32.mrf.mxu0
        %v4127 = vadd.f32 %v3836, %v4126
        %v4128 = vpop.f32.mrf.mxu0
        %4129 = vmatprep.mubr.bf16.mxu0 0
        %4130 = vmatmul.mubr.bf16.gmra.mxu0 %v3818
        %v4131 = vpop.f32.mrf.mxu0
        %v4132 = vadd.f32 %v3836, %v4131
        %v4133 = vpop.f32.mrf.mxu0
        %v4134 = vpop.f32.mrf.mxu0
        %v4135 = vadd.f32 %v3836, %v4134
        %v4136 = vpop.f32.mrf.mxu0
        %4137 = vmatprep.mubr.bf16.mxu0 0
        %4138 = vmatmul.mubr.bf16.gmra.mxu0 %v3819
        %v4139 = vpop.f32.mrf.mxu0
        %v4140 = vadd.f32 %v3836, %v4139
        %v4141 = vpop.f32.mrf.mxu0
        %v4142 = vpop.f32.mrf.mxu0
        %v4143 = vadd.f32 %v3836, %v4142
        %v4144 = vpop.f32.mrf.mxu0
        %4145 = vmatprep.mubr.bf16.mxu0 0
        %4146 = vmatmul.mubr.bf16.gmra.mxu0 %v3820
        %v4147 = vpop.f32.mrf.mxu0
        %v4148 = vadd.f32 %v3836, %v4147
        %v4149 = vpop.f32.mrf.mxu0
        %v4150 = vpop.f32.mrf.mxu0
        %v4151 = vadd.f32 %v3836, %v4150
        %v4152 = vpop.f32.mrf.mxu0
        %4153 = vmatprep.mubr.bf16.mxu0 0
        %4154 = vmatmul.mubr.bf16.gmra.mxu0 %v3821
        %v4155 = vpop.f32.mrf.mxu0
        %v4156 = vadd.f32 %v3836, %v4155
        %v4157 = vpop.f32.mrf.mxu0
        %v4158 = vpop.f32.mrf.mxu0
        %v4159 = vadd.f32 %v3836, %v4158
        %v4160 = vpop.f32.mrf.mxu0
        %4161 = vmatprep.mubr.bf16.mxu0 0
        %4162 = vmatmul.mubr.bf16.gmra.mxu0 %v3822
        %v4163 = vpop.f32.mrf.mxu0
        %v4164 = vadd.f32 %v3836, %v4163
        %v4165 = vpop.f32.mrf.mxu0
        %v4166 = vpop.f32.mrf.mxu0
        %v4167 = vadd.f32 %v3836, %v4166
        %v4168 = vpop.f32.mrf.mxu0
        %4169 = vmatprep.mubr.bf16.mxu0 0
        %4170 = vmatmul.mubr.bf16.gmra.mxu0 %v3823
        %v4171 = vpop.f32.mrf.mxu0
        %v4172 = vadd.f32 %v3836, %v4171
        %v4173 = vpop.f32.mrf.mxu0
        %v4174 = vpop.f32.mrf.mxu0
        %v4175 = vadd.f32 %v3836, %v4174
        %v4176 = vpop.f32.mrf.mxu0
        %4177 = vdwg.mxu0
        %v4178 = vmul.f32 %v4005, %v4003
        %v4179 = vmul.f32 %v4009, %v4007
        %v4180 = vmul.f32 %v4015, %v4013
        %v4181 = vmul.f32 %v4019, %v4017
        %v4182 = vmul.f32 %v4025, %v4023
        %v4183 = vmul.f32 %v4029, %v4027
        %v4184 = vmul.f32 %v4035, %v4033
        %v4185 = vmul.f32 %v4039, %v4037
        %v4186 = vmul.f32 %v4045, %v4043
        %v4187 = vmul.f32 %v4049, %v4047
        %v4188 = vmul.f32 %v4055, %v4053
        %v4189 = vmul.f32 %v4059, %v4057
        %v4190 = vmul.f32 %v4065, %v4063
        %v4191 = vmul.f32 %v4069, %v4067
        %v4192 = vmul.f32 %v4075, %v4073
        %v4193 = vmul.f32 %v4079, %v4077
        %4194 = vmax.xlane.f32.xlu0 %v4178
        %v4195 = vpop.xlane.xlu0 %4194
        %4196 = vmax.xlane.f32.xlu0 %v4179
        %v4197 = vpop.xlane.xlu0 %4196
        %4198 = vmax.xlane.f32.xlu0 %v4180
        %v4199 = vpop.xlane.xlu0 %4198
        %4200 = vmax.xlane.f32.xlu0 %v4181
        %v4201 = vpop.xlane.xlu0 %4200
        %4202 = vmax.xlane.f32.xlu0 %v4182
        %v4203 = vpop.xlane.xlu0 %4202
        %4204 = vmax.xlane.f32.xlu0 %v4183
        %v4205 = vpop.xlane.xlu0 %4204
        %4206 = vmax.xlane.f32.xlu0 %v4184
        %v4207 = vpop.xlane.xlu0 %4206
        %4208 = vmax.xlane.f32.xlu0 %v4185
        %v4209 = vpop.xlane.xlu0 %4208
        %4210 = vmax.xlane.f32.xlu0 %v4186
        %v4211 = vpop.xlane.xlu0 %4210
        %4212 = vmax.xlane.f32.xlu0 %v4187
        %v4213 = vpop.xlane.xlu0 %4212
        %4214 = vmax.xlane.f32.xlu0 %v4188
        %v4215 = vpop.xlane.xlu0 %4214
        %4216 = vmax.xlane.f32.xlu0 %v4189
        %v4217 = vpop.xlane.xlu0 %4216
        %4218 = vmax.xlane.f32.xlu0 %v4190
        %v4219 = vpop.xlane.xlu0 %4218
        %4220 = vmax.xlane.f32.xlu0 %v4191
        %v4221 = vpop.xlane.xlu0 %4220
        %4222 = vmax.xlane.f32.xlu0 %v4192
        %v4223 = vpop.xlane.xlu0 %4222
        %4224 = vmax.xlane.f32.xlu0 %v4193
        %v4225 = vpop.xlane.xlu0 %4224
        %v4226 = vsub.f32 %v4178, %v4195
        %v4227 = vsub.f32 %v4179, %v4197
        %v4228 = vsub.f32 %v4180, %v4199
        %v4229 = vsub.f32 %v4181, %v4201
        %v4230 = vsub.f32 %v4182, %v4203
        %v4231 = vsub.f32 %v4183, %v4205
        %v4232 = vsub.f32 %v4184, %v4207
        %v4233 = vsub.f32 %v4185, %v4209
        %v4234 = vsub.f32 %v4186, %v4211
        %v4235 = vsub.f32 %v4187, %v4213
        %v4236 = vsub.f32 %v4188, %v4215
        %v4237 = vsub.f32 %v4189, %v4217
        %v4238 = vsub.f32 %v4190, %v4219
        %v4239 = vsub.f32 %v4191, %v4221
        %v4240 = vsub.f32 %v4192, %v4223
        %v4241 = vsub.f32 %v4193, %v4225
        %v4242 = vmul.f32 %v4226, 1.442695
        %v4243 = vpow.pop %v4242
        %v4244 = vmul.f32 %v4227, 1.442695
        %v4245 = vpow.pop %v4244
        %v4246 = vmul.f32 %v4228, 1.442695
        %v4247 = vpow.pop %v4246
        %v4248 = vmul.f32 %v4229, 1.442695
        %v4249 = vpow.pop %v4248
        %v4250 = vmul.f32 %v4230, 1.442695
        %v4251 = vpow.pop %v4250
        %v4252 = vmul.f32 %v4231, 1.442695
        %v4253 = vpow.pop %v4252
        %v4254 = vmul.f32 %v4232, 1.442695
        %v4255 = vpow.pop %v4254
        %v4256 = vmul.f32 %v4233, 1.442695
        %v4257 = vpow.pop %v4256
        %v4258 = vmul.f32 %v4234, 1.442695
        %v4259 = vpow.pop %v4258
        %v4260 = vmul.f32 %v4235, 1.442695
        %v4261 = vpow.pop %v4260
        %v4262 = vmul.f32 %v4236, 1.442695
        %v4263 = vpow.pop %v4262
        %v4264 = vmul.f32 %v4237, 1.442695
        %v4265 = vpow.pop %v4264
        %v4266 = vmul.f32 %v4238, 1.442695
        %v4267 = vpow.pop %v4266
        %v4268 = vmul.f32 %v4239, 1.442695
        %v4269 = vpow.pop %v4268
        %v4270 = vmul.f32 %v4240, 1.442695
        %v4271 = vpow.pop %v4270
        %v4272 = vmul.f32 %v4241, 1.442695
        %v4273 = vpow.pop %v4272
        %4274 = vadd.xlane.f32.xlu0 %v4243
        %v4275 = vpop.xlane.xlu0 %4274
        %4276 = vadd.xlane.f32.xlu0 %v4245
        %v4277 = vpop.xlane.xlu0 %4276
        %4278 = vadd.xlane.f32.xlu0 %v4247
        %v4279 = vpop.xlane.xlu0 %4278
        %4280 = vadd.xlane.f32.xlu0 %v4249
        %v4281 = vpop.xlane.xlu0 %4280
        %4282 = vadd.xlane.f32.xlu0 %v4251
        %v4283 = vpop.xlane.xlu0 %4282
        %4284 = vadd.xlane.f32.xlu0 %v4253
        %v4285 = vpop.xlane.xlu0 %4284
        %4286 = vadd.xlane.f32.xlu0 %v4255
        %v4287 = vpop.xlane.xlu0 %4286
        %4288 = vadd.xlane.f32.xlu0 %v4257
        %v4289 = vpop.xlane.xlu0 %4288
        %4290 = vadd.xlane.f32.xlu0 %v4259
        %v4291 = vpop.xlane.xlu0 %4290
        %4292 = vadd.xlane.f32.xlu0 %v4261
        %v4293 = vpop.xlane.xlu0 %4292
        %4294 = vadd.xlane.f32.xlu0 %v4263
        %v4295 = vpop.xlane.xlu0 %4294
        %4296 = vadd.xlane.f32.xlu0 %v4265
        %v4297 = vpop.xlane.xlu0 %4296
        %4298 = vadd.xlane.f32.xlu0 %v4267
        %v4299 = vpop.xlane.xlu0 %4298
        %4300 = vadd.xlane.f32.xlu0 %v4269
        %v4301 = vpop.xlane.xlu0 %4300
        %4302 = vadd.xlane.f32.xlu0 %v4271
        %v4303 = vpop.xlane.xlu0 %4302
        %4304 = vadd.xlane.f32.xlu0 %v4273
        %v4305 = vpop.xlane.xlu0 %4304
        %v4306 = vrcp.pop %v4275
        %v4307 = vrcp.pop %v4277
        %v4308 = vrcp.pop %v4279
        %v4309 = vrcp.pop %v4281
        %v4310 = vrcp.pop %v4283
        %v4311 = vrcp.pop %v4285
        %v4312 = vrcp.pop %v4287
        %v4313 = vrcp.pop %v4289
        %v4314 = vrcp.pop %v4291
        %v4315 = vrcp.pop %v4293
        %v4316 = vrcp.pop %v4295
        %v4317 = vrcp.pop %v4297
        %v4318 = vrcp.pop %v4299
        %v4319 = vrcp.pop %v4301
        %v4320 = vrcp.pop %v4303
        %v4321 = vrcp.pop %v4305
        %v4322 = vmul.f32 %v4243, %v4306
        %v4323 = vmul.f32 %v4245, %v4307
        %v4324 = vmul.f32 %v4247, %v4308
        %v4325 = vmul.f32 %v4249, %v4309
        %v4326 = vmul.f32 %v4251, %v4310
        %v4327 = vmul.f32 %v4253, %v4311
        %v4328 = vmul.f32 %v4255, %v4312
        %v4329 = vmul.f32 %v4257, %v4313
        %v4330 = vmul.f32 %v4259, %v4314
        %v4331 = vmul.f32 %v4261, %v4315
        %v4332 = vmul.f32 %v4263, %v4316
        %v4333 = vmul.f32 %v4265, %v4317
        %v4334 = vmul.f32 %v4267, %v4318
        %v4335 = vmul.f32 %v4269, %v4319
        %v4336 = vmul.f32 %v4271, %v4320
        %v4337 = vmul.f32 %v4273, %v4321
        %v4338 = vmul.f32 %v4116, %v4322
        %v4339 = vmul.f32 %v4119, %v4323
        %v4340 = vmul.f32 %v4124, %v4324
        %v4341 = vmul.f32 %v4127, %v4325
        %v4342 = vmul.f32 %v4132, %v4326
        %v4343 = vmul.f32 %v4135, %v4327
        %v4344 = vmul.f32 %v4140, %v4328
        %v4345 = vmul.f32 %v4143, %v4329
        %v4346 = vmul.f32 %v4148, %v4330
        %v4347 = vmul.f32 %v4151, %v4331
        %v4348 = vmul.f32 %v4156, %v4332
        %v4349 = vmul.f32 %v4159, %v4333
        %v4350 = vmul.f32 %v4164, %v4334
        %v4351 = vmul.f32 %v4167, %v4335
        %v4352 = vmul.f32 %v4172, %v4336
        %v4353 = vmul.f32 %v4175, %v4337
        %v4354 = vadd.f32 %v3800, %v4338
        %v4355 = vadd.f32 %v3801, %v4339
        %v4356 = vadd.f32 %v3802, %v4340
        %v4357 = vadd.f32 %v3803, %v4341
        %v4358 = vadd.f32 %v3804, %v4342
        %v4359 = vadd.f32 %v3805, %v4343
        %v4360 = vadd.f32 %v3806, %v4344
        %v4361 = vadd.f32 %v3807, %v4345
        %v4362 = vadd.f32 %v3808, %v4346
        %v4363 = vadd.f32 %v3809, %v4347
        %v4364 = vadd.f32 %v3810, %v4348
        %v4365 = vadd.f32 %v3811, %v4349
        %v4366 = vadd.f32 %v3812, %v4350
        %v4367 = vadd.f32 %v3813, %v4351
        %v4368 = vadd.f32 %v3814, %v4352
        %v4369 = vadd.f32 %v3815, %v4353
        %4370 = vadd.xlane.f32.xlu0 %v4354
        %v4371 = vpop.xlane.xlu0 %4370
        %4372 = vadd.xlane.f32.xlu0 %v4355
        %v4373 = vpop.xlane.xlu0 %4372
        %4374 = vadd.xlane.f32.xlu0 %v4356
        %v4375 = vpop.xlane.xlu0 %4374
        %4376 = vadd.xlane.f32.xlu0 %v4357
        %v4377 = vpop.xlane.xlu0 %4376
        %4378 = vadd.xlane.f32.xlu0 %v4358
        %v4379 = vpop.xlane.xlu0 %4378
        %4380 = vadd.xlane.f32.xlu0 %v4359
        %v4381 = vpop.xlane.xlu0 %4380
        %4382 = vadd.xlane.f32.xlu0 %v4360
        %v4383 = vpop.xlane.xlu0 %4382
        %4384 = vadd.xlane.f32.xlu0 %v4361
        %v4385 = vpop.xlane.xlu0 %4384
        %4386 = vadd.xlane.f32.xlu0 %v4362
        %v4387 = vpop.xlane.xlu0 %4386
        %4388 = vadd.xlane.f32.xlu0 %v4363
        %v4389 = vpop.xlane.xlu0 %4388
        %4390 = vadd.xlane.f32.xlu0 %v4364
        %v4391 = vpop.xlane.xlu0 %4390
        %4392 = vadd.xlane.f32.xlu0 %v4365
        %v4393 = vpop.xlane.xlu0 %4392
        %4394 = vadd.xlane.f32.xlu0 %v4366
        %v4395 = vpop.xlane.xlu0 %4394
        %4396 = vadd.xlane.f32.xlu0 %v4367
        %v4397 = vpop.xlane.xlu0 %4396
        %4398 = vadd.xlane.f32.xlu0 %v4368
        %v4399 = vpop.xlane.xlu0 %4398
        %4400 = vadd.xlane.f32.xlu0 %v4369
        %v4401 = vpop.xlane.xlu0 %4400
        %v4402 = vmul.f32 %v4371, 0.0078125
        %v4403 = vmul.f32 %v4373, 0.0078125
        %v4404 = vmul.f32 %v4375, 0.0078125
        %v4405 = vmul.f32 %v4377, 0.0078125
        %v4406 = vmul.f32 %v4379, 0.0078125
        %v4407 = vmul.f32 %v4381, 0.0078125
        %v4408 = vmul.f32 %v4383, 0.0078125
        %v4409 = vmul.f32 %v4385, 0.0078125
        %v4410 = vmul.f32 %v4387, 0.0078125
        %v4411 = vmul.f32 %v4389, 0.0078125
        %v4412 = vmul.f32 %v4391, 0.0078125
        %v4413 = vmul.f32 %v4393, 0.0078125
        %v4414 = vmul.f32 %v4395, 0.0078125
        %v4415 = vmul.f32 %v4397, 0.0078125
        %v4416 = vmul.f32 %v4399, 0.0078125
        %v4417 = vmul.f32 %v4401, 0.0078125
        %v4418 = vsub.f32 %v4354, %v4402
        %v4419 = vsub.f32 %v4355, %v4403
        %v4420 = vsub.f32 %v4356, %v4404
        %v4421 = vsub.f32 %v4357, %v4405
        %v4422 = vsub.f32 %v4358, %v4406
        %v4423 = vsub.f32 %v4359, %v4407
        %v4424 = vsub.f32 %v4360, %v4408
        %v4425 = vsub.f32 %v4361, %v4409
        %v4426 = vsub.f32 %v4362, %v4410
        %v4427 = vsub.f32 %v4363, %v4411
        %v4428 = vsub.f32 %v4364, %v4412
        %v4429 = vsub.f32 %v4365, %v4413
        %v4430 = vsub.f32 %v4366, %v4414
        %v4431 = vsub.f32 %v4367, %v4415
        %v4432 = vsub.f32 %v4368, %v4416
        %v4433 = vsub.f32 %v4369, %v4417
        %v4434 = vmul.f32 %v4418, %v4418
        %v4435 = vmul.f32 %v4419, %v4419
        %v4436 = vmul.f32 %v4420, %v4420
        %v4437 = vmul.f32 %v4421, %v4421
        %v4438 = vmul.f32 %v4422, %v4422
        %v4439 = vmul.f32 %v4423, %v4423
        %v4440 = vmul.f32 %v4424, %v4424
        %v4441 = vmul.f32 %v4425, %v4425
        %v4442 = vmul.f32 %v4426, %v4426
        %v4443 = vmul.f32 %v4427, %v4427
        %v4444 = vmul.f32 %v4428, %v4428
        %v4445 = vmul.f32 %v4429, %v4429
        %v4446 = vmul.f32 %v4430, %v4430
        %v4447 = vmul.f32 %v4431, %v4431
        %v4448 = vmul.f32 %v4432, %v4432
        %v4449 = vmul.f32 %v4433, %v4433
        %4450 = vadd.xlane.f32.xlu0 %v4434
        %v4451 = vpop.xlane.xlu0 %4450
        %4452 = vadd.xlane.f32.xlu0 %v4435
        %v4453 = vpop.xlane.xlu0 %4452
        %4454 = vadd.xlane.f32.xlu0 %v4436
        %v4455 = vpop.xlane.xlu0 %4454
        %4456 = vadd.xlane.f32.xlu0 %v4437
        %v4457 = vpop.xlane.xlu0 %4456
        %4458 = vadd.xlane.f32.xlu0 %v4438
        %v4459 = vpop.xlane.xlu0 %4458
        %4460 = vadd.xlane.f32.xlu0 %v4439
        %v4461 = vpop.xlane.xlu0 %4460
        %4462 = vadd.xlane.f32.xlu0 %v4440
        %v4463 = vpop.xlane.xlu0 %4462
        %4464 = vadd.xlane.f32.xlu0 %v4441
        %v4465 = vpop.xlane.xlu0 %4464
        %4466 = vadd.xlane.f32.xlu0 %v4442
        %v4467 = vpop.xlane.xlu0 %4466
        %4468 = vadd.xlane.f32.xlu0 %v4443
        %v4469 = vpop.xlane.xlu0 %4468
        %4470 = vadd.xlane.f32.xlu0 %v4444
        %v4471 = vpop.xlane.xlu0 %4470
        %4472 = vadd.xlane.f32.xlu0 %v4445
        %v4473 = vpop.xlane.xlu0 %4472
        %4474 = vadd.xlane.f32.xlu0 %v4446
        %v4475 = vpop.xlane.xlu0 %4474
        %4476 = vadd.xlane.f32.xlu0 %v4447
        %v4477 = vpop.xlane.xlu0 %4476
        %4478 = vadd.xlane.f32.xlu0 %v4448
        %v4479 = vpop.xlane.xlu0 %4478
        %4480 = vadd.xlane.f32.xlu0 %v4449
        %v4481 = vpop.xlane.xlu0 %4480
        %v4482 = vmul.f32 %v4451, 0.0078125
        %v4483 = vmul.f32 %v4453, 0.0078125
        %v4484 = vmul.f32 %v4455, 0.0078125
        %v4485 = vmul.f32 %v4457, 0.0078125
        %v4486 = vmul.f32 %v4459, 0.0078125
        %v4487 = vmul.f32 %v4461, 0.0078125
        %v4488 = vmul.f32 %v4463, 0.0078125
        %v4489 = vmul.f32 %v4465, 0.0078125
        %v4490 = vmul.f32 %v4467, 0.0078125
        %v4491 = vmul.f32 %v4469, 0.0078125
        %v4492 = vmul.f32 %v4471, 0.0078125
        %v4493 = vmul.f32 %v4473, 0.0078125
        %v4494 = vmul.f32 %v4475, 0.0078125
        %v4495 = vmul.f32 %v4477, 0.0078125
        %v4496 = vmul.f32 %v4479, 0.0078125
        %v4497 = vmul.f32 %v4481, 0.0078125
        %v4498 = vadd.f32 %v4482, 1e-05
        %v4499 = vadd.f32 %v4483, 1e-05
        %v4500 = vadd.f32 %v4484, 1e-05
        %v4501 = vadd.f32 %v4485, 1e-05
        %v4502 = vadd.f32 %v4486, 1e-05
        %v4503 = vadd.f32 %v4487, 1e-05
        %v4504 = vadd.f32 %v4488, 1e-05
        %v4505 = vadd.f32 %v4489, 1e-05
        %v4506 = vadd.f32 %v4490, 1e-05
        %v4507 = vadd.f32 %v4491, 1e-05
        %v4508 = vadd.f32 %v4492, 1e-05
        %v4509 = vadd.f32 %v4493, 1e-05
        %v4510 = vadd.f32 %v4494, 1e-05
        %v4511 = vadd.f32 %v4495, 1e-05
        %v4512 = vadd.f32 %v4496, 1e-05
        %v4513 = vadd.f32 %v4497, 1e-05
        %v4514 = vrsqrt.pop %v4498
        %v4515 = vrsqrt.pop %v4499
        %v4516 = vrsqrt.pop %v4500
        %v4517 = vrsqrt.pop %v4501
        %v4518 = vrsqrt.pop %v4502
        %v4519 = vrsqrt.pop %v4503
        %v4520 = vrsqrt.pop %v4504
        %v4521 = vrsqrt.pop %v4505
        %v4522 = vrsqrt.pop %v4506
        %v4523 = vrsqrt.pop %v4507
        %v4524 = vrsqrt.pop %v4508
        %v4525 = vrsqrt.pop %v4509
        %v4526 = vrsqrt.pop %v4510
        %v4527 = vrsqrt.pop %v4511
        %v4528 = vrsqrt.pop %v4512
        %v4529 = vrsqrt.pop %v4513
        %v4530 = vmul.f32 %v4418, %v4514
        %v4531 = vmul.f32 %v4419, %v4515
        %v4532 = vmul.f32 %v4420, %v4516
        %v4533 = vmul.f32 %v4421, %v4517
        %v4534 = vmul.f32 %v4422, %v4518
        %v4535 = vmul.f32 %v4423, %v4519
        %v4536 = vmul.f32 %v4424, %v4520
        %v4537 = vmul.f32 %v4425, %v4521
        %v4538 = vmul.f32 %v4426, %v4522
        %v4539 = vmul.f32 %v4427, %v4523
        %v4540 = vmul.f32 %v4428, %v4524
        %v4541 = vmul.f32 %v4429, %v4525
        %v4542 = vmul.f32 %v4430, %v4526
        %v4543 = vmul.f32 %v4431, %v4527
        %v4544 = vmul.f32 %v4432, %v4528
        %v4545 = vmul.f32 %v4433, %v4529
        %v4546 = vlaneseq
        %v4547 = vshrl.u32 %v4546, 7
        %v4548 = vsub.s32 1, %v4547
        %v4549 = vrot.slane %v3610, %v4548
        %v4550 = vmul.f32 %v4530, %v4549
        %v4551 = vmul.f32 %v4531, %v4549
        %v4552 = vmul.f32 %v4532, %v4549
        %v4553 = vmul.f32 %v4533, %v4549
        %v4554 = vmul.f32 %v4534, %v4549
        %v4555 = vmul.f32 %v4535, %v4549
        %v4556 = vmul.f32 %v4536, %v4549
        %v4557 = vmul.f32 %v4537, %v4549
        %v4558 = vmul.f32 %v4538, %v4549
        %v4559 = vmul.f32 %v4539, %v4549
        %v4560 = vmul.f32 %v4540, %v4549
        %v4561 = vmul.f32 %v4541, %v4549
        %v4562 = vmul.f32 %v4542, %v4549
        %v4563 = vmul.f32 %v4543, %v4549
        %v4564 = vmul.f32 %v4544, %v4549
        %v4565 = vmul.f32 %v4545, %v4549
        %v4566 = vlaneseq
        %v4567 = vshrl.u32 %v4566, 7
        %v4568 = vsub.s32 2, %v4567
        %v4569 = vrot.slane %v3610, %v4568
        %v4570 = vadd.f32 %v4550, %v4569
        %v4571 = vadd.f32 %v4551, %v4569
        %v4572 = vadd.f32 %v4552, %v4569
        %v4573 = vadd.f32 %v4553, %v4569
        %v4574 = vadd.f32 %v4554, %v4569
        %v4575 = vadd.f32 %v4555, %v4569
        %v4576 = vadd.f32 %v4556, %v4569
        %v4577 = vadd.f32 %v4557, %v4569
        %v4578 = vadd.f32 %v4558, %v4569
        %v4579 = vadd.f32 %v4559, %v4569
        %v4580 = vadd.f32 %v4560, %v4569
        %v4581 = vadd.f32 %v4561, %v4569
        %v4582 = vadd.f32 %v4562, %v4569
        %v4583 = vadd.f32 %v4563, %v4569
        %v4584 = vadd.f32 %v4564, %v4569
        %v4585 = vadd.f32 %v4565, %v4569
        %s4586 = scalar_lea.vmem [#allocation5], 128
        %v4587 = vld [vmem:[%s4586] sm:$0xf]
        %v4588 = vld [vmem:[%s4586 + $0x4] sm:$0xf]
        %v4589 = vld [vmem:[%s4586 + $0x8] sm:$0xf]
        %v4590 = vld [vmem:[%s4586 + $0xc] sm:$0xf]
        %v4591 = vld [vmem:[%s4586 + $0x10] sm:$0xf]
        %v4592 = vld [vmem:[%s4586 + $0x14] sm:$0xf]
        %v4593 = vld [vmem:[%s4586 + $0x18] sm:$0xf]
        %v4594 = vld [vmem:[%s4586 + $0x1c] sm:$0xf]
        %v4595 = vld [vmem:[%s4586 + $0x20] sm:$0xf]
        %v4596 = vld [vmem:[%s4586 + $0x24] sm:$0xf]
        %v4597 = vld [vmem:[%s4586 + $0x28] sm:$0xf]
        %v4598 = vld [vmem:[%s4586 + $0x2c] sm:$0xf]
        %v4599 = vld [vmem:[%s4586 + $0x30] sm:$0xf]
        %v4600 = vld [vmem:[%s4586 + $0x34] sm:$0xf]
        %v4601 = vld [vmem:[%s4586 + $0x38] sm:$0xf]
        %v4602 = vld [vmem:[%s4586 + $0x3c] sm:$0xf]
        %s4603 = scalar_lea.vmem [#allocation7], 384
        %v4604 = vld [vmem:[%s4603] sm:$0xff]
        %v4605 = vld [vmem:[%s4603 + $0x8] sm:$0xf]
        %v4606 = vld [vmem:[%s4603 + $0xc] sm:$0xff]
        %v4607 = vld [vmem:[%s4603 + $0x14] sm:$0xf]
        %v4608 = vld [vmem:[%s4603 + $0x18] sm:$0xff]
        %v4609 = vld [vmem:[%s4603 + $0x20] sm:$0xf]
        %v4610 = vld [vmem:[%s4603 + $0x24] sm:$0xff]
        %v4611 = vld [vmem:[%s4603 + $0x2c] sm:$0xf]
        %v4612 = vld [vmem:[%s4603 + $0x30] sm:$0xff]
        %v4613 = vld [vmem:[%s4603 + $0x38] sm:$0xf]
        %v4614 = vld [vmem:[%s4603 + $0x3c] sm:$0xff]
        %v4615 = vld [vmem:[%s4603 + $0x44] sm:$0xf]
        %v4616 = vld [vmem:[%s4603 + $0x48] sm:$0xff]
        %v4617 = vld [vmem:[%s4603 + $0x50] sm:$0xf]
        %v4618 = vld [vmem:[%s4603 + $0x54] sm:$0xff]
        %v4619 = vld [vmem:[%s4603 + $0x5c] sm:$0xf]
        %v4620 = vld [vmem:[%s4603 + $0x60] sm:$0xff]
        %v4621 = vld [vmem:[%s4603 + $0x68] sm:$0xf]
        %v4622 = vld [vmem:[%s4603 + $0x6c] sm:$0xff]
        %v4623 = vld [vmem:[%s4603 + $0x74] sm:$0xf]
        %v4624 = vld [vmem:[%s4603 + $0x78] sm:$0xff]
        %v4625 = vld [vmem:[%s4603 + $0x80] sm:$0xf]
        %v4626 = vld [vmem:[%s4603 + $0x84] sm:$0xff]
        %v4627 = vld [vmem:[%s4603 + $0x8c] sm:$0xf]
        %v4628 = vld [vmem:[%s4603 + $0x90] sm:$0xff]
        %v4629 = vld [vmem:[%s4603 + $0x98] sm:$0xf]
        %v4630 = vld [vmem:[%s4603 + $0x9c] sm:$0xff]
        %v4631 = vld [vmem:[%s4603 + $0xa4] sm:$0xf]
        %v4632 = vld [vmem:[%s4603 + $0xa8] sm:$0xff]
        %v4633 = vld [vmem:[%s4603 + $0xb0] sm:$0xf]
        %v4634 = vld [vmem:[%s4603 + $0xb4] sm:$0xff]
        %v4635 = vld [vmem:[%s4603 + $0xbc] sm:$0xf]
        %s4636 = scalar_lea.vmem [#allocation8], 6
        %v4637 = vld [vmem:[%s4636] sm:$0x7]
        %s4638 = scalar_lea.vmem [#allocation10], 16
        %v4639 = vld [vmem:[%s4638] sm:$0xff]
        %v4640 = vpack.c.bf16 %v4571, %v4570
        %v4641 = vpack.c.bf16 %v4573, %v4572
        %v4642 = vpack.c.bf16 %v4575, %v4574
        %v4643 = vpack.c.bf16 %v4577, %v4576
        %v4644 = vpack.c.bf16 %v4579, %v4578
        %v4645 = vpack.c.bf16 %v4581, %v4580
        %v4646 = vpack.c.bf16 %v4583, %v4582
        %v4647 = vpack.c.bf16 %v4585, %v4584
        %v4648 = vlaneseq
        %v4649 = vshrl.u32 %v4648, 7
        %v4650 = vsub.s32 0, %v4649
        %v4651 = vrot.slane %v4639, %v4650
        %v4668 = vunpack.c.l.b16 %v4587
        %v4669 = vunpack.c.l.b16 %v4588
        %v4670 = vunpack.c.l.b16 %v4589
        %v4671 = vunpack.c.l.b16 %v4590
        %v4672 = vunpack.c.l.b16 %v4591
        %v4673 = vunpack.c.l.b16 %v4592
        %v4674 = vunpack.c.l.b16 %v4593
        %v4675 = vunpack.c.l.b16 %v4594
        %v4676 = vunpack.c.l.b16 %v4595
        %v4677 = vunpack.c.l.b16 %v4596
        %v4678 = vunpack.c.l.b16 %v4597
        %v4679 = vunpack.c.l.b16 %v4598
        %v4680 = vunpack.c.l.b16 %v4599
        %v4681 = vunpack.c.l.b16 %v4600
        %v4682 = vunpack.c.l.b16 %v4601
        %v4683 = vunpack.c.l.b16 %v4602
        %v4684 = vpack.c.b16 %v4669, %v4668
        %v4685 = vpack.c.b16 %v4671, %v4670
        %v4686 = vpack.c.b16 %v4673, %v4672
        %v4687 = vpack.c.b16 %v4675, %v4674
        %v4688 = vpack.c.b16 %v4677, %v4676
        %v4689 = vpack.c.b16 %v4679, %v4678
        %v4690 = vpack.c.b16 %v4681, %v4680
        %v4691 = vpack.c.b16 %v4683, %v4682
        %4700 = vmatprep.subr.bf16.mxu0 0
        %4701 = vmatpush1.bf16.msra.mxu0 %v4691
        %4702 = vmatprep.subr.bf16.mxu0 0
        %4703 = vmatpush1.bf16.msra.mxu0 %v4690
        %4704 = vmatprep.subr.bf16.mxu0 0
        %4705 = vmatpush1.bf16.msra.mxu0 %v4689
        %4706 = vmatprep.subr.bf16.mxu0 0
        %4707 = vmatpush1.bf16.msra.mxu0 %v4688
        %4708 = vmatprep.subr.bf16.mxu0 0
        %4709 = vmatpush1.bf16.msra.mxu0 %v4687
        %4710 = vmatprep.subr.bf16.mxu0 0
        %4711 = vmatpush1.bf16.msra.mxu0 %v4686
        %4712 = vmatprep.subr.bf16.mxu0 0
        %4713 = vmatpush1.bf16.msra.mxu0 %v4685
        %4714 = vmatprep.subr.bf16.mxu0 0
        %4715 = vmatpush1.bf16.msra.mxu0 %v4684
        %4716 = vmatprep.subr.bf16.mxu0 0
        %4717 = vmatpush2.bf16.msra.mxu0 0
        %4718 = vmatprep.subr.bf16.mxu0 0
        %4719 = vmatpush2.bf16.msra.mxu0 0
        %4720 = vmatprep.subr.bf16.mxu0 0
        %4721 = vmatpush2.bf16.msra.mxu0 0
        %4722 = vmatprep.subr.bf16.mxu0 0
        %4723 = vmatpush2.bf16.msra.mxu0 0
        %4724 = vmatprep.subr.bf16.mxu0 0
        %4725 = vmatpush2.bf16.msra.mxu0 0
        %4726 = vmatprep.subr.bf16.mxu0 0
        %4727 = vmatpush2.bf16.msra.mxu0 0
        %4728 = vmatprep.subr.bf16.mxu0 0
        %4729 = vmatpush2.bf16.msra.mxu0 0
        %4730 = vmatprep.subr.bf16.mxu0 0
        %4731 = vmatpush2.bf16.msra.mxu0 0
        %4732 = vmatprep.mubr.bf16.mxu0 0
        %4733 = vmatmul.mubr.bf16.gmra.mxu0 %v4640
        %v4734 = vpop.f32.mrf.mxu0
        %v4735 = vadd.f32 %v4651, %v4734
        %v4736 = vpop.f32.mrf.mxu0
        %v4737 = vpop.f32.mrf.mxu0
        %v4738 = vadd.f32 %v4651, %v4737
        %v4739 = vpop.f32.mrf.mxu0
        %4740 = vmatprep.mubr.bf16.mxu0 0
        %4741 = vmatmul.mubr.bf16.gmra.mxu0 %v4641
        %v4742 = vpop.f32.mrf.mxu0
        %v4743 = vadd.f32 %v4651, %v4742
        %v4744 = vpop.f32.mrf.mxu0
        %v4745 = vpop.f32.mrf.mxu0
        %v4746 = vadd.f32 %v4651, %v4745
        %v4747 = vpop.f32.mrf.mxu0
        %4748 = vmatprep.mubr.bf16.mxu0 0
        %4749 = vmatmul.mubr.bf16.gmra.mxu0 %v4642
        %v4750 = vpop.f32.mrf.mxu0
        %v4751 = vadd.f32 %v4651, %v4750
        %v4752 = vpop.f32.mrf.mxu0
        %v4753 = vpop.f32.mrf.mxu0
        %v4754 = vadd.f32 %v4651, %v4753
        %v4755 = vpop.f32.mrf.mxu0
        %4756 = vmatprep.mubr.bf16.mxu0 0
        %4757 = vmatmul.mubr.bf16.gmra.mxu0 %v4643
        %v4758 = vpop.f32.mrf.mxu0
        %v4759 = vadd.f32 %v4651, %v4758
        %v4760 = vpop.f32.mrf.mxu0
        %v4761 = vpop.f32.mrf.mxu0
        %v4762 = vadd.f32 %v4651, %v4761
        %v4763 = vpop.f32.mrf.mxu0
        %4764 = vmatprep.mubr.bf16.mxu0 0
        %4765 = vmatmul.mubr.bf16.gmra.mxu0 %v4644
        %v4766 = vpop.f32.mrf.mxu0
        %v4767 = vadd.f32 %v4651, %v4766
        %v4768 = vpop.f32.mrf.mxu0
        %v4769 = vpop.f32.mrf.mxu0
        %v4770 = vadd.f32 %v4651, %v4769
        %v4771 = vpop.f32.mrf.mxu0
        %4772 = vmatprep.mubr.bf16.mxu0 0
        %4773 = vmatmul.mubr.bf16.gmra.mxu0 %v4645
        %v4774 = vpop.f32.mrf.mxu0
        %v4775 = vadd.f32 %v4651, %v4774
        %v4776 = vpop.f32.mrf.mxu0
        %v4777 = vpop.f32.mrf.mxu0
        %v4778 = vadd.f32 %v4651, %v4777
        %v4779 = vpop.f32.mrf.mxu0
        %4780 = vmatprep.mubr.bf16.mxu0 0
        %4781 = vmatmul.mubr.bf16.gmra.mxu0 %v4646
        %v4782 = vpop.f32.mrf.mxu0
        %v4783 = vadd.f32 %v4651, %v4782
        %v4784 = vpop.f32.mrf.mxu0
        %v4785 = vpop.f32.mrf.mxu0
        %v4786 = vadd.f32 %v4651, %v4785
        %v4787 = vpop.f32.mrf.mxu0
        %4788 = vmatprep.mubr.bf16.mxu0 0
        %4789 = vmatmul.mubr.bf16.gmra.mxu0 %v4647
        %v4790 = vpop.f32.mrf.mxu0
        %v4791 = vadd.f32 %v4651, %v4790
        %v4792 = vpop.f32.mrf.mxu0
        %v4793 = vpop.f32.mrf.mxu0
        %v4794 = vadd.f32 %v4651, %v4793
        %v4795 = vpop.f32.mrf.mxu0
        %4796 = vdwg.mxu0
        %vm4797 = vcmp.ge.f32.partialorder %v4735, 0.0
        %vm4798 = vcmp.ge.f32.partialorder %v4738, 0.0
        %vm4799 = vcmp.ge.f32.partialorder %v4743, 0.0
        %vm4800 = vcmp.ge.f32.partialorder %v4746, 0.0
        %vm4801 = vcmp.ge.f32.partialorder %v4751, 0.0
        %vm4802 = vcmp.ge.f32.partialorder %v4754, 0.0
        %vm4803 = vcmp.ge.f32.partialorder %v4759, 0.0
        %vm4804 = vcmp.ge.f32.partialorder %v4762, 0.0
        %vm4805 = vcmp.ge.f32.partialorder %v4767, 0.0
        %vm4806 = vcmp.ge.f32.partialorder %v4770, 0.0
        %vm4807 = vcmp.ge.f32.partialorder %v4775, 0.0
        %vm4808 = vcmp.ge.f32.partialorder %v4778, 0.0
        %vm4809 = vcmp.ge.f32.partialorder %v4783, 0.0
        %vm4810 = vcmp.ge.f32.partialorder %v4786, 0.0
        %vm4811 = vcmp.ge.f32.partialorder %v4791, 0.0
        %vm4812 = vcmp.ge.f32.partialorder %v4794, 0.0
        %v4813 = vmul.f32 %v4735, 0.2
        %v4814 = vmul.f32 %v4738, 0.2
        %v4815 = vmul.f32 %v4743, 0.2
        %v4816 = vmul.f32 %v4746, 0.2
        %v4817 = vmul.f32 %v4751, 0.2
        %v4818 = vmul.f32 %v4754, 0.2
        %v4819 = vmul.f32 %v4759, 0.2
        %v4820 = vmul.f32 %v4762, 0.2
        %v4821 = vmul.f32 %v4767, 0.2
        %v4822 = vmul.f32 %v4770, 0.2
        %v4823 = vmul.f32 %v4775, 0.2
        %v4824 = vmul.f32 %v4778, 0.2
        %v4825 = vmul.f32 %v4783, 0.2
        %v4826 = vmul.f32 %v4786, 0.2
        %v4827 = vmul.f32 %v4791, 0.2
        %v4828 = vmul.f32 %v4794, 0.2
        %v4829 = vsel %vm4797, %v4735, %v4813
        %v4830 = vsel %vm4798, %v4738, %v4814
        %v4831 = vsel %vm4799, %v4743, %v4815
        %v4832 = vsel %vm4800, %v4746, %v4816
        %v4833 = vsel %vm4801, %v4751, %v4817
        %v4834 = vsel %vm4802, %v4754, %v4818
        %v4835 = vsel %vm4803, %v4759, %v4819
        %v4836 = vsel %vm4804, %v4762, %v4820
        %v4837 = vsel %vm4805, %v4767, %v4821
        %v4838 = vsel %vm4806, %v4770, %v4822
        %v4839 = vsel %vm4807, %v4775, %v4823
        %v4840 = vsel %vm4808, %v4778, %v4824
        %v4841 = vsel %vm4809, %v4783, %v4825
        %v4842 = vsel %vm4810, %v4786, %v4826
        %v4843 = vsel %vm4811, %v4791, %v4827
        %v4844 = vsel %vm4812, %v4794, %v4828
        %v4845 = vpack.c.bf16 %v4830, %v4829
        %v4846 = vpack.c.bf16 %v4832, %v4831
        %v4847 = vpack.c.bf16 %v4834, %v4833
        %v4848 = vpack.c.bf16 %v4836, %v4835
        %v4849 = vpack.c.bf16 %v4838, %v4837
        %v4850 = vpack.c.bf16 %v4840, %v4839
        %v4851 = vpack.c.bf16 %v4842, %v4841
        %v4852 = vpack.c.bf16 %v4844, %v4843
        %v4854 = vlaneseq
        %v4855 = vshrl.u32 %v4854, 7
        %v4856 = vsub.s32 0, %v4855
        %v4857 = vrot.slane %v4637, %v4856
        %v4858 = vlaneseq
        %v4859 = vshrl.u32 %v4858, 7
        %v4860 = vsub.s32 1, %v4859
        %v4861 = vrot.slane %v4637, %v4860
        %v4862 = vlaneseq
        %v4863 = vshrl.u32 %v4862, 7
        %v4864 = vsub.s32 2, %v4863
        %v4865 = vrot.slane %v4637, %v4864
        %v4901 = vunpack.c.l.b16 %v4604
        %v4902 = vunpack.c.h.b16 %v4604
        %v4903 = vunpack.c.l.b16 %v4605
        %v4904 = vunpack.c.l.b16 %v4606
        %v4905 = vunpack.c.h.b16 %v4606
        %v4906 = vunpack.c.l.b16 %v4607
        %v4907 = vunpack.c.l.b16 %v4608
        %v4908 = vunpack.c.h.b16 %v4608
        %v4909 = vunpack.c.l.b16 %v4609
        %v4910 = vunpack.c.l.b16 %v4610
        %v4911 = vunpack.c.h.b16 %v4610
        %v4912 = vunpack.c.l.b16 %v4611
        %v4913 = vunpack.c.l.b16 %v4612
        %v4914 = vunpack.c.h.b16 %v4612
        %v4915 = vunpack.c.l.b16 %v4613
        %v4916 = vunpack.c.l.b16 %v4614
        %v4917 = vunpack.c.h.b16 %v4614
        %v4918 = vunpack.c.l.b16 %v4615
        %v4919 = vunpack.c.l.b16 %v4616
        %v4920 = vunpack.c.h.b16 %v4616
        %v4921 = vunpack.c.l.b16 %v4617
        %v4922 = vunpack.c.l.b16 %v4618
        %v4923 = vunpack.c.h.b16 %v4618
        %v4924 = vunpack.c.l.b16 %v4619
        %v4925 = vunpack.c.l.b16 %v4620
        %v4926 = vunpack.c.h.b16 %v4620
        %v4927 = vunpack.c.l.b16 %v4621
        %v4928 = vunpack.c.l.b16 %v4622
        %v4929 = vunpack.c.h.b16 %v4622
        %v4930 = vunpack.c.l.b16 %v4623
        %v4931 = vunpack.c.l.b16 %v4624
        %v4932 = vunpack.c.h.b16 %v4624
        %v4933 = vunpack.c.l.b16 %v4625
        %v4934 = vunpack.c.l.b16 %v4626
        %v4935 = vunpack.c.h.b16 %v4626
        %v4936 = vunpack.c.l.b16 %v4627
        %v4937 = vunpack.c.l.b16 %v4628
        %v4938 = vunpack.c.h.b16 %v4628
        %v4939 = vunpack.c.l.b16 %v4629
        %v4940 = vunpack.c.l.b16 %v4630
        %v4941 = vunpack.c.h.b16 %v4630
        %v4942 = vunpack.c.l.b16 %v4631
        %v4943 = vunpack.c.l.b16 %v4632
        %v4944 = vunpack.c.h.b16 %v4632
        %v4945 = vunpack.c.l.b16 %v4633
        %v4946 = vunpack.c.l.b16 %v4634
        %v4947 = vunpack.c.h.b16 %v4634
        %v4948 = vunpack.c.l.b16 %v4635
        %v4949 = vpack.c.b16 %v4904, %v4901
        %v4950 = vpack.c.b16 %v4905, %v4902
        %v4951 = vpack.c.b16 %v4906, %v4903
        %v4952 = vpack.c.b16 %v4910, %v4907
        %v4953 = vpack.c.b16 %v4911, %v4908
        %v4954 = vpack.c.b16 %v4912, %v4909
        %v4955 = vpack.c.b16 %v4916, %v4913
        %v4956 = vpack.c.b16 %v4917, %v4914
        %v4957 = vpack.c.b16 %v4918, %v4915
        %v4958 = vpack.c.b16 %v4922, %v4919
        %v4959 = vpack.c.b16 %v4923, %v4920
        %v4960 = vpack.c.b16 %v4924, %v4921
        %v4961 = vpack.c.b16 %v4928, %v4925
        %v4962 = vpack.c.b16 %v4929, %v4926
        %v4963 = vpack.c.b16 %v4930, %v4927
        %v4964 = vpack.c.b16 %v4934, %v4931
        %v4965 = vpack.c.b16 %v4935, %v4932
        %v4966 = vpack.c.b16 %v4936, %v4933
        %v4967 = vpack.c.b16 %v4940, %v4937
        %v4968 = vpack.c.b16 %v4941, %v4938
        %v4969 = vpack.c.b16 %v4942, %v4939
        %v4970 = vpack.c.b16 %v4946, %v4943
        %v4971 = vpack.c.b16 %v4947, %v4944
        %v4972 = vpack.c.b16 %v4948, %v4945
        %4997 = vmatprep.subr.bf16.mxu0 %v4971
        %4998 = vmatpush1.bf16.msra.mxu0 %v4970
        %4999 = vmatprep.subr.bf16.mxu0 %v4968
        %5000 = vmatpush1.bf16.msra.mxu0 %v4967
        %5001 = vmatprep.subr.bf16.mxu0 %v4965
        %5002 = vmatpush1.bf16.msra.mxu0 %v4964
        %5003 = vmatprep.subr.bf16.mxu0 %v4962
        %5004 = vmatpush1.bf16.msra.mxu0 %v4961
        %5005 = vmatprep.subr.bf16.mxu0 %v4959
        %5006 = vmatpush1.bf16.msra.mxu0 %v4958
        %5007 = vmatprep.subr.bf16.mxu0 %v4956
        %5008 = vmatpush1.bf16.msra.mxu0 %v4955
        %5009 = vmatprep.subr.bf16.mxu0 %v4953
        %5010 = vmatpush1.bf16.msra.mxu0 %v4952
        %5011 = vmatprep.subr.bf16.mxu0 %v4950
        %5012 = vmatpush1.bf16.msra.mxu0 %v4949
        %5013 = vmatprep.subr.bf16.mxu0 0
        %5014 = vmatpush2.bf16.msra.mxu0 0
        %5015 = vmatprep.subr.bf16.mxu0 0
        %5016 = vmatpush2.bf16.msra.mxu0 0
        %5017 = vmatprep.subr.bf16.mxu0 0
        %5018 = vmatpush2.bf16.msra.mxu0 0
        %5019 = vmatprep.subr.bf16.mxu0 0
        %5020 = vmatpush2.bf16.msra.mxu0 0
        %5021 = vmatprep.subr.bf16.mxu0 0
        %5022 = vmatpush2.bf16.msra.mxu0 0
        %5023 = vmatprep.subr.bf16.mxu0 0
        %5024 = vmatpush2.bf16.msra.mxu0 0
        %5025 = vmatprep.subr.bf16.mxu0 0
        %5026 = vmatpush2.bf16.msra.mxu0 0
        %5027 = vmatprep.subr.bf16.mxu0 0
        %5028 = vmatpush2.bf16.msra.mxu0 0
        %5029 = vmatprep.mubr.bf16.mxu0 0
        %5030 = vmatmul.mubr.bf16.gmra.mxu0 %v4845
        %v5031 = vpop.f32.mrf.mxu0
        %v5032 = vadd.f32 %v4857, %v5031
        %v5033 = vpop.f32.mrf.mxu0
        %v5034 = vadd.f32 %v4861, %v5033
        %v5035 = vpop.f32.mrf.mxu0
        %v5036 = vadd.f32 %v4857, %v5035
        %v5037 = vpop.f32.mrf.mxu0
        %v5038 = vadd.f32 %v4861, %v5037
        %5039 = vmatprep.mubr.bf16.mxu0 0
        %5040 = vmatmul.mubr.bf16.gmra.mxu0 %v4846
        %v5041 = vpop.f32.mrf.mxu0
        %v5042 = vadd.f32 %v4857, %v5041
        %v5043 = vpop.f32.mrf.mxu0
        %v5044 = vadd.f32 %v4861, %v5043
        %v5045 = vpop.f32.mrf.mxu0
        %v5046 = vadd.f32 %v4857, %v5045
        %v5047 = vpop.f32.mrf.mxu0
        %v5048 = vadd.f32 %v4861, %v5047
        %5049 = vmatprep.mubr.bf16.mxu0 0
        %5050 = vmatmul.mubr.bf16.gmra.mxu0 %v4847
        %v5051 = vpop.f32.mrf.mxu0
        %v5052 = vadd.f32 %v4857, %v5051
        %v5053 = vpop.f32.mrf.mxu0
        %v5054 = vadd.f32 %v4861, %v5053
        %v5055 = vpop.f32.mrf.mxu0
        %v5056 = vadd.f32 %v4857, %v5055
        %v5057 = vpop.f32.mrf.mxu0
        %v5058 = vadd.f32 %v4861, %v5057
        %5059 = vmatprep.mubr.bf16.mxu0 0
        %5060 = vmatmul.mubr.bf16.gmra.mxu0 %v4848
        %v5061 = vpop.f32.mrf.mxu0
        %v5062 = vadd.f32 %v4857, %v5061
        %v5063 = vpop.f32.mrf.mxu0
        %v5064 = vadd.f32 %v4861, %v5063
        %v5065 = vpop.f32.mrf.mxu0
        %v5066 = vadd.f32 %v4857, %v5065
        %v5067 = vpop.f32.mrf.mxu0
        %v5068 = vadd.f32 %v4861, %v5067
        %5069 = vmatprep.mubr.bf16.mxu0 0
        %5070 = vmatmul.mubr.bf16.gmra.mxu0 %v4849
        %v5071 = vpop.f32.mrf.mxu0
        %v5072 = vadd.f32 %v4857, %v5071
        %v5073 = vpop.f32.mrf.mxu0
        %v5074 = vadd.f32 %v4861, %v5073
        %v5075 = vpop.f32.mrf.mxu0
        %v5076 = vadd.f32 %v4857, %v5075
        %v5077 = vpop.f32.mrf.mxu0
        %v5078 = vadd.f32 %v4861, %v5077
        %5079 = vmatprep.mubr.bf16.mxu0 0
        %5080 = vmatmul.mubr.bf16.gmra.mxu0 %v4850
        %v5081 = vpop.f32.mrf.mxu0
        %v5082 = vadd.f32 %v4857, %v5081
        %v5083 = vpop.f32.mrf.mxu0
        %v5084 = vadd.f32 %v4861, %v5083
        %v5085 = vpop.f32.mrf.mxu0
        %v5086 = vadd.f32 %v4857, %v5085
        %v5087 = vpop.f32.mrf.mxu0
        %v5088 = vadd.f32 %v4861, %v5087
        %5089 = vmatprep.mubr.bf16.mxu0 0
        %5090 = vmatmul.mubr.bf16.gmra.mxu0 %v4851
        %v5091 = vpop.f32.mrf.mxu0
        %v5092 = vadd.f32 %v4857, %v5091
        %v5093 = vpop.f32.mrf.mxu0
        %v5094 = vadd.f32 %v4861, %v5093
        %v5095 = vpop.f32.mrf.mxu0
        %v5096 = vadd.f32 %v4857, %v5095
        %v5097 = vpop.f32.mrf.mxu0
        %v5098 = vadd.f32 %v4861, %v5097
        %5099 = vmatprep.mubr.bf16.mxu0 0
        %5100 = vmatmul.mubr.bf16.gmra.mxu0 %v4852
        %v5101 = vpop.f32.mrf.mxu0
        %v5102 = vadd.f32 %v4857, %v5101
        %v5103 = vpop.f32.mrf.mxu0
        %v5104 = vadd.f32 %v4861, %v5103
        %v5105 = vpop.f32.mrf.mxu0
        %v5106 = vadd.f32 %v4857, %v5105
        %v5107 = vpop.f32.mrf.mxu0
        %v5108 = vadd.f32 %v4861, %v5107
        %5109 = vdwg.mxu0
        %5110 = vmatprep.subr.bf16.mxu0 0
        %5111 = vmatpush1.bf16.msra.mxu0 %v4972
        %5112 = vmatprep.subr.bf16.mxu0 0
        %5113 = vmatpush1.bf16.msra.mxu0 %v4969
        %5114 = vmatprep.subr.bf16.mxu0 0
        %5115 = vmatpush1.bf16.msra.mxu0 %v4966
        %5116 = vmatprep.subr.bf16.mxu0 0
        %5117 = vmatpush1.bf16.msra.mxu0 %v4963
        %5118 = vmatprep.subr.bf16.mxu0 0
        %5119 = vmatpush1.bf16.msra.mxu0 %v4960
        %5120 = vmatprep.subr.bf16.mxu0 0
        %5121 = vmatpush1.bf16.msra.mxu0 %v4957
        %5122 = vmatprep.subr.bf16.mxu0 0
        %5123 = vmatpush1.bf16.msra.mxu0 %v4954
        %5124 = vmatprep.subr.bf16.mxu0 0
        %5125 = vmatpush1.bf16.msra.mxu0 %v4951
        %5126 = vmatprep.subr.bf16.mxu0 0
        %5127 = vmatpush2.bf16.msra.mxu0 0
        %5128 = vmatprep.subr.bf16.mxu0 0
        %5129 = vmatpush2.bf16.msra.mxu0 0
        %5130 = vmatprep.subr.bf16.mxu0 0
        %5131 = vmatpush2.bf16.msra.mxu0 0
        %5132 = vmatprep.subr.bf16.mxu0 0
        %5133 = vmatpush2.bf16.msra.mxu0 0
        %5134 = vmatprep.subr.bf16.mxu0 0
        %5135 = vmatpush2.bf16.msra.mxu0 0
        %5136 = vmatprep.subr.bf16.mxu0 0
        %5137 = vmatpush2.bf16.msra.mxu0 0
        %5138 = vmatprep.subr.bf16.mxu0 0
        %5139 = vmatpush2.bf16.msra.mxu0 0
        %5140 = vmatprep.subr.bf16.mxu0 0
        %5141 = vmatpush2.bf16.msra.mxu0 0
        %5142 = vmatprep.mubr.bf16.mxu0 0
        %5143 = vmatmul.mubr.bf16.gmra.mxu0 %v4845
        %v5144 = vpop.f32.mrf.mxu0
        %v5145 = vadd.f32 %v4865, %v5144
        %v5146 = vpop.f32.mrf.mxu0
        %v5147 = vpop.f32.mrf.mxu0
        %v5148 = vadd.f32 %v4865, %v5147
        %v5149 = vpop.f32.mrf.mxu0
        %5150 = vmatprep.mubr.bf16.mxu0 0
        %5151 = vmatmul.mubr.bf16.gmra.mxu0 %v4846
        %v5152 = vpop.f32.mrf.mxu0
        %v5153 = vadd.f32 %v4865, %v5152
        %v5154 = vpop.f32.mrf.mxu0
        %v5155 = vpop.f32.mrf.mxu0
        %v5156 = vadd.f32 %v4865, %v5155
        %v5157 = vpop.f32.mrf.mxu0
        %5158 = vmatprep.mubr.bf16.mxu0 0
        %5159 = vmatmul.mubr.bf16.gmra.mxu0 %v4847
        %v5160 = vpop.f32.mrf.mxu0
        %v5161 = vadd.f32 %v4865, %v5160
        %v5162 = vpop.f32.mrf.mxu0
        %v5163 = vpop.f32.mrf.mxu0
        %v5164 = vadd.f32 %v4865, %v5163
        %v5165 = vpop.f32.mrf.mxu0
        %5166 = vmatprep.mubr.bf16.mxu0 0
        %5167 = vmatmul.mubr.bf16.gmra.mxu0 %v4848
        %v5168 = vpop.f32.mrf.mxu0
        %v5169 = vadd.f32 %v4865, %v5168
        %v5170 = vpop.f32.mrf.mxu0
        %v5171 = vpop.f32.mrf.mxu0
        %v5172 = vadd.f32 %v4865, %v5171
        %v5173 = vpop.f32.mrf.mxu0
        %5174 = vmatprep.mubr.bf16.mxu0 0
        %5175 = vmatmul.mubr.bf16.gmra.mxu0 %v4849
        %v5176 = vpop.f32.mrf.mxu0
        %v5177 = vadd.f32 %v4865, %v5176
        %v5178 = vpop.f32.mrf.mxu0
        %v5179 = vpop.f32.mrf.mxu0
        %v5180 = vadd.f32 %v4865, %v5179
        %v5181 = vpop.f32.mrf.mxu0
        %5182 = vmatprep.mubr.bf16.mxu0 0
        %5183 = vmatmul.mubr.bf16.gmra.mxu0 %v4850
        %v5184 = vpop.f32.mrf.mxu0
        %v5185 = vadd.f32 %v4865, %v5184
        %v5186 = vpop.f32.mrf.mxu0
        %v5187 = vpop.f32.mrf.mxu0
        %v5188 = vadd.f32 %v4865, %v5187
        %v5189 = vpop.f32.mrf.mxu0
        %5190 = vmatprep.mubr.bf16.mxu0 0
        %5191 = vmatmul.mubr.bf16.gmra.mxu0 %v4851
        %v5192 = vpop.f32.mrf.mxu0
        %v5193 = vadd.f32 %v4865, %v5192
        %v5194 = vpop.f32.mrf.mxu0
        %v5195 = vpop.f32.mrf.mxu0
        %v5196 = vadd.f32 %v4865, %v5195
        %v5197 = vpop.f32.mrf.mxu0
        %5198 = vmatprep.mubr.bf16.mxu0 0
        %5199 = vmatmul.mubr.bf16.gmra.mxu0 %v4852
        %v5200 = vpop.f32.mrf.mxu0
        %v5201 = vadd.f32 %v4865, %v5200
        %v5202 = vpop.f32.mrf.mxu0
        %v5203 = vpop.f32.mrf.mxu0
        %v5204 = vadd.f32 %v4865, %v5203
        %v5205 = vpop.f32.mrf.mxu0
        %5206 = vdwg.mxu0
        %v5207 = vmul.f32 %v5034, %v5032
        %v5208 = vmul.f32 %v5038, %v5036
        %v5209 = vmul.f32 %v5044, %v5042
        %v5210 = vmul.f32 %v5048, %v5046
        %v5211 = vmul.f32 %v5054, %v5052
        %v5212 = vmul.f32 %v5058, %v5056
        %v5213 = vmul.f32 %v5064, %v5062
        %v5214 = vmul.f32 %v5068, %v5066
        %v5215 = vmul.f32 %v5074, %v5072
        %v5216 = vmul.f32 %v5078, %v5076
        %v5217 = vmul.f32 %v5084, %v5082
        %v5218 = vmul.f32 %v5088, %v5086
        %v5219 = vmul.f32 %v5094, %v5092
        %v5220 = vmul.f32 %v5098, %v5096
        %v5221 = vmul.f32 %v5104, %v5102
        %v5222 = vmul.f32 %v5108, %v5106
        %5223 = vmax.xlane.f32.xlu0 %v5207
        %v5224 = vpop.xlane.xlu0 %5223
        %5225 = vmax.xlane.f32.xlu0 %v5208
        %v5226 = vpop.xlane.xlu0 %5225
        %5227 = vmax.xlane.f32.xlu0 %v5209
        %v5228 = vpop.xlane.xlu0 %5227
        %5229 = vmax.xlane.f32.xlu0 %v5210
        %v5230 = vpop.xlane.xlu0 %5229
        %5231 = vmax.xlane.f32.xlu0 %v5211
        %v5232 = vpop.xlane.xlu0 %5231
        %5233 = vmax.xlane.f32.xlu0 %v5212
        %v5234 = vpop.xlane.xlu0 %5233
        %5235 = vmax.xlane.f32.xlu0 %v5213
        %v5236 = vpop.xlane.xlu0 %5235
        %5237 = vmax.xlane.f32.xlu0 %v5214
        %v5238 = vpop.xlane.xlu0 %5237
        %5239 = vmax.xlane.f32.xlu0 %v5215
        %v5240 = vpop.xlane.xlu0 %5239
        %5241 = vmax.xlane.f32.xlu0 %v5216
        %v5242 = vpop.xlane.xlu0 %5241
        %5243 = vmax.xlane.f32.xlu0 %v5217
        %v5244 = vpop.xlane.xlu0 %5243
        %5245 = vmax.xlane.f32.xlu0 %v5218
        %v5246 = vpop.xlane.xlu0 %5245
        %5247 = vmax.xlane.f32.xlu0 %v5219
        %v5248 = vpop.xlane.xlu0 %5247
        %5249 = vmax.xlane.f32.xlu0 %v5220
        %v5250 = vpop.xlane.xlu0 %5249
        %5251 = vmax.xlane.f32.xlu0 %v5221
        %v5252 = vpop.xlane.xlu0 %5251
        %5253 = vmax.xlane.f32.xlu0 %v5222
        %v5254 = vpop.xlane.xlu0 %5253
        %v5255 = vsub.f32 %v5207, %v5224
        %v5256 = vsub.f32 %v5208, %v5226
        %v5257 = vsub.f32 %v5209, %v5228
        %v5258 = vsub.f32 %v5210, %v5230
        %v5259 = vsub.f32 %v5211, %v5232
        %v5260 = vsub.f32 %v5212, %v5234
        %v5261 = vsub.f32 %v5213, %v5236
        %v5262 = vsub.f32 %v5214, %v5238
        %v5263 = vsub.f32 %v5215, %v5240
        %v5264 = vsub.f32 %v5216, %v5242
        %v5265 = vsub.f32 %v5217, %v5244
        %v5266 = vsub.f32 %v5218, %v5246
        %v5267 = vsub.f32 %v5219, %v5248
        %v5268 = vsub.f32 %v5220, %v5250
        %v5269 = vsub.f32 %v5221, %v5252
        %v5270 = vsub.f32 %v5222, %v5254
        %v5271 = vmul.f32 %v5255, 1.442695
        %v5272 = vpow.pop %v5271
        %v5273 = vmul.f32 %v5256, 1.442695
        %v5274 = vpow.pop %v5273
        %v5275 = vmul.f32 %v5257, 1.442695
        %v5276 = vpow.pop %v5275
        %v5277 = vmul.f32 %v5258, 1.442695
        %v5278 = vpow.pop %v5277
        %v5279 = vmul.f32 %v5259, 1.442695
        %v5280 = vpow.pop %v5279
        %v5281 = vmul.f32 %v5260, 1.442695
        %v5282 = vpow.pop %v5281
        %v5283 = vmul.f32 %v5261, 1.442695
        %v5284 = vpow.pop %v5283
        %v5285 = vmul.f32 %v5262, 1.442695
        %v5286 = vpow.pop %v5285
        %v5287 = vmul.f32 %v5263, 1.442695
        %v5288 = vpow.pop %v5287
        %v5289 = vmul.f32 %v5264, 1.442695
        %v5290 = vpow.pop %v5289
        %v5291 = vmul.f32 %v5265, 1.442695
        %v5292 = vpow.pop %v5291
        %v5293 = vmul.f32 %v5266, 1.442695
        %v5294 = vpow.pop %v5293
        %v5295 = vmul.f32 %v5267, 1.442695
        %v5296 = vpow.pop %v5295
        %v5297 = vmul.f32 %v5268, 1.442695
        %v5298 = vpow.pop %v5297
        %v5299 = vmul.f32 %v5269, 1.442695
        %v5300 = vpow.pop %v5299
        %v5301 = vmul.f32 %v5270, 1.442695
        %v5302 = vpow.pop %v5301
        %5303 = vadd.xlane.f32.xlu0 %v5272
        %v5304 = vpop.xlane.xlu0 %5303
        %5305 = vadd.xlane.f32.xlu0 %v5274
        %v5306 = vpop.xlane.xlu0 %5305
        %5307 = vadd.xlane.f32.xlu0 %v5276
        %v5308 = vpop.xlane.xlu0 %5307
        %5309 = vadd.xlane.f32.xlu0 %v5278
        %v5310 = vpop.xlane.xlu0 %5309
        %5311 = vadd.xlane.f32.xlu0 %v5280
        %v5312 = vpop.xlane.xlu0 %5311
        %5313 = vadd.xlane.f32.xlu0 %v5282
        %v5314 = vpop.xlane.xlu0 %5313
        %5315 = vadd.xlane.f32.xlu0 %v5284
        %v5316 = vpop.xlane.xlu0 %5315
        %5317 = vadd.xlane.f32.xlu0 %v5286
        %v5318 = vpop.xlane.xlu0 %5317
        %5319 = vadd.xlane.f32.xlu0 %v5288
        %v5320 = vpop.xlane.xlu0 %5319
        %5321 = vadd.xlane.f32.xlu0 %v5290
        %v5322 = vpop.xlane.xlu0 %5321
        %5323 = vadd.xlane.f32.xlu0 %v5292
        %v5324 = vpop.xlane.xlu0 %5323
        %5325 = vadd.xlane.f32.xlu0 %v5294
        %v5326 = vpop.xlane.xlu0 %5325
        %5327 = vadd.xlane.f32.xlu0 %v5296
        %v5328 = vpop.xlane.xlu0 %5327
        %5329 = vadd.xlane.f32.xlu0 %v5298
        %v5330 = vpop.xlane.xlu0 %5329
        %5331 = vadd.xlane.f32.xlu0 %v5300
        %v5332 = vpop.xlane.xlu0 %5331
        %5333 = vadd.xlane.f32.xlu0 %v5302
        %v5334 = vpop.xlane.xlu0 %5333
        %v5335 = vrcp.pop %v5304
        %v5336 = vrcp.pop %v5306
        %v5337 = vrcp.pop %v5308
        %v5338 = vrcp.pop %v5310
        %v5339 = vrcp.pop %v5312
        %v5340 = vrcp.pop %v5314
        %v5341 = vrcp.pop %v5316
        %v5342 = vrcp.pop %v5318
        %v5343 = vrcp.pop %v5320
        %v5344 = vrcp.pop %v5322
        %v5345 = vrcp.pop %v5324
        %v5346 = vrcp.pop %v5326
        %v5347 = vrcp.pop %v5328
        %v5348 = vrcp.pop %v5330
        %v5349 = vrcp.pop %v5332
        %v5350 = vrcp.pop %v5334
        %v5351 = vmul.f32 %v5272, %v5335
        %v5352 = vmul.f32 %v5274, %v5336
        %v5353 = vmul.f32 %v5276, %v5337
        %v5354 = vmul.f32 %v5278, %v5338
        %v5355 = vmul.f32 %v5280, %v5339
        %v5356 = vmul.f32 %v5282, %v5340
        %v5357 = vmul.f32 %v5284, %v5341
        %v5358 = vmul.f32 %v5286, %v5342
        %v5359 = vmul.f32 %v5288, %v5343
        %v5360 = vmul.f32 %v5290, %v5344
        %v5361 = vmul.f32 %v5292, %v5345
        %v5362 = vmul.f32 %v5294, %v5346
        %v5363 = vmul.f32 %v5296, %v5347
        %v5364 = vmul.f32 %v5298, %v5348
        %v5365 = vmul.f32 %v5300, %v5349
        %v5366 = vmul.f32 %v5302, %v5350
        %v5367 = vmul.f32 %v5145, %v5351
        %v5368 = vmul.f32 %v5148, %v5352
        %v5369 = vmul.f32 %v5153, %v5353
        %v5370 = vmul.f32 %v5156, %v5354
        %v5371 = vmul.f32 %v5161, %v5355
        %v5372 = vmul.f32 %v5164, %v5356
        %v5373 = vmul.f32 %v5169, %v5357
        %v5374 = vmul.f32 %v5172, %v5358
        %v5375 = vmul.f32 %v5177, %v5359
        %v5376 = vmul.f32 %v5180, %v5360
        %v5377 = vmul.f32 %v5185, %v5361
        %v5378 = vmul.f32 %v5188, %v5362
        %v5379 = vmul.f32 %v5193, %v5363
        %v5380 = vmul.f32 %v5196, %v5364
        %v5381 = vmul.f32 %v5201, %v5365
        %v5382 = vmul.f32 %v5204, %v5366
        %v5383 = vadd.f32 %v4829, %v5367
        %v5384 = vadd.f32 %v4830, %v5368
        %v5385 = vadd.f32 %v4831, %v5369
        %v5386 = vadd.f32 %v4832, %v5370
        %v5387 = vadd.f32 %v4833, %v5371
        %v5388 = vadd.f32 %v4834, %v5372
        %v5389 = vadd.f32 %v4835, %v5373
        %v5390 = vadd.f32 %v4836, %v5374
        %v5391 = vadd.f32 %v4837, %v5375
        %v5392 = vadd.f32 %v4838, %v5376
        %v5393 = vadd.f32 %v4839, %v5377
        %v5394 = vadd.f32 %v4840, %v5378
        %v5395 = vadd.f32 %v4841, %v5379
        %v5396 = vadd.f32 %v4842, %v5380
        %v5397 = vadd.f32 %v4843, %v5381
        %v5398 = vadd.f32 %v4844, %v5382
        %5399 = vadd.xlane.f32.xlu0 %v5383
        %v5400 = vpop.xlane.xlu0 %5399
        %5401 = vadd.xlane.f32.xlu0 %v5384
        %v5402 = vpop.xlane.xlu0 %5401
        %5403 = vadd.xlane.f32.xlu0 %v5385
        %v5404 = vpop.xlane.xlu0 %5403
        %5405 = vadd.xlane.f32.xlu0 %v5386
        %v5406 = vpop.xlane.xlu0 %5405
        %5407 = vadd.xlane.f32.xlu0 %v5387
        %v5408 = vpop.xlane.xlu0 %5407
        %5409 = vadd.xlane.f32.xlu0 %v5388
        %v5410 = vpop.xlane.xlu0 %5409
        %5411 = vadd.xlane.f32.xlu0 %v5389
        %v5412 = vpop.xlane.xlu0 %5411
        %5413 = vadd.xlane.f32.xlu0 %v5390
        %v5414 = vpop.xlane.xlu0 %5413
        %5415 = vadd.xlane.f32.xlu0 %v5391
        %v5416 = vpop.xlane.xlu0 %5415
        %5417 = vadd.xlane.f32.xlu0 %v5392
        %v5418 = vpop.xlane.xlu0 %5417
        %5419 = vadd.xlane.f32.xlu0 %v5393
        %v5420 = vpop.xlane.xlu0 %5419
        %5421 = vadd.xlane.f32.xlu0 %v5394
        %v5422 = vpop.xlane.xlu0 %5421
        %5423 = vadd.xlane.f32.xlu0 %v5395
        %v5424 = vpop.xlane.xlu0 %5423
        %5425 = vadd.xlane.f32.xlu0 %v5396
        %v5426 = vpop.xlane.xlu0 %5425
        %5427 = vadd.xlane.f32.xlu0 %v5397
        %v5428 = vpop.xlane.xlu0 %5427
        %5429 = vadd.xlane.f32.xlu0 %v5398
        %v5430 = vpop.xlane.xlu0 %5429
        %v5431 = vmul.f32 %v5400, 0.0078125
        %v5432 = vmul.f32 %v5402, 0.0078125
        %v5433 = vmul.f32 %v5404, 0.0078125
        %v5434 = vmul.f32 %v5406, 0.0078125
        %v5435 = vmul.f32 %v5408, 0.0078125
        %v5436 = vmul.f32 %v5410, 0.0078125
        %v5437 = vmul.f32 %v5412, 0.0078125
        %v5438 = vmul.f32 %v5414, 0.0078125
        %v5439 = vmul.f32 %v5416, 0.0078125
        %v5440 = vmul.f32 %v5418, 0.0078125
        %v5441 = vmul.f32 %v5420, 0.0078125
        %v5442 = vmul.f32 %v5422, 0.0078125
        %v5443 = vmul.f32 %v5424, 0.0078125
        %v5444 = vmul.f32 %v5426, 0.0078125
        %v5445 = vmul.f32 %v5428, 0.0078125
        %v5446 = vmul.f32 %v5430, 0.0078125
        %v5447 = vsub.f32 %v5383, %v5431
        %v5448 = vsub.f32 %v5384, %v5432
        %v5449 = vsub.f32 %v5385, %v5433
        %v5450 = vsub.f32 %v5386, %v5434
        %v5451 = vsub.f32 %v5387, %v5435
        %v5452 = vsub.f32 %v5388, %v5436
        %v5453 = vsub.f32 %v5389, %v5437
        %v5454 = vsub.f32 %v5390, %v5438
        %v5455 = vsub.f32 %v5391, %v5439
        %v5456 = vsub.f32 %v5392, %v5440
        %v5457 = vsub.f32 %v5393, %v5441
        %v5458 = vsub.f32 %v5394, %v5442
        %v5459 = vsub.f32 %v5395, %v5443
        %v5460 = vsub.f32 %v5396, %v5444
        %v5461 = vsub.f32 %v5397, %v5445
        %v5462 = vsub.f32 %v5398, %v5446
        %v5463 = vmul.f32 %v5447, %v5447
        %v5464 = vmul.f32 %v5448, %v5448
        %v5465 = vmul.f32 %v5449, %v5449
        %v5466 = vmul.f32 %v5450, %v5450
        %v5467 = vmul.f32 %v5451, %v5451
        %v5468 = vmul.f32 %v5452, %v5452
        %v5469 = vmul.f32 %v5453, %v5453
        %v5470 = vmul.f32 %v5454, %v5454
        %v5471 = vmul.f32 %v5455, %v5455
        %v5472 = vmul.f32 %v5456, %v5456
        %v5473 = vmul.f32 %v5457, %v5457
        %v5474 = vmul.f32 %v5458, %v5458
        %v5475 = vmul.f32 %v5459, %v5459
        %v5476 = vmul.f32 %v5460, %v5460
        %v5477 = vmul.f32 %v5461, %v5461
        %v5478 = vmul.f32 %v5462, %v5462
        %5479 = vadd.xlane.f32.xlu0 %v5463
        %v5480 = vpop.xlane.xlu0 %5479
        %5481 = vadd.xlane.f32.xlu0 %v5464
        %v5482 = vpop.xlane.xlu0 %5481
        %5483 = vadd.xlane.f32.xlu0 %v5465
        %v5484 = vpop.xlane.xlu0 %5483
        %5485 = vadd.xlane.f32.xlu0 %v5466
        %v5486 = vpop.xlane.xlu0 %5485
        %5487 = vadd.xlane.f32.xlu0 %v5467
        %v5488 = vpop.xlane.xlu0 %5487
        %5489 = vadd.xlane.f32.xlu0 %v5468
        %v5490 = vpop.xlane.xlu0 %5489
        %5491 = vadd.xlane.f32.xlu0 %v5469
        %v5492 = vpop.xlane.xlu0 %5491
        %5493 = vadd.xlane.f32.xlu0 %v5470
        %v5494 = vpop.xlane.xlu0 %5493
        %5495 = vadd.xlane.f32.xlu0 %v5471
        %v5496 = vpop.xlane.xlu0 %5495
        %5497 = vadd.xlane.f32.xlu0 %v5472
        %v5498 = vpop.xlane.xlu0 %5497
        %5499 = vadd.xlane.f32.xlu0 %v5473
        %v5500 = vpop.xlane.xlu0 %5499
        %5501 = vadd.xlane.f32.xlu0 %v5474
        %v5502 = vpop.xlane.xlu0 %5501
        %5503 = vadd.xlane.f32.xlu0 %v5475
        %v5504 = vpop.xlane.xlu0 %5503
        %5505 = vadd.xlane.f32.xlu0 %v5476
        %v5506 = vpop.xlane.xlu0 %5505
        %5507 = vadd.xlane.f32.xlu0 %v5477
        %v5508 = vpop.xlane.xlu0 %5507
        %5509 = vadd.xlane.f32.xlu0 %v5478
        %v5510 = vpop.xlane.xlu0 %5509
        %v5511 = vmul.f32 %v5480, 0.0078125
        %v5512 = vmul.f32 %v5482, 0.0078125
        %v5513 = vmul.f32 %v5484, 0.0078125
        %v5514 = vmul.f32 %v5486, 0.0078125
        %v5515 = vmul.f32 %v5488, 0.0078125
        %v5516 = vmul.f32 %v5490, 0.0078125
        %v5517 = vmul.f32 %v5492, 0.0078125
        %v5518 = vmul.f32 %v5494, 0.0078125
        %v5519 = vmul.f32 %v5496, 0.0078125
        %v5520 = vmul.f32 %v5498, 0.0078125
        %v5521 = vmul.f32 %v5500, 0.0078125
        %v5522 = vmul.f32 %v5502, 0.0078125
        %v5523 = vmul.f32 %v5504, 0.0078125
        %v5524 = vmul.f32 %v5506, 0.0078125
        %v5525 = vmul.f32 %v5508, 0.0078125
        %v5526 = vmul.f32 %v5510, 0.0078125
        %v5527 = vadd.f32 %v5511, 1e-05
        %v5528 = vadd.f32 %v5512, 1e-05
        %v5529 = vadd.f32 %v5513, 1e-05
        %v5530 = vadd.f32 %v5514, 1e-05
        %v5531 = vadd.f32 %v5515, 1e-05
        %v5532 = vadd.f32 %v5516, 1e-05
        %v5533 = vadd.f32 %v5517, 1e-05
        %v5534 = vadd.f32 %v5518, 1e-05
        %v5535 = vadd.f32 %v5519, 1e-05
        %v5536 = vadd.f32 %v5520, 1e-05
        %v5537 = vadd.f32 %v5521, 1e-05
        %v5538 = vadd.f32 %v5522, 1e-05
        %v5539 = vadd.f32 %v5523, 1e-05
        %v5540 = vadd.f32 %v5524, 1e-05
        %v5541 = vadd.f32 %v5525, 1e-05
        %v5542 = vadd.f32 %v5526, 1e-05
        %v5543 = vrsqrt.pop %v5527
        %v5544 = vrsqrt.pop %v5528
        %v5545 = vrsqrt.pop %v5529
        %v5546 = vrsqrt.pop %v5530
        %v5547 = vrsqrt.pop %v5531
        %v5548 = vrsqrt.pop %v5532
        %v5549 = vrsqrt.pop %v5533
        %v5550 = vrsqrt.pop %v5534
        %v5551 = vrsqrt.pop %v5535
        %v5552 = vrsqrt.pop %v5536
        %v5553 = vrsqrt.pop %v5537
        %v5554 = vrsqrt.pop %v5538
        %v5555 = vrsqrt.pop %v5539
        %v5556 = vrsqrt.pop %v5540
        %v5557 = vrsqrt.pop %v5541
        %v5558 = vrsqrt.pop %v5542
        %v5559 = vmul.f32 %v5447, %v5543
        %v5560 = vmul.f32 %v5448, %v5544
        %v5561 = vmul.f32 %v5449, %v5545
        %v5562 = vmul.f32 %v5450, %v5546
        %v5563 = vmul.f32 %v5451, %v5547
        %v5564 = vmul.f32 %v5452, %v5548
        %v5565 = vmul.f32 %v5453, %v5549
        %v5566 = vmul.f32 %v5454, %v5550
        %v5567 = vmul.f32 %v5455, %v5551
        %v5568 = vmul.f32 %v5456, %v5552
        %v5569 = vmul.f32 %v5457, %v5553
        %v5570 = vmul.f32 %v5458, %v5554
        %v5571 = vmul.f32 %v5459, %v5555
        %v5572 = vmul.f32 %v5460, %v5556
        %v5573 = vmul.f32 %v5461, %v5557
        %v5574 = vmul.f32 %v5462, %v5558
        %v5575 = vlaneseq
        %v5576 = vshrl.u32 %v5575, 7
        %v5577 = vsub.s32 1, %v5576
        %v5578 = vrot.slane %v4639, %v5577
        %v5579 = vmul.f32 %v5559, %v5578
        %v5580 = vmul.f32 %v5560, %v5578
        %v5581 = vmul.f32 %v5561, %v5578
        %v5582 = vmul.f32 %v5562, %v5578
        %v5583 = vmul.f32 %v5563, %v5578
        %v5584 = vmul.f32 %v5564, %v5578
        %v5585 = vmul.f32 %v5565, %v5578
        %v5586 = vmul.f32 %v5566, %v5578
        %v5587 = vmul.f32 %v5567, %v5578
        %v5588 = vmul.f32 %v5568, %v5578
        %v5589 = vmul.f32 %v5569, %v5578
        %v5590 = vmul.f32 %v5570, %v5578
        %v5591 = vmul.f32 %v5571, %v5578
        %v5592 = vmul.f32 %v5572, %v5578
        %v5593 = vmul.f32 %v5573, %v5578
        %v5594 = vmul.f32 %v5574, %v5578
        %v5595 = vlaneseq
        %v5596 = vshrl.u32 %v5595, 7
        %v5597 = vsub.s32 2, %v5596
        %v5598 = vrot.slane %v4639, %v5597
        %v5599 = vadd.f32 %v5579, %v5598
        %v5600 = vadd.f32 %v5580, %v5598
        %v5601 = vadd.f32 %v5581, %v5598
        %v5602 = vadd.f32 %v5582, %v5598
        %v5603 = vadd.f32 %v5583, %v5598
        %v5604 = vadd.f32 %v5584, %v5598
        %v5605 = vadd.f32 %v5585, %v5598
        %v5606 = vadd.f32 %v5586, %v5598
        %v5607 = vadd.f32 %v5587, %v5598
        %v5608 = vadd.f32 %v5588, %v5598
        %v5609 = vadd.f32 %v5589, %v5598
        %v5610 = vadd.f32 %v5590, %v5598
        %v5611 = vadd.f32 %v5591, %v5598
        %v5612 = vadd.f32 %v5592, %v5598
        %v5613 = vadd.f32 %v5593, %v5598
        %v5614 = vadd.f32 %v5594, %v5598
        %v5615 = vadd.f32 %v5599, %v4570
        %v5616 = vadd.f32 %v5600, %v4571
        %v5617 = vadd.f32 %v5601, %v4572
        %v5618 = vadd.f32 %v5602, %v4573
        %v5619 = vadd.f32 %v5603, %v4574
        %v5620 = vadd.f32 %v5604, %v4575
        %v5621 = vadd.f32 %v5605, %v4576
        %v5622 = vadd.f32 %v5606, %v4577
        %v5623 = vadd.f32 %v5607, %v4578
        %v5624 = vadd.f32 %v5608, %v4579
        %v5625 = vadd.f32 %v5609, %v4580
        %v5626 = vadd.f32 %v5610, %v4581
        %v5627 = vadd.f32 %v5611, %v4582
        %v5628 = vadd.f32 %v5612, %v4583
        %v5629 = vadd.f32 %v5613, %v4584
        %v5630 = vadd.f32 %v5614, %v4585
        %s5631 = scalar_lea.vmem [#allocation5], 192
        %v5632 = vld [vmem:[%s5631] sm:$0xf]
        %v5633 = vld [vmem:[%s5631 + $0x4] sm:$0xf]
        %v5634 = vld [vmem:[%s5631 + $0x8] sm:$0xf]
        %v5635 = vld [vmem:[%s5631 + $0xc] sm:$0xf]
        %v5636 = vld [vmem:[%s5631 + $0x10] sm:$0xf]
        %v5637 = vld [vmem:[%s5631 + $0x14] sm:$0xf]
        %v5638 = vld [vmem:[%s5631 + $0x18] sm:$0xf]
        %v5639 = vld [vmem:[%s5631 + $0x1c] sm:$0xf]
        %v5640 = vld [vmem:[%s5631 + $0x20] sm:$0xf]
        %v5641 = vld [vmem:[%s5631 + $0x24] sm:$0xf]
        %v5642 = vld [vmem:[%s5631 + $0x28] sm:$0xf]
        %v5643 = vld [vmem:[%s5631 + $0x2c] sm:$0xf]
        %v5644 = vld [vmem:[%s5631 + $0x30] sm:$0xf]
        %v5645 = vld [vmem:[%s5631 + $0x34] sm:$0xf]
        %v5646 = vld [vmem:[%s5631 + $0x38] sm:$0xf]
        %v5647 = vld [vmem:[%s5631 + $0x3c] sm:$0xf]
        %s5648 = scalar_lea.vmem [#allocation7], 576
        %v5649 = vld [vmem:[%s5648] sm:$0xff]
        %v5650 = vld [vmem:[%s5648 + $0x8] sm:$0xf]
        %v5651 = vld [vmem:[%s5648 + $0xc] sm:$0xff]
        %v5652 = vld [vmem:[%s5648 + $0x14] sm:$0xf]
        %v5653 = vld [vmem:[%s5648 + $0x18] sm:$0xff]
        %v5654 = vld [vmem:[%s5648 + $0x20] sm:$0xf]
        %v5655 = vld [vmem:[%s5648 + $0x24] sm:$0xff]
        %v5656 = vld [vmem:[%s5648 + $0x2c] sm:$0xf]
        %v5657 = vld [vmem:[%s5648 + $0x30] sm:$0xff]
        %v5658 = vld [vmem:[%s5648 + $0x38] sm:$0xf]
        %v5659 = vld [vmem:[%s5648 + $0x3c] sm:$0xff]
        %v5660 = vld [vmem:[%s5648 + $0x44] sm:$0xf]
        %v5661 = vld [vmem:[%s5648 + $0x48] sm:$0xff]
        %v5662 = vld [vmem:[%s5648 + $0x50] sm:$0xf]
        %v5663 = vld [vmem:[%s5648 + $0x54] sm:$0xff]
        %v5664 = vld [vmem:[%s5648 + $0x5c] sm:$0xf]
        %v5665 = vld [vmem:[%s5648 + $0x60] sm:$0xff]
        %v5666 = vld [vmem:[%s5648 + $0x68] sm:$0xf]
        %v5667 = vld [vmem:[%s5648 + $0x6c] sm:$0xff]
        %v5668 = vld [vmem:[%s5648 + $0x74] sm:$0xf]
        %v5669 = vld [vmem:[%s5648 + $0x78] sm:$0xff]
        %v5670 = vld [vmem:[%s5648 + $0x80] sm:$0xf]
        %v5671 = vld [vmem:[%s5648 + $0x84] sm:$0xff]
        %v5672 = vld [vmem:[%s5648 + $0x8c] sm:$0xf]
        %v5673 = vld [vmem:[%s5648 + $0x90] sm:$0xff]
        %v5674 = vld [vmem:[%s5648 + $0x98] sm:$0xf]
        %v5675 = vld [vmem:[%s5648 + $0x9c] sm:$0xff]
        %v5676 = vld [vmem:[%s5648 + $0xa4] sm:$0xf]
        %v5677 = vld [vmem:[%s5648 + $0xa8] sm:$0xff]
        %v5678 = vld [vmem:[%s5648 + $0xb0] sm:$0xf]
        %v5679 = vld [vmem:[%s5648 + $0xb4] sm:$0xff]
        %v5680 = vld [vmem:[%s5648 + $0xbc] sm:$0xf]
        %s5681 = scalar_lea.vmem [#allocation8], 9
        %v5682 = vld [vmem:[%s5681] sm:$0x7]
        %s5683 = scalar_lea.vmem [#allocation10], 24
        %v5684 = vld [vmem:[%s5683] sm:$0xff]
        %v5685 = vpack.c.bf16 %v5616, %v5615
        %v5686 = vpack.c.bf16 %v5618, %v5617
        %v5687 = vpack.c.bf16 %v5620, %v5619
        %v5688 = vpack.c.bf16 %v5622, %v5621
        %v5689 = vpack.c.bf16 %v5624, %v5623
        %v5690 = vpack.c.bf16 %v5626, %v5625
        %v5691 = vpack.c.bf16 %v5628, %v5627
        %v5692 = vpack.c.bf16 %v5630, %v5629
        %v5693 = vlaneseq
        %v5694 = vshrl.u32 %v5693, 7
        %v5695 = vsub.s32 0, %v5694
        %v5696 = vrot.slane %v5684, %v5695
        %v5713 = vunpack.c.l.b16 %v5632
        %v5714 = vunpack.c.l.b16 %v5633
        %v5715 = vunpack.c.l.b16 %v5634
        %v5716 = vunpack.c.l.b16 %v5635
        %v5717 = vunpack.c.l.b16 %v5636
        %v5718 = vunpack.c.l.b16 %v5637
        %v5719 = vunpack.c.l.b16 %v5638
        %v5720 = vunpack.c.l.b16 %v5639
        %v5721 = vunpack.c.l.b16 %v5640
        %v5722 = vunpack.c.l.b16 %v5641
        %v5723 = vunpack.c.l.b16 %v5642
        %v5724 = vunpack.c.l.b16 %v5643
        %v5725 = vunpack.c.l.b16 %v5644
        %v5726 = vunpack.c.l.b16 %v5645
        %v5727 = vunpack.c.l.b16 %v5646
        %v5728 = vunpack.c.l.b16 %v5647
        %v5729 = vpack.c.b16 %v5714, %v5713
        %v5730 = vpack.c.b16 %v5716, %v5715
        %v5731 = vpack.c.b16 %v5718, %v5717
        %v5732 = vpack.c.b16 %v5720, %v5719
        %v5733 = vpack.c.b16 %v5722, %v5721
        %v5734 = vpack.c.b16 %v5724, %v5723
        %v5735 = vpack.c.b16 %v5726, %v5725
        %v5736 = vpack.c.b16 %v5728, %v5727
        %5745 = vmatprep.subr.bf16.mxu0 0
        %5746 = vmatpush1.bf16.msra.mxu0 %v5736
        %5747 = vmatprep.subr.bf16.mxu0 0
        %5748 = vmatpush1.bf16.msra.mxu0 %v5735
        %5749 = vmatprep.subr.bf16.mxu0 0
        %5750 = vmatpush1.bf16.msra.mxu0 %v5734
        %5751 = vmatprep.subr.bf16.mxu0 0
        %5752 = vmatpush1.bf16.msra.mxu0 %v5733
        %5753 = vmatprep.subr.bf16.mxu0 0
        %5754 = vmatpush1.bf16.msra.mxu0 %v5732
        %5755 = vmatprep.subr.bf16.mxu0 0
        %5756 = vmatpush1.bf16.msra.mxu0 %v5731
        %5757 = vmatprep.subr.bf16.mxu0 0
        %5758 = vmatpush1.bf16.msra.mxu0 %v5730
        %5759 = vmatprep.subr.bf16.mxu0 0
        %5760 = vmatpush1.bf16.msra.mxu0 %v5729
        %5761 = vmatprep.subr.bf16.mxu0 0
        %5762 = vmatpush2.bf16.msra.mxu0 0
        %5763 = vmatprep.subr.bf16.mxu0 0
        %5764 = vmatpush2.bf16.msra.mxu0 0
        %5765 = vmatprep.subr.bf16.mxu0 0
        %5766 = vmatpush2.bf16.msra.mxu0 0
        %5767 = vmatprep.subr.bf16.mxu0 0
        %5768 = vmatpush2.bf16.msra.mxu0 0
        %5769 = vmatprep.subr.bf16.mxu0 0
        %5770 = vmatpush2.bf16.msra.mxu0 0
        %5771 = vmatprep.subr.bf16.mxu0 0
        %5772 = vmatpush2.bf16.msra.mxu0 0
        %5773 = vmatprep.subr.bf16.mxu0 0
        %5774 = vmatpush2.bf16.msra.mxu0 0
        %5775 = vmatprep.subr.bf16.mxu0 0
        %5776 = vmatpush2.bf16.msra.mxu0 0
        %5777 = vmatprep.mubr.bf16.mxu0 0
        %5778 = vmatmul.mubr.bf16.gmra.mxu0 %v5685
        %v5779 = vpop.f32.mrf.mxu0
        %v5780 = vadd.f32 %v5696, %v5779
        %v5781 = vpop.f32.mrf.mxu0
        %v5782 = vpop.f32.mrf.mxu0
        %v5783 = vadd.f32 %v5696, %v5782
        %v5784 = vpop.f32.mrf.mxu0
        %5785 = vmatprep.mubr.bf16.mxu0 0
        %5786 = vmatmul.mubr.bf16.gmra.mxu0 %v5686
        %v5787 = vpop.f32.mrf.mxu0
        %v5788 = vadd.f32 %v5696, %v5787
        %v5789 = vpop.f32.mrf.mxu0
        %v5790 = vpop.f32.mrf.mxu0
        %v5791 = vadd.f32 %v5696, %v5790
        %v5792 = vpop.f32.mrf.mxu0
        %5793 = vmatprep.mubr.bf16.mxu0 0
        %5794 = vmatmul.mubr.bf16.gmra.mxu0 %v5687
        %v5795 = vpop.f32.mrf.mxu0
        %v5796 = vadd.f32 %v5696, %v5795
        %v5797 = vpop.f32.mrf.mxu0
        %v5798 = vpop.f32.mrf.mxu0
        %v5799 = vadd.f32 %v5696, %v5798
        %v5800 = vpop.f32.mrf.mxu0
        %5801 = vmatprep.mubr.bf16.mxu0 0
        %5802 = vmatmul.mubr.bf16.gmra.mxu0 %v5688
        %v5803 = vpop.f32.mrf.mxu0
        %v5804 = vadd.f32 %v5696, %v5803
        %v5805 = vpop.f32.mrf.mxu0
        %v5806 = vpop.f32.mrf.mxu0
        %v5807 = vadd.f32 %v5696, %v5806
        %v5808 = vpop.f32.mrf.mxu0
        %5809 = vmatprep.mubr.bf16.mxu0 0
        %5810 = vmatmul.mubr.bf16.gmra.mxu0 %v5689
        %v5811 = vpop.f32.mrf.mxu0
        %v5812 = vadd.f32 %v5696, %v5811
        %v5813 = vpop.f32.mrf.mxu0
        %v5814 = vpop.f32.mrf.mxu0
        %v5815 = vadd.f32 %v5696, %v5814
        %v5816 = vpop.f32.mrf.mxu0
        %5817 = vmatprep.mubr.bf16.mxu0 0
        %5818 = vmatmul.mubr.bf16.gmra.mxu0 %v5690
        %v5819 = vpop.f32.mrf.mxu0
        %v5820 = vadd.f32 %v5696, %v5819
        %v5821 = vpop.f32.mrf.mxu0
        %v5822 = vpop.f32.mrf.mxu0
        %v5823 = vadd.f32 %v5696, %v5822
        %v5824 = vpop.f32.mrf.mxu0
        %5825 = vmatprep.mubr.bf16.mxu0 0
        %5826 = vmatmul.mubr.bf16.gmra.mxu0 %v5691
        %v5827 = vpop.f32.mrf.mxu0
        %v5828 = vadd.f32 %v5696, %v5827
        %v5829 = vpop.f32.mrf.mxu0
        %v5830 = vpop.f32.mrf.mxu0
        %v5831 = vadd.f32 %v5696, %v5830
        %v5832 = vpop.f32.mrf.mxu0
        %5833 = vmatprep.mubr.bf16.mxu0 0
        %5834 = vmatmul.mubr.bf16.gmra.mxu0 %v5692
        %v5835 = vpop.f32.mrf.mxu0
        %v5836 = vadd.f32 %v5696, %v5835
        %v5837 = vpop.f32.mrf.mxu0
        %v5838 = vpop.f32.mrf.mxu0
        %v5839 = vadd.f32 %v5696, %v5838
        %v5840 = vpop.f32.mrf.mxu0
        %5841 = vdwg.mxu0
        %vm5842 = vcmp.ge.f32.partialorder %v5780, 0.0
        %vm5843 = vcmp.ge.f32.partialorder %v5783, 0.0
        %vm5844 = vcmp.ge.f32.partialorder %v5788, 0.0
        %vm5845 = vcmp.ge.f32.partialorder %v5791, 0.0
        %vm5846 = vcmp.ge.f32.partialorder %v5796, 0.0
        %vm5847 = vcmp.ge.f32.partialorder %v5799, 0.0
        %vm5848 = vcmp.ge.f32.partialorder %v5804, 0.0
        %vm5849 = vcmp.ge.f32.partialorder %v5807, 0.0
        %vm5850 = vcmp.ge.f32.partialorder %v5812, 0.0
        %vm5851 = vcmp.ge.f32.partialorder %v5815, 0.0
        %vm5852 = vcmp.ge.f32.partialorder %v5820, 0.0
        %vm5853 = vcmp.ge.f32.partialorder %v5823, 0.0
        %vm5854 = vcmp.ge.f32.partialorder %v5828, 0.0
        %vm5855 = vcmp.ge.f32.partialorder %v5831, 0.0
        %vm5856 = vcmp.ge.f32.partialorder %v5836, 0.0
        %vm5857 = vcmp.ge.f32.partialorder %v5839, 0.0
        %v5858 = vmul.f32 %v5780, 0.2
        %v5859 = vmul.f32 %v5783, 0.2
        %v5860 = vmul.f32 %v5788, 0.2
        %v5861 = vmul.f32 %v5791, 0.2
        %v5862 = vmul.f32 %v5796, 0.2
        %v5863 = vmul.f32 %v5799, 0.2
        %v5864 = vmul.f32 %v5804, 0.2
        %v5865 = vmul.f32 %v5807, 0.2
        %v5866 = vmul.f32 %v5812, 0.2
        %v5867 = vmul.f32 %v5815, 0.2
        %v5868 = vmul.f32 %v5820, 0.2
        %v5869 = vmul.f32 %v5823, 0.2
        %v5870 = vmul.f32 %v5828, 0.2
        %v5871 = vmul.f32 %v5831, 0.2
        %v5872 = vmul.f32 %v5836, 0.2
        %v5873 = vmul.f32 %v5839, 0.2
        %v5874 = vsel %vm5842, %v5780, %v5858
        %v5875 = vsel %vm5843, %v5783, %v5859
        %v5876 = vsel %vm5844, %v5788, %v5860
        %v5877 = vsel %vm5845, %v5791, %v5861
        %v5878 = vsel %vm5846, %v5796, %v5862
        %v5879 = vsel %vm5847, %v5799, %v5863
        %v5880 = vsel %vm5848, %v5804, %v5864
        %v5881 = vsel %vm5849, %v5807, %v5865
        %v5882 = vsel %vm5850, %v5812, %v5866
        %v5883 = vsel %vm5851, %v5815, %v5867
        %v5884 = vsel %vm5852, %v5820, %v5868
        %v5885 = vsel %vm5853, %v5823, %v5869
        %v5886 = vsel %vm5854, %v5828, %v5870
        %v5887 = vsel %vm5855, %v5831, %v5871
        %v5888 = vsel %vm5856, %v5836, %v5872
        %v5889 = vsel %vm5857, %v5839, %v5873
        %v5890 = vpack.c.bf16 %v5875, %v5874
        %v5891 = vpack.c.bf16 %v5877, %v5876
        %v5892 = vpack.c.bf16 %v5879, %v5878
        %v5893 = vpack.c.bf16 %v5881, %v5880
        %v5894 = vpack.c.bf16 %v5883, %v5882
        %v5895 = vpack.c.bf16 %v5885, %v5884
        %v5896 = vpack.c.bf16 %v5887, %v5886
        %v5897 = vpack.c.bf16 %v5889, %v5888
        %v5899 = vlaneseq
        %v5900 = vshrl.u32 %v5899, 7
        %v5901 = vsub.s32 0, %v5900
        %v5902 = vrot.slane %v5682, %v5901
        %v5903 = vlaneseq
        %v5904 = vshrl.u32 %v5903, 7
        %v5905 = vsub.s32 1, %v5904
        %v5906 = vrot.slane %v5682, %v5905
        %v5907 = vlaneseq
        %v5908 = vshrl.u32 %v5907, 7
        %v5909 = vsub.s32 2, %v5908
        %v5910 = vrot.slane %v5682, %v5909
        %v5946 = vunpack.c.l.b16 %v5649
        %v5947 = vunpack.c.h.b16 %v5649
        %v5948 = vunpack.c.l.b16 %v5650
        %v5949 = vunpack.c.l.b16 %v5651
        %v5950 = vunpack.c.h.b16 %v5651
        %v5951 = vunpack.c.l.b16 %v5652
        %v5952 = vunpack.c.l.b16 %v5653
        %v5953 = vunpack.c.h.b16 %v5653
        %v5954 = vunpack.c.l.b16 %v5654
        %v5955 = vunpack.c.l.b16 %v5655
        %v5956 = vunpack.c.h.b16 %v5655
        %v5957 = vunpack.c.l.b16 %v5656
        %v5958 = vunpack.c.l.b16 %v5657
        %v5959 = vunpack.c.h.b16 %v5657
        %v5960 = vunpack.c.l.b16 %v5658
        %v5961 = vunpack.c.l.b16 %v5659
        %v5962 = vunpack.c.h.b16 %v5659
        %v5963 = vunpack.c.l.b16 %v5660
        %v5964 = vunpack.c.l.b16 %v5661
        %v5965 = vunpack.c.h.b16 %v5661
        %v5966 = vunpack.c.l.b16 %v5662
        %v5967 = vunpack.c.l.b16 %v5663
        %v5968 = vunpack.c.h.b16 %v5663
        %v5969 = vunpack.c.l.b16 %v5664
        %v5970 = vunpack.c.l.b16 %v5665
        %v5971 = vunpack.c.h.b16 %v5665
        %v5972 = vunpack.c.l.b16 %v5666
        %v5973 = vunpack.c.l.b16 %v5667
        %v5974 = vunpack.c.h.b16 %v5667
        %v5975 = vunpack.c.l.b16 %v5668
        %v5976 = vunpack.c.l.b16 %v5669
        %v5977 = vunpack.c.h.b16 %v5669
        %v5978 = vunpack.c.l.b16 %v5670
        %v5979 = vunpack.c.l.b16 %v5671
        %v5980 = vunpack.c.h.b16 %v5671
        %v5981 = vunpack.c.l.b16 %v5672
        %v5982 = vunpack.c.l.b16 %v5673
        %v5983 = vunpack.c.h.b16 %v5673
        %v5984 = vunpack.c.l.b16 %v5674
        %v5985 = vunpack.c.l.b16 %v5675
        %v5986 = vunpack.c.h.b16 %v5675
        %v5987 = vunpack.c.l.b16 %v5676
        %v5988 = vunpack.c.l.b16 %v5677
        %v5989 = vunpack.c.h.b16 %v5677
        %v5990 = vunpack.c.l.b16 %v5678
        %v5991 = vunpack.c.l.b16 %v5679
        %v5992 = vunpack.c.h.b16 %v5679
        %v5993 = vunpack.c.l.b16 %v5680
        %v5994 = vpack.c.b16 %v5949, %v5946
        %v5995 = vpack.c.b16 %v5950, %v5947
        %v5996 = vpack.c.b16 %v5951, %v5948
        %v5997 = vpack.c.b16 %v5955, %v5952
        %v5998 = vpack.c.b16 %v5956, %v5953
        %v5999 = vpack.c.b16 %v5957, %v5954
        %v6000 = vpack.c.b16 %v5961, %v5958
        %v6001 = vpack.c.b16 %v5962, %v5959
        %v6002 = vpack.c.b16 %v5963, %v5960
        %v6003 = vpack.c.b16 %v5967, %v5964
        %v6004 = vpack.c.b16 %v5968, %v5965
        %v6005 = vpack.c.b16 %v5969, %v5966
        %v6006 = vpack.c.b16 %v5973, %v5970
        %v6007 = vpack.c.b16 %v5974, %v5971
        %v6008 = vpack.c.b16 %v5975, %v5972
        %v6009 = vpack.c.b16 %v5979, %v5976
        %v6010 = vpack.c.b16 %v5980, %v5977
        %v6011 = vpack.c.b16 %v5981, %v5978
        %v6012 = vpack.c.b16 %v5985, %v5982
        %v6013 = vpack.c.b16 %v5986, %v5983
        %v6014 = vpack.c.b16 %v5987, %v5984
        %v6015 = vpack.c.b16 %v5991, %v5988
        %v6016 = vpack.c.b16 %v5992, %v5989
        %v6017 = vpack.c.b16 %v5993, %v5990
        %6042 = vmatprep.subr.bf16.mxu0 %v6016
        %6043 = vmatpush1.bf16.msra.mxu0 %v6015
        %6044 = vmatprep.subr.bf16.mxu0 %v6013
        %6045 = vmatpush1.bf16.msra.mxu0 %v6012
        %6046 = vmatprep.subr.bf16.mxu0 %v6010
        %6047 = vmatpush1.bf16.msra.mxu0 %v6009
        %6048 = vmatprep.subr.bf16.mxu0 %v6007
        %6049 = vmatpush1.bf16.msra.mxu0 %v6006
        %6050 = vmatprep.subr.bf16.mxu0 %v6004
        %6051 = vmatpush1.bf16.msra.mxu0 %v6003
        %6052 = vmatprep.subr.bf16.mxu0 %v6001
        %6053 = vmatpush1.bf16.msra.mxu0 %v6000
        %6054 = vmatprep.subr.bf16.mxu0 %v5998
        %6055 = vmatpush1.bf16.msra.mxu0 %v5997
        %6056 = vmatprep.subr.bf16.mxu0 %v5995
        %6057 = vmatpush1.bf16.msra.mxu0 %v5994
        %6058 = vmatprep.subr.bf16.mxu0 0
        %6059 = vmatpush2.bf16.msra.mxu0 0
        %6060 = vmatprep.subr.bf16.mxu0 0
        %6061 = vmatpush2.bf16.msra.mxu0 0
        %6062 = vmatprep.subr.bf16.mxu0 0
        %6063 = vmatpush2.bf16.msra.mxu0 0
        %6064 = vmatprep.subr.bf16.mxu0 0
        %6065 = vmatpush2.bf16.msra.mxu0 0
        %6066 = vmatprep.subr.bf16.mxu0 0
        %6067 = vmatpush2.bf16.msra.mxu0 0
        %6068 = vmatprep.subr.bf16.mxu0 0
        %6069 = vmatpush2.bf16.msra.mxu0 0
        %6070 = vmatprep.subr.bf16.mxu0 0
        %6071 = vmatpush2.bf16.msra.mxu0 0
        %6072 = vmatprep.subr.bf16.mxu0 0
        %6073 = vmatpush2.bf16.msra.mxu0 0
        %6074 = vmatprep.mubr.bf16.mxu0 0
        %6075 = vmatmul.mubr.bf16.gmra.mxu0 %v5890
        %v6076 = vpop.f32.mrf.mxu0
        %v6077 = vadd.f32 %v5902, %v6076
        %v6078 = vpop.f32.mrf.mxu0
        %v6079 = vadd.f32 %v5906, %v6078
        %v6080 = vpop.f32.mrf.mxu0
        %v6081 = vadd.f32 %v5902, %v6080
        %v6082 = vpop.f32.mrf.mxu0
        %v6083 = vadd.f32 %v5906, %v6082
        %6084 = vmatprep.mubr.bf16.mxu0 0
        %6085 = vmatmul.mubr.bf16.gmra.mxu0 %v5891
        %v6086 = vpop.f32.mrf.mxu0
        %v6087 = vadd.f32 %v5902, %v6086
        %v6088 = vpop.f32.mrf.mxu0
        %v6089 = vadd.f32 %v5906, %v6088
        %v6090 = vpop.f32.mrf.mxu0
        %v6091 = vadd.f32 %v5902, %v6090
        %v6092 = vpop.f32.mrf.mxu0
        %v6093 = vadd.f32 %v5906, %v6092
        %6094 = vmatprep.mubr.bf16.mxu0 0
        %6095 = vmatmul.mubr.bf16.gmra.mxu0 %v5892
        %v6096 = vpop.f32.mrf.mxu0
        %v6097 = vadd.f32 %v5902, %v6096
        %v6098 = vpop.f32.mrf.mxu0
        %v6099 = vadd.f32 %v5906, %v6098
        %v6100 = vpop.f32.mrf.mxu0
        %v6101 = vadd.f32 %v5902, %v6100
        %v6102 = vpop.f32.mrf.mxu0
        %v6103 = vadd.f32 %v5906, %v6102
        %6104 = vmatprep.mubr.bf16.mxu0 0
        %6105 = vmatmul.mubr.bf16.gmra.mxu0 %v5893
        %v6106 = vpop.f32.mrf.mxu0
        %v6107 = vadd.f32 %v5902, %v6106
        %v6108 = vpop.f32.mrf.mxu0
        %v6109 = vadd.f32 %v5906, %v6108
        %v6110 = vpop.f32.mrf.mxu0
        %v6111 = vadd.f32 %v5902, %v6110
        %v6112 = vpop.f32.mrf.mxu0
        %v6113 = vadd.f32 %v5906, %v6112
        %6114 = vmatprep.mubr.bf16.mxu0 0
        %6115 = vmatmul.mubr.bf16.gmra.mxu0 %v5894
        %v6116 = vpop.f32.mrf.mxu0
        %v6117 = vadd.f32 %v5902, %v6116
        %v6118 = vpop.f32.mrf.mxu0
        %v6119 = vadd.f32 %v5906, %v6118
        %v6120 = vpop.f32.mrf.mxu0
        %v6121 = vadd.f32 %v5902, %v6120
        %v6122 = vpop.f32.mrf.mxu0
        %v6123 = vadd.f32 %v5906, %v6122
        %6124 = vmatprep.mubr.bf16.mxu0 0
        %6125 = vmatmul.mubr.bf16.gmra.mxu0 %v5895
        %v6126 = vpop.f32.mrf.mxu0
        %v6127 = vadd.f32 %v5902, %v6126
        %v6128 = vpop.f32.mrf.mxu0
        %v6129 = vadd.f32 %v5906, %v6128
        %v6130 = vpop.f32.mrf.mxu0
        %v6131 = vadd.f32 %v5902, %v6130
        %v6132 = vpop.f32.mrf.mxu0
        %v6133 = vadd.f32 %v5906, %v6132
        %6134 = vmatprep.mubr.bf16.mxu0 0
        %6135 = vmatmul.mubr.bf16.gmra.mxu0 %v5896
        %v6136 = vpop.f32.mrf.mxu0
        %v6137 = vadd.f32 %v5902, %v6136
        %v6138 = vpop.f32.mrf.mxu0
        %v6139 = vadd.f32 %v5906, %v6138
        %v6140 = vpop.f32.mrf.mxu0
        %v6141 = vadd.f32 %v5902, %v6140
        %v6142 = vpop.f32.mrf.mxu0
        %v6143 = vadd.f32 %v5906, %v6142
        %6144 = vmatprep.mubr.bf16.mxu0 0
        %6145 = vmatmul.mubr.bf16.gmra.mxu0 %v5897
        %v6146 = vpop.f32.mrf.mxu0
        %v6147 = vadd.f32 %v5902, %v6146
        %v6148 = vpop.f32.mrf.mxu0
        %v6149 = vadd.f32 %v5906, %v6148
        %v6150 = vpop.f32.mrf.mxu0
        %v6151 = vadd.f32 %v5902, %v6150
        %v6152 = vpop.f32.mrf.mxu0
        %v6153 = vadd.f32 %v5906, %v6152
        %6154 = vdwg.mxu0
        %6155 = vmatprep.subr.bf16.mxu0 0
        %6156 = vmatpush1.bf16.msra.mxu0 %v6017
        %6157 = vmatprep.subr.bf16.mxu0 0
        %6158 = vmatpush1.bf16.msra.mxu0 %v6014
        %6159 = vmatprep.subr.bf16.mxu0 0
        %6160 = vmatpush1.bf16.msra.mxu0 %v6011
        %6161 = vmatprep.subr.bf16.mxu0 0
        %6162 = vmatpush1.bf16.msra.mxu0 %v6008
        %6163 = vmatprep.subr.bf16.mxu0 0
        %6164 = vmatpush1.bf16.msra.mxu0 %v6005
        %6165 = vmatprep.subr.bf16.mxu0 0
        %6166 = vmatpush1.bf16.msra.mxu0 %v6002
        %6167 = vmatprep.subr.bf16.mxu0 0
        %6168 = vmatpush1.bf16.msra.mxu0 %v5999
        %6169 = vmatprep.subr.bf16.mxu0 0
        %6170 = vmatpush1.bf16.msra.mxu0 %v5996
        %6171 = vmatprep.subr.bf16.mxu0 0
        %6172 = vmatpush2.bf16.msra.mxu0 0
        %6173 = vmatprep.subr.bf16.mxu0 0
        %6174 = vmatpush2.bf16.msra.mxu0 0
        %6175 = vmatprep.subr.bf16.mxu0 0
        %6176 = vmatpush2.bf16.msra.mxu0 0
        %6177 = vmatprep.subr.bf16.mxu0 0
        %6178 = vmatpush2.bf16.msra.mxu0 0
        %6179 = vmatprep.subr.bf16.mxu0 0
        %6180 = vmatpush2.bf16.msra.mxu0 0
        %6181 = vmatprep.subr.bf16.mxu0 0
        %6182 = vmatpush2.bf16.msra.mxu0 0
        %6183 = vmatprep.subr.bf16.mxu0 0
        %6184 = vmatpush2.bf16.msra.mxu0 0
        %6185 = vmatprep.subr.bf16.mxu0 0
        %6186 = vmatpush2.bf16.msra.mxu0 0
        %6187 = vmatprep.mubr.bf16.mxu0 0
        %6188 = vmatmul.mubr.bf16.gmra.mxu0 %v5890
        %v6189 = vpop.f32.mrf.mxu0
        %v6190 = vadd.f32 %v5910, %v6189
        %v6191 = vpop.f32.mrf.mxu0
        %v6192 = vpop.f32.mrf.mxu0
        %v6193 = vadd.f32 %v5910, %v6192
        %v6194 = vpop.f32.mrf.mxu0
        %6195 = vmatprep.mubr.bf16.mxu0 0
        %6196 = vmatmul.mubr.bf16.gmra.mxu0 %v5891
        %v6197 = vpop.f32.mrf.mxu0
        %v6198 = vadd.f32 %v5910, %v6197
        %v6199 = vpop.f32.mrf.mxu0
        %v6200 = vpop.f32.mrf.mxu0
        %v6201 = vadd.f32 %v5910, %v6200
        %v6202 = vpop.f32.mrf.mxu0
        %6203 = vmatprep.mubr.bf16.mxu0 0
        %6204 = vmatmul.mubr.bf16.gmra.mxu0 %v5892
        %v6205 = vpop.f32.mrf.mxu0
        %v6206 = vadd.f32 %v5910, %v6205
        %v6207 = vpop.f32.mrf.mxu0
        %v6208 = vpop.f32.mrf.mxu0
        %v6209 = vadd.f32 %v5910, %v6208
        %v6210 = vpop.f32.mrf.mxu0
        %6211 = vmatprep.mubr.bf16.mxu0 0
        %6212 = vmatmul.mubr.bf16.gmra.mxu0 %v5893
        %v6213 = vpop.f32.mrf.mxu0
        %v6214 = vadd.f32 %v5910, %v6213
        %v6215 = vpop.f32.mrf.mxu0
        %v6216 = vpop.f32.mrf.mxu0
        %v6217 = vadd.f32 %v5910, %v6216
        %v6218 = vpop.f32.mrf.mxu0
        %6219 = vmatprep.mubr.bf16.mxu0 0
        %6220 = vmatmul.mubr.bf16.gmra.mxu0 %v5894
        %v6221 = vpop.f32.mrf.mxu0
        %v6222 = vadd.f32 %v5910, %v6221
        %v6223 = vpop.f32.mrf.mxu0
        %v6224 = vpop.f32.mrf.mxu0
        %v6225 = vadd.f32 %v5910, %v6224
        %v6226 = vpop.f32.mrf.mxu0
        %6227 = vmatprep.mubr.bf16.mxu0 0
        %6228 = vmatmul.mubr.bf16.gmra.mxu0 %v5895
        %v6229 = vpop.f32.mrf.mxu0
        %v6230 = vadd.f32 %v5910, %v6229
        %v6231 = vpop.f32.mrf.mxu0
        %v6232 = vpop.f32.mrf.mxu0
        %v6233 = vadd.f32 %v5910, %v6232
        %v6234 = vpop.f32.mrf.mxu0
        %6235 = vmatprep.mubr.bf16.mxu0 0
        %6236 = vmatmul.mubr.bf16.gmra.mxu0 %v5896
        %v6237 = vpop.f32.mrf.mxu0
        %v6238 = vadd.f32 %v5910, %v6237
        %v6239 = vpop.f32.mrf.mxu0
        %v6240 = vpop.f32.mrf.mxu0
        %v6241 = vadd.f32 %v5910, %v6240
        %v6242 = vpop.f32.mrf.mxu0
        %6243 = vmatprep.mubr.bf16.mxu0 0
        %6244 = vmatmul.mubr.bf16.gmra.mxu0 %v5897
        %v6245 = vpop.f32.mrf.mxu0
        %v6246 = vadd.f32 %v5910, %v6245
        %v6247 = vpop.f32.mrf.mxu0
        %v6248 = vpop.f32.mrf.mxu0
        %v6249 = vadd.f32 %v5910, %v6248
        %v6250 = vpop.f32.mrf.mxu0
        %6251 = vdwg.mxu0
        %v6252 = vmul.f32 %v6079, %v6077
        %v6253 = vmul.f32 %v6083, %v6081
        %v6254 = vmul.f32 %v6089, %v6087
        %v6255 = vmul.f32 %v6093, %v6091
        %v6256 = vmul.f32 %v6099, %v6097
        %v6257 = vmul.f32 %v6103, %v6101
        %v6258 = vmul.f32 %v6109, %v6107
        %v6259 = vmul.f32 %v6113, %v6111
        %v6260 = vmul.f32 %v6119, %v6117
        %v6261 = vmul.f32 %v6123, %v6121
        %v6262 = vmul.f32 %v6129, %v6127
        %v6263 = vmul.f32 %v6133, %v6131
        %v6264 = vmul.f32 %v6139, %v6137
        %v6265 = vmul.f32 %v6143, %v6141
        %v6266 = vmul.f32 %v6149, %v6147
        %v6267 = vmul.f32 %v6153, %v6151
        %v6268 = vsel %vm3100, %v6252, -1e+30
        %v6269 = vsel %vm3100, %v6253, -1e+30
        %v6270 = vsel %vm3100, %v6254, -1e+30
        %v6271 = vsel %vm3100, %v6255, -1e+30
        %v6272 = vsel %vm3100, %v6256, -1e+30
        %v6273 = vsel %vm3100, %v6257, -1e+30
        %v6274 = vsel %vm3100, %v6258, -1e+30
        %v6275 = vsel %vm3100, %v6259, -1e+30
        %v6276 = vsel %vm3100, %v6260, -1e+30
        %v6277 = vsel %vm3100, %v6261, -1e+30
        %v6278 = vsel %vm3100, %v6262, -1e+30
        %v6279 = vsel %vm3100, %v6263, -1e+30
        %v6280 = vsel %vm3100, %v6264, -1e+30
        %v6281 = vsel %vm3100, %v6265, -1e+30
        %v6282 = vsel %vm3100, %v6266, -1e+30
        %v6283 = vsel %vm3100, %v6267, -1e+30
        %6284 = vmax.xlane.f32.xlu0 %v6268
        %v6285 = vpop.xlane.xlu0 %6284
        %6286 = vmax.xlane.f32.xlu0 %v6269
        %v6287 = vpop.xlane.xlu0 %6286
        %6288 = vmax.xlane.f32.xlu0 %v6270
        %v6289 = vpop.xlane.xlu0 %6288
        %6290 = vmax.xlane.f32.xlu0 %v6271
        %v6291 = vpop.xlane.xlu0 %6290
        %6292 = vmax.xlane.f32.xlu0 %v6272
        %v6293 = vpop.xlane.xlu0 %6292
        %6294 = vmax.xlane.f32.xlu0 %v6273
        %v6295 = vpop.xlane.xlu0 %6294
        %6296 = vmax.xlane.f32.xlu0 %v6274
        %v6297 = vpop.xlane.xlu0 %6296
        %6298 = vmax.xlane.f32.xlu0 %v6275
        %v6299 = vpop.xlane.xlu0 %6298
        %6300 = vmax.xlane.f32.xlu0 %v6276
        %v6301 = vpop.xlane.xlu0 %6300
        %6302 = vmax.xlane.f32.xlu0 %v6277
        %v6303 = vpop.xlane.xlu0 %6302
        %6304 = vmax.xlane.f32.xlu0 %v6278
        %v6305 = vpop.xlane.xlu0 %6304
        %6306 = vmax.xlane.f32.xlu0 %v6279
        %v6307 = vpop.xlane.xlu0 %6306
        %6308 = vmax.xlane.f32.xlu0 %v6280
        %v6309 = vpop.xlane.xlu0 %6308
        %6310 = vmax.xlane.f32.xlu0 %v6281
        %v6311 = vpop.xlane.xlu0 %6310
        %6312 = vmax.xlane.f32.xlu0 %v6282
        %v6313 = vpop.xlane.xlu0 %6312
        %6314 = vmax.xlane.f32.xlu0 %v6283
        %v6315 = vpop.xlane.xlu0 %6314
        %v6316 = vsub.f32 %v6268, %v6285
        %v6317 = vsub.f32 %v6269, %v6287
        %v6318 = vsub.f32 %v6270, %v6289
        %v6319 = vsub.f32 %v6271, %v6291
        %v6320 = vsub.f32 %v6272, %v6293
        %v6321 = vsub.f32 %v6273, %v6295
        %v6322 = vsub.f32 %v6274, %v6297
        %v6323 = vsub.f32 %v6275, %v6299
        %v6324 = vsub.f32 %v6276, %v6301
        %v6325 = vsub.f32 %v6277, %v6303
        %v6326 = vsub.f32 %v6278, %v6305
        %v6327 = vsub.f32 %v6279, %v6307
        %v6328 = vsub.f32 %v6280, %v6309
        %v6329 = vsub.f32 %v6281, %v6311
        %v6330 = vsub.f32 %v6282, %v6313
        %v6331 = vsub.f32 %v6283, %v6315
        %v6332 = vmul.f32 %v6316, 1.442695
        %v6333 = vpow.pop %v6332
        %v6334 = vmul.f32 %v6317, 1.442695
        %v6335 = vpow.pop %v6334
        %v6336 = vmul.f32 %v6318, 1.442695
        %v6337 = vpow.pop %v6336
        %v6338 = vmul.f32 %v6319, 1.442695
        %v6339 = vpow.pop %v6338
        %v6340 = vmul.f32 %v6320, 1.442695
        %v6341 = vpow.pop %v6340
        %v6342 = vmul.f32 %v6321, 1.442695
        %v6343 = vpow.pop %v6342
        %v6344 = vmul.f32 %v6322, 1.442695
        %v6345 = vpow.pop %v6344
        %v6346 = vmul.f32 %v6323, 1.442695
        %v6347 = vpow.pop %v6346
        %v6348 = vmul.f32 %v6324, 1.442695
        %v6349 = vpow.pop %v6348
        %v6350 = vmul.f32 %v6325, 1.442695
        %v6351 = vpow.pop %v6350
        %v6352 = vmul.f32 %v6326, 1.442695
        %v6353 = vpow.pop %v6352
        %v6354 = vmul.f32 %v6327, 1.442695
        %v6355 = vpow.pop %v6354
        %v6356 = vmul.f32 %v6328, 1.442695
        %v6357 = vpow.pop %v6356
        %v6358 = vmul.f32 %v6329, 1.442695
        %v6359 = vpow.pop %v6358
        %v6360 = vmul.f32 %v6330, 1.442695
        %v6361 = vpow.pop %v6360
        %v6362 = vmul.f32 %v6331, 1.442695
        %v6363 = vpow.pop %v6362
        %6364 = vadd.xlane.f32.xlu0 %v6333
        %v6365 = vpop.xlane.xlu0 %6364
        %6366 = vadd.xlane.f32.xlu0 %v6335
        %v6367 = vpop.xlane.xlu0 %6366
        %6368 = vadd.xlane.f32.xlu0 %v6337
        %v6369 = vpop.xlane.xlu0 %6368
        %6370 = vadd.xlane.f32.xlu0 %v6339
        %v6371 = vpop.xlane.xlu0 %6370
        %6372 = vadd.xlane.f32.xlu0 %v6341
        %v6373 = vpop.xlane.xlu0 %6372
        %6374 = vadd.xlane.f32.xlu0 %v6343
        %v6375 = vpop.xlane.xlu0 %6374
        %6376 = vadd.xlane.f32.xlu0 %v6345
        %v6377 = vpop.xlane.xlu0 %6376
        %6378 = vadd.xlane.f32.xlu0 %v6347
        %v6379 = vpop.xlane.xlu0 %6378
        %6380 = vadd.xlane.f32.xlu0 %v6349
        %v6381 = vpop.xlane.xlu0 %6380
        %6382 = vadd.xlane.f32.xlu0 %v6351
        %v6383 = vpop.xlane.xlu0 %6382
        %6384 = vadd.xlane.f32.xlu0 %v6353
        %v6385 = vpop.xlane.xlu0 %6384
        %6386 = vadd.xlane.f32.xlu0 %v6355
        %v6387 = vpop.xlane.xlu0 %6386
        %6388 = vadd.xlane.f32.xlu0 %v6357
        %v6389 = vpop.xlane.xlu0 %6388
        %6390 = vadd.xlane.f32.xlu0 %v6359
        %v6391 = vpop.xlane.xlu0 %6390
        %6392 = vadd.xlane.f32.xlu0 %v6361
        %v6393 = vpop.xlane.xlu0 %6392
        %6394 = vadd.xlane.f32.xlu0 %v6363
        %v6395 = vpop.xlane.xlu0 %6394
        %v6396 = vrcp.pop %v6365
        %v6397 = vrcp.pop %v6367
        %v6398 = vrcp.pop %v6369
        %v6399 = vrcp.pop %v6371
        %v6400 = vrcp.pop %v6373
        %v6401 = vrcp.pop %v6375
        %v6402 = vrcp.pop %v6377
        %v6403 = vrcp.pop %v6379
        %v6404 = vrcp.pop %v6381
        %v6405 = vrcp.pop %v6383
        %v6406 = vrcp.pop %v6385
        %v6407 = vrcp.pop %v6387
        %v6408 = vrcp.pop %v6389
        %v6409 = vrcp.pop %v6391
        %v6410 = vrcp.pop %v6393
        %v6411 = vrcp.pop %v6395
        %v6412 = vmul.f32 %v6333, %v6396
        %v6413 = vmul.f32 %v6335, %v6397
        %v6414 = vmul.f32 %v6337, %v6398
        %v6415 = vmul.f32 %v6339, %v6399
        %v6416 = vmul.f32 %v6341, %v6400
        %v6417 = vmul.f32 %v6343, %v6401
        %v6418 = vmul.f32 %v6345, %v6402
        %v6419 = vmul.f32 %v6347, %v6403
        %v6420 = vmul.f32 %v6349, %v6404
        %v6421 = vmul.f32 %v6351, %v6405
        %v6422 = vmul.f32 %v6353, %v6406
        %v6423 = vmul.f32 %v6355, %v6407
        %v6424 = vmul.f32 %v6357, %v6408
        %v6425 = vmul.f32 %v6359, %v6409
        %v6426 = vmul.f32 %v6361, %v6410
        %v6427 = vmul.f32 %v6363, %v6411
        %v6428 = vmul.f32 %v6190, %v6412
        %v6429 = vmul.f32 %v6193, %v6413
        %v6430 = vmul.f32 %v6198, %v6414
        %v6431 = vmul.f32 %v6201, %v6415
        %v6432 = vmul.f32 %v6206, %v6416
        %v6433 = vmul.f32 %v6209, %v6417
        %v6434 = vmul.f32 %v6214, %v6418
        %v6435 = vmul.f32 %v6217, %v6419
        %v6436 = vmul.f32 %v6222, %v6420
        %v6437 = vmul.f32 %v6225, %v6421
        %v6438 = vmul.f32 %v6230, %v6422
        %v6439 = vmul.f32 %v6233, %v6423
        %v6440 = vmul.f32 %v6238, %v6424
        %v6441 = vmul.f32 %v6241, %v6425
        %v6442 = vmul.f32 %v6246, %v6426
        %v6443 = vmul.f32 %v6249, %v6427
        %v6444 = vadd.f32 %v5874, %v6428
        %v6445 = vadd.f32 %v5875, %v6429
        %v6446 = vadd.f32 %v5876, %v6430
        %v6447 = vadd.f32 %v5877, %v6431
        %v6448 = vadd.f32 %v5878, %v6432
        %v6449 = vadd.f32 %v5879, %v6433
        %v6450 = vadd.f32 %v5880, %v6434
        %v6451 = vadd.f32 %v5881, %v6435
        %v6452 = vadd.f32 %v5882, %v6436
        %v6453 = vadd.f32 %v5883, %v6437
        %v6454 = vadd.f32 %v5884, %v6438
        %v6455 = vadd.f32 %v5885, %v6439
        %v6456 = vadd.f32 %v5886, %v6440
        %v6457 = vadd.f32 %v5887, %v6441
        %v6458 = vadd.f32 %v5888, %v6442
        %v6459 = vadd.f32 %v5889, %v6443
        %6460 = vadd.xlane.f32.xlu0 %v6444
        %v6461 = vpop.xlane.xlu0 %6460
        %6462 = vadd.xlane.f32.xlu0 %v6445
        %v6463 = vpop.xlane.xlu0 %6462
        %6464 = vadd.xlane.f32.xlu0 %v6446
        %v6465 = vpop.xlane.xlu0 %6464
        %6466 = vadd.xlane.f32.xlu0 %v6447
        %v6467 = vpop.xlane.xlu0 %6466
        %6468 = vadd.xlane.f32.xlu0 %v6448
        %v6469 = vpop.xlane.xlu0 %6468
        %6470 = vadd.xlane.f32.xlu0 %v6449
        %v6471 = vpop.xlane.xlu0 %6470
        %6472 = vadd.xlane.f32.xlu0 %v6450
        %v6473 = vpop.xlane.xlu0 %6472
        %6474 = vadd.xlane.f32.xlu0 %v6451
        %v6475 = vpop.xlane.xlu0 %6474
        %6476 = vadd.xlane.f32.xlu0 %v6452
        %v6477 = vpop.xlane.xlu0 %6476
        %6478 = vadd.xlane.f32.xlu0 %v6453
        %v6479 = vpop.xlane.xlu0 %6478
        %6480 = vadd.xlane.f32.xlu0 %v6454
        %v6481 = vpop.xlane.xlu0 %6480
        %6482 = vadd.xlane.f32.xlu0 %v6455
        %v6483 = vpop.xlane.xlu0 %6482
        %6484 = vadd.xlane.f32.xlu0 %v6456
        %v6485 = vpop.xlane.xlu0 %6484
        %6486 = vadd.xlane.f32.xlu0 %v6457
        %v6487 = vpop.xlane.xlu0 %6486
        %6488 = vadd.xlane.f32.xlu0 %v6458
        %v6489 = vpop.xlane.xlu0 %6488
        %6490 = vadd.xlane.f32.xlu0 %v6459
        %v6491 = vpop.xlane.xlu0 %6490
        %v6492 = vmul.f32 %v6461, 0.015625
        %v6493 = vmul.f32 %v6463, 0.015625
        %v6494 = vmul.f32 %v6465, 0.015625
        %v6495 = vmul.f32 %v6467, 0.015625
        %v6496 = vmul.f32 %v6469, 0.015625
        %v6497 = vmul.f32 %v6471, 0.015625
        %v6498 = vmul.f32 %v6473, 0.015625
        %v6499 = vmul.f32 %v6475, 0.015625
        %v6500 = vmul.f32 %v6477, 0.015625
        %v6501 = vmul.f32 %v6479, 0.015625
        %v6502 = vmul.f32 %v6481, 0.015625
        %v6503 = vmul.f32 %v6483, 0.015625
        %v6504 = vmul.f32 %v6485, 0.015625
        %v6505 = vmul.f32 %v6487, 0.015625
        %v6506 = vmul.f32 %v6489, 0.015625
        %v6507 = vmul.f32 %v6491, 0.015625
        %v6508 = vsub.f32 %v6444, %v6492
        %v6509 = vsub.f32 %v6445, %v6493
        %v6510 = vsub.f32 %v6446, %v6494
        %v6511 = vsub.f32 %v6447, %v6495
        %v6512 = vsub.f32 %v6448, %v6496
        %v6513 = vsub.f32 %v6449, %v6497
        %v6514 = vsub.f32 %v6450, %v6498
        %v6515 = vsub.f32 %v6451, %v6499
        %v6516 = vsub.f32 %v6452, %v6500
        %v6517 = vsub.f32 %v6453, %v6501
        %v6518 = vsub.f32 %v6454, %v6502
        %v6519 = vsub.f32 %v6455, %v6503
        %v6520 = vsub.f32 %v6456, %v6504
        %v6521 = vsub.f32 %v6457, %v6505
        %v6522 = vsub.f32 %v6458, %v6506
        %v6523 = vsub.f32 %v6459, %v6507
        %v6524 = vmul.f32 %v6508, %v6508
        %v6525 = vmul.f32 %v6509, %v6509
        %v6526 = vmul.f32 %v6510, %v6510
        %v6527 = vmul.f32 %v6511, %v6511
        %v6528 = vmul.f32 %v6512, %v6512
        %v6529 = vmul.f32 %v6513, %v6513
        %v6530 = vmul.f32 %v6514, %v6514
        %v6531 = vmul.f32 %v6515, %v6515
        %v6532 = vmul.f32 %v6516, %v6516
        %v6533 = vmul.f32 %v6517, %v6517
        %v6534 = vmul.f32 %v6518, %v6518
        %v6535 = vmul.f32 %v6519, %v6519
        %v6536 = vmul.f32 %v6520, %v6520
        %v6537 = vmul.f32 %v6521, %v6521
        %v6538 = vmul.f32 %v6522, %v6522
        %v6539 = vmul.f32 %v6523, %v6523
        %6540 = vadd.xlane.f32.xlu0 %v6524
        %v6541 = vpop.xlane.xlu0 %6540
        %6542 = vadd.xlane.f32.xlu0 %v6525
        %v6543 = vpop.xlane.xlu0 %6542
        %6544 = vadd.xlane.f32.xlu0 %v6526
        %v6545 = vpop.xlane.xlu0 %6544
        %6546 = vadd.xlane.f32.xlu0 %v6527
        %v6547 = vpop.xlane.xlu0 %6546
        %6548 = vadd.xlane.f32.xlu0 %v6528
        %v6549 = vpop.xlane.xlu0 %6548
        %6550 = vadd.xlane.f32.xlu0 %v6529
        %v6551 = vpop.xlane.xlu0 %6550
        %6552 = vadd.xlane.f32.xlu0 %v6530
        %v6553 = vpop.xlane.xlu0 %6552
        %6554 = vadd.xlane.f32.xlu0 %v6531
        %v6555 = vpop.xlane.xlu0 %6554
        %6556 = vadd.xlane.f32.xlu0 %v6532
        %v6557 = vpop.xlane.xlu0 %6556
        %6558 = vadd.xlane.f32.xlu0 %v6533
        %v6559 = vpop.xlane.xlu0 %6558
        %6560 = vadd.xlane.f32.xlu0 %v6534
        %v6561 = vpop.xlane.xlu0 %6560
        %6562 = vadd.xlane.f32.xlu0 %v6535
        %v6563 = vpop.xlane.xlu0 %6562
        %6564 = vadd.xlane.f32.xlu0 %v6536
        %v6565 = vpop.xlane.xlu0 %6564
        %6566 = vadd.xlane.f32.xlu0 %v6537
        %v6567 = vpop.xlane.xlu0 %6566
        %6568 = vadd.xlane.f32.xlu0 %v6538
        %v6569 = vpop.xlane.xlu0 %6568
        %6570 = vadd.xlane.f32.xlu0 %v6539
        %v6571 = vpop.xlane.xlu0 %6570
        %v6572 = vmul.f32 %v6492, 64.0
        %v6573 = vmul.f32 %v6493, 64.0
        %v6574 = vmul.f32 %v6494, 64.0
        %v6575 = vmul.f32 %v6495, 64.0
        %v6576 = vmul.f32 %v6496, 64.0
        %v6577 = vmul.f32 %v6497, 64.0
        %v6578 = vmul.f32 %v6498, 64.0
        %v6579 = vmul.f32 %v6499, 64.0
        %v6580 = vmul.f32 %v6500, 64.0
        %v6581 = vmul.f32 %v6501, 64.0
        %v6582 = vmul.f32 %v6502, 64.0
        %v6583 = vmul.f32 %v6503, 64.0
        %v6584 = vmul.f32 %v6504, 64.0
        %v6585 = vmul.f32 %v6505, 64.0
        %v6586 = vmul.f32 %v6506, 64.0
        %v6587 = vmul.f32 %v6507, 64.0
        %v6588 = vmul.f32 %v6572, %v6492
        %v6589 = vmul.f32 %v6573, %v6493
        %v6590 = vmul.f32 %v6574, %v6494
        %v6591 = vmul.f32 %v6575, %v6495
        %v6592 = vmul.f32 %v6576, %v6496
        %v6593 = vmul.f32 %v6577, %v6497
        %v6594 = vmul.f32 %v6578, %v6498
        %v6595 = vmul.f32 %v6579, %v6499
        %v6596 = vmul.f32 %v6580, %v6500
        %v6597 = vmul.f32 %v6581, %v6501
        %v6598 = vmul.f32 %v6582, %v6502
        %v6599 = vmul.f32 %v6583, %v6503
        %v6600 = vmul.f32 %v6584, %v6504
        %v6601 = vmul.f32 %v6585, %v6505
        %v6602 = vmul.f32 %v6586, %v6506
        %v6603 = vmul.f32 %v6587, %v6507
        %v6604 = vsub.f32 %v6541, %v6588
        %v6605 = vsub.f32 %v6543, %v6589
        %v6606 = vsub.f32 %v6545, %v6590
        %v6607 = vsub.f32 %v6547, %v6591
        %v6608 = vsub.f32 %v6549, %v6592
        %v6609 = vsub.f32 %v6551, %v6593
        %v6610 = vsub.f32 %v6553, %v6594
        %v6611 = vsub.f32 %v6555, %v6595
        %v6612 = vsub.f32 %v6557, %v6596
        %v6613 = vsub.f32 %v6559, %v6597
        %v6614 = vsub.f32 %v6561, %v6598
        %v6615 = vsub.f32 %v6563, %v6599
        %v6616 = vsub.f32 %v6565, %v6600
        %v6617 = vsub.f32 %v6567, %v6601
        %v6618 = vsub.f32 %v6569, %v6602
        %v6619 = vsub.f32 %v6571, %v6603
        %v6620 = vmul.f32 %v6604, 0.015625
        %v6621 = vmul.f32 %v6605, 0.015625
        %v6622 = vmul.f32 %v6606, 0.015625
        %v6623 = vmul.f32 %v6607, 0.015625
        %v6624 = vmul.f32 %v6608, 0.015625
        %v6625 = vmul.f32 %v6609, 0.015625
        %v6626 = vmul.f32 %v6610, 0.015625
        %v6627 = vmul.f32 %v6611, 0.015625
        %v6628 = vmul.f32 %v6612, 0.015625
        %v6629 = vmul.f32 %v6613, 0.015625
        %v6630 = vmul.f32 %v6614, 0.015625
        %v6631 = vmul.f32 %v6615, 0.015625
        %v6632 = vmul.f32 %v6616, 0.015625
        %v6633 = vmul.f32 %v6617, 0.015625
        %v6634 = vmul.f32 %v6618, 0.015625
        %v6635 = vmul.f32 %v6619, 0.015625
        %v6636 = vadd.f32 %v6620, 1e-05
        %v6637 = vadd.f32 %v6621, 1e-05
        %v6638 = vadd.f32 %v6622, 1e-05
        %v6639 = vadd.f32 %v6623, 1e-05
        %v6640 = vadd.f32 %v6624, 1e-05
        %v6641 = vadd.f32 %v6625, 1e-05
        %v6642 = vadd.f32 %v6626, 1e-05
        %v6643 = vadd.f32 %v6627, 1e-05
        %v6644 = vadd.f32 %v6628, 1e-05
        %v6645 = vadd.f32 %v6629, 1e-05
        %v6646 = vadd.f32 %v6630, 1e-05
        %v6647 = vadd.f32 %v6631, 1e-05
        %v6648 = vadd.f32 %v6632, 1e-05
        %v6649 = vadd.f32 %v6633, 1e-05
        %v6650 = vadd.f32 %v6634, 1e-05
        %v6651 = vadd.f32 %v6635, 1e-05
        %v6652 = vrsqrt.pop %v6636
        %v6653 = vrsqrt.pop %v6637
        %v6654 = vrsqrt.pop %v6638
        %v6655 = vrsqrt.pop %v6639
        %v6656 = vrsqrt.pop %v6640
        %v6657 = vrsqrt.pop %v6641
        %v6658 = vrsqrt.pop %v6642
        %v6659 = vrsqrt.pop %v6643
        %v6660 = vrsqrt.pop %v6644
        %v6661 = vrsqrt.pop %v6645
        %v6662 = vrsqrt.pop %v6646
        %v6663 = vrsqrt.pop %v6647
        %v6664 = vrsqrt.pop %v6648
        %v6665 = vrsqrt.pop %v6649
        %v6666 = vrsqrt.pop %v6650
        %v6667 = vrsqrt.pop %v6651
        %v6668 = vmul.f32 %v6508, %v6652
        %v6669 = vmul.f32 %v6509, %v6653
        %v6670 = vmul.f32 %v6510, %v6654
        %v6671 = vmul.f32 %v6511, %v6655
        %v6672 = vmul.f32 %v6512, %v6656
        %v6673 = vmul.f32 %v6513, %v6657
        %v6674 = vmul.f32 %v6514, %v6658
        %v6675 = vmul.f32 %v6515, %v6659
        %v6676 = vmul.f32 %v6516, %v6660
        %v6677 = vmul.f32 %v6517, %v6661
        %v6678 = vmul.f32 %v6518, %v6662
        %v6679 = vmul.f32 %v6519, %v6663
        %v6680 = vmul.f32 %v6520, %v6664
        %v6681 = vmul.f32 %v6521, %v6665
        %v6682 = vmul.f32 %v6522, %v6666
        %v6683 = vmul.f32 %v6523, %v6667
        %v6684 = vlaneseq
        %v6685 = vshrl.u32 %v6684, 7
        %v6686 = vsub.s32 1, %v6685
        %v6687 = vrot.slane %v5684, %v6686
        %v6688 = vmul.f32 %v6668, %v6687
        %v6689 = vmul.f32 %v6669, %v6687
        %v6690 = vmul.f32 %v6670, %v6687
        %v6691 = vmul.f32 %v6671, %v6687
        %v6692 = vmul.f32 %v6672, %v6687
        %v6693 = vmul.f32 %v6673, %v6687
        %v6694 = vmul.f32 %v6674, %v6687
        %v6695 = vmul.f32 %v6675, %v6687
        %v6696 = vmul.f32 %v6676, %v6687
        %v6697 = vmul.f32 %v6677, %v6687
        %v6698 = vmul.f32 %v6678, %v6687
        %v6699 = vmul.f32 %v6679, %v6687
        %v6700 = vmul.f32 %v6680, %v6687
        %v6701 = vmul.f32 %v6681, %v6687
        %v6702 = vmul.f32 %v6682, %v6687
        %v6703 = vmul.f32 %v6683, %v6687
        %v6704 = vlaneseq
        %v6705 = vshrl.u32 %v6704, 7
        %v6706 = vsub.s32 2, %v6705
        %v6707 = vrot.slane %v5684, %v6706
        %v6708 = vadd.f32 %v6688, %v6707
        %v6709 = vadd.f32 %v6689, %v6707
        %v6710 = vadd.f32 %v6690, %v6707
        %v6711 = vadd.f32 %v6691, %v6707
        %v6712 = vadd.f32 %v6692, %v6707
        %v6713 = vadd.f32 %v6693, %v6707
        %v6714 = vadd.f32 %v6694, %v6707
        %v6715 = vadd.f32 %v6695, %v6707
        %v6716 = vadd.f32 %v6696, %v6707
        %v6717 = vadd.f32 %v6697, %v6707
        %v6718 = vadd.f32 %v6698, %v6707
        %v6719 = vadd.f32 %v6699, %v6707
        %v6720 = vadd.f32 %v6700, %v6707
        %v6721 = vadd.f32 %v6701, %v6707
        %v6722 = vadd.f32 %v6702, %v6707
        %v6723 = vadd.f32 %v6703, %v6707
        %v6724 = vadd.f32 %v6708, %v3541
        %v6725 = vadd.f32 %v6709, %v3542
        %v6726 = vadd.f32 %v6710, %v3543
        %v6727 = vadd.f32 %v6711, %v3544
        %v6728 = vadd.f32 %v6712, %v3545
        %v6729 = vadd.f32 %v6713, %v3546
        %v6730 = vadd.f32 %v6714, %v3547
        %v6731 = vadd.f32 %v6715, %v3548
        %v6732 = vadd.f32 %v6716, %v3549
        %v6733 = vadd.f32 %v6717, %v3550
        %v6734 = vadd.f32 %v6718, %v3551
        %v6735 = vadd.f32 %v6719, %v3552
        %v6736 = vadd.f32 %v6720, %v3553
        %v6737 = vadd.f32 %v6721, %v3554
        %v6738 = vadd.f32 %v6722, %v3555
        %v6739 = vadd.f32 %v6723, %v3556
        %s6740 = scalar_lea.vmem [#allocation5], 256
        %v6741 = vld [vmem:[%s6740] sm:$0xf]
        %v6742 = vld [vmem:[%s6740 + $0x4] sm:$0xf]
        %v6743 = vld [vmem:[%s6740 + $0x8] sm:$0xf]
        %v6744 = vld [vmem:[%s6740 + $0xc] sm:$0xf]
        %v6745 = vld [vmem:[%s6740 + $0x10] sm:$0xf]
        %v6746 = vld [vmem:[%s6740 + $0x14] sm:$0xf]
        %v6747 = vld [vmem:[%s6740 + $0x18] sm:$0xf]
        %v6748 = vld [vmem:[%s6740 + $0x1c] sm:$0xf]
        %v6749 = vld [vmem:[%s6740 + $0x20] sm:$0xf]
        %v6750 = vld [vmem:[%s6740 + $0x24] sm:$0xf]
        %v6751 = vld [vmem:[%s6740 + $0x28] sm:$0xf]
        %v6752 = vld [vmem:[%s6740 + $0x2c] sm:$0xf]
        %v6753 = vld [vmem:[%s6740 + $0x30] sm:$0xf]
        %v6754 = vld [vmem:[%s6740 + $0x34] sm:$0xf]
        %v6755 = vld [vmem:[%s6740 + $0x38] sm:$0xf]
        %v6756 = vld [vmem:[%s6740 + $0x3c] sm:$0xf]
        %s6757 = scalar_lea.vmem [#allocation7], 768
        %v6758 = vld [vmem:[%s6757] sm:$0xff]
        %v6759 = vld [vmem:[%s6757 + $0x8] sm:$0xf]
        %v6760 = vld [vmem:[%s6757 + $0xc] sm:$0xff]
        %v6761 = vld [vmem:[%s6757 + $0x14] sm:$0xf]
        %v6762 = vld [vmem:[%s6757 + $0x18] sm:$0xff]
        %v6763 = vld [vmem:[%s6757 + $0x20] sm:$0xf]
        %v6764 = vld [vmem:[%s6757 + $0x24] sm:$0xff]
        %v6765 = vld [vmem:[%s6757 + $0x2c] sm:$0xf]
        %v6766 = vld [vmem:[%s6757 + $0x30] sm:$0xff]
        %v6767 = vld [vmem:[%s6757 + $0x38] sm:$0xf]
        %v6768 = vld [vmem:[%s6757 + $0x3c] sm:$0xff]
        %v6769 = vld [vmem:[%s6757 + $0x44] sm:$0xf]
        %v6770 = vld [vmem:[%s6757 + $0x48] sm:$0xff]
        %v6771 = vld [vmem:[%s6757 + $0x50] sm:$0xf]
        %v6772 = vld [vmem:[%s6757 + $0x54] sm:$0xff]
        %v6773 = vld [vmem:[%s6757 + $0x5c] sm:$0xf]
        %v6774 = vld [vmem:[%s6757 + $0x60] sm:$0xff]
        %v6775 = vld [vmem:[%s6757 + $0x68] sm:$0xf]
        %v6776 = vld [vmem:[%s6757 + $0x6c] sm:$0xff]
        %v6777 = vld [vmem:[%s6757 + $0x74] sm:$0xf]
        %v6778 = vld [vmem:[%s6757 + $0x78] sm:$0xff]
        %v6779 = vld [vmem:[%s6757 + $0x80] sm:$0xf]
        %v6780 = vld [vmem:[%s6757 + $0x84] sm:$0xff]
        %v6781 = vld [vmem:[%s6757 + $0x8c] sm:$0xf]
        %v6782 = vld [vmem:[%s6757 + $0x90] sm:$0xff]
        %v6783 = vld [vmem:[%s6757 + $0x98] sm:$0xf]
        %v6784 = vld [vmem:[%s6757 + $0x9c] sm:$0xff]
        %v6785 = vld [vmem:[%s6757 + $0xa4] sm:$0xf]
        %v6786 = vld [vmem:[%s6757 + $0xa8] sm:$0xff]
        %v6787 = vld [vmem:[%s6757 + $0xb0] sm:$0xf]
        %v6788 = vld [vmem:[%s6757 + $0xb4] sm:$0xff]
        %v6789 = vld [vmem:[%s6757 + $0xbc] sm:$0xf]
        %s6790 = scalar_lea.vmem [#allocation8], 12
        %v6791 = vld [vmem:[%s6790] sm:$0x7]
        %s6792 = scalar_lea.vmem [#allocation10], 32
        %v6793 = vld [vmem:[%s6792] sm:$0xff]
        %v6794 = vpack.c.bf16 %v6725, %v6724
        %v6795 = vpack.c.bf16 %v6727, %v6726
        %v6796 = vpack.c.bf16 %v6729, %v6728
        %v6797 = vpack.c.bf16 %v6731, %v6730
        %v6798 = vpack.c.bf16 %v6733, %v6732
        %v6799 = vpack.c.bf16 %v6735, %v6734
        %v6800 = vpack.c.bf16 %v6737, %v6736
        %v6801 = vpack.c.bf16 %v6739, %v6738
        %v6802 = vlaneseq
        %v6803 = vshrl.u32 %v6802, 7
        %v6804 = vsub.s32 0, %v6803
        %v6805 = vrot.slane %v6793, %v6804
        %v6822 = vunpack.c.l.b16 %v6741
        %v6823 = vunpack.c.l.b16 %v6742
        %v6824 = vunpack.c.l.b16 %v6743
        %v6825 = vunpack.c.l.b16 %v6744
        %v6826 = vunpack.c.l.b16 %v6745
        %v6827 = vunpack.c.l.b16 %v6746
        %v6828 = vunpack.c.l.b16 %v6747
        %v6829 = vunpack.c.l.b16 %v6748
        %v6830 = vunpack.c.l.b16 %v6749
        %v6831 = vunpack.c.l.b16 %v6750
        %v6832 = vunpack.c.l.b16 %v6751
        %v6833 = vunpack.c.l.b16 %v6752
        %v6834 = vunpack.c.l.b16 %v6753
        %v6835 = vunpack.c.l.b16 %v6754
        %v6836 = vunpack.c.l.b16 %v6755
        %v6837 = vunpack.c.l.b16 %v6756
        %v6838 = vpack.c.b16 %v6823, %v6822
        %v6839 = vpack.c.b16 %v6825, %v6824
        %v6840 = vpack.c.b16 %v6827, %v6826
        %v6841 = vpack.c.b16 %v6829, %v6828
        %v6842 = vpack.c.b16 %v6831, %v6830
        %v6843 = vpack.c.b16 %v6833, %v6832
        %v6844 = vpack.c.b16 %v6835, %v6834
        %v6845 = vpack.c.b16 %v6837, %v6836
        %6854 = vmatprep.subr.bf16.mxu0 0
        %6855 = vmatpush1.bf16.msra.mxu0 %v6845
        %6856 = vmatprep.subr.bf16.mxu0 0
        %6857 = vmatpush1.bf16.msra.mxu0 %v6844
        %6858 = vmatprep.subr.bf16.mxu0 0
        %6859 = vmatpush1.bf16.msra.mxu0 %v6843
        %6860 = vmatprep.subr.bf16.mxu0 0
        %6861 = vmatpush1.bf16.msra.mxu0 %v6842
        %6862 = vmatprep.subr.bf16.mxu0 0
        %6863 = vmatpush1.bf16.msra.mxu0 %v6841
        %6864 = vmatprep.subr.bf16.mxu0 0
        %6865 = vmatpush1.bf16.msra.mxu0 %v6840
        %6866 = vmatprep.subr.bf16.mxu0 0
        %6867 = vmatpush1.bf16.msra.mxu0 %v6839
        %6868 = vmatprep.subr.bf16.mxu0 0
        %6869 = vmatpush1.bf16.msra.mxu0 %v6838
        %6870 = vmatprep.subr.bf16.mxu0 0
        %6871 = vmatpush2.bf16.msra.mxu0 0
        %6872 = vmatprep.subr.bf16.mxu0 0
        %6873 = vmatpush2.bf16.msra.mxu0 0
        %6874 = vmatprep.subr.bf16.mxu0 0
        %6875 = vmatpush2.bf16.msra.mxu0 0
        %6876 = vmatprep.subr.bf16.mxu0 0
        %6877 = vmatpush2.bf16.msra.mxu0 0
        %6878 = vmatprep.subr.bf16.mxu0 0
        %6879 = vmatpush2.bf16.msra.mxu0 0
        %6880 = vmatprep.subr.bf16.mxu0 0
        %6881 = vmatpush2.bf16.msra.mxu0 0
        %6882 = vmatprep.subr.bf16.mxu0 0
        %6883 = vmatpush2.bf16.msra.mxu0 0
        %6884 = vmatprep.subr.bf16.mxu0 0
        %6885 = vmatpush2.bf16.msra.mxu0 0
        %6886 = vmatprep.mubr.bf16.mxu0 0
        %6887 = vmatmul.mubr.bf16.gmra.mxu0 %v6794
        %v6888 = vpop.f32.mrf.mxu0
        %v6889 = vadd.f32 %v6805, %v6888
        %v6890 = vpop.f32.mrf.mxu0
        %v6891 = vpop.f32.mrf.mxu0
        %v6892 = vadd.f32 %v6805, %v6891
        %v6893 = vpop.f32.mrf.mxu0
        %6894 = vmatprep.mubr.bf16.mxu0 0
        %6895 = vmatmul.mubr.bf16.gmra.mxu0 %v6795
        %v6896 = vpop.f32.mrf.mxu0
        %v6897 = vadd.f32 %v6805, %v6896
        %v6898 = vpop.f32.mrf.mxu0
        %v6899 = vpop.f32.mrf.mxu0
        %v6900 = vadd.f32 %v6805, %v6899
        %v6901 = vpop.f32.mrf.mxu0
        %6902 = vmatprep.mubr.bf16.mxu0 0
        %6903 = vmatmul.mubr.bf16.gmra.mxu0 %v6796
        %v6904 = vpop.f32.mrf.mxu0
        %v6905 = vadd.f32 %v6805, %v6904
        %v6906 = vpop.f32.mrf.mxu0
        %v6907 = vpop.f32.mrf.mxu0
        %v6908 = vadd.f32 %v6805, %v6907
        %v6909 = vpop.f32.mrf.mxu0
        %6910 = vmatprep.mubr.bf16.mxu0 0
        %6911 = vmatmul.mubr.bf16.gmra.mxu0 %v6797
        %v6912 = vpop.f32.mrf.mxu0
        %v6913 = vadd.f32 %v6805, %v6912
        %v6914 = vpop.f32.mrf.mxu0
        %v6915 = vpop.f32.mrf.mxu0
        %v6916 = vadd.f32 %v6805, %v6915
        %v6917 = vpop.f32.mrf.mxu0
        %6918 = vmatprep.mubr.bf16.mxu0 0
        %6919 = vmatmul.mubr.bf16.gmra.mxu0 %v6798
        %v6920 = vpop.f32.mrf.mxu0
        %v6921 = vadd.f32 %v6805, %v6920
        %v6922 = vpop.f32.mrf.mxu0
        %v6923 = vpop.f32.mrf.mxu0
        %v6924 = vadd.f32 %v6805, %v6923
        %v6925 = vpop.f32.mrf.mxu0
        %6926 = vmatprep.mubr.bf16.mxu0 0
        %6927 = vmatmul.mubr.bf16.gmra.mxu0 %v6799
        %v6928 = vpop.f32.mrf.mxu0
        %v6929 = vadd.f32 %v6805, %v6928
        %v6930 = vpop.f32.mrf.mxu0
        %v6931 = vpop.f32.mrf.mxu0
        %v6932 = vadd.f32 %v6805, %v6931
        %v6933 = vpop.f32.mrf.mxu0
        %6934 = vmatprep.mubr.bf16.mxu0 0
        %6935 = vmatmul.mubr.bf16.gmra.mxu0 %v6800
        %v6936 = vpop.f32.mrf.mxu0
        %v6937 = vadd.f32 %v6805, %v6936
        %v6938 = vpop.f32.mrf.mxu0
        %v6939 = vpop.f32.mrf.mxu0
        %v6940 = vadd.f32 %v6805, %v6939
        %v6941 = vpop.f32.mrf.mxu0
        %6942 = vmatprep.mubr.bf16.mxu0 0
        %6943 = vmatmul.mubr.bf16.gmra.mxu0 %v6801
        %v6944 = vpop.f32.mrf.mxu0
        %v6945 = vadd.f32 %v6805, %v6944
        %v6946 = vpop.f32.mrf.mxu0
        %v6947 = vpop.f32.mrf.mxu0
        %v6948 = vadd.f32 %v6805, %v6947
        %v6949 = vpop.f32.mrf.mxu0
        %6950 = vdwg.mxu0
        %vm6951 = vcmp.ge.f32.partialorder %v6889, 0.0
        %vm6952 = vcmp.ge.f32.partialorder %v6892, 0.0
        %vm6953 = vcmp.ge.f32.partialorder %v6897, 0.0
        %vm6954 = vcmp.ge.f32.partialorder %v6900, 0.0
        %vm6955 = vcmp.ge.f32.partialorder %v6905, 0.0
        %vm6956 = vcmp.ge.f32.partialorder %v6908, 0.0
        %vm6957 = vcmp.ge.f32.partialorder %v6913, 0.0
        %vm6958 = vcmp.ge.f32.partialorder %v6916, 0.0
        %vm6959 = vcmp.ge.f32.partialorder %v6921, 0.0
        %vm6960 = vcmp.ge.f32.partialorder %v6924, 0.0
        %vm6961 = vcmp.ge.f32.partialorder %v6929, 0.0
        %vm6962 = vcmp.ge.f32.partialorder %v6932, 0.0
        %vm6963 = vcmp.ge.f32.partialorder %v6937, 0.0
        %vm6964 = vcmp.ge.f32.partialorder %v6940, 0.0
        %vm6965 = vcmp.ge.f32.partialorder %v6945, 0.0
        %vm6966 = vcmp.ge.f32.partialorder %v6948, 0.0
        %v6967 = vmul.f32 %v6889, 0.2
        %v6968 = vmul.f32 %v6892, 0.2
        %v6969 = vmul.f32 %v6897, 0.2
        %v6970 = vmul.f32 %v6900, 0.2
        %v6971 = vmul.f32 %v6905, 0.2
        %v6972 = vmul.f32 %v6908, 0.2
        %v6973 = vmul.f32 %v6913, 0.2
        %v6974 = vmul.f32 %v6916, 0.2
        %v6975 = vmul.f32 %v6921, 0.2
        %v6976 = vmul.f32 %v6924, 0.2
        %v6977 = vmul.f32 %v6929, 0.2
        %v6978 = vmul.f32 %v6932, 0.2
        %v6979 = vmul.f32 %v6937, 0.2
        %v6980 = vmul.f32 %v6940, 0.2
        %v6981 = vmul.f32 %v6945, 0.2
        %v6982 = vmul.f32 %v6948, 0.2
        %v6983 = vsel %vm6951, %v6889, %v6967
        %v6984 = vsel %vm6952, %v6892, %v6968
        %v6985 = vsel %vm6953, %v6897, %v6969
        %v6986 = vsel %vm6954, %v6900, %v6970
        %v6987 = vsel %vm6955, %v6905, %v6971
        %v6988 = vsel %vm6956, %v6908, %v6972
        %v6989 = vsel %vm6957, %v6913, %v6973
        %v6990 = vsel %vm6958, %v6916, %v6974
        %v6991 = vsel %vm6959, %v6921, %v6975
        %v6992 = vsel %vm6960, %v6924, %v6976
        %v6993 = vsel %vm6961, %v6929, %v6977
        %v6994 = vsel %vm6962, %v6932, %v6978
        %v6995 = vsel %vm6963, %v6937, %v6979
        %v6996 = vsel %vm6964, %v6940, %v6980
        %v6997 = vsel %vm6965, %v6945, %v6981
        %v6998 = vsel %vm6966, %v6948, %v6982
        %v6999 = vpack.c.bf16 %v6984, %v6983
        %v7000 = vpack.c.bf16 %v6986, %v6985
        %v7001 = vpack.c.bf16 %v6988, %v6987
        %v7002 = vpack.c.bf16 %v6990, %v6989
        %v7003 = vpack.c.bf16 %v6992, %v6991
        %v7004 = vpack.c.bf16 %v6994, %v6993
        %v7005 = vpack.c.bf16 %v6996, %v6995
        %v7006 = vpack.c.bf16 %v6998, %v6997
        %v7008 = vlaneseq
        %v7009 = vshrl.u32 %v7008, 7
        %v7010 = vsub.s32 0, %v7009
        %v7011 = vrot.slane %v6791, %v7010
        %v7012 = vlaneseq
        %v7013 = vshrl.u32 %v7012, 7
        %v7014 = vsub.s32 1, %v7013
        %v7015 = vrot.slane %v6791, %v7014
        %v7016 = vlaneseq
        %v7017 = vshrl.u32 %v7016, 7
        %v7018 = vsub.s32 2, %v7017
        %v7019 = vrot.slane %v6791, %v7018
        %v7055 = vunpack.c.l.b16 %v6758
        %v7056 = vunpack.c.h.b16 %v6758
        %v7057 = vunpack.c.l.b16 %v6759
        %v7058 = vunpack.c.l.b16 %v6760
        %v7059 = vunpack.c.h.b16 %v6760
        %v7060 = vunpack.c.l.b16 %v6761
        %v7061 = vunpack.c.l.b16 %v6762
        %v7062 = vunpack.c.h.b16 %v6762
        %v7063 = vunpack.c.l.b16 %v6763
        %v7064 = vunpack.c.l.b16 %v6764
        %v7065 = vunpack.c.h.b16 %v6764
        %v7066 = vunpack.c.l.b16 %v6765
        %v7067 = vunpack.c.l.b16 %v6766
        %v7068 = vunpack.c.h.b16 %v6766
        %v7069 = vunpack.c.l.b16 %v6767
        %v7070 = vunpack.c.l.b16 %v6768
        %v7071 = vunpack.c.h.b16 %v6768
        %v7072 = vunpack.c.l.b16 %v6769
        %v7073 = vunpack.c.l.b16 %v6770
        %v7074 = vunpack.c.h.b16 %v6770
        %v7075 = vunpack.c.l.b16 %v6771
        %v7076 = vunpack.c.l.b16 %v6772
        %v7077 = vunpack.c.h.b16 %v6772
        %v7078 = vunpack.c.l.b16 %v6773
        %v7079 = vunpack.c.l.b16 %v6774
        %v7080 = vunpack.c.h.b16 %v6774
        %v7081 = vunpack.c.l.b16 %v6775
        %v7082 = vunpack.c.l.b16 %v6776
        %v7083 = vunpack.c.h.b16 %v6776
        %v7084 = vunpack.c.l.b16 %v6777
        %v7085 = vunpack.c.l.b16 %v6778
        %v7086 = vunpack.c.h.b16 %v6778
        %v7087 = vunpack.c.l.b16 %v6779
        %v7088 = vunpack.c.l.b16 %v6780
        %v7089 = vunpack.c.h.b16 %v6780
        %v7090 = vunpack.c.l.b16 %v6781
        %v7091 = vunpack.c.l.b16 %v6782
        %v7092 = vunpack.c.h.b16 %v6782
        %v7093 = vunpack.c.l.b16 %v6783
        %v7094 = vunpack.c.l.b16 %v6784
        %v7095 = vunpack.c.h.b16 %v6784
        %v7096 = vunpack.c.l.b16 %v6785
        %v7097 = vunpack.c.l.b16 %v6786
        %v7098 = vunpack.c.h.b16 %v6786
        %v7099 = vunpack.c.l.b16 %v6787
        %v7100 = vunpack.c.l.b16 %v6788
        %v7101 = vunpack.c.h.b16 %v6788
        %v7102 = vunpack.c.l.b16 %v6789
        %v7103 = vpack.c.b16 %v7058, %v7055
        %v7104 = vpack.c.b16 %v7059, %v7056
        %v7105 = vpack.c.b16 %v7060, %v7057
        %v7106 = vpack.c.b16 %v7064, %v7061
        %v7107 = vpack.c.b16 %v7065, %v7062
        %v7108 = vpack.c.b16 %v7066, %v7063
        %v7109 = vpack.c.b16 %v7070, %v7067
        %v7110 = vpack.c.b16 %v7071, %v7068
        %v7111 = vpack.c.b16 %v7072, %v7069
        %v7112 = vpack.c.b16 %v7076, %v7073
        %v7113 = vpack.c.b16 %v7077, %v7074
        %v7114 = vpack.c.b16 %v7078, %v7075
        %v7115 = vpack.c.b16 %v7082, %v7079
        %v7116 = vpack.c.b16 %v7083, %v7080
        %v7117 = vpack.c.b16 %v7084, %v7081
        %v7118 = vpack.c.b16 %v7088, %v7085
        %v7119 = vpack.c.b16 %v7089, %v7086
        %v7120 = vpack.c.b16 %v7090, %v7087
        %v7121 = vpack.c.b16 %v7094, %v7091
        %v7122 = vpack.c.b16 %v7095, %v7092
        %v7123 = vpack.c.b16 %v7096, %v7093
        %v7124 = vpack.c.b16 %v7100, %v7097
        %v7125 = vpack.c.b16 %v7101, %v7098
        %v7126 = vpack.c.b16 %v7102, %v7099
        %7151 = vmatprep.subr.bf16.mxu0 %v7125
        %7152 = vmatpush1.bf16.msra.mxu0 %v7124
        %7153 = vmatprep.subr.bf16.mxu0 %v7122
        %7154 = vmatpush1.bf16.msra.mxu0 %v7121
        %7155 = vmatprep.subr.bf16.mxu0 %v7119
        %7156 = vmatpush1.bf16.msra.mxu0 %v7118
        %7157 = vmatprep.subr.bf16.mxu0 %v7116
        %7158 = vmatpush1.bf16.msra.mxu0 %v7115
        %7159 = vmatprep.subr.bf16.mxu0 %v7113
        %7160 = vmatpush1.bf16.msra.mxu0 %v7112
        %7161 = vmatprep.subr.bf16.mxu0 %v7110
        %7162 = vmatpush1.bf16.msra.mxu0 %v7109
        %7163 = vmatprep.subr.bf16.mxu0 %v7107
        %7164 = vmatpush1.bf16.msra.mxu0 %v7106
        %7165 = vmatprep.subr.bf16.mxu0 %v7104
        %7166 = vmatpush1.bf16.msra.mxu0 %v7103
        %7167 = vmatprep.subr.bf16.mxu0 0
        %7168 = vmatpush2.bf16.msra.mxu0 0
        %7169 = vmatprep.subr.bf16.mxu0 0
        %7170 = vmatpush2.bf16.msra.mxu0 0
        %7171 = vmatprep.subr.bf16.mxu0 0
        %7172 = vmatpush2.bf16.msra.mxu0 0
        %7173 = vmatprep.subr.bf16.mxu0 0
        %7174 = vmatpush2.bf16.msra.mxu0 0
        %7175 = vmatprep.subr.bf16.mxu0 0
        %7176 = vmatpush2.bf16.msra.mxu0 0
        %7177 = vmatprep.subr.bf16.mxu0 0
        %7178 = vmatpush2.bf16.msra.mxu0 0
        %7179 = vmatprep.subr.bf16.mxu0 0
        %7180 = vmatpush2.bf16.msra.mxu0 0
        %7181 = vmatprep.subr.bf16.mxu0 0
        %7182 = vmatpush2.bf16.msra.mxu0 0
        %7183 = vmatprep.mubr.bf16.mxu0 0
        %7184 = vmatmul.mubr.bf16.gmra.mxu0 %v6999
        %v7185 = vpop.f32.mrf.mxu0
        %v7186 = vadd.f32 %v7011, %v7185
        %v7187 = vpop.f32.mrf.mxu0
        %v7188 = vadd.f32 %v7015, %v7187
        %v7189 = vpop.f32.mrf.mxu0
        %v7190 = vadd.f32 %v7011, %v7189
        %v7191 = vpop.f32.mrf.mxu0
        %v7192 = vadd.f32 %v7015, %v7191
        %7193 = vmatprep.mubr.bf16.mxu0 0
        %7194 = vmatmul.mubr.bf16.gmra.mxu0 %v7000
        %v7195 = vpop.f32.mrf.mxu0
        %v7196 = vadd.f32 %v7011, %v7195
        %v7197 = vpop.f32.mrf.mxu0
        %v7198 = vadd.f32 %v7015, %v7197
        %v7199 = vpop.f32.mrf.mxu0
        %v7200 = vadd.f32 %v7011, %v7199
        %v7201 = vpop.f32.mrf.mxu0
        %v7202 = vadd.f32 %v7015, %v7201
        %7203 = vmatprep.mubr.bf16.mxu0 0
        %7204 = vmatmul.mubr.bf16.gmra.mxu0 %v7001
        %v7205 = vpop.f32.mrf.mxu0
        %v7206 = vadd.f32 %v7011, %v7205
        %v7207 = vpop.f32.mrf.mxu0
        %v7208 = vadd.f32 %v7015, %v7207
        %v7209 = vpop.f32.mrf.mxu0
        %v7210 = vadd.f32 %v7011, %v7209
        %v7211 = vpop.f32.mrf.mxu0
        %v7212 = vadd.f32 %v7015, %v7211
        %7213 = vmatprep.mubr.bf16.mxu0 0
        %7214 = vmatmul.mubr.bf16.gmra.mxu0 %v7002
        %v7215 = vpop.f32.mrf.mxu0
        %v7216 = vadd.f32 %v7011, %v7215
        %v7217 = vpop.f32.mrf.mxu0
        %v7218 = vadd.f32 %v7015, %v7217
        %v7219 = vpop.f32.mrf.mxu0
        %v7220 = vadd.f32 %v7011, %v7219
        %v7221 = vpop.f32.mrf.mxu0
        %v7222 = vadd.f32 %v7015, %v7221
        %7223 = vmatprep.mubr.bf16.mxu0 0
        %7224 = vmatmul.mubr.bf16.gmra.mxu0 %v7003
        %v7225 = vpop.f32.mrf.mxu0
        %v7226 = vadd.f32 %v7011, %v7225
        %v7227 = vpop.f32.mrf.mxu0
        %v7228 = vadd.f32 %v7015, %v7227
        %v7229 = vpop.f32.mrf.mxu0
        %v7230 = vadd.f32 %v7011, %v7229
        %v7231 = vpop.f32.mrf.mxu0
        %v7232 = vadd.f32 %v7015, %v7231
        %7233 = vmatprep.mubr.bf16.mxu0 0
        %7234 = vmatmul.mubr.bf16.gmra.mxu0 %v7004
        %v7235 = vpop.f32.mrf.mxu0
        %v7236 = vadd.f32 %v7011, %v7235
        %v7237 = vpop.f32.mrf.mxu0
        %v7238 = vadd.f32 %v7015, %v7237
        %v7239 = vpop.f32.mrf.mxu0
        %v7240 = vadd.f32 %v7011, %v7239
        %v7241 = vpop.f32.mrf.mxu0
        %v7242 = vadd.f32 %v7015, %v7241
        %7243 = vmatprep.mubr.bf16.mxu0 0
        %7244 = vmatmul.mubr.bf16.gmra.mxu0 %v7005
        %v7245 = vpop.f32.mrf.mxu0
        %v7246 = vadd.f32 %v7011, %v7245
        %v7247 = vpop.f32.mrf.mxu0
        %v7248 = vadd.f32 %v7015, %v7247
        %v7249 = vpop.f32.mrf.mxu0
        %v7250 = vadd.f32 %v7011, %v7249
        %v7251 = vpop.f32.mrf.mxu0
        %v7252 = vadd.f32 %v7015, %v7251
        %7253 = vmatprep.mubr.bf16.mxu0 0
        %7254 = vmatmul.mubr.bf16.gmra.mxu0 %v7006
        %v7255 = vpop.f32.mrf.mxu0
        %v7256 = vadd.f32 %v7011, %v7255
        %v7257 = vpop.f32.mrf.mxu0
        %v7258 = vadd.f32 %v7015, %v7257
        %v7259 = vpop.f32.mrf.mxu0
        %v7260 = vadd.f32 %v7011, %v7259
        %v7261 = vpop.f32.mrf.mxu0
        %v7262 = vadd.f32 %v7015, %v7261
        %7263 = vdwg.mxu0
        %7264 = vmatprep.subr.bf16.mxu0 0
        %7265 = vmatpush1.bf16.msra.mxu0 %v7126
        %7266 = vmatprep.subr.bf16.mxu0 0
        %7267 = vmatpush1.bf16.msra.mxu0 %v7123
        %7268 = vmatprep.subr.bf16.mxu0 0
        %7269 = vmatpush1.bf16.msra.mxu0 %v7120
        %7270 = vmatprep.subr.bf16.mxu0 0
        %7271 = vmatpush1.bf16.msra.mxu0 %v7117
        %7272 = vmatprep.subr.bf16.mxu0 0
        %7273 = vmatpush1.bf16.msra.mxu0 %v7114
        %7274 = vmatprep.subr.bf16.mxu0 0
        %7275 = vmatpush1.bf16.msra.mxu0 %v7111
        %7276 = vmatprep.subr.bf16.mxu0 0
        %7277 = vmatpush1.bf16.msra.mxu0 %v7108
        %7278 = vmatprep.subr.bf16.mxu0 0
        %7279 = vmatpush1.bf16.msra.mxu0 %v7105
        %7280 = vmatprep.subr.bf16.mxu0 0
        %7281 = vmatpush2.bf16.msra.mxu0 0
        %7282 = vmatprep.subr.bf16.mxu0 0
        %7283 = vmatpush2.bf16.msra.mxu0 0
        %7284 = vmatprep.subr.bf16.mxu0 0
        %7285 = vmatpush2.bf16.msra.mxu0 0
        %7286 = vmatprep.subr.bf16.mxu0 0
        %7287 = vmatpush2.bf16.msra.mxu0 0
        %7288 = vmatprep.subr.bf16.mxu0 0
        %7289 = vmatpush2.bf16.msra.mxu0 0
        %7290 = vmatprep.subr.bf16.mxu0 0
        %7291 = vmatpush2.bf16.msra.mxu0 0
        %7292 = vmatprep.subr.bf16.mxu0 0
        %7293 = vmatpush2.bf16.msra.mxu0 0
        %7294 = vmatprep.subr.bf16.mxu0 0
        %7295 = vmatpush2.bf16.msra.mxu0 0
        %7296 = vmatprep.mubr.bf16.mxu0 0
        %7297 = vmatmul.mubr.bf16.gmra.mxu0 %v6999
        %v7298 = vpop.f32.mrf.mxu0
        %v7299 = vadd.f32 %v7019, %v7298
        %v7300 = vpop.f32.mrf.mxu0
        %v7301 = vpop.f32.mrf.mxu0
        %v7302 = vadd.f32 %v7019, %v7301
        %v7303 = vpop.f32.mrf.mxu0
        %7304 = vmatprep.mubr.bf16.mxu0 0
        %7305 = vmatmul.mubr.bf16.gmra.mxu0 %v7000
        %v7306 = vpop.f32.mrf.mxu0
        %v7307 = vadd.f32 %v7019, %v7306
        %v7308 = vpop.f32.mrf.mxu0
        %v7309 = vpop.f32.mrf.mxu0
        %v7310 = vadd.f32 %v7019, %v7309
        %v7311 = vpop.f32.mrf.mxu0
        %7312 = vmatprep.mubr.bf16.mxu0 0
        %7313 = vmatmul.mubr.bf16.gmra.mxu0 %v7001
        %v7314 = vpop.f32.mrf.mxu0
        %v7315 = vadd.f32 %v7019, %v7314
        %v7316 = vpop.f32.mrf.mxu0
        %v7317 = vpop.f32.mrf.mxu0
        %v7318 = vadd.f32 %v7019, %v7317
        %v7319 = vpop.f32.mrf.mxu0
        %7320 = vmatprep.mubr.bf16.mxu0 0
        %7321 = vmatmul.mubr.bf16.gmra.mxu0 %v7002
        %v7322 = vpop.f32.mrf.mxu0
        %v7323 = vadd.f32 %v7019, %v7322
        %v7324 = vpop.f32.mrf.mxu0
        %v7325 = vpop.f32.mrf.mxu0
        %v7326 = vadd.f32 %v7019, %v7325
        %v7327 = vpop.f32.mrf.mxu0
        %7328 = vmatprep.mubr.bf16.mxu0 0
        %7329 = vmatmul.mubr.bf16.gmra.mxu0 %v7003
        %v7330 = vpop.f32.mrf.mxu0
        %v7331 = vadd.f32 %v7019, %v7330
        %v7332 = vpop.f32.mrf.mxu0
        %v7333 = vpop.f32.mrf.mxu0
        %v7334 = vadd.f32 %v7019, %v7333
        %v7335 = vpop.f32.mrf.mxu0
        %7336 = vmatprep.mubr.bf16.mxu0 0
        %7337 = vmatmul.mubr.bf16.gmra.mxu0 %v7004
        %v7338 = vpop.f32.mrf.mxu0
        %v7339 = vadd.f32 %v7019, %v7338
        %v7340 = vpop.f32.mrf.mxu0
        %v7341 = vpop.f32.mrf.mxu0
        %v7342 = vadd.f32 %v7019, %v7341
        %v7343 = vpop.f32.mrf.mxu0
        %7344 = vmatprep.mubr.bf16.mxu0 0
        %7345 = vmatmul.mubr.bf16.gmra.mxu0 %v7005
        %v7346 = vpop.f32.mrf.mxu0
        %v7347 = vadd.f32 %v7019, %v7346
        %v7348 = vpop.f32.mrf.mxu0
        %v7349 = vpop.f32.mrf.mxu0
        %v7350 = vadd.f32 %v7019, %v7349
        %v7351 = vpop.f32.mrf.mxu0
        %7352 = vmatprep.mubr.bf16.mxu0 0
        %7353 = vmatmul.mubr.bf16.gmra.mxu0 %v7006
        %v7354 = vpop.f32.mrf.mxu0
        %v7355 = vadd.f32 %v7019, %v7354
        %v7356 = vpop.f32.mrf.mxu0
        %v7357 = vpop.f32.mrf.mxu0
        %v7358 = vadd.f32 %v7019, %v7357
        %v7359 = vpop.f32.mrf.mxu0
        %7360 = vdwg.mxu0
        %v7361 = vmul.f32 %v7188, %v7186
        %v7362 = vmul.f32 %v7192, %v7190
        %v7363 = vmul.f32 %v7198, %v7196
        %v7364 = vmul.f32 %v7202, %v7200
        %v7365 = vmul.f32 %v7208, %v7206
        %v7366 = vmul.f32 %v7212, %v7210
        %v7367 = vmul.f32 %v7218, %v7216
        %v7368 = vmul.f32 %v7222, %v7220
        %v7369 = vmul.f32 %v7228, %v7226
        %v7370 = vmul.f32 %v7232, %v7230
        %v7371 = vmul.f32 %v7238, %v7236
        %v7372 = vmul.f32 %v7242, %v7240
        %v7373 = vmul.f32 %v7248, %v7246
        %v7374 = vmul.f32 %v7252, %v7250
        %v7375 = vmul.f32 %v7258, %v7256
        %v7376 = vmul.f32 %v7262, %v7260
        %vm7377 = vcmp.lt.s32.totalorder %v3099, 32
        %v7378 = vsel %vm7377, %v7361, -1e+30
        %v7379 = vsel %vm7377, %v7362, -1e+30
        %v7380 = vsel %vm7377, %v7363, -1e+30
        %v7381 = vsel %vm7377, %v7364, -1e+30
        %v7382 = vsel %vm7377, %v7365, -1e+30
        %v7383 = vsel %vm7377, %v7366, -1e+30
        %v7384 = vsel %vm7377, %v7367, -1e+30
        %v7385 = vsel %vm7377, %v7368, -1e+30
        %v7386 = vsel %vm7377, %v7369, -1e+30
        %v7387 = vsel %vm7377, %v7370, -1e+30
        %v7388 = vsel %vm7377, %v7371, -1e+30
        %v7389 = vsel %vm7377, %v7372, -1e+30
        %v7390 = vsel %vm7377, %v7373, -1e+30
        %v7391 = vsel %vm7377, %v7374, -1e+30
        %v7392 = vsel %vm7377, %v7375, -1e+30
        %v7393 = vsel %vm7377, %v7376, -1e+30
        %7394 = vmax.xlane.f32.xlu0 %v7378
        %v7395 = vpop.xlane.xlu0 %7394
        %7396 = vmax.xlane.f32.xlu0 %v7379
        %v7397 = vpop.xlane.xlu0 %7396
        %7398 = vmax.xlane.f32.xlu0 %v7380
        %v7399 = vpop.xlane.xlu0 %7398
        %7400 = vmax.xlane.f32.xlu0 %v7381
        %v7401 = vpop.xlane.xlu0 %7400
        %7402 = vmax.xlane.f32.xlu0 %v7382
        %v7403 = vpop.xlane.xlu0 %7402
        %7404 = vmax.xlane.f32.xlu0 %v7383
        %v7405 = vpop.xlane.xlu0 %7404
        %7406 = vmax.xlane.f32.xlu0 %v7384
        %v7407 = vpop.xlane.xlu0 %7406
        %7408 = vmax.xlane.f32.xlu0 %v7385
        %v7409 = vpop.xlane.xlu0 %7408
        %7410 = vmax.xlane.f32.xlu0 %v7386
        %v7411 = vpop.xlane.xlu0 %7410
        %7412 = vmax.xlane.f32.xlu0 %v7387
        %v7413 = vpop.xlane.xlu0 %7412
        %7414 = vmax.xlane.f32.xlu0 %v7388
        %v7415 = vpop.xlane.xlu0 %7414
        %7416 = vmax.xlane.f32.xlu0 %v7389
        %v7417 = vpop.xlane.xlu0 %7416
        %7418 = vmax.xlane.f32.xlu0 %v7390
        %v7419 = vpop.xlane.xlu0 %7418
        %7420 = vmax.xlane.f32.xlu0 %v7391
        %v7421 = vpop.xlane.xlu0 %7420
        %7422 = vmax.xlane.f32.xlu0 %v7392
        %v7423 = vpop.xlane.xlu0 %7422
        %7424 = vmax.xlane.f32.xlu0 %v7393
        %v7425 = vpop.xlane.xlu0 %7424
        %v7426 = vsub.f32 %v7378, %v7395
        %v7427 = vsub.f32 %v7379, %v7397
        %v7428 = vsub.f32 %v7380, %v7399
        %v7429 = vsub.f32 %v7381, %v7401
        %v7430 = vsub.f32 %v7382, %v7403
        %v7431 = vsub.f32 %v7383, %v7405
        %v7432 = vsub.f32 %v7384, %v7407
        %v7433 = vsub.f32 %v7385, %v7409
        %v7434 = vsub.f32 %v7386, %v7411
        %v7435 = vsub.f32 %v7387, %v7413
        %v7436 = vsub.f32 %v7388, %v7415
        %v7437 = vsub.f32 %v7389, %v7417
        %v7438 = vsub.f32 %v7390, %v7419
        %v7439 = vsub.f32 %v7391, %v7421
        %v7440 = vsub.f32 %v7392, %v7423
        %v7441 = vsub.f32 %v7393, %v7425
        %v7442 = vmul.f32 %v7426, 1.442695
        %v7443 = vpow.pop %v7442
        %v7444 = vmul.f32 %v7427, 1.442695
        %v7445 = vpow.pop %v7444
        %v7446 = vmul.f32 %v7428, 1.442695
        %v7447 = vpow.pop %v7446
        %v7448 = vmul.f32 %v7429, 1.442695
        %v7449 = vpow.pop %v7448
        %v7450 = vmul.f32 %v7430, 1.442695
        %v7451 = vpow.pop %v7450
        %v7452 = vmul.f32 %v7431, 1.442695
        %v7453 = vpow.pop %v7452
        %v7454 = vmul.f32 %v7432, 1.442695
        %v7455 = vpow.pop %v7454
        %v7456 = vmul.f32 %v7433, 1.442695
        %v7457 = vpow.pop %v7456
        %v7458 = vmul.f32 %v7434, 1.442695
        %v7459 = vpow.pop %v7458
        %v7460 = vmul.f32 %v7435, 1.442695
        %v7461 = vpow.pop %v7460
        %v7462 = vmul.f32 %v7436, 1.442695
        %v7463 = vpow.pop %v7462
        %v7464 = vmul.f32 %v7437, 1.442695
        %v7465 = vpow.pop %v7464
        %v7466 = vmul.f32 %v7438, 1.442695
        %v7467 = vpow.pop %v7466
        %v7468 = vmul.f32 %v7439, 1.442695
        %v7469 = vpow.pop %v7468
        %v7470 = vmul.f32 %v7440, 1.442695
        %v7471 = vpow.pop %v7470
        %v7472 = vmul.f32 %v7441, 1.442695
        %v7473 = vpow.pop %v7472
        %7474 = vadd.xlane.f32.xlu0 %v7443
        %v7475 = vpop.xlane.xlu0 %7474
        %7476 = vadd.xlane.f32.xlu0 %v7445
        %v7477 = vpop.xlane.xlu0 %7476
        %7478 = vadd.xlane.f32.xlu0 %v7447
        %v7479 = vpop.xlane.xlu0 %7478
        %7480 = vadd.xlane.f32.xlu0 %v7449
        %v7481 = vpop.xlane.xlu0 %7480
        %7482 = vadd.xlane.f32.xlu0 %v7451
        %v7483 = vpop.xlane.xlu0 %7482
        %7484 = vadd.xlane.f32.xlu0 %v7453
        %v7485 = vpop.xlane.xlu0 %7484
        %7486 = vadd.xlane.f32.xlu0 %v7455
        %v7487 = vpop.xlane.xlu0 %7486
        %7488 = vadd.xlane.f32.xlu0 %v7457
        %v7489 = vpop.xlane.xlu0 %7488
        %7490 = vadd.xlane.f32.xlu0 %v7459
        %v7491 = vpop.xlane.xlu0 %7490
        %7492 = vadd.xlane.f32.xlu0 %v7461
        %v7493 = vpop.xlane.xlu0 %7492
        %7494 = vadd.xlane.f32.xlu0 %v7463
        %v7495 = vpop.xlane.xlu0 %7494
        %7496 = vadd.xlane.f32.xlu0 %v7465
        %v7497 = vpop.xlane.xlu0 %7496
        %7498 = vadd.xlane.f32.xlu0 %v7467
        %v7499 = vpop.xlane.xlu0 %7498
        %7500 = vadd.xlane.f32.xlu0 %v7469
        %v7501 = vpop.xlane.xlu0 %7500
        %7502 = vadd.xlane.f32.xlu0 %v7471
        %v7503 = vpop.xlane.xlu0 %7502
        %7504 = vadd.xlane.f32.xlu0 %v7473
        %v7505 = vpop.xlane.xlu0 %7504
        %v7506 = vrcp.pop %v7475
        %v7507 = vrcp.pop %v7477
        %v7508 = vrcp.pop %v7479
        %v7509 = vrcp.pop %v7481
        %v7510 = vrcp.pop %v7483
        %v7511 = vrcp.pop %v7485
        %v7512 = vrcp.pop %v7487
        %v7513 = vrcp.pop %v7489
        %v7514 = vrcp.pop %v7491
        %v7515 = vrcp.pop %v7493
        %v7516 = vrcp.pop %v7495
        %v7517 = vrcp.pop %v7497
        %v7518 = vrcp.pop %v7499
        %v7519 = vrcp.pop %v7501
        %v7520 = vrcp.pop %v7503
        %v7521 = vrcp.pop %v7505
        %v7522 = vmul.f32 %v7443, %v7506
        %v7523 = vmul.f32 %v7445, %v7507
        %v7524 = vmul.f32 %v7447, %v7508
        %v7525 = vmul.f32 %v7449, %v7509
        %v7526 = vmul.f32 %v7451, %v7510
        %v7527 = vmul.f32 %v7453, %v7511
        %v7528 = vmul.f32 %v7455, %v7512
        %v7529 = vmul.f32 %v7457, %v7513
        %v7530 = vmul.f32 %v7459, %v7514
        %v7531 = vmul.f32 %v7461, %v7515
        %v7532 = vmul.f32 %v7463, %v7516
        %v7533 = vmul.f32 %v7465, %v7517
        %v7534 = vmul.f32 %v7467, %v7518
        %v7535 = vmul.f32 %v7469, %v7519
        %v7536 = vmul.f32 %v7471, %v7520
        %v7537 = vmul.f32 %v7473, %v7521
        %v7538 = vmul.f32 %v7299, %v7522
        %v7539 = vmul.f32 %v7302, %v7523
        %v7540 = vmul.f32 %v7307, %v7524
        %v7541 = vmul.f32 %v7310, %v7525
        %v7542 = vmul.f32 %v7315, %v7526
        %v7543 = vmul.f32 %v7318, %v7527
        %v7544 = vmul.f32 %v7323, %v7528
        %v7545 = vmul.f32 %v7326, %v7529
        %v7546 = vmul.f32 %v7331, %v7530
        %v7547 = vmul.f32 %v7334, %v7531
        %v7548 = vmul.f32 %v7339, %v7532
        %v7549 = vmul.f32 %v7342, %v7533
        %v7550 = vmul.f32 %v7347, %v7534
        %v7551 = vmul.f32 %v7350, %v7535
        %v7552 = vmul.f32 %v7355, %v7536
        %v7553 = vmul.f32 %v7358, %v7537
        %v7554 = vadd.f32 %v6983, %v7538
        %v7555 = vadd.f32 %v6984, %v7539
        %v7556 = vadd.f32 %v6985, %v7540
        %v7557 = vadd.f32 %v6986, %v7541
        %v7558 = vadd.f32 %v6987, %v7542
        %v7559 = vadd.f32 %v6988, %v7543
        %v7560 = vadd.f32 %v6989, %v7544
        %v7561 = vadd.f32 %v6990, %v7545
        %v7562 = vadd.f32 %v6991, %v7546
        %v7563 = vadd.f32 %v6992, %v7547
        %v7564 = vadd.f32 %v6993, %v7548
        %v7565 = vadd.f32 %v6994, %v7549
        %v7566 = vadd.f32 %v6995, %v7550
        %v7567 = vadd.f32 %v6996, %v7551
        %v7568 = vadd.f32 %v6997, %v7552
        %v7569 = vadd.f32 %v6998, %v7553
        %7570 = vadd.xlane.f32.xlu0 %v7554
        %v7571 = vpop.xlane.xlu0 %7570
        %7572 = vadd.xlane.f32.xlu0 %v7555
        %v7573 = vpop.xlane.xlu0 %7572
        %7574 = vadd.xlane.f32.xlu0 %v7556
        %v7575 = vpop.xlane.xlu0 %7574
        %7576 = vadd.xlane.f32.xlu0 %v7557
        %v7577 = vpop.xlane.xlu0 %7576
        %7578 = vadd.xlane.f32.xlu0 %v7558
        %v7579 = vpop.xlane.xlu0 %7578
        %7580 = vadd.xlane.f32.xlu0 %v7559
        %v7581 = vpop.xlane.xlu0 %7580
        %7582 = vadd.xlane.f32.xlu0 %v7560
        %v7583 = vpop.xlane.xlu0 %7582
        %7584 = vadd.xlane.f32.xlu0 %v7561
        %v7585 = vpop.xlane.xlu0 %7584
        %7586 = vadd.xlane.f32.xlu0 %v7562
        %v7587 = vpop.xlane.xlu0 %7586
        %7588 = vadd.xlane.f32.xlu0 %v7563
        %v7589 = vpop.xlane.xlu0 %7588
        %7590 = vadd.xlane.f32.xlu0 %v7564
        %v7591 = vpop.xlane.xlu0 %7590
        %7592 = vadd.xlane.f32.xlu0 %v7565
        %v7593 = vpop.xlane.xlu0 %7592
        %7594 = vadd.xlane.f32.xlu0 %v7566
        %v7595 = vpop.xlane.xlu0 %7594
        %7596 = vadd.xlane.f32.xlu0 %v7567
        %v7597 = vpop.xlane.xlu0 %7596
        %7598 = vadd.xlane.f32.xlu0 %v7568
        %v7599 = vpop.xlane.xlu0 %7598
        %7600 = vadd.xlane.f32.xlu0 %v7569
        %v7601 = vpop.xlane.xlu0 %7600
        %v7602 = vmul.f32 %v7571, 0.03125
        %v7603 = vmul.f32 %v7573, 0.03125
        %v7604 = vmul.f32 %v7575, 0.03125
        %v7605 = vmul.f32 %v7577, 0.03125
        %v7606 = vmul.f32 %v7579, 0.03125
        %v7607 = vmul.f32 %v7581, 0.03125
        %v7608 = vmul.f32 %v7583, 0.03125
        %v7609 = vmul.f32 %v7585, 0.03125
        %v7610 = vmul.f32 %v7587, 0.03125
        %v7611 = vmul.f32 %v7589, 0.03125
        %v7612 = vmul.f32 %v7591, 0.03125
        %v7613 = vmul.f32 %v7593, 0.03125
        %v7614 = vmul.f32 %v7595, 0.03125
        %v7615 = vmul.f32 %v7597, 0.03125
        %v7616 = vmul.f32 %v7599, 0.03125
        %v7617 = vmul.f32 %v7601, 0.03125
        %v7618 = vsub.f32 %v7554, %v7602
        %v7619 = vsub.f32 %v7555, %v7603
        %v7620 = vsub.f32 %v7556, %v7604
        %v7621 = vsub.f32 %v7557, %v7605
        %v7622 = vsub.f32 %v7558, %v7606
        %v7623 = vsub.f32 %v7559, %v7607
        %v7624 = vsub.f32 %v7560, %v7608
        %v7625 = vsub.f32 %v7561, %v7609
        %v7626 = vsub.f32 %v7562, %v7610
        %v7627 = vsub.f32 %v7563, %v7611
        %v7628 = vsub.f32 %v7564, %v7612
        %v7629 = vsub.f32 %v7565, %v7613
        %v7630 = vsub.f32 %v7566, %v7614
        %v7631 = vsub.f32 %v7567, %v7615
        %v7632 = vsub.f32 %v7568, %v7616
        %v7633 = vsub.f32 %v7569, %v7617
        %v7634 = vmul.f32 %v7618, %v7618
        %v7635 = vmul.f32 %v7619, %v7619
        %v7636 = vmul.f32 %v7620, %v7620
        %v7637 = vmul.f32 %v7621, %v7621
        %v7638 = vmul.f32 %v7622, %v7622
        %v7639 = vmul.f32 %v7623, %v7623
        %v7640 = vmul.f32 %v7624, %v7624
        %v7641 = vmul.f32 %v7625, %v7625
        %v7642 = vmul.f32 %v7626, %v7626
        %v7643 = vmul.f32 %v7627, %v7627
        %v7644 = vmul.f32 %v7628, %v7628
        %v7645 = vmul.f32 %v7629, %v7629
        %v7646 = vmul.f32 %v7630, %v7630
        %v7647 = vmul.f32 %v7631, %v7631
        %v7648 = vmul.f32 %v7632, %v7632
        %v7649 = vmul.f32 %v7633, %v7633
        %7650 = vadd.xlane.f32.xlu0 %v7634
        %v7651 = vpop.xlane.xlu0 %7650
        %7652 = vadd.xlane.f32.xlu0 %v7635
        %v7653 = vpop.xlane.xlu0 %7652
        %7654 = vadd.xlane.f32.xlu0 %v7636
        %v7655 = vpop.xlane.xlu0 %7654
        %7656 = vadd.xlane.f32.xlu0 %v7637
        %v7657 = vpop.xlane.xlu0 %7656
        %7658 = vadd.xlane.f32.xlu0 %v7638
        %v7659 = vpop.xlane.xlu0 %7658
        %7660 = vadd.xlane.f32.xlu0 %v7639
        %v7661 = vpop.xlane.xlu0 %7660
        %7662 = vadd.xlane.f32.xlu0 %v7640
        %v7663 = vpop.xlane.xlu0 %7662
        %7664 = vadd.xlane.f32.xlu0 %v7641
        %v7665 = vpop.xlane.xlu0 %7664
        %7666 = vadd.xlane.f32.xlu0 %v7642
        %v7667 = vpop.xlane.xlu0 %7666
        %7668 = vadd.xlane.f32.xlu0 %v7643
        %v7669 = vpop.xlane.xlu0 %7668
        %7670 = vadd.xlane.f32.xlu0 %v7644
        %v7671 = vpop.xlane.xlu0 %7670
        %7672 = vadd.xlane.f32.xlu0 %v7645
        %v7673 = vpop.xlane.xlu0 %7672
        %7674 = vadd.xlane.f32.xlu0 %v7646
        %v7675 = vpop.xlane.xlu0 %7674
        %7676 = vadd.xlane.f32.xlu0 %v7647
        %v7677 = vpop.xlane.xlu0 %7676
        %7678 = vadd.xlane.f32.xlu0 %v7648
        %v7679 = vpop.xlane.xlu0 %7678
        %7680 = vadd.xlane.f32.xlu0 %v7649
        %v7681 = vpop.xlane.xlu0 %7680
        %v7682 = vmul.f32 %v7602, 96.0
        %v7683 = vmul.f32 %v7603, 96.0
        %v7684 = vmul.f32 %v7604, 96.0
        %v7685 = vmul.f32 %v7605, 96.0
        %v7686 = vmul.f32 %v7606, 96.0
        %v7687 = vmul.f32 %v7607, 96.0
        %v7688 = vmul.f32 %v7608, 96.0
        %v7689 = vmul.f32 %v7609, 96.0
        %v7690 = vmul.f32 %v7610, 96.0
        %v7691 = vmul.f32 %v7611, 96.0
        %v7692 = vmul.f32 %v7612, 96.0
        %v7693 = vmul.f32 %v7613, 96.0
        %v7694 = vmul.f32 %v7614, 96.0
        %v7695 = vmul.f32 %v7615, 96.0
        %v7696 = vmul.f32 %v7616, 96.0
        %v7697 = vmul.f32 %v7617, 96.0
        %v7698 = vmul.f32 %v7682, %v7602
        %v7699 = vmul.f32 %v7683, %v7603
        %v7700 = vmul.f32 %v7684, %v7604
        %v7701 = vmul.f32 %v7685, %v7605
        %v7702 = vmul.f32 %v7686, %v7606
        %v7703 = vmul.f32 %v7687, %v7607
        %v7704 = vmul.f32 %v7688, %v7608
        %v7705 = vmul.f32 %v7689, %v7609
        %v7706 = vmul.f32 %v7690, %v7610
        %v7707 = vmul.f32 %v7691, %v7611
        %v7708 = vmul.f32 %v7692, %v7612
        %v7709 = vmul.f32 %v7693, %v7613
        %v7710 = vmul.f32 %v7694, %v7614
        %v7711 = vmul.f32 %v7695, %v7615
        %v7712 = vmul.f32 %v7696, %v7616
        %v7713 = vmul.f32 %v7697, %v7617
        %v7714 = vsub.f32 %v7651, %v7698
        %v7715 = vsub.f32 %v7653, %v7699
        %v7716 = vsub.f32 %v7655, %v7700
        %v7717 = vsub.f32 %v7657, %v7701
        %v7718 = vsub.f32 %v7659, %v7702
        %v7719 = vsub.f32 %v7661, %v7703
        %v7720 = vsub.f32 %v7663, %v7704
        %v7721 = vsub.f32 %v7665, %v7705
        %v7722 = vsub.f32 %v7667, %v7706
        %v7723 = vsub.f32 %v7669, %v7707
        %v7724 = vsub.f32 %v7671, %v7708
        %v7725 = vsub.f32 %v7673, %v7709
        %v7726 = vsub.f32 %v7675, %v7710
        %v7727 = vsub.f32 %v7677, %v7711
        %v7728 = vsub.f32 %v7679, %v7712
        %v7729 = vsub.f32 %v7681, %v7713
        %v7730 = vmul.f32 %v7714, 0.03125
        %v7731 = vmul.f32 %v7715, 0.03125
        %v7732 = vmul.f32 %v7716, 0.03125
        %v7733 = vmul.f32 %v7717, 0.03125
        %v7734 = vmul.f32 %v7718, 0.03125
        %v7735 = vmul.f32 %v7719, 0.03125
        %v7736 = vmul.f32 %v7720, 0.03125
        %v7737 = vmul.f32 %v7721, 0.03125
        %v7738 = vmul.f32 %v7722, 0.03125
        %v7739 = vmul.f32 %v7723, 0.03125
        %v7740 = vmul.f32 %v7724, 0.03125
        %v7741 = vmul.f32 %v7725, 0.03125
        %v7742 = vmul.f32 %v7726, 0.03125
        %v7743 = vmul.f32 %v7727, 0.03125
        %v7744 = vmul.f32 %v7728, 0.03125
        %v7745 = vmul.f32 %v7729, 0.03125
        %v7746 = vadd.f32 %v7730, 1e-05
        %v7747 = vadd.f32 %v7731, 1e-05
        %v7748 = vadd.f32 %v7732, 1e-05
        %v7749 = vadd.f32 %v7733, 1e-05
        %v7750 = vadd.f32 %v7734, 1e-05
        %v7751 = vadd.f32 %v7735, 1e-05
        %v7752 = vadd.f32 %v7736, 1e-05
        %v7753 = vadd.f32 %v7737, 1e-05
        %v7754 = vadd.f32 %v7738, 1e-05
        %v7755 = vadd.f32 %v7739, 1e-05
        %v7756 = vadd.f32 %v7740, 1e-05
        %v7757 = vadd.f32 %v7741, 1e-05
        %v7758 = vadd.f32 %v7742, 1e-05
        %v7759 = vadd.f32 %v7743, 1e-05
        %v7760 = vadd.f32 %v7744, 1e-05
        %v7761 = vadd.f32 %v7745, 1e-05
        %v7762 = vrsqrt.pop %v7746
        %v7763 = vrsqrt.pop %v7747
        %v7764 = vrsqrt.pop %v7748
        %v7765 = vrsqrt.pop %v7749
        %v7766 = vrsqrt.pop %v7750
        %v7767 = vrsqrt.pop %v7751
        %v7768 = vrsqrt.pop %v7752
        %v7769 = vrsqrt.pop %v7753
        %v7770 = vrsqrt.pop %v7754
        %v7771 = vrsqrt.pop %v7755
        %v7772 = vrsqrt.pop %v7756
        %v7773 = vrsqrt.pop %v7757
        %v7774 = vrsqrt.pop %v7758
        %v7775 = vrsqrt.pop %v7759
        %v7776 = vrsqrt.pop %v7760
        %v7777 = vrsqrt.pop %v7761
        %v7778 = vmul.f32 %v7618, %v7762
        %v7779 = vmul.f32 %v7619, %v7763
        %v7780 = vmul.f32 %v7620, %v7764
        %v7781 = vmul.f32 %v7621, %v7765
        %v7782 = vmul.f32 %v7622, %v7766
        %v7783 = vmul.f32 %v7623, %v7767
        %v7784 = vmul.f32 %v7624, %v7768
        %v7785 = vmul.f32 %v7625, %v7769
        %v7786 = vmul.f32 %v7626, %v7770
        %v7787 = vmul.f32 %v7627, %v7771
        %v7788 = vmul.f32 %v7628, %v7772
        %v7789 = vmul.f32 %v7629, %v7773
        %v7790 = vmul.f32 %v7630, %v7774
        %v7791 = vmul.f32 %v7631, %v7775
        %v7792 = vmul.f32 %v7632, %v7776
        %v7793 = vmul.f32 %v7633, %v7777
        %v7794 = vlaneseq
        %v7795 = vshrl.u32 %v7794, 7
        %v7796 = vsub.s32 1, %v7795
        %v7797 = vrot.slane %v6793, %v7796
        %v7798 = vmul.f32 %v7778, %v7797
        %v7799 = vmul.f32 %v7779, %v7797
        %v7800 = vmul.f32 %v7780, %v7797
        %v7801 = vmul.f32 %v7781, %v7797
        %v7802 = vmul.f32 %v7782, %v7797
        %v7803 = vmul.f32 %v7783, %v7797
        %v7804 = vmul.f32 %v7784, %v7797
        %v7805 = vmul.f32 %v7785, %v7797
        %v7806 = vmul.f32 %v7786, %v7797
        %v7807 = vmul.f32 %v7787, %v7797
        %v7808 = vmul.f32 %v7788, %v7797
        %v7809 = vmul.f32 %v7789, %v7797
        %v7810 = vmul.f32 %v7790, %v7797
        %v7811 = vmul.f32 %v7791, %v7797
        %v7812 = vmul.f32 %v7792, %v7797
        %v7813 = vmul.f32 %v7793, %v7797
        %v7814 = vlaneseq
        %v7815 = vshrl.u32 %v7814, 7
        %v7816 = vsub.s32 2, %v7815
        %v7817 = vrot.slane %v6793, %v7816
        %v7818 = vadd.f32 %v7798, %v7817
        %v7819 = vadd.f32 %v7799, %v7817
        %v7820 = vadd.f32 %v7800, %v7817
        %v7821 = vadd.f32 %v7801, %v7817
        %v7822 = vadd.f32 %v7802, %v7817
        %v7823 = vadd.f32 %v7803, %v7817
        %v7824 = vadd.f32 %v7804, %v7817
        %v7825 = vadd.f32 %v7805, %v7817
        %v7826 = vadd.f32 %v7806, %v7817
        %v7827 = vadd.f32 %v7807, %v7817
        %v7828 = vadd.f32 %v7808, %v7817
        %v7829 = vadd.f32 %v7809, %v7817
        %v7830 = vadd.f32 %v7810, %v7817
        %v7831 = vadd.f32 %v7811, %v7817
        %v7832 = vadd.f32 %v7812, %v7817
        %v7833 = vadd.f32 %v7813, %v7817
        %v7834 = vadd.f32 %v7818, %v2449
        %v7835 = vadd.f32 %v7819, %v2450
        %v7836 = vadd.f32 %v7820, %v2451
        %v7837 = vadd.f32 %v7821, %v2452
        %v7838 = vadd.f32 %v7822, %v2453
        %v7839 = vadd.f32 %v7823, %v2454
        %v7840 = vadd.f32 %v7824, %v2455
        %v7841 = vadd.f32 %v7825, %v2456
        %v7842 = vadd.f32 %v7826, %v2457
        %v7843 = vadd.f32 %v7827, %v2458
        %v7844 = vadd.f32 %v7828, %v2459
        %v7845 = vadd.f32 %v7829, %v2460
        %v7846 = vadd.f32 %v7830, %v2461
        %v7847 = vadd.f32 %v7831, %v2462
        %v7848 = vadd.f32 %v7832, %v2463
        %v7849 = vadd.f32 %v7833, %v2464
        %7850 = vst [vmem:[%s415] sm:$0xff] %v7834
        %7851 = vst [vmem:[%s415 + $0x8] sm:$0xff] %v7835
        %7852 = vst [vmem:[%s415 + $0x10] sm:$0xff] %v7836
        %7853 = vst [vmem:[%s415 + $0x18] sm:$0xff] %v7837
        %7854 = vst [vmem:[%s415 + $0x20] sm:$0xff] %v7838
        %7855 = vst [vmem:[%s415 + $0x28] sm:$0xff] %v7839
        %7856 = vst [vmem:[%s415 + $0x30] sm:$0xff] %v7840
        %7857 = vst [vmem:[%s415 + $0x38] sm:$0xff] %v7841
        %7858 = vst [vmem:[%s415 + $0x40] sm:$0xff] %v7842
        %7859 = vst [vmem:[%s415 + $0x48] sm:$0xff] %v7843
        %7860 = vst [vmem:[%s415 + $0x50] sm:$0xff] %v7844
        %7861 = vst [vmem:[%s415 + $0x58] sm:$0xff] %v7845
        %7862 = vst [vmem:[%s415 + $0x60] sm:$0xff] %v7846
        %7863 = vst [vmem:[%s415 + $0x68] sm:$0xff] %v7847
        %7864 = vst [vmem:[%s415 + $0x70] sm:$0xff] %v7848
        %7865 = vst [vmem:[%s415 + $0x78] sm:$0xff] %v7849
        %s7866 = sand.u32 %s233, 1
        %s7867 = scalar_lea.sflag [#allocation4], %s7866
        %s7868 = sand.u32 %s233, 1
        %s7869 = smul.addr %s7868, 128
        %s7870 = scalar_lea.vmem [#allocation11], %s7869
        // Predicated region
        $region77: #{tpu_custom_call.1} parent=55 // pred_check
          %p7871 = pneg %p243
        $region78: #{tpu_custom_call.1} parent=55 // pred_check_branch
          %7873 = sbr.rel (%p7871) target = $region80
        $region79: #{tpu_custom_call.1} parent=55 // pred_region
          %s7874 = smul.u32 16, %s26
          %s7876 = ssub.s32 2048, 2048
          %7877 = vsyncadd %s7867, %s7876
          %s7878 = smul.addr %s7874, 128
          %s7879 = scalar_lea.hbm %s9, %s7878
          %s7880 = sshll.u32 %s7870, 4
          %s7881 = int_to_ptr.vmem [resolvable:$true] %s7880
          %7886 = dma.vmem_to_hbm [thread:$0]  %s7881, 2048, %s7879, %s7867, 128, 128, 8
        $region80: #{tpu_custom_call.1} parent=55 // pred_fallthru
          _
      $region56: #{tpu_custom_call.1} parent=5 // pred_fallthru
        _
      %p7887 = scmp.le.s32.totalorder 2, %s21
      // Predicated region
      $region81: #{tpu_custom_call.1} parent=5 // pred_check
        %p7888 = pneg %p7887
      $region82: #{tpu_custom_call.1} parent=5 // pred_check_branch
        %7890 = sbr.rel (%p7888) target = $region84
      $region83: #{tpu_custom_call.1} parent=5 // pred_region
        %s7891 = ssub.s32 %s21, 2
        // Predicated region
        $region85: #{tpu_custom_call.1} parent=83 // pred_check
          %p7892 = pneg %p249
        $region86: #{tpu_custom_call.1} parent=83 // pred_check_branch
          %7894 = sbr.rel (%p7892) target = $region88
        $region87: #{tpu_custom_call.1} parent=83 // pred_region
          %s7895 = sand.u32 %s234, 1
          %s7896 = scalar_lea.sflag [#allocation4], %s7895
          %s7897 = sand.u32 %s234, 1
          %s7898 = smul.addr %s7897, 128
          %s7899 = scalar_lea.vmem [#allocation11], %s7898
          %7900 = dma.done %s7896, 2048
        $region88: #{tpu_custom_call.1} parent=83 // pred_fallthru
          _
      $region84: #{tpu_custom_call.1} parent=5 // pred_fallthru
        _
    $region6: #{tpu_custom_call.1} parent=1 // loop_footer
      %s25 = sadd.s32 1, %s21
    $region7: #{tpu_custom_call.1} parent=1 // loop_footer_branch
      %20 = sbr.rel target = $region3
    $region8: #{tpu_custom_call.1} parent=1 // loop_exit
      _
    %7901 = vsyncpa [#allocation3], 1
    %s7902 = scalar_lea.sflag [#allocation3], 1
    %7903 = vsyncpa %s7902, 1
    %7904 = vsyncpa [#allocation6], 1
    %7905 = vsyncpa [#allocation9], 1
    %7906 = vsyncpa [#allocation4], 1
    %s7907 = scalar_lea.sflag [#allocation4], 1
    %7908 = vsyncpa %s7907, 1

</llo_original>
